<compile_context>
chip_gen: v6e
topology: v6e:2x2x1
jax: 0.10.0
libtpu: 0.0.40
codegen_flags: <defaults>
</compile_context>

<pallas_src>
import functools

import jax
import jax.numpy as jnp
from jax.experimental import pallas as pl
from jax.experimental.pallas import tpu as pltpu


def _round_up(x, m):
    return (x + m - 1) // m * m


# ----------------------------- fused ResBlock kernel -----------------------------

def _resblock_kernel(x_ref, w1_ref, b1_ref, w2_ref, b2_ref, w3_ref, b3_ref,
                     o_ref, pad_ref, *, H, W, C):
    # x_ref   : (1, H, W, C)      f32   channel-padded NHWC input tile (no halo)
    # w1/w2   : (9*C, C)          bf16  im2col-packed 3x3 weights (tap-major K)
    # w3      : (C, C)            bf16  1x1 weights
    # b1/2/3  : (1, C)            f32
    # o_ref   : (1, H, W, C)      f32
    # pad_ref : (H+2, W+2, C)     bf16  shared halo'd scratch (conv1 & conv2 input)

    # ---- zero ONLY the 1-pixel halo frame (interior is fully overwritten each
    #      step).  No program_id==0 guard: incorrect under megacore sharding. ----
    zrow = jnp.zeros((1, W + 2, C), jnp.bfloat16)
    zcol = jnp.zeros((H + 2, 1, C), jnp.bfloat16)
    pad_ref[0:1, :, :] = zrow
    pad_ref[H + 1:H + 2, :, :] = zrow
    pad_ref[:, 0:1, :] = zcol
    pad_ref[:, W + 1:W + 2, :] = zcol

    # ---- stage the input: one f32 read kept for the residual, one bf16 cast
    #      into the halo scratch for the MXU taps. ----
    x = x_ref[0]                                               # (H, W, C) f32
    pad_ref[1:H + 1, 1:W + 1, :] = x.astype(jnp.bfloat16)

    def conv3x3(w_ref, b_ref):
        # im2col-in-VMEM: one (H*W, 9*C) bf16 slab, ONE deep-K matmul.
        taps = [pad_ref[kh:kh + H, kw:kw + W, :].reshape(H * W, C)
                for kh in range(3) for kw in range(3)]
        a = jnp.concatenate(taps, axis=-1)                     # (H*W, 9*C) bf16
        return jnp.dot(a, w_ref[...],
                       preferred_element_type=jnp.float32) + b_ref[...]

    # ---- conv1: 3x3 pad=1 + bias + ReLU ----
    h = jnp.maximum(conv3x3(w1_ref, b1_ref), 0.0)              # (H*W, C) f32
    # park conv2's input back in the same halo scratch (border still zero)
    pad_ref[1:H + 1, 1:W + 1, :] = h.astype(jnp.bfloat16).reshape(H, W, C)

    # ---- conv2: 3x3 pad=1 + bias + ReLU ----
    h = jnp.maximum(conv3x3(w2_ref, b2_ref), 0.0)              # (H*W, C) f32

    # ---- conv3: 1x1 + bias, residual add in (H, W, C) space ----
    out = jnp.dot(h.astype(jnp.bfloat16), w3_ref[...],
                  preferred_element_type=jnp.float32) + b3_ref[...]
    o_ref[0] = out.reshape(H, W, C) + x


# ----------------------------- wrapper / packing -----------------------------

def pack_resblock_params(w1, b1, w2, b2, w3, b3):
    """Pre-pack PyTorch-layout Conv2d params once (im2col layout, pad, bf16).

    w1, w2: (C, C, 3, 3)   w3: (C, C, 1, 1)   b*: (C,)
    """
    C = w1.shape[0]
    Cp = _round_up(C, 128)                                     # lane-dense channels

    def pack3x3(w):
        # (Cout, Cin, kh, kw) -> (kh, kw, Cin, Cout) -> pad -> (9*Cp, Cp)
        # K index = (kh*3 + kw)*Cp + cin, matching the in-kernel tap concat order.
        wt = jnp.transpose(w, (2, 3, 1, 0))                    # (3, 3, Cin, Cout)
        wt = jnp.pad(wt, ((0, 0), (0, 0), (0, Cp - C), (0, Cp - C)))
        return wt.reshape(9 * Cp, Cp).astype(jnp.bfloat16)

    def pack1x1(w):
        wt = jnp.transpose(w[:, :, 0, 0], (1, 0))              # (Cin, Cout)
        wt = jnp.pad(wt, ((0, Cp - C), (0, Cp - C)))
        return wt.astype(jnp.bfloat16)

    def packb(b):
        return jnp.pad(b, (0, Cp - C)).reshape(1, Cp).astype(jnp.float32)

    return dict(w1=pack3x3(w1), b1=packb(b1),
                w2=pack3x3(w2), b2=packb(b2),
                w3=pack1x1(w3), b3=packb(b3))


def resblock_forward(x_nchw, p):
    """Fused ResBlock forward. x: (B, C, H, W) f32 -> (B, C, H, W) f32."""
    B, C, H, W = x_nchw.shape
    Cp = p['w3'].shape[0]
    # TODO(synk): general H/W needs a relayout guard for the in-kernel
    # (H,W,C)<->(H*W,C) reshapes; fine for typical power-of-two feature maps.
    assert H % 8 == 0 and W % 8 == 0

    # NCHW -> NHWC + channel pad (fuses into a single XLA copy).
    # Spatial halo padding happens inside the kernel (no extra HBM pass).
    x = jnp.transpose(x_nchw, (0, 2, 3, 1)).astype(jnp.float32)
    x = jnp.pad(x, ((0, 0), (0, 0), (0, 0), (0, Cp - C)))

    out = pl.pallas_call(
        functools.partial(_resblock_kernel, H=H, W=W, C=Cp),
        out_shape=jax.ShapeDtypeStruct((B, H, W, Cp), jnp.float32),
        grid_spec=pltpu.PrefetchScalarGridSpec(
            num_scalar_prefetch=0,
            grid=(B,),
            in_specs=[
                pl.BlockSpec((1, H, W, Cp), lambda b: (b, 0, 0, 0)),
                pl.BlockSpec((9 * Cp, Cp), lambda b: (0, 0)),
                pl.BlockSpec((1, Cp), lambda b: (0, 0)),
                pl.BlockSpec((9 * Cp, Cp), lambda b: (0, 0)),
                pl.BlockSpec((1, Cp), lambda b: (0, 0)),
                pl.BlockSpec((Cp, Cp), lambda b: (0, 0)),
                pl.BlockSpec((1, Cp), lambda b: (0, 0)),
            ],
            out_specs=pl.BlockSpec((1, H, W, Cp), lambda b: (b, 0, 0, 0)),
            scratch_shapes=[pltpu.VMEM((H + 2, W + 2, Cp), jnp.bfloat16)],
        ),
        compiler_params=pltpu.CompilerParams(
            dimension_semantics=("parallel",),
        ),
    )(x, p['w1'], p['b1'], p['w2'], p['b2'], p['w3'], p['b3'])

    # strip channel pad, back to NCHW
    return jnp.transpose(out[..., :C], (0, 3, 1, 2))


# ----------------------------- reference (for verification) -----------------------------

def resblock_reference(x, w1, b1, w2, b2, w3, b3):
    def conv(x, w, b, pad):
        y = jax.lax.conv_general_dilated(
            x, w, window_strides=(1, 1), padding=[(pad, pad), (pad, pad)],
            dimension_numbers=('NCHW', 'OIHW', 'NCHW'),
            precision=jax.lax.Precision.HIGHEST)
        return y + b[None, :, None, None]
    h = jax.nn.relu(conv(x, w1, b1, 1))
    h = jax.nn.relu(conv(h, w2, b2, 1))
    return conv(h, w3, b3, 0) + x


# ----------------------------- main -----------------------------

if __name__ == "__main__":
    key = jax.random.PRNGKey(0)
    k_x, k1, k2, k3 = jax.random.split(key, 4)

    B, C, H, W = 2, 64, 16, 16

    def init_conv(k, cout, cin, ksz):
        kw_, kb_ = jax.random.split(k)
        bound = 1.0 / (cin * ksz * ksz) ** 0.5
        w = jax.random.uniform(kw_, (cout, cin, ksz, ksz), jnp.float32, -bound, bound)
        b = jax.random.uniform(kb_, (cout,), jnp.float32, -bound, bound)
        return w, b

    w1, b1 = init_conv(k1, C, C, 3)
    w2, b2 = init_conv(k2, C, C, 3)
    w3, b3 = init_conv(k3, C, C, 1)

    x = jax.random.normal(k_x, (B, C, H, W), jnp.float32)

    packed = pack_resblock_params(w1, b1, w2, b2, w3, b3)
    fwd = jax.jit(resblock_forward)
    out = jax.block_until_ready(fwd(x, packed))

    assert out.shape == (B, C, H, W)
    assert bool(jnp.all(jnp.isfinite(out)))

    ref = resblock_reference(x, w1, b1, w2, b2, w3, b3)
    err = float(jnp.max(jnp.abs(out - ref)))
    assert err < 1e-1, f"max abs error too large: {err}"

    print("KERNEL_OK")
</pallas_src>

<mosaic_0001>
module attributes {stable_mosaic.version = 11 : i64} {
  func.func @_resblock_kernel(%arg0: i32, %arg1: memref<1x16x16x128xf32, #tpu.memory_space<vmem>>, %arg2: memref<1152x128xbf16, #tpu.memory_space<vmem>>, %arg3: memref<1x128xf32, #tpu.memory_space<vmem>>, %arg4: memref<1152x128xbf16, #tpu.memory_space<vmem>>, %arg5: memref<1x128xf32, #tpu.memory_space<vmem>>, %arg6: memref<128x128xbf16, #tpu.memory_space<vmem>>, %arg7: memref<1x128xf32, #tpu.memory_space<vmem>>, %arg8: memref<1x16x16x128xf32, #tpu.memory_space<vmem>>, %arg9: memref<18x18x128xbf16, #tpu.memory_space<vmem>>) attributes {dimension_semantics = [#tpu.dimension_semantics<parallel>], iteration_bounds = array<i64: 2>, scalar_prefetch = 0 : i64, scratch_operands = 1 : i64, tpu.core_type = #tpu.core_type<tc>, window_params = [{transform_indices = @transform_0, window_bounds = array<i64: 1, 16, 16, 128>}, {pipeline_mode = #tpu.pipeline_mode<synchronous>, transform_indices = @transform_1, window_bounds = array<i64: 1152, 128>}, {pipeline_mode = #tpu.pipeline_mode<synchronous>, transform_indices = @transform_2, window_bounds = array<i64: 1, 128>}, {pipeline_mode = #tpu.pipeline_mode<synchronous>, transform_indices = @transform_3, window_bounds = array<i64: 1152, 128>}, {pipeline_mode = #tpu.pipeline_mode<synchronous>, transform_indices = @transform_4, window_bounds = array<i64: 1, 128>}, {pipeline_mode = #tpu.pipeline_mode<synchronous>, transform_indices = @transform_5, window_bounds = array<i64: 128, 128>}, {pipeline_mode = #tpu.pipeline_mode<synchronous>, transform_indices = @transform_6, window_bounds = array<i64: 1, 128>}, {transform_indices = @transform_7, window_bounds = array<i64: 1, 16, 16, 128>}]} {
    %cst = arith.constant 0.000000e+00 : bf16
    %0 = vector.broadcast %cst : bf16 to vector<1x18x128xbf16>
    %cst_0 = arith.constant 0.000000e+00 : bf16
    %1 = vector.broadcast %cst_0 : bf16 to vector<18x1x128xbf16>
    %c0 = arith.constant 0 : index
    %c0_1 = arith.constant 0 : index
    %c0_2 = arith.constant 0 : index
    %2 = vector.load %arg9[%c0, %c0_1, %c0_2] : memref<18x18x128xbf16, #tpu.memory_space<vmem>>, vector<1x18x128xbf16>
    tpu.vector_store %arg9[%c0, %c0_1, %c0_2], %0 {strides = array<i32>} : memref<18x18x128xbf16, #tpu.memory_space<vmem>>, vector<1x18x128xbf16>,
    %c17 = arith.constant 17 : index
    %c0_3 = arith.constant 0 : index
    %c0_4 = arith.constant 0 : index
    %3 = vector.load %arg9[%c17, %c0_3, %c0_4] : memref<18x18x128xbf16, #tpu.memory_space<vmem>>, vector<1x18x128xbf16>
    tpu.vector_store %arg9[%c17, %c0_3, %c0_4], %0 {strides = array<i32>} : memref<18x18x128xbf16, #tpu.memory_space<vmem>>, vector<1x18x128xbf16>,
    %c0_5 = arith.constant 0 : index
    %c0_6 = arith.constant 0 : index
    %c0_7 = arith.constant 0 : index
    %4 = vector.load %arg9[%c0_5, %c0_6, %c0_7] : memref<18x18x128xbf16, #tpu.memory_space<vmem>>, vector<18x1x128xbf16>
    tpu.vector_store %arg9[%c0_5, %c0_6, %c0_7], %1 {strides = array<i32>} : memref<18x18x128xbf16, #tpu.memory_space<vmem>>, vector<18x1x128xbf16>,
    %c0_8 = arith.constant 0 : index
    %c17_9 = arith.constant 17 : index
    %c0_10 = arith.constant 0 : index
    %5 = vector.load %arg9[%c0_8, %c17_9, %c0_10] : memref<18x18x128xbf16, #tpu.memory_space<vmem>>, vector<18x1x128xbf16>
    tpu.vector_store %arg9[%c0_8, %c17_9, %c0_10], %1 {strides = array<i32>} : memref<18x18x128xbf16, #tpu.memory_space<vmem>>, vector<18x1x128xbf16>,
    %c0_11 = arith.constant 0 : index
    %c0_12 = arith.constant 0 : index
    %c0_13 = arith.constant 0 : index
    %c0_14 = arith.constant 0 : index
    %6 = vector.load %arg1[%c0_11, %c0_12, %c0_13, %c0_14] : memref<1x16x16x128xf32, #tpu.memory_space<vmem>>, vector<1x16x16x128xf32>
    %7 = vector.shape_cast %6 : vector<1x16x16x128xf32> to vector<16x16x128xf32>
    %8 = arith.truncf %7 : vector<16x16x128xf32> to vector<16x16x128xbf16>
    %c1 = arith.constant 1 : index
    %c1_15 = arith.constant 1 : index
    %c0_16 = arith.constant 0 : index
    %9 = vector.load %arg9[%c1, %c1_15, %c0_16] : memref<18x18x128xbf16, #tpu.memory_space<vmem>>, vector<16x16x128xbf16>
    tpu.vector_store %arg9[%c1, %c1_15, %c0_16], %8 {strides = array<i32>} : memref<18x18x128xbf16, #tpu.memory_space<vmem>>, vector<16x16x128xbf16>,
    %c0_17 = arith.constant 0 : index
    %c0_18 = arith.constant 0 : index
    %c0_19 = arith.constant 0 : index
    %10 = vector.load %arg9[%c0_17, %c0_18, %c0_19] : memref<18x18x128xbf16, #tpu.memory_space<vmem>>, vector<16x16x128xbf16>
    %11 = vector.shape_cast %10 : vector<16x16x128xbf16> to vector<256x128xbf16>
    %c0_20 = arith.constant 0 : index
    %c1_21 = arith.constant 1 : index
    %c0_22 = arith.constant 0 : index
    %12 = vector.load %arg9[%c0_20, %c1_21, %c0_22] : memref<18x18x128xbf16, #tpu.memory_space<vmem>>, vector<16x16x128xbf16>
    %13 = vector.shape_cast %12 : vector<16x16x128xbf16> to vector<256x128xbf16>
    %c0_23 = arith.constant 0 : index
    %c2 = arith.constant 2 : index
    %c0_24 = arith.constant 0 : index
    %14 = vector.load %arg9[%c0_23, %c2, %c0_24] : memref<18x18x128xbf16, #tpu.memory_space<vmem>>, vector<16x16x128xbf16>
    %15 = vector.shape_cast %14 : vector<16x16x128xbf16> to vector<256x128xbf16>
    %c1_25 = arith.constant 1 : index
    %c0_26 = arith.constant 0 : index
    %c0_27 = arith.constant 0 : index
    %16 = vector.load %arg9[%c1_25, %c0_26, %c0_27] : memref<18x18x128xbf16, #tpu.memory_space<vmem>>, vector<16x16x128xbf16>
    %17 = vector.shape_cast %16 : vector<16x16x128xbf16> to vector<256x128xbf16>
    %c1_28 = arith.constant 1 : index
    %c1_29 = arith.constant 1 : index
    %c0_30 = arith.constant 0 : index
    %18 = vector.load %arg9[%c1_28, %c1_29, %c0_30] : memref<18x18x128xbf16, #tpu.memory_space<vmem>>, vector<16x16x128xbf16>
    %19 = vector.shape_cast %18 : vector<16x16x128xbf16> to vector<256x128xbf16>
    %c1_31 = arith.constant 1 : index
    %c2_32 = arith.constant 2 : index
    %c0_33 = arith.constant 0 : index
    %20 = vector.load %arg9[%c1_31, %c2_32, %c0_33] : memref<18x18x128xbf16, #tpu.memory_space<vmem>>, vector<16x16x128xbf16>
    %21 = vector.shape_cast %20 : vector<16x16x128xbf16> to vector<256x128xbf16>
    %c2_34 = arith.constant 2 : index
    %c0_35 = arith.constant 0 : index
    %c0_36 = arith.constant 0 : index
    %22 = vector.load %arg9[%c2_34, %c0_35, %c0_36] : memref<18x18x128xbf16, #tpu.memory_space<vmem>>, vector<16x16x128xbf16>
    %23 = vector.shape_cast %22 : vector<16x16x128xbf16> to vector<256x128xbf16>
    %c2_37 = arith.constant 2 : index
    %c1_38 = arith.constant 1 : index
    %c0_39 = arith.constant 0 : index
    %24 = vector.load %arg9[%c2_37, %c1_38, %c0_39] : memref<18x18x128xbf16, #tpu.memory_space<vmem>>, vector<16x16x128xbf16>
    %25 = vector.shape_cast %24 : vector<16x16x128xbf16> to vector<256x128xbf16>
    %c2_40 = arith.constant 2 : index
    %c2_41 = arith.constant 2 : index
    %c0_42 = arith.constant 0 : index
    %26 = vector.load %arg9[%c2_40, %c2_41, %c0_42] : memref<18x18x128xbf16, #tpu.memory_space<vmem>>, vector<16x16x128xbf16>
    %27 = vector.shape_cast %26 : vector<16x16x128xbf16> to vector<256x128xbf16>
    %28 = tpu.concatenate %11, %13, %15, %17, %19, %21, %23, %25, %27 in 1 : vector<256x128xbf16>, vector<256x128xbf16>, vector<256x128xbf16>, vector<256x128xbf16>, vector<256x128xbf16>, vector<256x128xbf16>, vector<256x128xbf16>, vector<256x128xbf16>, vector<256x128xbf16> -> vector<256x1152xbf16>
    %c0_43 = arith.constant 0 : index
    %c0_44 = arith.constant 0 : index
    %29 = vector.load %arg2[%c0_43, %c0_44] : memref<1152x128xbf16, #tpu.memory_space<vmem>>, vector<1152x128xbf16>
    %cst_45 = arith.constant dense<0.000000e+00> : vector<256x128xf32>
    %30 = tpu.matmul %28, %29, %cst_45 {dimension_numbers = #tpu.dot_dimension_numbers<[1], [0], [0], [1], [0, 0, 1, 1], [], []>} : vector<256x1152xbf16>, vector<1152x128xbf16>, vector<256x128xf32> -> vector<256x128xf32>
    %c0_46 = arith.constant 0 : index
    %c0_47 = arith.constant 0 : index
    %31 = vector.load %arg3[%c0_46, %c0_47] : memref<1x128xf32, #tpu.memory_space<vmem>>, vector<1x128xf32>
    %32 = vector.broadcast %31 : vector<1x128xf32> to vector<256x128xf32>
    %33 = arith.addf %30, %32 : vector<256x128xf32>
    %cst_48 = arith.constant 0.000000e+00 : f32
    %34 = vector.broadcast %cst_48 : f32 to vector<256x128xf32>
    %35 = arith.maximumf %33, %34 : vector<256x128xf32>
    %36 = arith.truncf %35 : vector<256x128xf32> to vector<256x128xbf16>
    %37 = vector.shape_cast %36 : vector<256x128xbf16> to vector<16x16x128xbf16>
    %c1_49 = arith.constant 1 : index
    %c1_50 = arith.constant 1 : index
    %c0_51 = arith.constant 0 : index
    %38 = vector.load %arg9[%c1_49, %c1_50, %c0_51] : memref<18x18x128xbf16, #tpu.memory_space<vmem>>, vector<16x16x128xbf16>
    tpu.vector_store %arg9[%c1_49, %c1_50, %c0_51], %37 {strides = array<i32>} : memref<18x18x128xbf16, #tpu.memory_space<vmem>>, vector<16x16x128xbf16>,
    %c0_52 = arith.constant 0 : index
    %c0_53 = arith.constant 0 : index
    %c0_54 = arith.constant 0 : index
    %39 = vector.load %arg9[%c0_52, %c0_53, %c0_54] : memref<18x18x128xbf16, #tpu.memory_space<vmem>>, vector<16x16x128xbf16>
    %40 = vector.shape_cast %39 : vector<16x16x128xbf16> to vector<256x128xbf16>
    %c0_55 = arith.constant 0 : index
    %c1_56 = arith.constant 1 : index
    %c0_57 = arith.constant 0 : index
    %41 = vector.load %arg9[%c0_55, %c1_56, %c0_57] : memref<18x18x128xbf16, #tpu.memory_space<vmem>>, vector<16x16x128xbf16>
    %42 = vector.shape_cast %41 : vector<16x16x128xbf16> to vector<256x128xbf16>
    %c0_58 = arith.constant 0 : index
    %c2_59 = arith.constant 2 : index
    %c0_60 = arith.constant 0 : index
    %43 = vector.load %arg9[%c0_58, %c2_59, %c0_60] : memref<18x18x128xbf16, #tpu.memory_space<vmem>>, vector<16x16x128xbf16>
    %44 = vector.shape_cast %43 : vector<16x16x128xbf16> to vector<256x128xbf16>
    %c1_61 = arith.constant 1 : index
    %c0_62 = arith.constant 0 : index
    %c0_63 = arith.constant 0 : index
    %45 = vector.load %arg9[%c1_61, %c0_62, %c0_63] : memref<18x18x128xbf16, #tpu.memory_space<vmem>>, vector<16x16x128xbf16>
    %46 = vector.shape_cast %45 : vector<16x16x128xbf16> to vector<256x128xbf16>
    %c1_64 = arith.constant 1 : index
    %c1_65 = arith.constant 1 : index
    %c0_66 = arith.constant 0 : index
    %47 = vector.load %arg9[%c1_64, %c1_65, %c0_66] : memref<18x18x128xbf16, #tpu.memory_space<vmem>>, vector<16x16x128xbf16>
    %48 = vector.shape_cast %47 : vector<16x16x128xbf16> to vector<256x128xbf16>
    %c1_67 = arith.constant 1 : index
    %c2_68 = arith.constant 2 : index
    %c0_69 = arith.constant 0 : index
    %49 = vector.load %arg9[%c1_67, %c2_68, %c0_69] : memref<18x18x128xbf16, #tpu.memory_space<vmem>>, vector<16x16x128xbf16>
    %50 = vector.shape_cast %49 : vector<16x16x128xbf16> to vector<256x128xbf16>
    %c2_70 = arith.constant 2 : index
    %c0_71 = arith.constant 0 : index
    %c0_72 = arith.constant 0 : index
    %51 = vector.load %arg9[%c2_70, %c0_71, %c0_72] : memref<18x18x128xbf16, #tpu.memory_space<vmem>>, vector<16x16x128xbf16>
    %52 = vector.shape_cast %51 : vector<16x16x128xbf16> to vector<256x128xbf16>
    %c2_73 = arith.constant 2 : index
    %c1_74 = arith.constant 1 : index
    %c0_75 = arith.constant 0 : index
    %53 = vector.load %arg9[%c2_73, %c1_74, %c0_75] : memref<18x18x128xbf16, #tpu.memory_space<vmem>>, vector<16x16x128xbf16>
    %54 = vector.shape_cast %53 : vector<16x16x128xbf16> to vector<256x128xbf16>
    %c2_76 = arith.constant 2 : index
    %c2_77 = arith.constant 2 : index
    %c0_78 = arith.constant 0 : index
    %55 = vector.load %arg9[%c2_76, %c2_77, %c0_78] : memref<18x18x128xbf16, #tpu.memory_space<vmem>>, vector<16x16x128xbf16>
    %56 = vector.shape_cast %55 : vector<16x16x128xbf16> to vector<256x128xbf16>
    %57 = tpu.concatenate %40, %42, %44, %46, %48, %50, %52, %54, %56 in 1 : vector<256x128xbf16>, vector<256x128xbf16>, vector<256x128xbf16>, vector<256x128xbf16>, vector<256x128xbf16>, vector<256x128xbf16>, vector<256x128xbf16>, vector<256x128xbf16>, vector<256x128xbf16> -> vector<256x1152xbf16>
    %c0_79 = arith.constant 0 : index
    %c0_80 = arith.constant 0 : index
    %58 = vector.load %arg4[%c0_79, %c0_80] : memref<1152x128xbf16, #tpu.memory_space<vmem>>, vector<1152x128xbf16>
    %cst_81 = arith.constant dense<0.000000e+00> : vector<256x128xf32>
    %59 = tpu.matmul %57, %58, %cst_81 {dimension_numbers = #tpu.dot_dimension_numbers<[1], [0], [0], [1], [0, 0, 1, 1], [], []>} : vector<256x1152xbf16>, vector<1152x128xbf16>, vector<256x128xf32> -> vector<256x128xf32>
    %c0_82 = arith.constant 0 : index
    %c0_83 = arith.constant 0 : index
    %60 = vector.load %arg5[%c0_82, %c0_83] : memref<1x128xf32, #tpu.memory_space<vmem>>, vector<1x128xf32>
    %61 = vector.broadcast %60 : vector<1x128xf32> to vector<256x128xf32>
    %62 = arith.addf %59, %61 : vector<256x128xf32>
    %cst_84 = arith.constant 0.000000e+00 : f32
    %63 = vector.broadcast %cst_84 : f32 to vector<256x128xf32>
    %64 = arith.maximumf %62, %63 : vector<256x128xf32>
    %65 = arith.truncf %64 : vector<256x128xf32> to vector<256x128xbf16>
    %c0_85 = arith.constant 0 : index
    %c0_86 = arith.constant 0 : index
    %66 = vector.load %arg6[%c0_85, %c0_86] : memref<128x128xbf16, #tpu.memory_space<vmem>>, vector<128x128xbf16>
    %cst_87 = arith.constant dense<0.000000e+00> : vector<256x128xf32>
    %67 = tpu.matmul %65, %66, %cst_87 {dimension_numbers = #tpu.dot_dimension_numbers<[1], [0], [0], [1], [0, 0, 1, 1], [], []>} : vector<256x128xbf16>, vector<128x128xbf16>, vector<256x128xf32> -> vector<256x128xf32>
    %c0_88 = arith.constant 0 : index
    %c0_89 = arith.constant 0 : index
    %68 = vector.load %arg7[%c0_88, %c0_89] : memref<1x128xf32, #tpu.memory_space<vmem>>, vector<1x128xf32>
    %69 = vector.broadcast %68 : vector<1x128xf32> to vector<256x128xf32>
    %70 = arith.addf %67, %69 : vector<256x128xf32>
    %71 = vector.shape_cast %70 : vector<256x128xf32> to vector<16x16x128xf32>
    %72 = arith.addf %71, %7 : vector<16x16x128xf32>
    %c0_90 = arith.constant 0 : index
    %c0_91 = arith.constant 0 : index
    %c0_92 = arith.constant 0 : index
    %c0_93 = arith.constant 0 : index
    %73 = vector.load %arg8[%c0_90, %c0_91, %c0_92, %c0_93] : memref<1x16x16x128xf32, #tpu.memory_space<vmem>>, vector<1x16x16x128xf32>
    %74 = vector.shape_cast %73 : vector<1x16x16x128xf32> to vector<16x16x128xf32>
    %75 = vector.shape_cast %72 : vector<16x16x128xf32> to vector<1x16x16x128xf32>
    tpu.vector_store %arg8[%c0_90, %c0_91, %c0_92, %c0_93], %75 {strides = array<i32>} : memref<1x16x16x128xf32, #tpu.memory_space<vmem>>, vector<1x16x16x128xf32>,
    return
  }
  func.func @transform_0(%arg0: i32) -> (i32, i32, i32, i32) {
    %c0_i32 = arith.constant 0 : i32
    %c0_i32_0 = arith.constant 0 : i32
    %c0_i32_1 = arith.constant 0 : i32
    %c0_i32_2 = arith.constant 0 : i32
    return %arg0, %c0_i32, %c0_i32_0, %c0_i32_1 : i32, i32, i32, i32
  }
  func.func @transform_1(%arg0: i32) -> (i32, i32) {
    %c0_i32 = arith.constant 0 : i32
    %c0_i32_0 = arith.constant 0 : i32
    %c0_i32_1 = arith.constant 0 : i32
    return %c0_i32, %c0_i32_0 : i32, i32
  }
  func.func @transform_2(%arg0: i32) -> (i32, i32) {
    %c0_i32 = arith.constant 0 : i32
    %c0_i32_0 = arith.constant 0 : i32
    %c0_i32_1 = arith.constant 0 : i32
    return %c0_i32, %c0_i32_0 : i32, i32
  }
  func.func @transform_3(%arg0: i32) -> (i32, i32) {
    %c0_i32 = arith.constant 0 : i32
    %c0_i32_0 = arith.constant 0 : i32
    %c0_i32_1 = arith.constant 0 : i32
    return %c0_i32, %c0_i32_0 : i32, i32
  }
  func.func @transform_4(%arg0: i32) -> (i32, i32) {
    %c0_i32 = arith.constant 0 : i32
    %c0_i32_0 = arith.constant 0 : i32
    %c0_i32_1 = arith.constant 0 : i32
    return %c0_i32, %c0_i32_0 : i32, i32
  }
  func.func @transform_5(%arg0: i32) -> (i32, i32) {
    %c0_i32 = arith.constant 0 : i32
    %c0_i32_0 = arith.constant 0 : i32
    %c0_i32_1 = arith.constant 0 : i32
    return %c0_i32, %c0_i32_0 : i32, i32
  }
  func.func @transform_6(%arg0: i32) -> (i32, i32) {
    %c0_i32 = arith.constant 0 : i32
    %c0_i32_0 = arith.constant 0 : i32
    %c0_i32_1 = arith.constant 0 : i32
    return %c0_i32, %c0_i32_0 : i32, i32
  }
  func.func @transform_7(%arg0: i32) -> (i32, i32, i32, i32) {
    %c0_i32 = arith.constant 0 : i32
    %c0_i32_0 = arith.constant 0 : i32
    %c0_i32_1 = arith.constant 0 : i32
    %c0_i32_2 = arith.constant 0 : i32
    return %arg0, %c0_i32, %c0_i32_0, %c0_i32_1 : i32, i32, i32, i32
  }
}

</mosaic_0001>

<llo_original>
// kernel: resblock_forward.1
$region0: #{resblock_forward.1}
  #allocation0 [shape = 'u32[]', space=smem, size = 0x4, offset = 0x4, fixed_abs, tag = 'smem constant byte address 0x4 - core index']
  #allocation1 [shape = 'u32[144,128]{1,0:T(1,128)}', space=vmem, size = 0x12000, scoped, tag = 'internal scratch']
  #allocation2 [shape = 'bf16[18,18,128]{2,1,0:T(8,128)(2,1)}', space=vmem, size = 0x1b000, scoped, tag = 'scratch operand']
  %s0 = inlined_call_operand.vmem [shape: f32[2,16,16,128], index: 0, kind: input, shape index: {}]
  %s1 = inlined_call_operand.vmem [shape: bf16[1152,128], index: 1, kind: input, shape index: {}]
  %s2 = inlined_call_operand.vmem [shape: f32[1,128], index: 2, kind: input, shape index: {}]
  %s3 = inlined_call_operand.hbm [shape: bf16[1152,128], index: 3, kind: input, shape index: {}]
  %s4 = inlined_call_operand.vmem [shape: f32[1,128], index: 4, kind: input, shape index: {}]
  %s5 = inlined_call_operand.vmem [shape: bf16[128,128], index: 5, kind: input, shape index: {}]
  %s6 = inlined_call_operand.vmem [shape: f32[1,128], index: 6, kind: input, shape index: {}]
  %s7 = inlined_call_operand.vmem [shape: f32[2,16,16,128], index: 7, kind: output, shape index: {}]
  %s8 = sld [smem:[#allocation0]]
  $region65: #{resblock_forward.1} parent=0
    _
  %s10 = ssub.s32 1, %s8
  %s11 = scalar_select 0, %s10, %s8
  $region1: #{resblock_forward.1} parent=0
    #allocation3 [shape = 'u8[294912]{0}', space=vmem, size = 0x48000, scoped, tag = 'input window, operand 3, single buffered']
    #allocation4 [shape = 's32[2]{0}', space=sflag, size = 0x8, scoped, tag = 'scoped memory for resblock_forward.1']
    %12 = vsyncpa [#allocation4], 0
    loop: start=0, step=1, limit=4
    $region2: #{resblock_forward.1} parent=1 // loop_pre_header
      _
    $region3: #{resblock_forward.1} parent=1 // loop_header
      %s14 = sphi 0, %s18
      %p15 = scmp.ge.s32.totalorder %s14, 4
      %s24 = sphi 0, %s26
      %s27 = sphi 0, %s24
      %s28 = sphi 0, %s27
      %s44 = sphi 0, %s28
      %s48 = sphi 0, %s48
      %s50 = sphi 0, %s48
      %s51 = sphi 0, %s50
      %s65 = sphi 0, %s51
      %s69 = sphi 0, %s69
      %s71 = sphi 0, %s69
      %s72 = sphi 0, %s71
      %s86 = sphi 0, %s72
      %s90 = sphi 0, %s90
      %s92 = sphi 0, %s90
      %s93 = sphi 0, %s92
      %s107 = sphi 0, %s93
      %s111 = sphi 0, %s111
      %s113 = sphi 0, %s111
      %s114 = sphi 0, %s113
      %s128 = sphi 0, %s114
      %s132 = sphi 0, %s132
      %s134 = sphi 0, %s132
      %s135 = sphi 0, %s134
      %s149 = sphi 0, %s135
      %s153 = sphi 0, %s153
      %s155 = sphi 0, %s153
      %s156 = sphi 0, %s155
      %s170 = sphi 0, %s156
      %s176 = sphi 0, %s178
      %s179 = sphi 0, %s176
      %s180 = sphi 0, %s179
      %s196 = sphi 0, %s180
    $region4: #{resblock_forward.1} parent=1 // loop_header_branch
      %17 = sbr.rel (%p15) target = $region8
    $region5: #{resblock_forward.1} parent=1 // loop_body
      %s19 = ssub.s32 %s14, 1
      %s20 = ssub.s32 %s14, 2
      %s21 = sadd.s32 %s14, 1
      %s22 = ssub.s32 %s14, %s21
      %p23 = scmp.eq.s32.totalorder %s22, 0
      %s25 = sadd.s32 %s24, 1
      %s26 = scalar_select %p23, %s24, %s25
      %p29 = pneg %p23
      %p30 = scmp.eq.s32.totalorder %s14, 1
      %p31 = por %p29, %p30
      %p32 = scmp.ne.s32.totalorder %s24, %s27
      %p33 = scmp.eq.s32.totalorder %s14, 0
      %p34 = por %p32, %p33
      %p35 = scmp.ne.s32.totalorder %s24, %s27
      %p36 = scmp.eq.s32.totalorder %s19, 1
      %p37 = por %p35, %p36
      %p38 = scmp.ne.s32.totalorder %s27, %s28
      %p39 = scmp.eq.s32.totalorder %s19, 0
      %p40 = por %p38, %p39
      %p41 = scmp.ne.s32.totalorder %s27, %s28
      %p42 = scmp.eq.s32.totalorder %s20, 1
      %p43 = por %p41, %p42
      %p45 = scmp.ne.s32.totalorder %s28, %s44
      %p46 = scmp.eq.s32.totalorder %s20, 0
      %p47 = por %p45, %p46
      %s49 = sadd.s32 %s48, 1
      %p52 = scmp.eq.s32.totalorder %s14, 1
      %p53 = scmp.ne.s32.totalorder %s48, %s50
      %p54 = scmp.eq.s32.totalorder %s14, 0
      %p55 = por %p53, %p54
      %p56 = scmp.ne.s32.totalorder %s48, %s50
      %p57 = scmp.eq.s32.totalorder %s19, 1
      %p58 = por %p56, %p57
      %p59 = scmp.ne.s32.totalorder %s50, %s51
      %p60 = scmp.eq.s32.totalorder %s19, 0
      %p61 = por %p59, %p60
      %p62 = scmp.ne.s32.totalorder %s50, %s51
      %p63 = scmp.eq.s32.totalorder %s20, 1
      %p64 = por %p62, %p63
      %p66 = scmp.ne.s32.totalorder %s51, %s65
      %p67 = scmp.eq.s32.totalorder %s20, 0
      %p68 = por %p66, %p67
      %s70 = sadd.s32 %s69, 1
      %p73 = scmp.eq.s32.totalorder %s14, 1
      %p74 = scmp.ne.s32.totalorder %s69, %s71
      %p75 = scmp.eq.s32.totalorder %s14, 0
      %p76 = por %p74, %p75
      %p77 = scmp.ne.s32.totalorder %s69, %s71
      %p78 = scmp.eq.s32.totalorder %s19, 1
      %p79 = por %p77, %p78
      %p80 = scmp.ne.s32.totalorder %s71, %s72
      %p81 = scmp.eq.s32.totalorder %s19, 0
      %p82 = por %p80, %p81
      %p83 = scmp.ne.s32.totalorder %s71, %s72
      %p84 = scmp.eq.s32.totalorder %s20, 1
      %p85 = por %p83, %p84
      %p87 = scmp.ne.s32.totalorder %s72, %s86
      %p88 = scmp.eq.s32.totalorder %s20, 0
      %p89 = por %p87, %p88
      %s91 = sadd.s32 %s90, 1
      %p94 = scmp.eq.s32.totalorder %s14, 1
      %p95 = scmp.ne.s32.totalorder %s90, %s92
      %p96 = scmp.eq.s32.totalorder %s14, 0
      %p97 = por %p95, %p96
      %p98 = scmp.ne.s32.totalorder %s90, %s92
      %p99 = scmp.eq.s32.totalorder %s19, 1
      %p100 = por %p98, %p99
      %p101 = scmp.ne.s32.totalorder %s92, %s93
      %p102 = scmp.eq.s32.totalorder %s19, 0
      %p103 = por %p101, %p102
      %p104 = scmp.ne.s32.totalorder %s92, %s93
      %p105 = scmp.eq.s32.totalorder %s20, 1
      %p106 = por %p104, %p105
      %p108 = scmp.ne.s32.totalorder %s93, %s107
      %p109 = scmp.eq.s32.totalorder %s20, 0
      %p110 = por %p108, %p109
      %s112 = sadd.s32 %s111, 1
      %p115 = scmp.eq.s32.totalorder %s14, 1
      %p116 = scmp.ne.s32.totalorder %s111, %s113
      %p117 = scmp.eq.s32.totalorder %s14, 0
      %p118 = por %p116, %p117
      %p119 = scmp.ne.s32.totalorder %s111, %s113
      %p120 = scmp.eq.s32.totalorder %s19, 1
      %p121 = por %p119, %p120
      %p122 = scmp.ne.s32.totalorder %s113, %s114
      %p123 = scmp.eq.s32.totalorder %s19, 0
      %p124 = por %p122, %p123
      %p125 = scmp.ne.s32.totalorder %s113, %s114
      %p126 = scmp.eq.s32.totalorder %s20, 1
      %p127 = por %p125, %p126
      %p129 = scmp.ne.s32.totalorder %s114, %s128
      %p130 = scmp.eq.s32.totalorder %s20, 0
      %p131 = por %p129, %p130
      %s133 = sadd.s32 %s132, 1
      %p136 = scmp.eq.s32.totalorder %s14, 1
      %p137 = scmp.ne.s32.totalorder %s132, %s134
      %p138 = scmp.eq.s32.totalorder %s14, 0
      %p139 = por %p137, %p138
      %p140 = scmp.ne.s32.totalorder %s132, %s134
      %p141 = scmp.eq.s32.totalorder %s19, 1
      %p142 = por %p140, %p141
      %p143 = scmp.ne.s32.totalorder %s134, %s135
      %p144 = scmp.eq.s32.totalorder %s19, 0
      %p145 = por %p143, %p144
      %p146 = scmp.ne.s32.totalorder %s134, %s135
      %p147 = scmp.eq.s32.totalorder %s20, 1
      %p148 = por %p146, %p147
      %p150 = scmp.ne.s32.totalorder %s135, %s149
      %p151 = scmp.eq.s32.totalorder %s20, 0
      %p152 = por %p150, %p151
      %s154 = sadd.s32 %s153, 1
      %p157 = scmp.eq.s32.totalorder %s14, 1
      %p158 = scmp.ne.s32.totalorder %s153, %s155
      %p159 = scmp.eq.s32.totalorder %s14, 0
      %p160 = por %p158, %p159
      %p161 = scmp.ne.s32.totalorder %s153, %s155
      %p162 = scmp.eq.s32.totalorder %s19, 1
      %p163 = por %p161, %p162
      %p164 = scmp.ne.s32.totalorder %s155, %s156
      %p165 = scmp.eq.s32.totalorder %s19, 0
      %p166 = por %p164, %p165
      %p167 = scmp.ne.s32.totalorder %s155, %s156
      %p168 = scmp.eq.s32.totalorder %s20, 1
      %p169 = por %p167, %p168
      %p171 = scmp.ne.s32.totalorder %s156, %s170
      %p172 = scmp.eq.s32.totalorder %s20, 0
      %p173 = por %p171, %p172
      %s174 = ssub.s32 %s14, %s21
      %p175 = scmp.eq.s32.totalorder %s174, 0
      %s177 = sadd.s32 %s176, 1
      %s178 = scalar_select %p175, %s176, %s177
      %p181 = pneg %p175
      %p182 = scmp.eq.s32.totalorder %s14, 1
      %p183 = por %p181, %p182
      %p184 = scmp.ne.s32.totalorder %s176, %s179
      %p185 = scmp.eq.s32.totalorder %s14, 0
      %p186 = por %p184, %p185
      %p187 = scmp.ne.s32.totalorder %s176, %s179
      %p188 = scmp.eq.s32.totalorder %s19, 1
      %p189 = por %p187, %p188
      %p190 = scmp.ne.s32.totalorder %s179, %s180
      %p191 = scmp.eq.s32.totalorder %s19, 0
      %p192 = por %p190, %p191
      %p193 = scmp.ne.s32.totalorder %s179, %s180
      %p194 = scmp.eq.s32.totalorder %s20, 1
      %p195 = por %p193, %p194
      %p197 = scmp.ne.s32.totalorder %s180, %s196
      %p198 = scmp.eq.s32.totalorder %s20, 0
      %p199 = por %p197, %p198
      %p200 = scmp.le.s32.totalorder 1, %s14
      %p201 = scmp.lt.s32.totalorder %s14, 3
      %p202 = pnand %p200, %p201
      %p203 = pneg %p202
      // Predicated region
      $region9: #{resblock_forward.1} parent=5 // pred_check
        _
      $region10: #{resblock_forward.1} parent=5 // pred_check_branch
        %205 = sbr.rel (%p202) target = $region12
      $region11: #{resblock_forward.1} parent=5 // pred_region
        %s206 = ssub.s32 %s14, 1
        // Predicated region
        $region13: #{resblock_forward.1} parent=11 // pred_check
          %p207 = pneg %p61
        $region14: #{resblock_forward.1} parent=11 // pred_check_branch
          %209 = sbr.rel (%p207) target = $region16
        $region15: #{resblock_forward.1} parent=11 // pred_region
          _
        $region16: #{resblock_forward.1} parent=11 // pred_fallthru
          _
        // Predicated region
        $region17: #{resblock_forward.1} parent=11 // pred_check
          %p210 = pneg %p82
        $region18: #{resblock_forward.1} parent=11 // pred_check_branch
          %212 = sbr.rel (%p210) target = $region20
        $region19: #{resblock_forward.1} parent=11 // pred_region
          _
        $region20: #{resblock_forward.1} parent=11 // pred_fallthru
          _
        // Predicated region
        $region21: #{resblock_forward.1} parent=11 // pred_check
          %p213 = pneg %p103
        $region22: #{resblock_forward.1} parent=11 // pred_check_branch
          %215 = sbr.rel (%p213) target = $region24
        $region23: #{resblock_forward.1} parent=11 // pred_region
          %s217 = ssub.s32 9216, 9216
          %218 = vsyncadd [#allocation4], %s217
          %s219 = sshll.u32 [#allocation3], 4
          %s220 = int_to_ptr.vmem [resolvable:$true] %s219
          %225 = dma.hbm_to_vmem [thread:$0]  %s3, 9216, %s220, [#allocation4], 64, 64, 4
        $region24: #{resblock_forward.1} parent=11 // pred_fallthru
          _
        // Predicated region
        $region25: #{resblock_forward.1} parent=11 // pred_check
          %p226 = pneg %p124
        $region26: #{resblock_forward.1} parent=11 // pred_check_branch
          %228 = sbr.rel (%p226) target = $region28
        $region27: #{resblock_forward.1} parent=11 // pred_region
          _
        $region28: #{resblock_forward.1} parent=11 // pred_fallthru
          _
        // Predicated region
        $region29: #{resblock_forward.1} parent=11 // pred_check
          %p229 = pneg %p145
        $region30: #{resblock_forward.1} parent=11 // pred_check_branch
          %231 = sbr.rel (%p229) target = $region32
        $region31: #{resblock_forward.1} parent=11 // pred_region
          _
        $region32: #{resblock_forward.1} parent=11 // pred_fallthru
          _
        // Predicated region
        $region33: #{resblock_forward.1} parent=11 // pred_check
          %p232 = pneg %p166
        $region34: #{resblock_forward.1} parent=11 // pred_check_branch
          %234 = sbr.rel (%p232) target = $region36
        $region35: #{resblock_forward.1} parent=11 // pred_region
          _
        $region36: #{resblock_forward.1} parent=11 // pred_fallthru
          _
      $region12: #{resblock_forward.1} parent=5 // pred_fallthru
        _
      %p235 = scmp.lt.s32.totalorder %s14, 2
      // Predicated region
      $region37: #{resblock_forward.1} parent=5 // pred_check
        %p236 = pneg %p235
      $region38: #{resblock_forward.1} parent=5 // pred_check_branch
        %238 = sbr.rel (%p236) target = $region40
      $region39: #{resblock_forward.1} parent=5 // pred_region
        // Predicated region
        $region41: #{resblock_forward.1} parent=39 // pred_check
          %p239 = pneg %p34
        $region42: #{resblock_forward.1} parent=39 // pred_check_branch
          %241 = sbr.rel (%p239) target = $region44
        $region43: #{resblock_forward.1} parent=39 // pred_region
          %p242 = scmp.lt.s32.totalorder %s14, 1
          %s243 = scalar_select %p242, %s14, 1
          %s244 = smul.addr %s243, 32
          %s245 = smul.addr %s244, 8
          %s246 = scalar_lea.vmem %s0, %s245
        $region44: #{resblock_forward.1} parent=39 // pred_fallthru
          _
      $region40: #{resblock_forward.1} parent=5 // pred_fallthru
        _
      %p247 = scmp.le.s32.totalorder 1, %s14
      %p248 = scmp.lt.s32.totalorder %s14, 3
      %p249 = pnand %p247, %p248
      %p250 = pneg %p249
      // Predicated region
      $region45: #{resblock_forward.1} parent=5 // pred_check
        _
      $region46: #{resblock_forward.1} parent=5 // pred_check_branch
        %252 = sbr.rel (%p249) target = $region48
      $region47: #{resblock_forward.1} parent=5 // pred_region
        %s253 = ssub.s32 %s14, 1
        // Predicated region
        $region49: #{resblock_forward.1} parent=47 // pred_check
          %p254 = pneg %p103
        $region50: #{resblock_forward.1} parent=47 // pred_check_branch
          %256 = sbr.rel (%p254) target = $region52
        $region51: #{resblock_forward.1} parent=47 // pred_region
          %257 = dma.done [#allocation4], 9216
        $region52: #{resblock_forward.1} parent=47 // pred_fallthru
          _
        %p258 = scmp.lt.s32.totalorder %s19, 1
        %s259 = scalar_select %p258, %s19, 1
        %s260 = smul.addr %s259, 32
        %s261 = smul.addr %s260, 8
        %s262 = scalar_lea.vmem %s0, %s261
        %p263 = pneg %p40
        %p264 = pneg %p37
        %p265 = pneg %p61
        %p266 = pneg %p58
        %p267 = pneg %p82
        %p268 = pneg %p79
        %p269 = pneg %p103
        %p270 = pneg %p100
        %p271 = pneg %p124
        %p272 = pneg %p121
        %p273 = pneg %p145
        %p274 = pneg %p142
        %p275 = pneg %p166
        %p276 = pneg %p163
        %p277 = pneg %p192
        %p278 = pneg %p189
        %p279 = scmp.lt.s32.totalorder %s19, 1
        %s280 = scalar_select %p279, %s19, 1
        %s281 = smul.addr %s280, 32
        %s282 = smul.addr %s281, 8
        %s283 = scalar_lea.vmem %s7, %s282
        %p284 = scmp.lt.s32.totalorder %s19, 1
        %s285 = scalar_select %p284, %s19, 1
        %s286 = smul.addr %s285, 32
        %s287 = smul.addr %s286, 8
        %s288 = scalar_lea.vmem %s0, %s287
        %p289 = scmp.lt.s32.totalorder %s19, 1
        %s290 = scalar_select %p289, %s19, 1
        %s291 = smul.addr %s290, 32
        %s292 = smul.addr %s291, 8
        %s293 = scalar_lea.vmem %s7, %s292
        %295 = vst [vmem:[#allocation2] sm:$0xf] 0
        %296 = vst [vmem:[#allocation2 + $0x4] sm:$0xf] 0
        %297 = vst [vmem:[#allocation2 + $0x8] sm:$0x1] 0
        %s298 = scalar_lea.vmem [#allocation2], 204
        %299 = vst [vmem:[%s298] sm:$0xf] 0
        %300 = vst [vmem:[%s298 + $0x4] sm:$0xf] 0
        %301 = vst [vmem:[%s298 + $0x8] sm:$0x1] 0
        %vm302 = vcmask 1040384
        %vm303 = vsmask.f32 256
        %vm304 = vmand %vm302, %vm303
        %v305 = vld [vmem:[#allocation2] sm:$0x1]
        %v306 = vsel %vm304, 0, %v305
        %307 = vst [vmem:[#allocation2] sm:$0x1] %v306
        %v308 = vld [vmem:[#allocation2 + $0xc] sm:$0x1]
        %v309 = vsel %vm304, 0, %v308
        %310 = vst [vmem:[#allocation2 + $0xc] sm:$0x1] %v309
        %v311 = vld [vmem:[#allocation2 + $0x18] sm:$0x1]
        %v312 = vsel %vm304, 0, %v311
        %313 = vst [vmem:[#allocation2 + $0x18] sm:$0x1] %v312
        %v314 = vld [vmem:[#allocation2 + $0x24] sm:$0x1]
        %v315 = vsel %vm304, 0, %v314
        %316 = vst [vmem:[#allocation2 + $0x24] sm:$0x1] %v315
        %v317 = vld [vmem:[#allocation2 + $0x30] sm:$0x1]
        %v318 = vsel %vm304, 0, %v317
        %319 = vst [vmem:[#allocation2 + $0x30] sm:$0x1] %v318
        %v320 = vld [vmem:[#allocation2 + $0x3c] sm:$0x1]
        %v321 = vsel %vm304, 0, %v320
        %322 = vst [vmem:[#allocation2 + $0x3c] sm:$0x1] %v321
        %v323 = vld [vmem:[#allocation2 + $0x48] sm:$0x1]
        %v324 = vsel %vm304, 0, %v323
        %325 = vst [vmem:[#allocation2 + $0x48] sm:$0x1] %v324
        %v326 = vld [vmem:[#allocation2 + $0x54] sm:$0x1]
        %v327 = vsel %vm304, 0, %v326
        %328 = vst [vmem:[#allocation2 + $0x54] sm:$0x1] %v327
        %v329 = vld [vmem:[#allocation2 + $0x60] sm:$0x1]
        %v330 = vsel %vm304, 0, %v329
        %331 = vst [vmem:[#allocation2 + $0x60] sm:$0x1] %v330
        %v332 = vld [vmem:[#allocation2 + $0x6c] sm:$0x1]
        %v333 = vsel %vm304, 0, %v332
        %334 = vst [vmem:[#allocation2 + $0x6c] sm:$0x1] %v333
        %v335 = vld [vmem:[#allocation2 + $0x78] sm:$0x1]
        %v336 = vsel %vm304, 0, %v335
        %337 = vst [vmem:[#allocation2 + $0x78] sm:$0x1] %v336
        %v338 = vld [vmem:[#allocation2 + $0x84] sm:$0x1]
        %v339 = vsel %vm304, 0, %v338
        %340 = vst [vmem:[#allocation2 + $0x84] sm:$0x1] %v339
        %v341 = vld [vmem:[#allocation2 + $0x90] sm:$0x1]
        %v342 = vsel %vm304, 0, %v341
        %343 = vst [vmem:[#allocation2 + $0x90] sm:$0x1] %v342
        %v344 = vld [vmem:[#allocation2 + $0x9c] sm:$0x1]
        %v345 = vsel %vm304, 0, %v344
        %346 = vst [vmem:[#allocation2 + $0x9c] sm:$0x1] %v345
        %v347 = vld [vmem:[#allocation2 + $0xa8] sm:$0x1]
        %v348 = vsel %vm304, 0, %v347
        %349 = vst [vmem:[#allocation2 + $0xa8] sm:$0x1] %v348
        %v350 = vld [vmem:[#allocation2 + $0xb4] sm:$0x1]
        %v351 = vsel %vm304, 0, %v350
        %352 = vst [vmem:[#allocation2 + $0xb4] sm:$0x1] %v351
        %v353 = vld [vmem:[#allocation2 + $0xc0] sm:$0x1]
        %v354 = vsel %vm304, 0, %v353
        %355 = vst [vmem:[#allocation2 + $0xc0] sm:$0x1] %v354
        %v356 = vld [vmem:[#allocation2 + $0xcc] sm:$0x1]
        %v357 = vsel %vm304, 0, %v356
        %358 = vst [vmem:[#allocation2 + $0xcc] sm:$0x1] %v357
        %vm359 = vsmask.f32 7938
        %vm360 = vmand %vm302, %vm359
        %v361 = vld [vmem:[#allocation2 + $0x8] sm:$0x1]
        %v362 = vsel %vm360, 0, %v361
        %363 = vst [vmem:[#allocation2 + $0x8] sm:$0x1] %v362
        %v364 = vld [vmem:[#allocation2 + $0x14] sm:$0x1]
        %v365 = vsel %vm360, 0, %v364
        %366 = vst [vmem:[#allocation2 + $0x14] sm:$0x1] %v365
        %v367 = vld [vmem:[#allocation2 + $0x20] sm:$0x1]
        %v368 = vsel %vm360, 0, %v367
        %369 = vst [vmem:[#allocation2 + $0x20] sm:$0x1] %v368
        %v370 = vld [vmem:[#allocation2 + $0x2c] sm:$0x1]
        %v371 = vsel %vm360, 0, %v370
        %372 = vst [vmem:[#allocation2 + $0x2c] sm:$0x1] %v371
        %v373 = vld [vmem:[#allocation2 + $0x38] sm:$0x1]
        %v374 = vsel %vm360, 0, %v373
        %375 = vst [vmem:[#allocation2 + $0x38] sm:$0x1] %v374
        %v376 = vld [vmem:[#allocation2 + $0x44] sm:$0x1]
        %v377 = vsel %vm360, 0, %v376
        %378 = vst [vmem:[#allocation2 + $0x44] sm:$0x1] %v377
        %v379 = vld [vmem:[#allocation2 + $0x50] sm:$0x1]
        %v380 = vsel %vm360, 0, %v379
        %381 = vst [vmem:[#allocation2 + $0x50] sm:$0x1] %v380
        %v382 = vld [vmem:[#allocation2 + $0x5c] sm:$0x1]
        %v383 = vsel %vm360, 0, %v382
        %384 = vst [vmem:[#allocation2 + $0x5c] sm:$0x1] %v383
        %v385 = vld [vmem:[#allocation2 + $0x68] sm:$0x1]
        %v386 = vsel %vm360, 0, %v385
        %387 = vst [vmem:[#allocation2 + $0x68] sm:$0x1] %v386
        %v388 = vld [vmem:[#allocation2 + $0x74] sm:$0x1]
        %v389 = vsel %vm360, 0, %v388
        %390 = vst [vmem:[#allocation2 + $0x74] sm:$0x1] %v389
        %v391 = vld [vmem:[#allocation2 + $0x80] sm:$0x1]
        %v392 = vsel %vm360, 0, %v391
        %393 = vst [vmem:[#allocation2 + $0x80] sm:$0x1] %v392
        %v394 = vld [vmem:[#allocation2 + $0x8c] sm:$0x1]
        %v395 = vsel %vm360, 0, %v394
        %396 = vst [vmem:[#allocation2 + $0x8c] sm:$0x1] %v395
        %v397 = vld [vmem:[#allocation2 + $0x98] sm:$0x1]
        %v398 = vsel %vm360, 0, %v397
        %399 = vst [vmem:[#allocation2 + $0x98] sm:$0x1] %v398
        %v400 = vld [vmem:[#allocation2 + $0xa4] sm:$0x1]
        %v401 = vsel %vm360, 0, %v400
        %402 = vst [vmem:[#allocation2 + $0xa4] sm:$0x1] %v401
        %v403 = vld [vmem:[#allocation2 + $0xb0] sm:$0x1]
        %v404 = vsel %vm360, 0, %v403
        %405 = vst [vmem:[#allocation2 + $0xb0] sm:$0x1] %v404
        %v406 = vld [vmem:[#allocation2 + $0xbc] sm:$0x1]
        %v407 = vsel %vm360, 0, %v406
        %408 = vst [vmem:[#allocation2 + $0xbc] sm:$0x1] %v407
        %v409 = vld [vmem:[#allocation2 + $0xc8] sm:$0x1]
        %v410 = vsel %vm360, 0, %v409
        %411 = vst [vmem:[#allocation2 + $0xc8] sm:$0x1] %v410
        %v412 = vld [vmem:[#allocation2 + $0xd4] sm:$0x1]
        %v413 = vsel %vm360, 0, %v412
        %414 = vst [vmem:[#allocation2 + $0xd4] sm:$0x1] %v413
        %v415 = vld [vmem:[%s288] sm:$0xff]
        %v416 = vld [vmem:[%s288 + $0x8] sm:$0xff]
        %v417 = vld [vmem:[%s288 + $0x10] sm:$0xff]
        %v418 = vld [vmem:[%s288 + $0x18] sm:$0xff]
        %v419 = vld [vmem:[%s288 + $0x20] sm:$0xff]
        %v420 = vld [vmem:[%s288 + $0x28] sm:$0xff]
        %v421 = vld [vmem:[%s288 + $0x30] sm:$0xff]
        %v422 = vld [vmem:[%s288 + $0x38] sm:$0xff]
        %v423 = vld [vmem:[%s288 + $0x40] sm:$0xff]
        %v424 = vld [vmem:[%s288 + $0x48] sm:$0xff]
        %v425 = vld [vmem:[%s288 + $0x50] sm:$0xff]
        %v426 = vld [vmem:[%s288 + $0x58] sm:$0xff]
        %v427 = vld [vmem:[%s288 + $0x60] sm:$0xff]
        %v428 = vld [vmem:[%s288 + $0x68] sm:$0xff]
        %v429 = vld [vmem:[%s288 + $0x70] sm:$0xff]
        %v430 = vld [vmem:[%s288 + $0x78] sm:$0xff]
        %v431 = vld [vmem:[%s288 + $0x80] sm:$0xff]
        %v432 = vld [vmem:[%s288 + $0x88] sm:$0xff]
        %v433 = vld [vmem:[%s288 + $0x90] sm:$0xff]
        %v434 = vld [vmem:[%s288 + $0x98] sm:$0xff]
        %v435 = vld [vmem:[%s288 + $0xa0] sm:$0xff]
        %v436 = vld [vmem:[%s288 + $0xa8] sm:$0xff]
        %v437 = vld [vmem:[%s288 + $0xb0] sm:$0xff]
        %v438 = vld [vmem:[%s288 + $0xb8] sm:$0xff]
        %v439 = vld [vmem:[%s288 + $0xc0] sm:$0xff]
        %v440 = vld [vmem:[%s288 + $0xc8] sm:$0xff]
        %v441 = vld [vmem:[%s288 + $0xd0] sm:$0xff]
        %v442 = vld [vmem:[%s288 + $0xd8] sm:$0xff]
        %v443 = vld [vmem:[%s288 + $0xe0] sm:$0xff]
        %v444 = vld [vmem:[%s288 + $0xe8] sm:$0xff]
        %v445 = vld [vmem:[%s288 + $0xf0] sm:$0xff]
        %v446 = vld [vmem:[%s288 + $0xf8] sm:$0xff]
        %v447 = vpack.c.bf16 %v416, %v415
        %v448 = vpack.c.bf16 %v418, %v417
        %v449 = vpack.c.bf16 %v420, %v419
        %v450 = vpack.c.bf16 %v422, %v421
        %v451 = vpack.c.bf16 %v424, %v423
        %v452 = vpack.c.bf16 %v426, %v425
        %v453 = vpack.c.bf16 %v428, %v427
        %v454 = vpack.c.bf16 %v430, %v429
        %v455 = vpack.c.bf16 %v432, %v431
        %v456 = vpack.c.bf16 %v434, %v433
        %v457 = vpack.c.bf16 %v436, %v435
        %v458 = vpack.c.bf16 %v438, %v437
        %v459 = vpack.c.bf16 %v440, %v439
        %v460 = vpack.c.bf16 %v442, %v441
        %v461 = vpack.c.bf16 %v444, %v443
        %v462 = vpack.c.bf16 %v446, %v445
        %v479 = vunpack.c.l.b16 %v447
        %v480 = vunpack.c.h.b16 %v447
        %v481 = vunpack.c.l.b16 %v448
        %v482 = vunpack.c.h.b16 %v448
        %v483 = vunpack.c.l.b16 %v449
        %v484 = vunpack.c.h.b16 %v449
        %v485 = vunpack.c.l.b16 %v450
        %v486 = vunpack.c.h.b16 %v450
        %v487 = vunpack.c.l.b16 %v451
        %v488 = vunpack.c.h.b16 %v451
        %v489 = vunpack.c.l.b16 %v452
        %v490 = vunpack.c.h.b16 %v452
        %v491 = vunpack.c.l.b16 %v453
        %v492 = vunpack.c.h.b16 %v453
        %v493 = vunpack.c.l.b16 %v454
        %v494 = vunpack.c.h.b16 %v454
        %v495 = vunpack.c.l.b16 %v455
        %v496 = vunpack.c.h.b16 %v455
        %v497 = vunpack.c.l.b16 %v456
        %v498 = vunpack.c.h.b16 %v456
        %v499 = vunpack.c.l.b16 %v457
        %v500 = vunpack.c.h.b16 %v457
        %v501 = vunpack.c.l.b16 %v458
        %v502 = vunpack.c.h.b16 %v458
        %v503 = vunpack.c.l.b16 %v459
        %v504 = vunpack.c.h.b16 %v459
        %v505 = vunpack.c.l.b16 %v460
        %v506 = vunpack.c.h.b16 %v460
        %v507 = vunpack.c.l.b16 %v461
        %v508 = vunpack.c.h.b16 %v461
        %v509 = vunpack.c.l.b16 %v462
        %v510 = vunpack.c.h.b16 %v462
        %v511 = vpack.c.b16 %v479, %v479
        %v512 = vpack.c.b16 %v480, %v480
        %v513 = vpack.c.b16 %v481, %v481
        %v514 = vpack.c.b16 %v482, %v482
        %v515 = vpack.c.b16 %v483, %v483
        %v516 = vpack.c.b16 %v484, %v484
        %v517 = vpack.c.b16 %v485, %v485
        %v518 = vpack.c.b16 %v486, %v486
        %v519 = vpack.c.b16 %v487, %v487
        %v520 = vpack.c.b16 %v488, %v488
        %v521 = vpack.c.b16 %v489, %v489
        %v522 = vpack.c.b16 %v490, %v490
        %v523 = vpack.c.b16 %v491, %v491
        %v524 = vpack.c.b16 %v492, %v492
        %v525 = vpack.c.b16 %v493, %v493
        %v526 = vpack.c.b16 %v494, %v494
        %v527 = vpack.c.b16 %v495, %v495
        %v528 = vpack.c.b16 %v496, %v496
        %v529 = vpack.c.b16 %v497, %v497
        %v530 = vpack.c.b16 %v498, %v498
        %v531 = vpack.c.b16 %v499, %v499
        %v532 = vpack.c.b16 %v500, %v500
        %v533 = vpack.c.b16 %v501, %v501
        %v534 = vpack.c.b16 %v502, %v502
        %v535 = vpack.c.b16 %v503, %v503
        %v536 = vpack.c.b16 %v504, %v504
        %v537 = vpack.c.b16 %v505, %v505
        %v538 = vpack.c.b16 %v506, %v506
        %v539 = vpack.c.b16 %v507, %v507
        %v540 = vpack.c.b16 %v508, %v508
        %v541 = vpack.c.b16 %v509, %v509
        %v542 = vpack.c.b16 %v510, %v510
        %vm543 = vsmask.f32 4368
        %vm544 = vmor %vm303, %vm543
        %v546 = vshrl.u32 %v511, 16
        %v548 = vrot.slane %v546, 7
        %v549 = vshll.u32 %v511, 16
        %v551 = vor.u32 %v548, %v549
        %v552 = vrot.slane %v548, 4
        %v554 = vshrl.u32 %v512, 16
        %v556 = vrot.slane %v554, 7
        %v557 = vshll.u32 %v512, 16
        %v559 = vor.u32 %v556, %v557
        %v560 = vsel %vm544, %v552, %v559
        %v561 = vrot.slane %v556, 4
        %v563 = vshrl.u32 %v513, 16
        %v565 = vrot.slane %v563, 7
        %v566 = vshll.u32 %v513, 16
        %v568 = vor.u32 %v565, %v566
        %v569 = vrot.slane %v565, 4
        %v571 = vshrl.u32 %v514, 16
        %v573 = vrot.slane %v571, 7
        %v574 = vshll.u32 %v514, 16
        %v576 = vor.u32 %v573, %v574
        %v577 = vsel %vm544, %v569, %v576
        %v578 = vrot.slane %v573, 4
        %v580 = vshrl.u32 %v515, 16
        %v582 = vrot.slane %v580, 7
        %v583 = vshll.u32 %v515, 16
        %v585 = vor.u32 %v582, %v583
        %v586 = vrot.slane %v582, 4
        %v588 = vshrl.u32 %v516, 16
        %v590 = vrot.slane %v588, 7
        %v591 = vshll.u32 %v516, 16
        %v593 = vor.u32 %v590, %v591
        %v594 = vsel %vm544, %v586, %v593
        %v595 = vrot.slane %v590, 4
        %v597 = vshrl.u32 %v517, 16
        %v599 = vrot.slane %v597, 7
        %v600 = vshll.u32 %v517, 16
        %v602 = vor.u32 %v599, %v600
        %v603 = vrot.slane %v599, 4
        %v605 = vshrl.u32 %v518, 16
        %v607 = vrot.slane %v605, 7
        %v608 = vshll.u32 %v518, 16
        %v610 = vor.u32 %v607, %v608
        %v611 = vsel %vm544, %v603, %v610
        %v612 = vrot.slane %v607, 4
        %v614 = vshrl.u32 %v519, 16
        %v616 = vrot.slane %v614, 7
        %v617 = vshll.u32 %v519, 16
        %v619 = vor.u32 %v616, %v617
        %v620 = vrot.slane %v616, 4
        %v622 = vshrl.u32 %v520, 16
        %v624 = vrot.slane %v622, 7
        %v625 = vshll.u32 %v520, 16
        %v627 = vor.u32 %v624, %v625
        %v628 = vsel %vm544, %v620, %v627
        %v629 = vrot.slane %v624, 4
        %v631 = vshrl.u32 %v521, 16
        %v633 = vrot.slane %v631, 7
        %v634 = vshll.u32 %v521, 16
        %v636 = vor.u32 %v633, %v634
        %v637 = vrot.slane %v633, 4
        %v639 = vshrl.u32 %v522, 16
        %v641 = vrot.slane %v639, 7
        %v642 = vshll.u32 %v522, 16
        %v644 = vor.u32 %v641, %v642
        %v645 = vsel %vm544, %v637, %v644
        %v646 = vrot.slane %v641, 4
        %v648 = vshrl.u32 %v523, 16
        %v650 = vrot.slane %v648, 7
        %v651 = vshll.u32 %v523, 16
        %v653 = vor.u32 %v650, %v651
        %v654 = vrot.slane %v650, 4
        %v656 = vshrl.u32 %v524, 16
        %v658 = vrot.slane %v656, 7
        %v659 = vshll.u32 %v524, 16
        %v661 = vor.u32 %v658, %v659
        %v662 = vsel %vm544, %v654, %v661
        %v663 = vrot.slane %v658, 4
        %v665 = vshrl.u32 %v525, 16
        %v667 = vrot.slane %v665, 7
        %v668 = vshll.u32 %v525, 16
        %v670 = vor.u32 %v667, %v668
        %v671 = vrot.slane %v667, 4
        %v673 = vshrl.u32 %v526, 16
        %v675 = vrot.slane %v673, 7
        %v676 = vshll.u32 %v526, 16
        %v678 = vor.u32 %v675, %v676
        %v679 = vsel %vm544, %v671, %v678
        %v680 = vrot.slane %v675, 4
        %v682 = vshrl.u32 %v527, 16
        %v684 = vrot.slane %v682, 7
        %v685 = vshll.u32 %v527, 16
        %v687 = vor.u32 %v684, %v685
        %v688 = vrot.slane %v684, 4
        %v690 = vshrl.u32 %v528, 16
        %v692 = vrot.slane %v690, 7
        %v693 = vshll.u32 %v528, 16
        %v695 = vor.u32 %v692, %v693
        %v696 = vsel %vm544, %v688, %v695
        %v697 = vrot.slane %v692, 4
        %v699 = vshrl.u32 %v529, 16
        %v701 = vrot.slane %v699, 7
        %v702 = vshll.u32 %v529, 16
        %v704 = vor.u32 %v701, %v702
        %v705 = vrot.slane %v701, 4
        %v707 = vshrl.u32 %v530, 16
        %v709 = vrot.slane %v707, 7
        %v710 = vshll.u32 %v530, 16
        %v712 = vor.u32 %v709, %v710
        %v713 = vsel %vm544, %v705, %v712
        %v714 = vrot.slane %v709, 4
        %v716 = vshrl.u32 %v531, 16
        %v718 = vrot.slane %v716, 7
        %v719 = vshll.u32 %v531, 16
        %v721 = vor.u32 %v718, %v719
        %v722 = vrot.slane %v718, 4
        %v724 = vshrl.u32 %v532, 16
        %v726 = vrot.slane %v724, 7
        %v727 = vshll.u32 %v532, 16
        %v729 = vor.u32 %v726, %v727
        %v730 = vsel %vm544, %v722, %v729
        %v731 = vrot.slane %v726, 4
        %v733 = vshrl.u32 %v533, 16
        %v735 = vrot.slane %v733, 7
        %v736 = vshll.u32 %v533, 16
        %v738 = vor.u32 %v735, %v736
        %v739 = vrot.slane %v735, 4
        %v741 = vshrl.u32 %v534, 16
        %v743 = vrot.slane %v741, 7
        %v744 = vshll.u32 %v534, 16
        %v746 = vor.u32 %v743, %v744
        %v747 = vsel %vm544, %v739, %v746
        %v748 = vrot.slane %v743, 4
        %v750 = vshrl.u32 %v535, 16
        %v752 = vrot.slane %v750, 7
        %v753 = vshll.u32 %v535, 16
        %v755 = vor.u32 %v752, %v753
        %v756 = vrot.slane %v752, 4
        %v758 = vshrl.u32 %v536, 16
        %v760 = vrot.slane %v758, 7
        %v761 = vshll.u32 %v536, 16
        %v763 = vor.u32 %v760, %v761
        %v764 = vsel %vm544, %v756, %v763
        %v765 = vrot.slane %v760, 4
        %v767 = vshrl.u32 %v537, 16
        %v769 = vrot.slane %v767, 7
        %v770 = vshll.u32 %v537, 16
        %v772 = vor.u32 %v769, %v770
        %v773 = vrot.slane %v769, 4
        %v775 = vshrl.u32 %v538, 16
        %v777 = vrot.slane %v775, 7
        %v778 = vshll.u32 %v538, 16
        %v780 = vor.u32 %v777, %v778
        %v781 = vsel %vm544, %v773, %v780
        %v782 = vrot.slane %v777, 4
        %v784 = vshrl.u32 %v539, 16
        %v786 = vrot.slane %v784, 7
        %v787 = vshll.u32 %v539, 16
        %v789 = vor.u32 %v786, %v787
        %v790 = vrot.slane %v786, 4
        %v792 = vshrl.u32 %v540, 16
        %v794 = vrot.slane %v792, 7
        %v795 = vshll.u32 %v540, 16
        %v797 = vor.u32 %v794, %v795
        %v798 = vsel %vm544, %v790, %v797
        %v799 = vrot.slane %v794, 4
        %v801 = vshrl.u32 %v541, 16
        %v803 = vrot.slane %v801, 7
        %v804 = vshll.u32 %v541, 16
        %v806 = vor.u32 %v803, %v804
        %v807 = vrot.slane %v803, 4
        %v809 = vshrl.u32 %v542, 16
        %v811 = vrot.slane %v809, 7
        %v812 = vshll.u32 %v542, 16
        %v814 = vor.u32 %v811, %v812
        %v815 = vsel %vm544, %v807, %v814
        %v816 = vrot.slane %v811, 4
        %s865 = scalar_lea.vmem [#allocation2], 12
        %vm866 = vcmask 1043456
        %vm867 = vmand %vm866, %vm359
        %v868 = vld [vmem:[%s865] sm:$0xf]
        %v869 = vsel %vm867, %v551, %v868
        %870 = vst [vmem:[%s865] sm:$0xf] %v869
        %871 = vst [vmem:[%s865 + $0x4] sm:$0xf] %v560
        %v872 = vld [vmem:[%s865 + $0x8] sm:$0x1]
        %v873 = vsel %vm304, %v561, %v872
        %874 = vst [vmem:[%s865 + $0x8] sm:$0x1] %v873
        %v875 = vld [vmem:[%s865 + $0xc] sm:$0xf]
        %v876 = vsel %vm867, %v568, %v875
        %877 = vst [vmem:[%s865 + $0xc] sm:$0xf] %v876
        %878 = vst [vmem:[%s865 + $0x10] sm:$0xf] %v577
        %v879 = vld [vmem:[%s865 + $0x14] sm:$0x1]
        %v880 = vsel %vm304, %v578, %v879
        %881 = vst [vmem:[%s865 + $0x14] sm:$0x1] %v880
        %v882 = vld [vmem:[%s865 + $0x18] sm:$0xf]
        %v883 = vsel %vm867, %v585, %v882
        %884 = vst [vmem:[%s865 + $0x18] sm:$0xf] %v883
        %885 = vst [vmem:[%s865 + $0x1c] sm:$0xf] %v594
        %v886 = vld [vmem:[%s865 + $0x20] sm:$0x1]
        %v887 = vsel %vm304, %v595, %v886
        %888 = vst [vmem:[%s865 + $0x20] sm:$0x1] %v887
        %v889 = vld [vmem:[%s865 + $0x24] sm:$0xf]
        %v890 = vsel %vm867, %v602, %v889
        %891 = vst [vmem:[%s865 + $0x24] sm:$0xf] %v890
        %892 = vst [vmem:[%s865 + $0x28] sm:$0xf] %v611
        %v893 = vld [vmem:[%s865 + $0x2c] sm:$0x1]
        %v894 = vsel %vm304, %v612, %v893
        %895 = vst [vmem:[%s865 + $0x2c] sm:$0x1] %v894
        %v896 = vld [vmem:[%s865 + $0x30] sm:$0xf]
        %v897 = vsel %vm867, %v619, %v896
        %898 = vst [vmem:[%s865 + $0x30] sm:$0xf] %v897
        %899 = vst [vmem:[%s865 + $0x34] sm:$0xf] %v628
        %v900 = vld [vmem:[%s865 + $0x38] sm:$0x1]
        %v901 = vsel %vm304, %v629, %v900
        %902 = vst [vmem:[%s865 + $0x38] sm:$0x1] %v901
        %v903 = vld [vmem:[%s865 + $0x3c] sm:$0xf]
        %v904 = vsel %vm867, %v636, %v903
        %905 = vst [vmem:[%s865 + $0x3c] sm:$0xf] %v904
        %906 = vst [vmem:[%s865 + $0x40] sm:$0xf] %v645
        %v907 = vld [vmem:[%s865 + $0x44] sm:$0x1]
        %v908 = vsel %vm304, %v646, %v907
        %909 = vst [vmem:[%s865 + $0x44] sm:$0x1] %v908
        %v910 = vld [vmem:[%s865 + $0x48] sm:$0xf]
        %v911 = vsel %vm867, %v653, %v910
        %912 = vst [vmem:[%s865 + $0x48] sm:$0xf] %v911
        %913 = vst [vmem:[%s865 + $0x4c] sm:$0xf] %v662
        %v914 = vld [vmem:[%s865 + $0x50] sm:$0x1]
        %v915 = vsel %vm304, %v663, %v914
        %916 = vst [vmem:[%s865 + $0x50] sm:$0x1] %v915
        %v917 = vld [vmem:[%s865 + $0x54] sm:$0xf]
        %v918 = vsel %vm867, %v670, %v917
        %919 = vst [vmem:[%s865 + $0x54] sm:$0xf] %v918
        %920 = vst [vmem:[%s865 + $0x58] sm:$0xf] %v679
        %v921 = vld [vmem:[%s865 + $0x5c] sm:$0x1]
        %v922 = vsel %vm304, %v680, %v921
        %923 = vst [vmem:[%s865 + $0x5c] sm:$0x1] %v922
        %v924 = vld [vmem:[%s865 + $0x60] sm:$0xf]
        %v925 = vsel %vm867, %v687, %v924
        %926 = vst [vmem:[%s865 + $0x60] sm:$0xf] %v925
        %927 = vst [vmem:[%s865 + $0x64] sm:$0xf] %v696
        %v928 = vld [vmem:[%s865 + $0x68] sm:$0x1]
        %v929 = vsel %vm304, %v697, %v928
        %930 = vst [vmem:[%s865 + $0x68] sm:$0x1] %v929
        %v931 = vld [vmem:[%s865 + $0x6c] sm:$0xf]
        %v932 = vsel %vm867, %v704, %v931
        %933 = vst [vmem:[%s865 + $0x6c] sm:$0xf] %v932
        %934 = vst [vmem:[%s865 + $0x70] sm:$0xf] %v713
        %v935 = vld [vmem:[%s865 + $0x74] sm:$0x1]
        %v936 = vsel %vm304, %v714, %v935
        %937 = vst [vmem:[%s865 + $0x74] sm:$0x1] %v936
        %v938 = vld [vmem:[%s865 + $0x78] sm:$0xf]
        %v939 = vsel %vm867, %v721, %v938
        %940 = vst [vmem:[%s865 + $0x78] sm:$0xf] %v939
        %941 = vst [vmem:[%s865 + $0x7c] sm:$0xf] %v730
        %v942 = vld [vmem:[%s865 + $0x80] sm:$0x1]
        %v943 = vsel %vm304, %v731, %v942
        %944 = vst [vmem:[%s865 + $0x80] sm:$0x1] %v943
        %v945 = vld [vmem:[%s865 + $0x84] sm:$0xf]
        %v946 = vsel %vm867, %v738, %v945
        %947 = vst [vmem:[%s865 + $0x84] sm:$0xf] %v946
        %948 = vst [vmem:[%s865 + $0x88] sm:$0xf] %v747
        %v949 = vld [vmem:[%s865 + $0x8c] sm:$0x1]
        %v950 = vsel %vm304, %v748, %v949
        %951 = vst [vmem:[%s865 + $0x8c] sm:$0x1] %v950
        %v952 = vld [vmem:[%s865 + $0x90] sm:$0xf]
        %v953 = vsel %vm867, %v755, %v952
        %954 = vst [vmem:[%s865 + $0x90] sm:$0xf] %v953
        %955 = vst [vmem:[%s865 + $0x94] sm:$0xf] %v764
        %v956 = vld [vmem:[%s865 + $0x98] sm:$0x1]
        %v957 = vsel %vm304, %v765, %v956
        %958 = vst [vmem:[%s865 + $0x98] sm:$0x1] %v957
        %v959 = vld [vmem:[%s865 + $0x9c] sm:$0xf]
        %v960 = vsel %vm867, %v772, %v959
        %961 = vst [vmem:[%s865 + $0x9c] sm:$0xf] %v960
        %962 = vst [vmem:[%s865 + $0xa0] sm:$0xf] %v781
        %v963 = vld [vmem:[%s865 + $0xa4] sm:$0x1]
        %v964 = vsel %vm304, %v782, %v963
        %965 = vst [vmem:[%s865 + $0xa4] sm:$0x1] %v964
        %v966 = vld [vmem:[%s865 + $0xa8] sm:$0xf]
        %v967 = vsel %vm867, %v789, %v966
        %968 = vst [vmem:[%s865 + $0xa8] sm:$0xf] %v967
        %969 = vst [vmem:[%s865 + $0xac] sm:$0xf] %v798
        %v970 = vld [vmem:[%s865 + $0xb0] sm:$0x1]
        %v971 = vsel %vm304, %v799, %v970
        %972 = vst [vmem:[%s865 + $0xb0] sm:$0x1] %v971
        %v973 = vld [vmem:[%s865 + $0xb4] sm:$0xf]
        %v974 = vsel %vm867, %v806, %v973
        %975 = vst [vmem:[%s865 + $0xb4] sm:$0xf] %v974
        %976 = vst [vmem:[%s865 + $0xb8] sm:$0xf] %v815
        %v977 = vld [vmem:[%s865 + $0xbc] sm:$0x1]
        %v978 = vsel %vm304, %v816, %v977
        %979 = vst [vmem:[%s865 + $0xbc] sm:$0x1] %v978
        %v980 = vld [vmem:[#allocation2] sm:$0xf]
        %v981 = vld [vmem:[#allocation2 + $0x4] sm:$0xf]
        %v982 = vld [vmem:[#allocation2 + $0xc] sm:$0xf]
        %v983 = vld [vmem:[#allocation2 + $0x10] sm:$0xf]
        %v984 = vld [vmem:[#allocation2 + $0x18] sm:$0xf]
        %v985 = vld [vmem:[#allocation2 + $0x1c] sm:$0xf]
        %v986 = vld [vmem:[#allocation2 + $0x24] sm:$0xf]
        %v987 = vld [vmem:[#allocation2 + $0x28] sm:$0xf]
        %v988 = vld [vmem:[#allocation2 + $0x30] sm:$0xf]
        %v989 = vld [vmem:[#allocation2 + $0x34] sm:$0xf]
        %v990 = vld [vmem:[#allocation2 + $0x3c] sm:$0xf]
        %v991 = vld [vmem:[#allocation2 + $0x40] sm:$0xf]
        %v992 = vld [vmem:[#allocation2 + $0x48] sm:$0xf]
        %v993 = vld [vmem:[#allocation2 + $0x4c] sm:$0xf]
        %v994 = vld [vmem:[#allocation2 + $0x54] sm:$0xf]
        %v995 = vld [vmem:[#allocation2 + $0x58] sm:$0xf]
        %v996 = vld [vmem:[#allocation2 + $0x60] sm:$0xf]
        %v997 = vld [vmem:[#allocation2 + $0x64] sm:$0xf]
        %v998 = vld [vmem:[#allocation2 + $0x6c] sm:$0xf]
        %v999 = vld [vmem:[#allocation2 + $0x70] sm:$0xf]
        %v1000 = vld [vmem:[#allocation2 + $0x78] sm:$0xf]
        %v1001 = vld [vmem:[#allocation2 + $0x7c] sm:$0xf]
        %v1002 = vld [vmem:[#allocation2 + $0x84] sm:$0xf]
        %v1003 = vld [vmem:[#allocation2 + $0x88] sm:$0xf]
        %v1004 = vld [vmem:[#allocation2 + $0x90] sm:$0xf]
        %v1005 = vld [vmem:[#allocation2 + $0x94] sm:$0xf]
        %v1006 = vld [vmem:[#allocation2 + $0x9c] sm:$0xf]
        %v1007 = vld [vmem:[#allocation2 + $0xa0] sm:$0xf]
        %v1008 = vld [vmem:[#allocation2 + $0xa8] sm:$0xf]
        %v1009 = vld [vmem:[#allocation2 + $0xac] sm:$0xf]
        %v1010 = vld [vmem:[#allocation2 + $0xb4] sm:$0xf]
        %v1011 = vld [vmem:[#allocation2 + $0xb8] sm:$0xf]
        %v1012 = vld [vmem:[#allocation2 + $0x8] sm:$0x1]
        %v1013 = vld [vmem:[#allocation2 + $0x14] sm:$0x1]
        %v1014 = vld [vmem:[#allocation2 + $0x20] sm:$0x1]
        %v1015 = vld [vmem:[#allocation2 + $0x2c] sm:$0x1]
        %v1016 = vld [vmem:[#allocation2 + $0x38] sm:$0x1]
        %v1017 = vld [vmem:[#allocation2 + $0x44] sm:$0x1]
        %v1018 = vld [vmem:[#allocation2 + $0x50] sm:$0x1]
        %v1019 = vld [vmem:[#allocation2 + $0x5c] sm:$0x1]
        %v1020 = vld [vmem:[#allocation2 + $0x68] sm:$0x1]
        %v1021 = vld [vmem:[#allocation2 + $0x74] sm:$0x1]
        %v1022 = vld [vmem:[#allocation2 + $0x80] sm:$0x1]
        %v1023 = vld [vmem:[#allocation2 + $0x8c] sm:$0x1]
        %v1024 = vld [vmem:[#allocation2 + $0x98] sm:$0x1]
        %v1025 = vld [vmem:[#allocation2 + $0xa4] sm:$0x1]
        %v1026 = vld [vmem:[#allocation2 + $0xb0] sm:$0x1]
        %v1027 = vld [vmem:[#allocation2 + $0xbc] sm:$0x1]
        %vm1028 = vsmask.f32 3328
        %vm1029 = vsmask.f32 7440
        %vm1030 = vmor %vm1028, %vm1029
        %v1032 = vshrl.u32 %v980, 16
        %v1034 = vrot.slane %v1032, 4
        %v1035 = vshll.u32 %v980, 16
        %v1037 = vrot.slane %v1035, 5
        %v1038 = vor.u32 %v1034, %v1037
        %v1039 = vrot.slane %v1038, 4
        %v1041 = vshll.u32 %v981, 16
        %v1043 = vrot.slane %v1041, 5
        %v1044 = vsel %vm1030, %v1039, %v1043
        %v1045 = vshrl.u32 %v981, 16
        %v1047 = vrot.slane %v1045, 4
        %v1048 = vor.u32 %v1047, %v1043
        %v1049 = vrot.slane %v1048, 4
        %v1051 = vshll.u32 %v1012, 16
        %v1053 = vrot.slane %v1051, 5
        %v1054 = vsel %vm1030, %v1049, %v1053
        %v1056 = vshrl.u32 %v982, 16
        %v1058 = vrot.slane %v1056, 4
        %v1059 = vshll.u32 %v982, 16
        %v1061 = vrot.slane %v1059, 5
        %v1062 = vor.u32 %v1058, %v1061
        %v1063 = vrot.slane %v1062, 4
        %v1065 = vshll.u32 %v983, 16
        %v1067 = vrot.slane %v1065, 5
        %v1068 = vsel %vm1030, %v1063, %v1067
        %v1069 = vshrl.u32 %v983, 16
        %v1071 = vrot.slane %v1069, 4
        %v1072 = vor.u32 %v1071, %v1067
        %v1073 = vrot.slane %v1072, 4
        %v1075 = vshll.u32 %v1013, 16
        %v1077 = vrot.slane %v1075, 5
        %v1078 = vsel %vm1030, %v1073, %v1077
        %v1080 = vshrl.u32 %v984, 16
        %v1082 = vrot.slane %v1080, 4
        %v1083 = vshll.u32 %v984, 16
        %v1085 = vrot.slane %v1083, 5
        %v1086 = vor.u32 %v1082, %v1085
        %v1087 = vrot.slane %v1086, 4
        %v1089 = vshll.u32 %v985, 16
        %v1091 = vrot.slane %v1089, 5
        %v1092 = vsel %vm1030, %v1087, %v1091
        %v1093 = vshrl.u32 %v985, 16
        %v1095 = vrot.slane %v1093, 4
        %v1096 = vor.u32 %v1095, %v1091
        %v1097 = vrot.slane %v1096, 4
        %v1099 = vshll.u32 %v1014, 16
        %v1101 = vrot.slane %v1099, 5
        %v1102 = vsel %vm1030, %v1097, %v1101
        %v1104 = vshrl.u32 %v986, 16
        %v1106 = vrot.slane %v1104, 4
        %v1107 = vshll.u32 %v986, 16
        %v1109 = vrot.slane %v1107, 5
        %v1110 = vor.u32 %v1106, %v1109
        %v1111 = vrot.slane %v1110, 4
        %v1113 = vshll.u32 %v987, 16
        %v1115 = vrot.slane %v1113, 5
        %v1116 = vsel %vm1030, %v1111, %v1115
        %v1117 = vshrl.u32 %v987, 16
        %v1119 = vrot.slane %v1117, 4
        %v1120 = vor.u32 %v1119, %v1115
        %v1121 = vrot.slane %v1120, 4
        %v1123 = vshll.u32 %v1015, 16
        %v1125 = vrot.slane %v1123, 5
        %v1126 = vsel %vm1030, %v1121, %v1125
        %v1128 = vshrl.u32 %v988, 16
        %v1130 = vrot.slane %v1128, 4
        %v1131 = vshll.u32 %v988, 16
        %v1133 = vrot.slane %v1131, 5
        %v1134 = vor.u32 %v1130, %v1133
        %v1135 = vrot.slane %v1134, 4
        %v1137 = vshll.u32 %v989, 16
        %v1139 = vrot.slane %v1137, 5
        %v1140 = vsel %vm1030, %v1135, %v1139
        %v1141 = vshrl.u32 %v989, 16
        %v1143 = vrot.slane %v1141, 4
        %v1144 = vor.u32 %v1143, %v1139
        %v1145 = vrot.slane %v1144, 4
        %v1147 = vshll.u32 %v1016, 16
        %v1149 = vrot.slane %v1147, 5
        %v1150 = vsel %vm1030, %v1145, %v1149
        %v1152 = vshrl.u32 %v990, 16
        %v1154 = vrot.slane %v1152, 4
        %v1155 = vshll.u32 %v990, 16
        %v1157 = vrot.slane %v1155, 5
        %v1158 = vor.u32 %v1154, %v1157
        %v1159 = vrot.slane %v1158, 4
        %v1161 = vshll.u32 %v991, 16
        %v1163 = vrot.slane %v1161, 5
        %v1164 = vsel %vm1030, %v1159, %v1163
        %v1165 = vshrl.u32 %v991, 16
        %v1167 = vrot.slane %v1165, 4
        %v1168 = vor.u32 %v1167, %v1163
        %v1169 = vrot.slane %v1168, 4
        %v1171 = vshll.u32 %v1017, 16
        %v1173 = vrot.slane %v1171, 5
        %v1174 = vsel %vm1030, %v1169, %v1173
        %v1176 = vshrl.u32 %v992, 16
        %v1178 = vrot.slane %v1176, 4
        %v1179 = vshll.u32 %v992, 16
        %v1181 = vrot.slane %v1179, 5
        %v1182 = vor.u32 %v1178, %v1181
        %v1183 = vrot.slane %v1182, 4
        %v1185 = vshll.u32 %v993, 16
        %v1187 = vrot.slane %v1185, 5
        %v1188 = vsel %vm1030, %v1183, %v1187
        %v1189 = vshrl.u32 %v993, 16
        %v1191 = vrot.slane %v1189, 4
        %v1192 = vor.u32 %v1191, %v1187
        %v1193 = vrot.slane %v1192, 4
        %v1195 = vshll.u32 %v1018, 16
        %v1197 = vrot.slane %v1195, 5
        %v1198 = vsel %vm1030, %v1193, %v1197
        %v1200 = vshrl.u32 %v994, 16
        %v1202 = vrot.slane %v1200, 4
        %v1203 = vshll.u32 %v994, 16
        %v1205 = vrot.slane %v1203, 5
        %v1206 = vor.u32 %v1202, %v1205
        %v1207 = vrot.slane %v1206, 4
        %v1209 = vshll.u32 %v995, 16
        %v1211 = vrot.slane %v1209, 5
        %v1212 = vsel %vm1030, %v1207, %v1211
        %v1213 = vshrl.u32 %v995, 16
        %v1215 = vrot.slane %v1213, 4
        %v1216 = vor.u32 %v1215, %v1211
        %v1217 = vrot.slane %v1216, 4
        %v1219 = vshll.u32 %v1019, 16
        %v1221 = vrot.slane %v1219, 5
        %v1222 = vsel %vm1030, %v1217, %v1221
        %v1224 = vshrl.u32 %v996, 16
        %v1226 = vrot.slane %v1224, 4
        %v1227 = vshll.u32 %v996, 16
        %v1229 = vrot.slane %v1227, 5
        %v1230 = vor.u32 %v1226, %v1229
        %v1231 = vrot.slane %v1230, 4
        %v1233 = vshll.u32 %v997, 16
        %v1235 = vrot.slane %v1233, 5
        %v1236 = vsel %vm1030, %v1231, %v1235
        %v1237 = vshrl.u32 %v997, 16
        %v1239 = vrot.slane %v1237, 4
        %v1240 = vor.u32 %v1239, %v1235
        %v1241 = vrot.slane %v1240, 4
        %v1243 = vshll.u32 %v1020, 16
        %v1245 = vrot.slane %v1243, 5
        %v1246 = vsel %vm1030, %v1241, %v1245
        %v1248 = vshrl.u32 %v998, 16
        %v1250 = vrot.slane %v1248, 4
        %v1251 = vshll.u32 %v998, 16
        %v1253 = vrot.slane %v1251, 5
        %v1254 = vor.u32 %v1250, %v1253
        %v1255 = vrot.slane %v1254, 4
        %v1257 = vshll.u32 %v999, 16
        %v1259 = vrot.slane %v1257, 5
        %v1260 = vsel %vm1030, %v1255, %v1259
        %v1261 = vshrl.u32 %v999, 16
        %v1263 = vrot.slane %v1261, 4
        %v1264 = vor.u32 %v1263, %v1259
        %v1265 = vrot.slane %v1264, 4
        %v1267 = vshll.u32 %v1021, 16
        %v1269 = vrot.slane %v1267, 5
        %v1270 = vsel %vm1030, %v1265, %v1269
        %v1272 = vshrl.u32 %v1000, 16
        %v1274 = vrot.slane %v1272, 4
        %v1275 = vshll.u32 %v1000, 16
        %v1277 = vrot.slane %v1275, 5
        %v1278 = vor.u32 %v1274, %v1277
        %v1279 = vrot.slane %v1278, 4
        %v1281 = vshll.u32 %v1001, 16
        %v1283 = vrot.slane %v1281, 5
        %v1284 = vsel %vm1030, %v1279, %v1283
        %v1285 = vshrl.u32 %v1001, 16
        %v1287 = vrot.slane %v1285, 4
        %v1288 = vor.u32 %v1287, %v1283
        %v1289 = vrot.slane %v1288, 4
        %v1291 = vshll.u32 %v1022, 16
        %v1293 = vrot.slane %v1291, 5
        %v1294 = vsel %vm1030, %v1289, %v1293
        %v1296 = vshrl.u32 %v1002, 16
        %v1298 = vrot.slane %v1296, 4
        %v1299 = vshll.u32 %v1002, 16
        %v1301 = vrot.slane %v1299, 5
        %v1302 = vor.u32 %v1298, %v1301
        %v1303 = vrot.slane %v1302, 4
        %v1305 = vshll.u32 %v1003, 16
        %v1307 = vrot.slane %v1305, 5
        %v1308 = vsel %vm1030, %v1303, %v1307
        %v1309 = vshrl.u32 %v1003, 16
        %v1311 = vrot.slane %v1309, 4
        %v1312 = vor.u32 %v1311, %v1307
        %v1313 = vrot.slane %v1312, 4
        %v1315 = vshll.u32 %v1023, 16
        %v1317 = vrot.slane %v1315, 5
        %v1318 = vsel %vm1030, %v1313, %v1317
        %v1320 = vshrl.u32 %v1004, 16
        %v1322 = vrot.slane %v1320, 4
        %v1323 = vshll.u32 %v1004, 16
        %v1325 = vrot.slane %v1323, 5
        %v1326 = vor.u32 %v1322, %v1325
        %v1327 = vrot.slane %v1326, 4
        %v1329 = vshll.u32 %v1005, 16
        %v1331 = vrot.slane %v1329, 5
        %v1332 = vsel %vm1030, %v1327, %v1331
        %v1333 = vshrl.u32 %v1005, 16
        %v1335 = vrot.slane %v1333, 4
        %v1336 = vor.u32 %v1335, %v1331
        %v1337 = vrot.slane %v1336, 4
        %v1339 = vshll.u32 %v1024, 16
        %v1341 = vrot.slane %v1339, 5
        %v1342 = vsel %vm1030, %v1337, %v1341
        %v1344 = vshrl.u32 %v1006, 16
        %v1346 = vrot.slane %v1344, 4
        %v1347 = vshll.u32 %v1006, 16
        %v1349 = vrot.slane %v1347, 5
        %v1350 = vor.u32 %v1346, %v1349
        %v1351 = vrot.slane %v1350, 4
        %v1353 = vshll.u32 %v1007, 16
        %v1355 = vrot.slane %v1353, 5
        %v1356 = vsel %vm1030, %v1351, %v1355
        %v1357 = vshrl.u32 %v1007, 16
        %v1359 = vrot.slane %v1357, 4
        %v1360 = vor.u32 %v1359, %v1355
        %v1361 = vrot.slane %v1360, 4
        %v1363 = vshll.u32 %v1025, 16
        %v1365 = vrot.slane %v1363, 5
        %v1366 = vsel %vm1030, %v1361, %v1365
        %v1368 = vshrl.u32 %v1008, 16
        %v1370 = vrot.slane %v1368, 4
        %v1371 = vshll.u32 %v1008, 16
        %v1373 = vrot.slane %v1371, 5
        %v1374 = vor.u32 %v1370, %v1373
        %v1375 = vrot.slane %v1374, 4
        %v1377 = vshll.u32 %v1009, 16
        %v1379 = vrot.slane %v1377, 5
        %v1380 = vsel %vm1030, %v1375, %v1379
        %v1381 = vshrl.u32 %v1009, 16
        %v1383 = vrot.slane %v1381, 4
        %v1384 = vor.u32 %v1383, %v1379
        %v1385 = vrot.slane %v1384, 4
        %v1387 = vshll.u32 %v1026, 16
        %v1389 = vrot.slane %v1387, 5
        %v1390 = vsel %vm1030, %v1385, %v1389
        %v1392 = vshrl.u32 %v1010, 16
        %v1394 = vrot.slane %v1392, 4
        %v1395 = vshll.u32 %v1010, 16
        %v1397 = vrot.slane %v1395, 5
        %v1398 = vor.u32 %v1394, %v1397
        %v1399 = vrot.slane %v1398, 4
        %v1401 = vshll.u32 %v1011, 16
        %v1403 = vrot.slane %v1401, 5
        %v1404 = vsel %vm1030, %v1399, %v1403
        %v1405 = vshrl.u32 %v1011, 16
        %v1407 = vrot.slane %v1405, 4
        %v1408 = vor.u32 %v1407, %v1403
        %v1409 = vrot.slane %v1408, 4
        %v1411 = vshll.u32 %v1027, 16
        %v1413 = vrot.slane %v1411, 5
        %v1414 = vsel %vm1030, %v1409, %v1413
        %v1415 = vld [vmem:[#allocation2] sm:$0xe]
        %v1416 = vld [vmem:[#allocation2 + $0xc] sm:$0xe]
        %v1417 = vld [vmem:[#allocation2 + $0x18] sm:$0xe]
        %v1418 = vld [vmem:[#allocation2 + $0x24] sm:$0xe]
        %v1419 = vld [vmem:[#allocation2 + $0x30] sm:$0xe]
        %v1420 = vld [vmem:[#allocation2 + $0x3c] sm:$0xe]
        %v1421 = vld [vmem:[#allocation2 + $0x48] sm:$0xe]
        %v1422 = vld [vmem:[#allocation2 + $0x54] sm:$0xe]
        %v1423 = vld [vmem:[#allocation2 + $0x60] sm:$0xe]
        %v1424 = vld [vmem:[#allocation2 + $0x6c] sm:$0xe]
        %v1425 = vld [vmem:[#allocation2 + $0x78] sm:$0xe]
        %v1426 = vld [vmem:[#allocation2 + $0x84] sm:$0xe]
        %v1427 = vld [vmem:[#allocation2 + $0x90] sm:$0xe]
        %v1428 = vld [vmem:[#allocation2 + $0x9c] sm:$0xe]
        %v1429 = vld [vmem:[#allocation2 + $0xa8] sm:$0xe]
        %v1430 = vld [vmem:[#allocation2 + $0xb4] sm:$0xe]
        %vm1479 = vcmask 1042432
        %vm1480 = vcmask 1046532
        %vm1481 = vmor %vm1479, %vm1480
        %v1482 = vrot.slane %v1415, 5
        %v1483 = vrot.slane %v1482, 4
        %v1484 = vrot.slane %v981, 5
        %v1485 = vsel %vm1481, %v1483, %v1484
        %v1486 = vrot.slane %v1484, 4
        %v1487 = vrot.slane %v1012, 5
        %v1488 = vsel %vm1481, %v1486, %v1487
        %v1489 = vrot.slane %v1416, 5
        %v1490 = vrot.slane %v1489, 4
        %v1491 = vrot.slane %v983, 5
        %v1492 = vsel %vm1481, %v1490, %v1491
        %v1493 = vrot.slane %v1491, 4
        %v1494 = vrot.slane %v1013, 5
        %v1495 = vsel %vm1481, %v1493, %v1494
        %v1496 = vrot.slane %v1417, 5
        %v1497 = vrot.slane %v1496, 4
        %v1498 = vrot.slane %v985, 5
        %v1499 = vsel %vm1481, %v1497, %v1498
        %v1500 = vrot.slane %v1498, 4
        %v1501 = vrot.slane %v1014, 5
        %v1502 = vsel %vm1481, %v1500, %v1501
        %v1503 = vrot.slane %v1418, 5
        %v1504 = vrot.slane %v1503, 4
        %v1505 = vrot.slane %v987, 5
        %v1506 = vsel %vm1481, %v1504, %v1505
        %v1507 = vrot.slane %v1505, 4
        %v1508 = vrot.slane %v1015, 5
        %v1509 = vsel %vm1481, %v1507, %v1508
        %v1510 = vrot.slane %v1419, 5
        %v1511 = vrot.slane %v1510, 4
        %v1512 = vrot.slane %v989, 5
        %v1513 = vsel %vm1481, %v1511, %v1512
        %v1514 = vrot.slane %v1512, 4
        %v1515 = vrot.slane %v1016, 5
        %v1516 = vsel %vm1481, %v1514, %v1515
        %v1517 = vrot.slane %v1420, 5
        %v1518 = vrot.slane %v1517, 4
        %v1519 = vrot.slane %v991, 5
        %v1520 = vsel %vm1481, %v1518, %v1519
        %v1521 = vrot.slane %v1519, 4
        %v1522 = vrot.slane %v1017, 5
        %v1523 = vsel %vm1481, %v1521, %v1522
        %v1524 = vrot.slane %v1421, 5
        %v1525 = vrot.slane %v1524, 4
        %v1526 = vrot.slane %v993, 5
        %v1527 = vsel %vm1481, %v1525, %v1526
        %v1528 = vrot.slane %v1526, 4
        %v1529 = vrot.slane %v1018, 5
        %v1530 = vsel %vm1481, %v1528, %v1529
        %v1531 = vrot.slane %v1422, 5
        %v1532 = vrot.slane %v1531, 4
        %v1533 = vrot.slane %v995, 5
        %v1534 = vsel %vm1481, %v1532, %v1533
        %v1535 = vrot.slane %v1533, 4
        %v1536 = vrot.slane %v1019, 5
        %v1537 = vsel %vm1481, %v1535, %v1536
        %v1538 = vrot.slane %v1423, 5
        %v1539 = vrot.slane %v1538, 4
        %v1540 = vrot.slane %v997, 5
        %v1541 = vsel %vm1481, %v1539, %v1540
        %v1542 = vrot.slane %v1540, 4
        %v1543 = vrot.slane %v1020, 5
        %v1544 = vsel %vm1481, %v1542, %v1543
        %v1545 = vrot.slane %v1424, 5
        %v1546 = vrot.slane %v1545, 4
        %v1547 = vrot.slane %v999, 5
        %v1548 = vsel %vm1481, %v1546, %v1547
        %v1549 = vrot.slane %v1547, 4
        %v1550 = vrot.slane %v1021, 5
        %v1551 = vsel %vm1481, %v1549, %v1550
        %v1552 = vrot.slane %v1425, 5
        %v1553 = vrot.slane %v1552, 4
        %v1554 = vrot.slane %v1001, 5
        %v1555 = vsel %vm1481, %v1553, %v1554
        %v1556 = vrot.slane %v1554, 4
        %v1557 = vrot.slane %v1022, 5
        %v1558 = vsel %vm1481, %v1556, %v1557
        %v1559 = vrot.slane %v1426, 5
        %v1560 = vrot.slane %v1559, 4
        %v1561 = vrot.slane %v1003, 5
        %v1562 = vsel %vm1481, %v1560, %v1561
        %v1563 = vrot.slane %v1561, 4
        %v1564 = vrot.slane %v1023, 5
        %v1565 = vsel %vm1481, %v1563, %v1564
        %v1566 = vrot.slane %v1427, 5
        %v1567 = vrot.slane %v1566, 4
        %v1568 = vrot.slane %v1005, 5
        %v1569 = vsel %vm1481, %v1567, %v1568
        %v1570 = vrot.slane %v1568, 4
        %v1571 = vrot.slane %v1024, 5
        %v1572 = vsel %vm1481, %v1570, %v1571
        %v1573 = vrot.slane %v1428, 5
        %v1574 = vrot.slane %v1573, 4
        %v1575 = vrot.slane %v1007, 5
        %v1576 = vsel %vm1481, %v1574, %v1575
        %v1577 = vrot.slane %v1575, 4
        %v1578 = vrot.slane %v1025, 5
        %v1579 = vsel %vm1481, %v1577, %v1578
        %v1580 = vrot.slane %v1429, 5
        %v1581 = vrot.slane %v1580, 4
        %v1582 = vrot.slane %v1009, 5
        %v1583 = vsel %vm1481, %v1581, %v1582
        %v1584 = vrot.slane %v1582, 4
        %v1585 = vrot.slane %v1026, 5
        %v1586 = vsel %vm1481, %v1584, %v1585
        %v1587 = vrot.slane %v1430, 5
        %v1588 = vrot.slane %v1587, 4
        %v1589 = vrot.slane %v1011, 5
        %v1590 = vsel %vm1481, %v1588, %v1589
        %v1591 = vrot.slane %v1589, 4
        %v1592 = vrot.slane %v1027, 5
        %v1593 = vsel %vm1481, %v1591, %v1592
        %v1594 = vld [vmem:[%s865] sm:$0xf]
        %v1595 = vld [vmem:[%s865 + $0x4] sm:$0xf]
        %v1596 = vld [vmem:[%s865 + $0xc] sm:$0xf]
        %v1597 = vld [vmem:[%s865 + $0x10] sm:$0xf]
        %v1598 = vld [vmem:[%s865 + $0x18] sm:$0xf]
        %v1599 = vld [vmem:[%s865 + $0x1c] sm:$0xf]
        %v1600 = vld [vmem:[%s865 + $0x24] sm:$0xf]
        %v1601 = vld [vmem:[%s865 + $0x28] sm:$0xf]
        %v1602 = vld [vmem:[%s865 + $0x30] sm:$0xf]
        %v1603 = vld [vmem:[%s865 + $0x34] sm:$0xf]
        %v1604 = vld [vmem:[%s865 + $0x3c] sm:$0xf]
        %v1605 = vld [vmem:[%s865 + $0x40] sm:$0xf]
        %v1606 = vld [vmem:[%s865 + $0x48] sm:$0xf]
        %v1607 = vld [vmem:[%s865 + $0x4c] sm:$0xf]
        %v1608 = vld [vmem:[%s865 + $0x54] sm:$0xf]
        %v1609 = vld [vmem:[%s865 + $0x58] sm:$0xf]
        %v1610 = vld [vmem:[%s865 + $0x60] sm:$0xf]
        %v1611 = vld [vmem:[%s865 + $0x64] sm:$0xf]
        %v1612 = vld [vmem:[%s865 + $0x6c] sm:$0xf]
        %v1613 = vld [vmem:[%s865 + $0x70] sm:$0xf]
        %v1614 = vld [vmem:[%s865 + $0x78] sm:$0xf]
        %v1615 = vld [vmem:[%s865 + $0x7c] sm:$0xf]
        %v1616 = vld [vmem:[%s865 + $0x84] sm:$0xf]
        %v1617 = vld [vmem:[%s865 + $0x88] sm:$0xf]
        %v1618 = vld [vmem:[%s865 + $0x90] sm:$0xf]
        %v1619 = vld [vmem:[%s865 + $0x94] sm:$0xf]
        %v1620 = vld [vmem:[%s865 + $0x9c] sm:$0xf]
        %v1621 = vld [vmem:[%s865 + $0xa0] sm:$0xf]
        %v1622 = vld [vmem:[%s865 + $0xa8] sm:$0xf]
        %v1623 = vld [vmem:[%s865 + $0xac] sm:$0xf]
        %v1624 = vld [vmem:[%s865 + $0xb4] sm:$0xf]
        %v1625 = vld [vmem:[%s865 + $0xb8] sm:$0xf]
        %v1626 = vld [vmem:[%s865 + $0x8] sm:$0x1]
        %v1627 = vld [vmem:[%s865 + $0x14] sm:$0x1]
        %v1628 = vld [vmem:[%s865 + $0x20] sm:$0x1]
        %v1629 = vld [vmem:[%s865 + $0x2c] sm:$0x1]
        %v1630 = vld [vmem:[%s865 + $0x38] sm:$0x1]
        %v1631 = vld [vmem:[%s865 + $0x44] sm:$0x1]
        %v1632 = vld [vmem:[%s865 + $0x50] sm:$0x1]
        %v1633 = vld [vmem:[%s865 + $0x5c] sm:$0x1]
        %v1634 = vld [vmem:[%s865 + $0x68] sm:$0x1]
        %v1635 = vld [vmem:[%s865 + $0x74] sm:$0x1]
        %v1636 = vld [vmem:[%s865 + $0x80] sm:$0x1]
        %v1637 = vld [vmem:[%s865 + $0x8c] sm:$0x1]
        %v1638 = vld [vmem:[%s865 + $0x98] sm:$0x1]
        %v1639 = vld [vmem:[%s865 + $0xa4] sm:$0x1]
        %v1640 = vld [vmem:[%s865 + $0xb0] sm:$0x1]
        %v1641 = vld [vmem:[%s865 + $0xbc] sm:$0x1]
        %v1643 = vshrl.u32 %v1594, 16
        %v1645 = vrot.slane %v1643, 4
        %v1646 = vshll.u32 %v1594, 16
        %v1648 = vrot.slane %v1646, 5
        %v1649 = vor.u32 %v1645, %v1648
        %v1650 = vrot.slane %v1649, 4
        %v1652 = vshll.u32 %v1595, 16
        %v1654 = vrot.slane %v1652, 5
        %v1655 = vsel %vm1030, %v1650, %v1654
        %v1656 = vshrl.u32 %v1595, 16
        %v1658 = vrot.slane %v1656, 4
        %v1659 = vor.u32 %v1658, %v1654
        %v1660 = vrot.slane %v1659, 4
        %v1662 = vshll.u32 %v1626, 16
        %v1664 = vrot.slane %v1662, 5
        %v1665 = vsel %vm1030, %v1660, %v1664
        %v1667 = vshrl.u32 %v1596, 16
        %v1669 = vrot.slane %v1667, 4
        %v1670 = vshll.u32 %v1596, 16
        %v1672 = vrot.slane %v1670, 5
        %v1673 = vor.u32 %v1669, %v1672
        %v1674 = vrot.slane %v1673, 4
        %v1676 = vshll.u32 %v1597, 16
        %v1678 = vrot.slane %v1676, 5
        %v1679 = vsel %vm1030, %v1674, %v1678
        %v1680 = vshrl.u32 %v1597, 16
        %v1682 = vrot.slane %v1680, 4
        %v1683 = vor.u32 %v1682, %v1678
        %v1684 = vrot.slane %v1683, 4
        %v1686 = vshll.u32 %v1627, 16
        %v1688 = vrot.slane %v1686, 5
        %v1689 = vsel %vm1030, %v1684, %v1688
        %v1691 = vshrl.u32 %v1598, 16
        %v1693 = vrot.slane %v1691, 4
        %v1694 = vshll.u32 %v1598, 16
        %v1696 = vrot.slane %v1694, 5
        %v1697 = vor.u32 %v1693, %v1696
        %v1698 = vrot.slane %v1697, 4
        %v1700 = vshll.u32 %v1599, 16
        %v1702 = vrot.slane %v1700, 5
        %v1703 = vsel %vm1030, %v1698, %v1702
        %v1704 = vshrl.u32 %v1599, 16
        %v1706 = vrot.slane %v1704, 4
        %v1707 = vor.u32 %v1706, %v1702
        %v1708 = vrot.slane %v1707, 4
        %v1710 = vshll.u32 %v1628, 16
        %v1712 = vrot.slane %v1710, 5
        %v1713 = vsel %vm1030, %v1708, %v1712
        %v1715 = vshrl.u32 %v1600, 16
        %v1717 = vrot.slane %v1715, 4
        %v1718 = vshll.u32 %v1600, 16
        %v1720 = vrot.slane %v1718, 5
        %v1721 = vor.u32 %v1717, %v1720
        %v1722 = vrot.slane %v1721, 4
        %v1724 = vshll.u32 %v1601, 16
        %v1726 = vrot.slane %v1724, 5
        %v1727 = vsel %vm1030, %v1722, %v1726
        %v1728 = vshrl.u32 %v1601, 16
        %v1730 = vrot.slane %v1728, 4
        %v1731 = vor.u32 %v1730, %v1726
        %v1732 = vrot.slane %v1731, 4
        %v1734 = vshll.u32 %v1629, 16
        %v1736 = vrot.slane %v1734, 5
        %v1737 = vsel %vm1030, %v1732, %v1736
        %v1739 = vshrl.u32 %v1602, 16
        %v1741 = vrot.slane %v1739, 4
        %v1742 = vshll.u32 %v1602, 16
        %v1744 = vrot.slane %v1742, 5
        %v1745 = vor.u32 %v1741, %v1744
        %v1746 = vrot.slane %v1745, 4
        %v1748 = vshll.u32 %v1603, 16
        %v1750 = vrot.slane %v1748, 5
        %v1751 = vsel %vm1030, %v1746, %v1750
        %v1752 = vshrl.u32 %v1603, 16
        %v1754 = vrot.slane %v1752, 4
        %v1755 = vor.u32 %v1754, %v1750
        %v1756 = vrot.slane %v1755, 4
        %v1758 = vshll.u32 %v1630, 16
        %v1760 = vrot.slane %v1758, 5
        %v1761 = vsel %vm1030, %v1756, %v1760
        %v1763 = vshrl.u32 %v1604, 16
        %v1765 = vrot.slane %v1763, 4
        %v1766 = vshll.u32 %v1604, 16
        %v1768 = vrot.slane %v1766, 5
        %v1769 = vor.u32 %v1765, %v1768
        %v1770 = vrot.slane %v1769, 4
        %v1772 = vshll.u32 %v1605, 16
        %v1774 = vrot.slane %v1772, 5
        %v1775 = vsel %vm1030, %v1770, %v1774
        %v1776 = vshrl.u32 %v1605, 16
        %v1778 = vrot.slane %v1776, 4
        %v1779 = vor.u32 %v1778, %v1774
        %v1780 = vrot.slane %v1779, 4
        %v1782 = vshll.u32 %v1631, 16
        %v1784 = vrot.slane %v1782, 5
        %v1785 = vsel %vm1030, %v1780, %v1784
        %v1787 = vshrl.u32 %v1606, 16
        %v1789 = vrot.slane %v1787, 4
        %v1790 = vshll.u32 %v1606, 16
        %v1792 = vrot.slane %v1790, 5
        %v1793 = vor.u32 %v1789, %v1792
        %v1794 = vrot.slane %v1793, 4
        %v1796 = vshll.u32 %v1607, 16
        %v1798 = vrot.slane %v1796, 5
        %v1799 = vsel %vm1030, %v1794, %v1798
        %v1800 = vshrl.u32 %v1607, 16
        %v1802 = vrot.slane %v1800, 4
        %v1803 = vor.u32 %v1802, %v1798
        %v1804 = vrot.slane %v1803, 4
        %v1806 = vshll.u32 %v1632, 16
        %v1808 = vrot.slane %v1806, 5
        %v1809 = vsel %vm1030, %v1804, %v1808
        %v1811 = vshrl.u32 %v1608, 16
        %v1813 = vrot.slane %v1811, 4
        %v1814 = vshll.u32 %v1608, 16
        %v1816 = vrot.slane %v1814, 5
        %v1817 = vor.u32 %v1813, %v1816
        %v1818 = vrot.slane %v1817, 4
        %v1820 = vshll.u32 %v1609, 16
        %v1822 = vrot.slane %v1820, 5
        %v1823 = vsel %vm1030, %v1818, %v1822
        %v1824 = vshrl.u32 %v1609, 16
        %v1826 = vrot.slane %v1824, 4
        %v1827 = vor.u32 %v1826, %v1822
        %v1828 = vrot.slane %v1827, 4
        %v1830 = vshll.u32 %v1633, 16
        %v1832 = vrot.slane %v1830, 5
        %v1833 = vsel %vm1030, %v1828, %v1832
        %v1835 = vshrl.u32 %v1610, 16
        %v1837 = vrot.slane %v1835, 4
        %v1838 = vshll.u32 %v1610, 16
        %v1840 = vrot.slane %v1838, 5
        %v1841 = vor.u32 %v1837, %v1840
        %v1842 = vrot.slane %v1841, 4
        %v1844 = vshll.u32 %v1611, 16
        %v1846 = vrot.slane %v1844, 5
        %v1847 = vsel %vm1030, %v1842, %v1846
        %v1848 = vshrl.u32 %v1611, 16
        %v1850 = vrot.slane %v1848, 4
        %v1851 = vor.u32 %v1850, %v1846
        %v1852 = vrot.slane %v1851, 4
        %v1854 = vshll.u32 %v1634, 16
        %v1856 = vrot.slane %v1854, 5
        %v1857 = vsel %vm1030, %v1852, %v1856
        %v1859 = vshrl.u32 %v1612, 16
        %v1861 = vrot.slane %v1859, 4
        %v1862 = vshll.u32 %v1612, 16
        %v1864 = vrot.slane %v1862, 5
        %v1865 = vor.u32 %v1861, %v1864
        %v1866 = vrot.slane %v1865, 4
        %v1868 = vshll.u32 %v1613, 16
        %v1870 = vrot.slane %v1868, 5
        %v1871 = vsel %vm1030, %v1866, %v1870
        %v1872 = vshrl.u32 %v1613, 16
        %v1874 = vrot.slane %v1872, 4
        %v1875 = vor.u32 %v1874, %v1870
        %v1876 = vrot.slane %v1875, 4
        %v1878 = vshll.u32 %v1635, 16
        %v1880 = vrot.slane %v1878, 5
        %v1881 = vsel %vm1030, %v1876, %v1880
        %v1883 = vshrl.u32 %v1614, 16
        %v1885 = vrot.slane %v1883, 4
        %v1886 = vshll.u32 %v1614, 16
        %v1888 = vrot.slane %v1886, 5
        %v1889 = vor.u32 %v1885, %v1888
        %v1890 = vrot.slane %v1889, 4
        %v1892 = vshll.u32 %v1615, 16
        %v1894 = vrot.slane %v1892, 5
        %v1895 = vsel %vm1030, %v1890, %v1894
        %v1896 = vshrl.u32 %v1615, 16
        %v1898 = vrot.slane %v1896, 4
        %v1899 = vor.u32 %v1898, %v1894
        %v1900 = vrot.slane %v1899, 4
        %v1902 = vshll.u32 %v1636, 16
        %v1904 = vrot.slane %v1902, 5
        %v1905 = vsel %vm1030, %v1900, %v1904
        %v1907 = vshrl.u32 %v1616, 16
        %v1909 = vrot.slane %v1907, 4
        %v1910 = vshll.u32 %v1616, 16
        %v1912 = vrot.slane %v1910, 5
        %v1913 = vor.u32 %v1909, %v1912
        %v1914 = vrot.slane %v1913, 4
        %v1916 = vshll.u32 %v1617, 16
        %v1918 = vrot.slane %v1916, 5
        %v1919 = vsel %vm1030, %v1914, %v1918
        %v1920 = vshrl.u32 %v1617, 16
        %v1922 = vrot.slane %v1920, 4
        %v1923 = vor.u32 %v1922, %v1918
        %v1924 = vrot.slane %v1923, 4
        %v1926 = vshll.u32 %v1637, 16
        %v1928 = vrot.slane %v1926, 5
        %v1929 = vsel %vm1030, %v1924, %v1928
        %v1931 = vshrl.u32 %v1618, 16
        %v1933 = vrot.slane %v1931, 4
        %v1934 = vshll.u32 %v1618, 16
        %v1936 = vrot.slane %v1934, 5
        %v1937 = vor.u32 %v1933, %v1936
        %v1938 = vrot.slane %v1937, 4
        %v1940 = vshll.u32 %v1619, 16
        %v1942 = vrot.slane %v1940, 5
        %v1943 = vsel %vm1030, %v1938, %v1942
        %v1944 = vshrl.u32 %v1619, 16
        %v1946 = vrot.slane %v1944, 4
        %v1947 = vor.u32 %v1946, %v1942
        %v1948 = vrot.slane %v1947, 4
        %v1950 = vshll.u32 %v1638, 16
        %v1952 = vrot.slane %v1950, 5
        %v1953 = vsel %vm1030, %v1948, %v1952
        %v1955 = vshrl.u32 %v1620, 16
        %v1957 = vrot.slane %v1955, 4
        %v1958 = vshll.u32 %v1620, 16
        %v1960 = vrot.slane %v1958, 5
        %v1961 = vor.u32 %v1957, %v1960
        %v1962 = vrot.slane %v1961, 4
        %v1964 = vshll.u32 %v1621, 16
        %v1966 = vrot.slane %v1964, 5
        %v1967 = vsel %vm1030, %v1962, %v1966
        %v1968 = vshrl.u32 %v1621, 16
        %v1970 = vrot.slane %v1968, 4
        %v1971 = vor.u32 %v1970, %v1966
        %v1972 = vrot.slane %v1971, 4
        %v1974 = vshll.u32 %v1639, 16
        %v1976 = vrot.slane %v1974, 5
        %v1977 = vsel %vm1030, %v1972, %v1976
        %v1979 = vshrl.u32 %v1622, 16
        %v1981 = vrot.slane %v1979, 4
        %v1982 = vshll.u32 %v1622, 16
        %v1984 = vrot.slane %v1982, 5
        %v1985 = vor.u32 %v1981, %v1984
        %v1986 = vrot.slane %v1985, 4
        %v1988 = vshll.u32 %v1623, 16
        %v1990 = vrot.slane %v1988, 5
        %v1991 = vsel %vm1030, %v1986, %v1990
        %v1992 = vshrl.u32 %v1623, 16
        %v1994 = vrot.slane %v1992, 4
        %v1995 = vor.u32 %v1994, %v1990
        %v1996 = vrot.slane %v1995, 4
        %v1998 = vshll.u32 %v1640, 16
        %v2000 = vrot.slane %v1998, 5
        %v2001 = vsel %vm1030, %v1996, %v2000
        %v2003 = vshrl.u32 %v1624, 16
        %v2005 = vrot.slane %v2003, 4
        %v2006 = vshll.u32 %v1624, 16
        %v2008 = vrot.slane %v2006, 5
        %v2009 = vor.u32 %v2005, %v2008
        %v2010 = vrot.slane %v2009, 4
        %v2012 = vshll.u32 %v1625, 16
        %v2014 = vrot.slane %v2012, 5
        %v2015 = vsel %vm1030, %v2010, %v2014
        %v2016 = vshrl.u32 %v1625, 16
        %v2018 = vrot.slane %v2016, 4
        %v2019 = vor.u32 %v2018, %v2014
        %v2020 = vrot.slane %v2019, 4
        %v2022 = vshll.u32 %v1641, 16
        %v2024 = vrot.slane %v2022, 5
        %v2025 = vsel %vm1030, %v2020, %v2024
        %v2026 = vld [vmem:[%s865] sm:$0xe]
        %v2027 = vld [vmem:[%s865 + $0xc] sm:$0xe]
        %v2028 = vld [vmem:[%s865 + $0x18] sm:$0xe]
        %v2029 = vld [vmem:[%s865 + $0x24] sm:$0xe]
        %v2030 = vld [vmem:[%s865 + $0x30] sm:$0xe]
        %v2031 = vld [vmem:[%s865 + $0x3c] sm:$0xe]
        %v2032 = vld [vmem:[%s865 + $0x48] sm:$0xe]
        %v2033 = vld [vmem:[%s865 + $0x54] sm:$0xe]
        %v2034 = vld [vmem:[%s865 + $0x60] sm:$0xe]
        %v2035 = vld [vmem:[%s865 + $0x6c] sm:$0xe]
        %v2036 = vld [vmem:[%s865 + $0x78] sm:$0xe]
        %v2037 = vld [vmem:[%s865 + $0x84] sm:$0xe]
        %v2038 = vld [vmem:[%s865 + $0x90] sm:$0xe]
        %v2039 = vld [vmem:[%s865 + $0x9c] sm:$0xe]
        %v2040 = vld [vmem:[%s865 + $0xa8] sm:$0xe]
        %v2041 = vld [vmem:[%s865 + $0xb4] sm:$0xe]
        %v2090 = vrot.slane %v2026, 5
        %v2091 = vrot.slane %v2090, 4
        %v2092 = vrot.slane %v1595, 5
        %v2093 = vsel %vm1481, %v2091, %v2092
        %v2094 = vrot.slane %v2092, 4
        %v2095 = vrot.slane %v1626, 5
        %v2096 = vsel %vm1481, %v2094, %v2095
        %v2097 = vrot.slane %v2027, 5
        %v2098 = vrot.slane %v2097, 4
        %v2099 = vrot.slane %v1597, 5
        %v2100 = vsel %vm1481, %v2098, %v2099
        %v2101 = vrot.slane %v2099, 4
        %v2102 = vrot.slane %v1627, 5
        %v2103 = vsel %vm1481, %v2101, %v2102
        %v2104 = vrot.slane %v2028, 5
        %v2105 = vrot.slane %v2104, 4
        %v2106 = vrot.slane %v1599, 5
        %v2107 = vsel %vm1481, %v2105, %v2106
        %v2108 = vrot.slane %v2106, 4
        %v2109 = vrot.slane %v1628, 5
        %v2110 = vsel %vm1481, %v2108, %v2109
        %v2111 = vrot.slane %v2029, 5
        %v2112 = vrot.slane %v2111, 4
        %v2113 = vrot.slane %v1601, 5
        %v2114 = vsel %vm1481, %v2112, %v2113
        %v2115 = vrot.slane %v2113, 4
        %v2116 = vrot.slane %v1629, 5
        %v2117 = vsel %vm1481, %v2115, %v2116
        %v2118 = vrot.slane %v2030, 5
        %v2119 = vrot.slane %v2118, 4
        %v2120 = vrot.slane %v1603, 5
        %v2121 = vsel %vm1481, %v2119, %v2120
        %v2122 = vrot.slane %v2120, 4
        %v2123 = vrot.slane %v1630, 5
        %v2124 = vsel %vm1481, %v2122, %v2123
        %v2125 = vrot.slane %v2031, 5
        %v2126 = vrot.slane %v2125, 4
        %v2127 = vrot.slane %v1605, 5
        %v2128 = vsel %vm1481, %v2126, %v2127
        %v2129 = vrot.slane %v2127, 4
        %v2130 = vrot.slane %v1631, 5
        %v2131 = vsel %vm1481, %v2129, %v2130
        %v2132 = vrot.slane %v2032, 5
        %v2133 = vrot.slane %v2132, 4
        %v2134 = vrot.slane %v1607, 5
        %v2135 = vsel %vm1481, %v2133, %v2134
        %v2136 = vrot.slane %v2134, 4
        %v2137 = vrot.slane %v1632, 5
        %v2138 = vsel %vm1481, %v2136, %v2137
        %v2139 = vrot.slane %v2033, 5
        %v2140 = vrot.slane %v2139, 4
        %v2141 = vrot.slane %v1609, 5
        %v2142 = vsel %vm1481, %v2140, %v2141
        %v2143 = vrot.slane %v2141, 4
        %v2144 = vrot.slane %v1633, 5
        %v2145 = vsel %vm1481, %v2143, %v2144
        %v2146 = vrot.slane %v2034, 5
        %v2147 = vrot.slane %v2146, 4
        %v2148 = vrot.slane %v1611, 5
        %v2149 = vsel %vm1481, %v2147, %v2148
        %v2150 = vrot.slane %v2148, 4
        %v2151 = vrot.slane %v1634, 5
        %v2152 = vsel %vm1481, %v2150, %v2151
        %v2153 = vrot.slane %v2035, 5
        %v2154 = vrot.slane %v2153, 4
        %v2155 = vrot.slane %v1613, 5
        %v2156 = vsel %vm1481, %v2154, %v2155
        %v2157 = vrot.slane %v2155, 4
        %v2158 = vrot.slane %v1635, 5
        %v2159 = vsel %vm1481, %v2157, %v2158
        %v2160 = vrot.slane %v2036, 5
        %v2161 = vrot.slane %v2160, 4
        %v2162 = vrot.slane %v1615, 5
        %v2163 = vsel %vm1481, %v2161, %v2162
        %v2164 = vrot.slane %v2162, 4
        %v2165 = vrot.slane %v1636, 5
        %v2166 = vsel %vm1481, %v2164, %v2165
        %v2167 = vrot.slane %v2037, 5
        %v2168 = vrot.slane %v2167, 4
        %v2169 = vrot.slane %v1617, 5
        %v2170 = vsel %vm1481, %v2168, %v2169
        %v2171 = vrot.slane %v2169, 4
        %v2172 = vrot.slane %v1637, 5
        %v2173 = vsel %vm1481, %v2171, %v2172
        %v2174 = vrot.slane %v2038, 5
        %v2175 = vrot.slane %v2174, 4
        %v2176 = vrot.slane %v1619, 5
        %v2177 = vsel %vm1481, %v2175, %v2176
        %v2178 = vrot.slane %v2176, 4
        %v2179 = vrot.slane %v1638, 5
        %v2180 = vsel %vm1481, %v2178, %v2179
        %v2181 = vrot.slane %v2039, 5
        %v2182 = vrot.slane %v2181, 4
        %v2183 = vrot.slane %v1621, 5
        %v2184 = vsel %vm1481, %v2182, %v2183
        %v2185 = vrot.slane %v2183, 4
        %v2186 = vrot.slane %v1639, 5
        %v2187 = vsel %vm1481, %v2185, %v2186
        %v2188 = vrot.slane %v2040, 5
        %v2189 = vrot.slane %v2188, 4
        %v2190 = vrot.slane %v1623, 5
        %v2191 = vsel %vm1481, %v2189, %v2190
        %v2192 = vrot.slane %v2190, 4
        %v2193 = vrot.slane %v1640, 5
        %v2194 = vsel %vm1481, %v2192, %v2193
        %v2195 = vrot.slane %v2041, 5
        %v2196 = vrot.slane %v2195, 4
        %v2197 = vrot.slane %v1625, 5
        %v2198 = vsel %vm1481, %v2196, %v2197
        %v2199 = vrot.slane %v2197, 4
        %v2200 = vrot.slane %v1641, 5
        %v2201 = vsel %vm1481, %v2199, %v2200
        %s2202 = scalar_lea.vmem [#allocation2], 24
        %v2203 = vld [vmem:[%s2202] sm:$0xf]
        %v2204 = vld [vmem:[%s2202 + $0x4] sm:$0xf]
        %v2205 = vld [vmem:[%s2202 + $0xc] sm:$0xf]
        %v2206 = vld [vmem:[%s2202 + $0x10] sm:$0xf]
        %v2207 = vld [vmem:[%s2202 + $0x18] sm:$0xf]
        %v2208 = vld [vmem:[%s2202 + $0x1c] sm:$0xf]
        %v2209 = vld [vmem:[%s2202 + $0x24] sm:$0xf]
        %v2210 = vld [vmem:[%s2202 + $0x28] sm:$0xf]
        %v2211 = vld [vmem:[%s2202 + $0x30] sm:$0xf]
        %v2212 = vld [vmem:[%s2202 + $0x34] sm:$0xf]
        %v2213 = vld [vmem:[%s2202 + $0x3c] sm:$0xf]
        %v2214 = vld [vmem:[%s2202 + $0x40] sm:$0xf]
        %v2215 = vld [vmem:[%s2202 + $0x48] sm:$0xf]
        %v2216 = vld [vmem:[%s2202 + $0x4c] sm:$0xf]
        %v2217 = vld [vmem:[%s2202 + $0x54] sm:$0xf]
        %v2218 = vld [vmem:[%s2202 + $0x58] sm:$0xf]
        %v2219 = vld [vmem:[%s2202 + $0x60] sm:$0xf]
        %v2220 = vld [vmem:[%s2202 + $0x64] sm:$0xf]
        %v2221 = vld [vmem:[%s2202 + $0x6c] sm:$0xf]
        %v2222 = vld [vmem:[%s2202 + $0x70] sm:$0xf]
        %v2223 = vld [vmem:[%s2202 + $0x78] sm:$0xf]
        %v2224 = vld [vmem:[%s2202 + $0x7c] sm:$0xf]
        %v2225 = vld [vmem:[%s2202 + $0x84] sm:$0xf]
        %v2226 = vld [vmem:[%s2202 + $0x88] sm:$0xf]
        %v2227 = vld [vmem:[%s2202 + $0x90] sm:$0xf]
        %v2228 = vld [vmem:[%s2202 + $0x94] sm:$0xf]
        %v2229 = vld [vmem:[%s2202 + $0x9c] sm:$0xf]
        %v2230 = vld [vmem:[%s2202 + $0xa0] sm:$0xf]
        %v2231 = vld [vmem:[%s2202 + $0xa8] sm:$0xf]
        %v2232 = vld [vmem:[%s2202 + $0xac] sm:$0xf]
        %v2233 = vld [vmem:[%s2202 + $0xb4] sm:$0xf]
        %v2234 = vld [vmem:[%s2202 + $0xb8] sm:$0xf]
        %v2235 = vld [vmem:[%s2202 + $0x8] sm:$0x1]
        %v2236 = vld [vmem:[%s2202 + $0x14] sm:$0x1]
        %v2237 = vld [vmem:[%s2202 + $0x20] sm:$0x1]
        %v2238 = vld [vmem:[%s2202 + $0x2c] sm:$0x1]
        %v2239 = vld [vmem:[%s2202 + $0x38] sm:$0x1]
        %v2240 = vld [vmem:[%s2202 + $0x44] sm:$0x1]
        %v2241 = vld [vmem:[%s2202 + $0x50] sm:$0x1]
        %v2242 = vld [vmem:[%s2202 + $0x5c] sm:$0x1]
        %v2243 = vld [vmem:[%s2202 + $0x68] sm:$0x1]
        %v2244 = vld [vmem:[%s2202 + $0x74] sm:$0x1]
        %v2245 = vld [vmem:[%s2202 + $0x80] sm:$0x1]
        %v2246 = vld [vmem:[%s2202 + $0x8c] sm:$0x1]
        %v2247 = vld [vmem:[%s2202 + $0x98] sm:$0x1]
        %v2248 = vld [vmem:[%s2202 + $0xa4] sm:$0x1]
        %v2249 = vld [vmem:[%s2202 + $0xb0] sm:$0x1]
        %v2250 = vld [vmem:[%s2202 + $0xbc] sm:$0x1]
        %v2252 = vshrl.u32 %v2203, 16
        %v2254 = vrot.slane %v2252, 4
        %v2255 = vshll.u32 %v2203, 16
        %v2257 = vrot.slane %v2255, 5
        %v2258 = vor.u32 %v2254, %v2257
        %v2259 = vrot.slane %v2258, 4
        %v2261 = vshll.u32 %v2204, 16
        %v2263 = vrot.slane %v2261, 5
        %v2264 = vsel %vm1030, %v2259, %v2263
        %v2265 = vshrl.u32 %v2204, 16
        %v2267 = vrot.slane %v2265, 4
        %v2268 = vor.u32 %v2267, %v2263
        %v2269 = vrot.slane %v2268, 4
        %v2271 = vshll.u32 %v2235, 16
        %v2273 = vrot.slane %v2271, 5
        %v2274 = vsel %vm1030, %v2269, %v2273
        %v2276 = vshrl.u32 %v2205, 16
        %v2278 = vrot.slane %v2276, 4
        %v2279 = vshll.u32 %v2205, 16
        %v2281 = vrot.slane %v2279, 5
        %v2282 = vor.u32 %v2278, %v2281
        %v2283 = vrot.slane %v2282, 4
        %v2285 = vshll.u32 %v2206, 16
        %v2287 = vrot.slane %v2285, 5
        %v2288 = vsel %vm1030, %v2283, %v2287
        %v2289 = vshrl.u32 %v2206, 16
        %v2291 = vrot.slane %v2289, 4
        %v2292 = vor.u32 %v2291, %v2287
        %v2293 = vrot.slane %v2292, 4
        %v2295 = vshll.u32 %v2236, 16
        %v2297 = vrot.slane %v2295, 5
        %v2298 = vsel %vm1030, %v2293, %v2297
        %v2300 = vshrl.u32 %v2207, 16
        %v2302 = vrot.slane %v2300, 4
        %v2303 = vshll.u32 %v2207, 16
        %v2305 = vrot.slane %v2303, 5
        %v2306 = vor.u32 %v2302, %v2305
        %v2307 = vrot.slane %v2306, 4
        %v2309 = vshll.u32 %v2208, 16
        %v2311 = vrot.slane %v2309, 5
        %v2312 = vsel %vm1030, %v2307, %v2311
        %v2313 = vshrl.u32 %v2208, 16
        %v2315 = vrot.slane %v2313, 4
        %v2316 = vor.u32 %v2315, %v2311
        %v2317 = vrot.slane %v2316, 4
        %v2319 = vshll.u32 %v2237, 16
        %v2321 = vrot.slane %v2319, 5
        %v2322 = vsel %vm1030, %v2317, %v2321
        %v2324 = vshrl.u32 %v2209, 16
        %v2326 = vrot.slane %v2324, 4
        %v2327 = vshll.u32 %v2209, 16
        %v2329 = vrot.slane %v2327, 5
        %v2330 = vor.u32 %v2326, %v2329
        %v2331 = vrot.slane %v2330, 4
        %v2333 = vshll.u32 %v2210, 16
        %v2335 = vrot.slane %v2333, 5
        %v2336 = vsel %vm1030, %v2331, %v2335
        %v2337 = vshrl.u32 %v2210, 16
        %v2339 = vrot.slane %v2337, 4
        %v2340 = vor.u32 %v2339, %v2335
        %v2341 = vrot.slane %v2340, 4
        %v2343 = vshll.u32 %v2238, 16
        %v2345 = vrot.slane %v2343, 5
        %v2346 = vsel %vm1030, %v2341, %v2345
        %v2348 = vshrl.u32 %v2211, 16
        %v2350 = vrot.slane %v2348, 4
        %v2351 = vshll.u32 %v2211, 16
        %v2353 = vrot.slane %v2351, 5
        %v2354 = vor.u32 %v2350, %v2353
        %v2355 = vrot.slane %v2354, 4
        %v2357 = vshll.u32 %v2212, 16
        %v2359 = vrot.slane %v2357, 5
        %v2360 = vsel %vm1030, %v2355, %v2359
        %v2361 = vshrl.u32 %v2212, 16
        %v2363 = vrot.slane %v2361, 4
        %v2364 = vor.u32 %v2363, %v2359
        %v2365 = vrot.slane %v2364, 4
        %v2367 = vshll.u32 %v2239, 16
        %v2369 = vrot.slane %v2367, 5
        %v2370 = vsel %vm1030, %v2365, %v2369
        %v2372 = vshrl.u32 %v2213, 16
        %v2374 = vrot.slane %v2372, 4
        %v2375 = vshll.u32 %v2213, 16
        %v2377 = vrot.slane %v2375, 5
        %v2378 = vor.u32 %v2374, %v2377
        %v2379 = vrot.slane %v2378, 4
        %v2381 = vshll.u32 %v2214, 16
        %v2383 = vrot.slane %v2381, 5
        %v2384 = vsel %vm1030, %v2379, %v2383
        %v2385 = vshrl.u32 %v2214, 16
        %v2387 = vrot.slane %v2385, 4
        %v2388 = vor.u32 %v2387, %v2383
        %v2389 = vrot.slane %v2388, 4
        %v2391 = vshll.u32 %v2240, 16
        %v2393 = vrot.slane %v2391, 5
        %v2394 = vsel %vm1030, %v2389, %v2393
        %v2396 = vshrl.u32 %v2215, 16
        %v2398 = vrot.slane %v2396, 4
        %v2399 = vshll.u32 %v2215, 16
        %v2401 = vrot.slane %v2399, 5
        %v2402 = vor.u32 %v2398, %v2401
        %v2403 = vrot.slane %v2402, 4
        %v2405 = vshll.u32 %v2216, 16
        %v2407 = vrot.slane %v2405, 5
        %v2408 = vsel %vm1030, %v2403, %v2407
        %v2409 = vshrl.u32 %v2216, 16
        %v2411 = vrot.slane %v2409, 4
        %v2412 = vor.u32 %v2411, %v2407
        %v2413 = vrot.slane %v2412, 4
        %v2415 = vshll.u32 %v2241, 16
        %v2417 = vrot.slane %v2415, 5
        %v2418 = vsel %vm1030, %v2413, %v2417
        %v2420 = vshrl.u32 %v2217, 16
        %v2422 = vrot.slane %v2420, 4
        %v2423 = vshll.u32 %v2217, 16
        %v2425 = vrot.slane %v2423, 5
        %v2426 = vor.u32 %v2422, %v2425
        %v2427 = vrot.slane %v2426, 4
        %v2429 = vshll.u32 %v2218, 16
        %v2431 = vrot.slane %v2429, 5
        %v2432 = vsel %vm1030, %v2427, %v2431
        %v2433 = vshrl.u32 %v2218, 16
        %v2435 = vrot.slane %v2433, 4
        %v2436 = vor.u32 %v2435, %v2431
        %v2437 = vrot.slane %v2436, 4
        %v2439 = vshll.u32 %v2242, 16
        %v2441 = vrot.slane %v2439, 5
        %v2442 = vsel %vm1030, %v2437, %v2441
        %v2444 = vshrl.u32 %v2219, 16
        %v2446 = vrot.slane %v2444, 4
        %v2447 = vshll.u32 %v2219, 16
        %v2449 = vrot.slane %v2447, 5
        %v2450 = vor.u32 %v2446, %v2449
        %v2451 = vrot.slane %v2450, 4
        %v2453 = vshll.u32 %v2220, 16
        %v2455 = vrot.slane %v2453, 5
        %v2456 = vsel %vm1030, %v2451, %v2455
        %v2457 = vshrl.u32 %v2220, 16
        %v2459 = vrot.slane %v2457, 4
        %v2460 = vor.u32 %v2459, %v2455
        %v2461 = vrot.slane %v2460, 4
        %v2463 = vshll.u32 %v2243, 16
        %v2465 = vrot.slane %v2463, 5
        %v2466 = vsel %vm1030, %v2461, %v2465
        %v2468 = vshrl.u32 %v2221, 16
        %v2470 = vrot.slane %v2468, 4
        %v2471 = vshll.u32 %v2221, 16
        %v2473 = vrot.slane %v2471, 5
        %v2474 = vor.u32 %v2470, %v2473
        %v2475 = vrot.slane %v2474, 4
        %v2477 = vshll.u32 %v2222, 16
        %v2479 = vrot.slane %v2477, 5
        %v2480 = vsel %vm1030, %v2475, %v2479
        %v2481 = vshrl.u32 %v2222, 16
        %v2483 = vrot.slane %v2481, 4
        %v2484 = vor.u32 %v2483, %v2479
        %v2485 = vrot.slane %v2484, 4
        %v2487 = vshll.u32 %v2244, 16
        %v2489 = vrot.slane %v2487, 5
        %v2490 = vsel %vm1030, %v2485, %v2489
        %v2492 = vshrl.u32 %v2223, 16
        %v2494 = vrot.slane %v2492, 4
        %v2495 = vshll.u32 %v2223, 16
        %v2497 = vrot.slane %v2495, 5
        %v2498 = vor.u32 %v2494, %v2497
        %v2499 = vrot.slane %v2498, 4
        %v2501 = vshll.u32 %v2224, 16
        %v2503 = vrot.slane %v2501, 5
        %v2504 = vsel %vm1030, %v2499, %v2503
        %v2505 = vshrl.u32 %v2224, 16
        %v2507 = vrot.slane %v2505, 4
        %v2508 = vor.u32 %v2507, %v2503
        %v2509 = vrot.slane %v2508, 4
        %v2511 = vshll.u32 %v2245, 16
        %v2513 = vrot.slane %v2511, 5
        %v2514 = vsel %vm1030, %v2509, %v2513
        %v2516 = vshrl.u32 %v2225, 16
        %v2518 = vrot.slane %v2516, 4
        %v2519 = vshll.u32 %v2225, 16
        %v2521 = vrot.slane %v2519, 5
        %v2522 = vor.u32 %v2518, %v2521
        %v2523 = vrot.slane %v2522, 4
        %v2525 = vshll.u32 %v2226, 16
        %v2527 = vrot.slane %v2525, 5
        %v2528 = vsel %vm1030, %v2523, %v2527
        %v2529 = vshrl.u32 %v2226, 16
        %v2531 = vrot.slane %v2529, 4
        %v2532 = vor.u32 %v2531, %v2527
        %v2533 = vrot.slane %v2532, 4
        %v2535 = vshll.u32 %v2246, 16
        %v2537 = vrot.slane %v2535, 5
        %v2538 = vsel %vm1030, %v2533, %v2537
        %v2540 = vshrl.u32 %v2227, 16
        %v2542 = vrot.slane %v2540, 4
        %v2543 = vshll.u32 %v2227, 16
        %v2545 = vrot.slane %v2543, 5
        %v2546 = vor.u32 %v2542, %v2545
        %v2547 = vrot.slane %v2546, 4
        %v2549 = vshll.u32 %v2228, 16
        %v2551 = vrot.slane %v2549, 5
        %v2552 = vsel %vm1030, %v2547, %v2551
        %v2553 = vshrl.u32 %v2228, 16
        %v2555 = vrot.slane %v2553, 4
        %v2556 = vor.u32 %v2555, %v2551
        %v2557 = vrot.slane %v2556, 4
        %v2559 = vshll.u32 %v2247, 16
        %v2561 = vrot.slane %v2559, 5
        %v2562 = vsel %vm1030, %v2557, %v2561
        %v2564 = vshrl.u32 %v2229, 16
        %v2566 = vrot.slane %v2564, 4
        %v2567 = vshll.u32 %v2229, 16
        %v2569 = vrot.slane %v2567, 5
        %v2570 = vor.u32 %v2566, %v2569
        %v2571 = vrot.slane %v2570, 4
        %v2573 = vshll.u32 %v2230, 16
        %v2575 = vrot.slane %v2573, 5
        %v2576 = vsel %vm1030, %v2571, %v2575
        %v2577 = vshrl.u32 %v2230, 16
        %v2579 = vrot.slane %v2577, 4
        %v2580 = vor.u32 %v2579, %v2575
        %v2581 = vrot.slane %v2580, 4
        %v2583 = vshll.u32 %v2248, 16
        %v2585 = vrot.slane %v2583, 5
        %v2586 = vsel %vm1030, %v2581, %v2585
        %v2588 = vshrl.u32 %v2231, 16
        %v2590 = vrot.slane %v2588, 4
        %v2591 = vshll.u32 %v2231, 16
        %v2593 = vrot.slane %v2591, 5
        %v2594 = vor.u32 %v2590, %v2593
        %v2595 = vrot.slane %v2594, 4
        %v2597 = vshll.u32 %v2232, 16
        %v2599 = vrot.slane %v2597, 5
        %v2600 = vsel %vm1030, %v2595, %v2599
        %v2601 = vshrl.u32 %v2232, 16
        %v2603 = vrot.slane %v2601, 4
        %v2604 = vor.u32 %v2603, %v2599
        %v2605 = vrot.slane %v2604, 4
        %v2607 = vshll.u32 %v2249, 16
        %v2609 = vrot.slane %v2607, 5
        %v2610 = vsel %vm1030, %v2605, %v2609
        %v2612 = vshrl.u32 %v2233, 16
        %v2614 = vrot.slane %v2612, 4
        %v2615 = vshll.u32 %v2233, 16
        %v2617 = vrot.slane %v2615, 5
        %v2618 = vor.u32 %v2614, %v2617
        %v2619 = vrot.slane %v2618, 4
        %v2621 = vshll.u32 %v2234, 16
        %v2623 = vrot.slane %v2621, 5
        %v2624 = vsel %vm1030, %v2619, %v2623
        %v2625 = vshrl.u32 %v2234, 16
        %v2627 = vrot.slane %v2625, 4
        %v2628 = vor.u32 %v2627, %v2623
        %v2629 = vrot.slane %v2628, 4
        %v2631 = vshll.u32 %v2250, 16
        %v2633 = vrot.slane %v2631, 5
        %v2634 = vsel %vm1030, %v2629, %v2633
        %v2635 = vld [vmem:[%s2202] sm:$0xe]
        %v2636 = vld [vmem:[%s2202 + $0xc] sm:$0xe]
        %v2637 = vld [vmem:[%s2202 + $0x18] sm:$0xe]
        %v2638 = vld [vmem:[%s2202 + $0x24] sm:$0xe]
        %v2639 = vld [vmem:[%s2202 + $0x30] sm:$0xe]
        %v2640 = vld [vmem:[%s2202 + $0x3c] sm:$0xe]
        %v2641 = vld [vmem:[%s2202 + $0x48] sm:$0xe]
        %v2642 = vld [vmem:[%s2202 + $0x54] sm:$0xe]
        %v2643 = vld [vmem:[%s2202 + $0x60] sm:$0xe]
        %v2644 = vld [vmem:[%s2202 + $0x6c] sm:$0xe]
        %v2645 = vld [vmem:[%s2202 + $0x78] sm:$0xe]
        %v2646 = vld [vmem:[%s2202 + $0x84] sm:$0xe]
        %v2647 = vld [vmem:[%s2202 + $0x90] sm:$0xe]
        %v2648 = vld [vmem:[%s2202 + $0x9c] sm:$0xe]
        %v2649 = vld [vmem:[%s2202 + $0xa8] sm:$0xe]
        %v2650 = vld [vmem:[%s2202 + $0xb4] sm:$0xe]
        %v2699 = vrot.slane %v2635, 5
        %v2700 = vrot.slane %v2699, 4
        %v2701 = vrot.slane %v2204, 5
        %v2702 = vsel %vm1481, %v2700, %v2701
        %v2703 = vrot.slane %v2701, 4
        %v2704 = vrot.slane %v2235, 5
        %v2705 = vsel %vm1481, %v2703, %v2704
        %v2706 = vrot.slane %v2636, 5
        %v2707 = vrot.slane %v2706, 4
        %v2708 = vrot.slane %v2206, 5
        %v2709 = vsel %vm1481, %v2707, %v2708
        %v2710 = vrot.slane %v2708, 4
        %v2711 = vrot.slane %v2236, 5
        %v2712 = vsel %vm1481, %v2710, %v2711
        %v2713 = vrot.slane %v2637, 5
        %v2714 = vrot.slane %v2713, 4
        %v2715 = vrot.slane %v2208, 5
        %v2716 = vsel %vm1481, %v2714, %v2715
        %v2717 = vrot.slane %v2715, 4
        %v2718 = vrot.slane %v2237, 5
        %v2719 = vsel %vm1481, %v2717, %v2718
        %v2720 = vrot.slane %v2638, 5
        %v2721 = vrot.slane %v2720, 4
        %v2722 = vrot.slane %v2210, 5
        %v2723 = vsel %vm1481, %v2721, %v2722
        %v2724 = vrot.slane %v2722, 4
        %v2725 = vrot.slane %v2238, 5
        %v2726 = vsel %vm1481, %v2724, %v2725
        %v2727 = vrot.slane %v2639, 5
        %v2728 = vrot.slane %v2727, 4
        %v2729 = vrot.slane %v2212, 5
        %v2730 = vsel %vm1481, %v2728, %v2729
        %v2731 = vrot.slane %v2729, 4
        %v2732 = vrot.slane %v2239, 5
        %v2733 = vsel %vm1481, %v2731, %v2732
        %v2734 = vrot.slane %v2640, 5
        %v2735 = vrot.slane %v2734, 4
        %v2736 = vrot.slane %v2214, 5
        %v2737 = vsel %vm1481, %v2735, %v2736
        %v2738 = vrot.slane %v2736, 4
        %v2739 = vrot.slane %v2240, 5
        %v2740 = vsel %vm1481, %v2738, %v2739
        %v2741 = vrot.slane %v2641, 5
        %v2742 = vrot.slane %v2741, 4
        %v2743 = vrot.slane %v2216, 5
        %v2744 = vsel %vm1481, %v2742, %v2743
        %v2745 = vrot.slane %v2743, 4
        %v2746 = vrot.slane %v2241, 5
        %v2747 = vsel %vm1481, %v2745, %v2746
        %v2748 = vrot.slane %v2642, 5
        %v2749 = vrot.slane %v2748, 4
        %v2750 = vrot.slane %v2218, 5
        %v2751 = vsel %vm1481, %v2749, %v2750
        %v2752 = vrot.slane %v2750, 4
        %v2753 = vrot.slane %v2242, 5
        %v2754 = vsel %vm1481, %v2752, %v2753
        %v2755 = vrot.slane %v2643, 5
        %v2756 = vrot.slane %v2755, 4
        %v2757 = vrot.slane %v2220, 5
        %v2758 = vsel %vm1481, %v2756, %v2757
        %v2759 = vrot.slane %v2757, 4
        %v2760 = vrot.slane %v2243, 5
        %v2761 = vsel %vm1481, %v2759, %v2760
        %v2762 = vrot.slane %v2644, 5
        %v2763 = vrot.slane %v2762, 4
        %v2764 = vrot.slane %v2222, 5
        %v2765 = vsel %vm1481, %v2763, %v2764
        %v2766 = vrot.slane %v2764, 4
        %v2767 = vrot.slane %v2244, 5
        %v2768 = vsel %vm1481, %v2766, %v2767
        %v2769 = vrot.slane %v2645, 5
        %v2770 = vrot.slane %v2769, 4
        %v2771 = vrot.slane %v2224, 5
        %v2772 = vsel %vm1481, %v2770, %v2771
        %v2773 = vrot.slane %v2771, 4
        %v2774 = vrot.slane %v2245, 5
        %v2775 = vsel %vm1481, %v2773, %v2774
        %v2776 = vrot.slane %v2646, 5
        %v2777 = vrot.slane %v2776, 4
        %v2778 = vrot.slane %v2226, 5
        %v2779 = vsel %vm1481, %v2777, %v2778
        %v2780 = vrot.slane %v2778, 4
        %v2781 = vrot.slane %v2246, 5
        %v2782 = vsel %vm1481, %v2780, %v2781
        %v2783 = vrot.slane %v2647, 5
        %v2784 = vrot.slane %v2783, 4
        %v2785 = vrot.slane %v2228, 5
        %v2786 = vsel %vm1481, %v2784, %v2785
        %v2787 = vrot.slane %v2785, 4
        %v2788 = vrot.slane %v2247, 5
        %v2789 = vsel %vm1481, %v2787, %v2788
        %v2790 = vrot.slane %v2648, 5
        %v2791 = vrot.slane %v2790, 4
        %v2792 = vrot.slane %v2230, 5
        %v2793 = vsel %vm1481, %v2791, %v2792
        %v2794 = vrot.slane %v2792, 4
        %v2795 = vrot.slane %v2248, 5
        %v2796 = vsel %vm1481, %v2794, %v2795
        %v2797 = vrot.slane %v2649, 5
        %v2798 = vrot.slane %v2797, 4
        %v2799 = vrot.slane %v2232, 5
        %v2800 = vsel %vm1481, %v2798, %v2799
        %v2801 = vrot.slane %v2799, 4
        %v2802 = vrot.slane %v2249, 5
        %v2803 = vsel %vm1481, %v2801, %v2802
        %v2804 = vrot.slane %v2650, 5
        %v2805 = vrot.slane %v2804, 4
        %v2806 = vrot.slane %v2234, 5
        %v2807 = vsel %vm1481, %v2805, %v2806
        %v2808 = vrot.slane %v2806, 4
        %v2809 = vrot.slane %v2250, 5
        %v2810 = vsel %vm1481, %v2808, %v2809
        %v2827 = vunpack.c.l.b16 %v980
        %v2828 = vunpack.c.l.b16 %v981
        %v2829 = vunpack.c.l.b16 %v982
        %v2830 = vunpack.c.l.b16 %v983
        %v2831 = vunpack.c.l.b16 %v984
        %v2832 = vunpack.c.l.b16 %v985
        %v2833 = vunpack.c.l.b16 %v986
        %v2834 = vunpack.c.l.b16 %v987
        %v2835 = vunpack.c.l.b16 %v988
        %v2836 = vunpack.c.l.b16 %v989
        %v2837 = vunpack.c.l.b16 %v990
        %v2838 = vunpack.c.l.b16 %v991
        %v2839 = vunpack.c.l.b16 %v992
        %v2840 = vunpack.c.l.b16 %v993
        %v2841 = vunpack.c.l.b16 %v994
        %v2842 = vunpack.c.l.b16 %v995
        %v2843 = vunpack.c.l.b16 %v996
        %v2844 = vunpack.c.l.b16 %v997
        %v2845 = vunpack.c.l.b16 %v998
        %v2846 = vunpack.c.l.b16 %v999
        %v2847 = vunpack.c.l.b16 %v1000
        %v2848 = vunpack.c.l.b16 %v1001
        %v2849 = vunpack.c.l.b16 %v1002
        %v2850 = vunpack.c.l.b16 %v1003
        %v2851 = vunpack.c.l.b16 %v1004
        %v2852 = vunpack.c.l.b16 %v1005
        %v2853 = vunpack.c.l.b16 %v1006
        %v2854 = vunpack.c.l.b16 %v1007
        %v2855 = vunpack.c.l.b16 %v1008
        %v2856 = vunpack.c.l.b16 %v1009
        %v2857 = vunpack.c.l.b16 %v1010
        %v2858 = vunpack.c.l.b16 %v1011
        %v2859 = vpack.c.b16 %v2828, %v2827
        %v2860 = vpack.c.b16 %v2830, %v2829
        %v2861 = vpack.c.b16 %v2832, %v2831
        %v2862 = vpack.c.b16 %v2834, %v2833
        %v2863 = vpack.c.b16 %v2836, %v2835
        %v2864 = vpack.c.b16 %v2838, %v2837
        %v2865 = vpack.c.b16 %v2840, %v2839
        %v2866 = vpack.c.b16 %v2842, %v2841
        %v2867 = vpack.c.b16 %v2844, %v2843
        %v2868 = vpack.c.b16 %v2846, %v2845
        %v2869 = vpack.c.b16 %v2848, %v2847
        %v2870 = vpack.c.b16 %v2850, %v2849
        %v2871 = vpack.c.b16 %v2852, %v2851
        %v2872 = vpack.c.b16 %v2854, %v2853
        %v2873 = vpack.c.b16 %v2856, %v2855
        %v2874 = vpack.c.b16 %v2858, %v2857
        %v2891 = vunpack.c.l.b16 %v1044
        %v2892 = vunpack.c.l.b16 %v1054
        %v2893 = vunpack.c.l.b16 %v1068
        %v2894 = vunpack.c.l.b16 %v1078
        %v2895 = vunpack.c.l.b16 %v1092
        %v2896 = vunpack.c.l.b16 %v1102
        %v2897 = vunpack.c.l.b16 %v1116
        %v2898 = vunpack.c.l.b16 %v1126
        %v2899 = vunpack.c.l.b16 %v1140
        %v2900 = vunpack.c.l.b16 %v1150
        %v2901 = vunpack.c.l.b16 %v1164
        %v2902 = vunpack.c.l.b16 %v1174
        %v2903 = vunpack.c.l.b16 %v1188
        %v2904 = vunpack.c.l.b16 %v1198
        %v2905 = vunpack.c.l.b16 %v1212
        %v2906 = vunpack.c.l.b16 %v1222
        %v2907 = vunpack.c.l.b16 %v1236
        %v2908 = vunpack.c.l.b16 %v1246
        %v2909 = vunpack.c.l.b16 %v1260
        %v2910 = vunpack.c.l.b16 %v1270
        %v2911 = vunpack.c.l.b16 %v1284
        %v2912 = vunpack.c.l.b16 %v1294
        %v2913 = vunpack.c.l.b16 %v1308
        %v2914 = vunpack.c.l.b16 %v1318
        %v2915 = vunpack.c.l.b16 %v1332
        %v2916 = vunpack.c.l.b16 %v1342
        %v2917 = vunpack.c.l.b16 %v1356
        %v2918 = vunpack.c.l.b16 %v1366
        %v2919 = vunpack.c.l.b16 %v1380
        %v2920 = vunpack.c.l.b16 %v1390
        %v2921 = vunpack.c.l.b16 %v1404
        %v2922 = vunpack.c.l.b16 %v1414
        %v2923 = vpack.c.b16 %v2892, %v2891
        %v2924 = vpack.c.b16 %v2894, %v2893
        %v2925 = vpack.c.b16 %v2896, %v2895
        %v2926 = vpack.c.b16 %v2898, %v2897
        %v2927 = vpack.c.b16 %v2900, %v2899
        %v2928 = vpack.c.b16 %v2902, %v2901
        %v2929 = vpack.c.b16 %v2904, %v2903
        %v2930 = vpack.c.b16 %v2906, %v2905
        %v2931 = vpack.c.b16 %v2908, %v2907
        %v2932 = vpack.c.b16 %v2910, %v2909
        %v2933 = vpack.c.b16 %v2912, %v2911
        %v2934 = vpack.c.b16 %v2914, %v2913
        %v2935 = vpack.c.b16 %v2916, %v2915
        %v2936 = vpack.c.b16 %v2918, %v2917
        %v2937 = vpack.c.b16 %v2920, %v2919
        %v2938 = vpack.c.b16 %v2922, %v2921
        %v2955 = vunpack.c.l.b16 %v1485
        %v2956 = vunpack.c.l.b16 %v1488
        %v2957 = vunpack.c.l.b16 %v1492
        %v2958 = vunpack.c.l.b16 %v1495
        %v2959 = vunpack.c.l.b16 %v1499
        %v2960 = vunpack.c.l.b16 %v1502
        %v2961 = vunpack.c.l.b16 %v1506
        %v2962 = vunpack.c.l.b16 %v1509
        %v2963 = vunpack.c.l.b16 %v1513
        %v2964 = vunpack.c.l.b16 %v1516
        %v2965 = vunpack.c.l.b16 %v1520
        %v2966 = vunpack.c.l.b16 %v1523
        %v2967 = vunpack.c.l.b16 %v1527
        %v2968 = vunpack.c.l.b16 %v1530
        %v2969 = vunpack.c.l.b16 %v1534
        %v2970 = vunpack.c.l.b16 %v1537
        %v2971 = vunpack.c.l.b16 %v1541
        %v2972 = vunpack.c.l.b16 %v1544
        %v2973 = vunpack.c.l.b16 %v1548
        %v2974 = vunpack.c.l.b16 %v1551
        %v2975 = vunpack.c.l.b16 %v1555
        %v2976 = vunpack.c.l.b16 %v1558
        %v2977 = vunpack.c.l.b16 %v1562
        %v2978 = vunpack.c.l.b16 %v1565
        %v2979 = vunpack.c.l.b16 %v1569
        %v2980 = vunpack.c.l.b16 %v1572
        %v2981 = vunpack.c.l.b16 %v1576
        %v2982 = vunpack.c.l.b16 %v1579
        %v2983 = vunpack.c.l.b16 %v1583
        %v2984 = vunpack.c.l.b16 %v1586
        %v2985 = vunpack.c.l.b16 %v1590
        %v2986 = vunpack.c.l.b16 %v1593
        %v2987 = vpack.c.b16 %v2956, %v2955
        %v2988 = vpack.c.b16 %v2958, %v2957
        %v2989 = vpack.c.b16 %v2960, %v2959
        %v2990 = vpack.c.b16 %v2962, %v2961
        %v2991 = vpack.c.b16 %v2964, %v2963
        %v2992 = vpack.c.b16 %v2966, %v2965
        %v2993 = vpack.c.b16 %v2968, %v2967
        %v2994 = vpack.c.b16 %v2970, %v2969
        %v2995 = vpack.c.b16 %v2972, %v2971
        %v2996 = vpack.c.b16 %v2974, %v2973
        %v2997 = vpack.c.b16 %v2976, %v2975
        %v2998 = vpack.c.b16 %v2978, %v2977
        %v2999 = vpack.c.b16 %v2980, %v2979
        %v3000 = vpack.c.b16 %v2982, %v2981
        %v3001 = vpack.c.b16 %v2984, %v2983
        %v3002 = vpack.c.b16 %v2986, %v2985
        %v3035 = vunpack.c.l.b16 %v1594
        %v3036 = vunpack.c.l.b16 %v1595
        %v3037 = vunpack.c.l.b16 %v1596
        %v3038 = vunpack.c.l.b16 %v1597
        %v3039 = vunpack.c.l.b16 %v1598
        %v3040 = vunpack.c.l.b16 %v1599
        %v3041 = vunpack.c.l.b16 %v1600
        %v3042 = vunpack.c.l.b16 %v1601
        %v3043 = vunpack.c.l.b16 %v1602
        %v3044 = vunpack.c.l.b16 %v1603
        %v3045 = vunpack.c.l.b16 %v1604
        %v3046 = vunpack.c.l.b16 %v1605
        %v3047 = vunpack.c.l.b16 %v1606
        %v3048 = vunpack.c.l.b16 %v1607
        %v3049 = vunpack.c.l.b16 %v1608
        %v3050 = vunpack.c.l.b16 %v1609
        %v3051 = vunpack.c.l.b16 %v1610
        %v3052 = vunpack.c.l.b16 %v1611
        %v3053 = vunpack.c.l.b16 %v1612
        %v3054 = vunpack.c.l.b16 %v1613
        %v3055 = vunpack.c.l.b16 %v1614
        %v3056 = vunpack.c.l.b16 %v1615
        %v3057 = vunpack.c.l.b16 %v1616
        %v3058 = vunpack.c.l.b16 %v1617
        %v3059 = vunpack.c.l.b16 %v1618
        %v3060 = vunpack.c.l.b16 %v1619
        %v3061 = vunpack.c.l.b16 %v1620
        %v3062 = vunpack.c.l.b16 %v1621
        %v3063 = vunpack.c.l.b16 %v1622
        %v3064 = vunpack.c.l.b16 %v1623
        %v3065 = vunpack.c.l.b16 %v1624
        %v3066 = vunpack.c.l.b16 %v1625
        %v3067 = vpack.c.b16 %v3036, %v3035
        %v3068 = vpack.c.b16 %v3038, %v3037
        %v3069 = vpack.c.b16 %v3040, %v3039
        %v3070 = vpack.c.b16 %v3042, %v3041
        %v3071 = vpack.c.b16 %v3044, %v3043
        %v3072 = vpack.c.b16 %v3046, %v3045
        %v3073 = vpack.c.b16 %v3048, %v3047
        %v3074 = vpack.c.b16 %v3050, %v3049
        %v3075 = vpack.c.b16 %v3052, %v3051
        %v3076 = vpack.c.b16 %v3054, %v3053
        %v3077 = vpack.c.b16 %v3056, %v3055
        %v3078 = vpack.c.b16 %v3058, %v3057
        %v3079 = vpack.c.b16 %v3060, %v3059
        %v3080 = vpack.c.b16 %v3062, %v3061
        %v3081 = vpack.c.b16 %v3064, %v3063
        %v3082 = vpack.c.b16 %v3066, %v3065
        %v3099 = vunpack.c.l.b16 %v1655
        %v3100 = vunpack.c.l.b16 %v1665
        %v3101 = vunpack.c.l.b16 %v1679
        %v3102 = vunpack.c.l.b16 %v1689
        %v3103 = vunpack.c.l.b16 %v1703
        %v3104 = vunpack.c.l.b16 %v1713
        %v3105 = vunpack.c.l.b16 %v1727
        %v3106 = vunpack.c.l.b16 %v1737
        %v3107 = vunpack.c.l.b16 %v1751
        %v3108 = vunpack.c.l.b16 %v1761
        %v3109 = vunpack.c.l.b16 %v1775
        %v3110 = vunpack.c.l.b16 %v1785
        %v3111 = vunpack.c.l.b16 %v1799
        %v3112 = vunpack.c.l.b16 %v1809
        %v3113 = vunpack.c.l.b16 %v1823
        %v3114 = vunpack.c.l.b16 %v1833
        %v3115 = vunpack.c.l.b16 %v1847
        %v3116 = vunpack.c.l.b16 %v1857
        %v3117 = vunpack.c.l.b16 %v1871
        %v3118 = vunpack.c.l.b16 %v1881
        %v3119 = vunpack.c.l.b16 %v1895
        %v3120 = vunpack.c.l.b16 %v1905
        %v3121 = vunpack.c.l.b16 %v1919
        %v3122 = vunpack.c.l.b16 %v1929
        %v3123 = vunpack.c.l.b16 %v1943
        %v3124 = vunpack.c.l.b16 %v1953
        %v3125 = vunpack.c.l.b16 %v1967
        %v3126 = vunpack.c.l.b16 %v1977
        %v3127 = vunpack.c.l.b16 %v1991
        %v3128 = vunpack.c.l.b16 %v2001
        %v3129 = vunpack.c.l.b16 %v2015
        %v3130 = vunpack.c.l.b16 %v2025
        %v3131 = vpack.c.b16 %v3100, %v3099
        %v3132 = vpack.c.b16 %v3102, %v3101
        %v3133 = vpack.c.b16 %v3104, %v3103
        %v3134 = vpack.c.b16 %v3106, %v3105
        %v3135 = vpack.c.b16 %v3108, %v3107
        %v3136 = vpack.c.b16 %v3110, %v3109
        %v3137 = vpack.c.b16 %v3112, %v3111
        %v3138 = vpack.c.b16 %v3114, %v3113
        %v3139 = vpack.c.b16 %v3116, %v3115
        %v3140 = vpack.c.b16 %v3118, %v3117
        %v3141 = vpack.c.b16 %v3120, %v3119
        %v3142 = vpack.c.b16 %v3122, %v3121
        %v3143 = vpack.c.b16 %v3124, %v3123
        %v3144 = vpack.c.b16 %v3126, %v3125
        %v3145 = vpack.c.b16 %v3128, %v3127
        %v3146 = vpack.c.b16 %v3130, %v3129
        %v3163 = vunpack.c.l.b16 %v2093
        %v3164 = vunpack.c.l.b16 %v2096
        %v3165 = vunpack.c.l.b16 %v2100
        %v3166 = vunpack.c.l.b16 %v2103
        %v3167 = vunpack.c.l.b16 %v2107
        %v3168 = vunpack.c.l.b16 %v2110
        %v3169 = vunpack.c.l.b16 %v2114
        %v3170 = vunpack.c.l.b16 %v2117
        %v3171 = vunpack.c.l.b16 %v2121
        %v3172 = vunpack.c.l.b16 %v2124
        %v3173 = vunpack.c.l.b16 %v2128
        %v3174 = vunpack.c.l.b16 %v2131
        %v3175 = vunpack.c.l.b16 %v2135
        %v3176 = vunpack.c.l.b16 %v2138
        %v3177 = vunpack.c.l.b16 %v2142
        %v3178 = vunpack.c.l.b16 %v2145
        %v3179 = vunpack.c.l.b16 %v2149
        %v3180 = vunpack.c.l.b16 %v2152
        %v3181 = vunpack.c.l.b16 %v2156
        %v3182 = vunpack.c.l.b16 %v2159
        %v3183 = vunpack.c.l.b16 %v2163
        %v3184 = vunpack.c.l.b16 %v2166
        %v3185 = vunpack.c.l.b16 %v2170
        %v3186 = vunpack.c.l.b16 %v2173
        %v3187 = vunpack.c.l.b16 %v2177
        %v3188 = vunpack.c.l.b16 %v2180
        %v3189 = vunpack.c.l.b16 %v2184
        %v3190 = vunpack.c.l.b16 %v2187
        %v3191 = vunpack.c.l.b16 %v2191
        %v3192 = vunpack.c.l.b16 %v2194
        %v3193 = vunpack.c.l.b16 %v2198
        %v3194 = vunpack.c.l.b16 %v2201
        %v3195 = vpack.c.b16 %v3164, %v3163
        %v3196 = vpack.c.b16 %v3166, %v3165
        %v3197 = vpack.c.b16 %v3168, %v3167
        %v3198 = vpack.c.b16 %v3170, %v3169
        %v3199 = vpack.c.b16 %v3172, %v3171
        %v3200 = vpack.c.b16 %v3174, %v3173
        %v3201 = vpack.c.b16 %v3176, %v3175
        %v3202 = vpack.c.b16 %v3178, %v3177
        %v3203 = vpack.c.b16 %v3180, %v3179
        %v3204 = vpack.c.b16 %v3182, %v3181
        %v3205 = vpack.c.b16 %v3184, %v3183
        %v3206 = vpack.c.b16 %v3186, %v3185
        %v3207 = vpack.c.b16 %v3188, %v3187
        %v3208 = vpack.c.b16 %v3190, %v3189
        %v3209 = vpack.c.b16 %v3192, %v3191
        %v3210 = vpack.c.b16 %v3194, %v3193
        %v3243 = vunpack.c.l.b16 %v2203
        %v3244 = vunpack.c.l.b16 %v2204
        %v3245 = vunpack.c.l.b16 %v2205
        %v3246 = vunpack.c.l.b16 %v2206
        %v3247 = vunpack.c.l.b16 %v2207
        %v3248 = vunpack.c.l.b16 %v2208
        %v3249 = vunpack.c.l.b16 %v2209
        %v3250 = vunpack.c.l.b16 %v2210
        %v3251 = vunpack.c.l.b16 %v2211
        %v3252 = vunpack.c.l.b16 %v2212
        %v3253 = vunpack.c.l.b16 %v2213
        %v3254 = vunpack.c.l.b16 %v2214
        %v3255 = vunpack.c.l.b16 %v2215
        %v3256 = vunpack.c.l.b16 %v2216
        %v3257 = vunpack.c.l.b16 %v2217
        %v3258 = vunpack.c.l.b16 %v2218
        %v3259 = vunpack.c.l.b16 %v2219
        %v3260 = vunpack.c.l.b16 %v2220
        %v3261 = vunpack.c.l.b16 %v2221
        %v3262 = vunpack.c.l.b16 %v2222
        %v3263 = vunpack.c.l.b16 %v2223
        %v3264 = vunpack.c.l.b16 %v2224
        %v3265 = vunpack.c.l.b16 %v2225
        %v3266 = vunpack.c.l.b16 %v2226
        %v3267 = vunpack.c.l.b16 %v2227
        %v3268 = vunpack.c.l.b16 %v2228
        %v3269 = vunpack.c.l.b16 %v2229
        %v3270 = vunpack.c.l.b16 %v2230
        %v3271 = vunpack.c.l.b16 %v2231
        %v3272 = vunpack.c.l.b16 %v2232
        %v3273 = vunpack.c.l.b16 %v2233
        %v3274 = vunpack.c.l.b16 %v2234
        %v3275 = vpack.c.b16 %v3244, %v3243
        %v3276 = vpack.c.b16 %v3246, %v3245
        %v3277 = vpack.c.b16 %v3248, %v3247
        %v3278 = vpack.c.b16 %v3250, %v3249
        %v3279 = vpack.c.b16 %v3252, %v3251
        %v3280 = vpack.c.b16 %v3254, %v3253
        %v3281 = vpack.c.b16 %v3256, %v3255
        %v3282 = vpack.c.b16 %v3258, %v3257
        %v3283 = vpack.c.b16 %v3260, %v3259
        %v3284 = vpack.c.b16 %v3262, %v3261
        %v3285 = vpack.c.b16 %v3264, %v3263
        %v3286 = vpack.c.b16 %v3266, %v3265
        %v3287 = vpack.c.b16 %v3268, %v3267
        %v3288 = vpack.c.b16 %v3270, %v3269
        %v3289 = vpack.c.b16 %v3272, %v3271
        %v3290 = vpack.c.b16 %v3274, %v3273
        %v3307 = vunpack.c.l.b16 %v2264
        %v3308 = vunpack.c.l.b16 %v2274
        %v3309 = vunpack.c.l.b16 %v2288
        %v3310 = vunpack.c.l.b16 %v2298
        %v3311 = vunpack.c.l.b16 %v2312
        %v3312 = vunpack.c.l.b16 %v2322
        %v3313 = vunpack.c.l.b16 %v2336
        %v3314 = vunpack.c.l.b16 %v2346
        %v3315 = vunpack.c.l.b16 %v2360
        %v3316 = vunpack.c.l.b16 %v2370
        %v3317 = vunpack.c.l.b16 %v2384
        %v3318 = vunpack.c.l.b16 %v2394
        %v3319 = vunpack.c.l.b16 %v2408
        %v3320 = vunpack.c.l.b16 %v2418
        %v3321 = vunpack.c.l.b16 %v2432
        %v3322 = vunpack.c.l.b16 %v2442
        %v3323 = vunpack.c.l.b16 %v2456
        %v3324 = vunpack.c.l.b16 %v2466
        %v3325 = vunpack.c.l.b16 %v2480
        %v3326 = vunpack.c.l.b16 %v2490
        %v3327 = vunpack.c.l.b16 %v2504
        %v3328 = vunpack.c.l.b16 %v2514
        %v3329 = vunpack.c.l.b16 %v2528
        %v3330 = vunpack.c.l.b16 %v2538
        %v3331 = vunpack.c.l.b16 %v2552
        %v3332 = vunpack.c.l.b16 %v2562
        %v3333 = vunpack.c.l.b16 %v2576
        %v3334 = vunpack.c.l.b16 %v2586
        %v3335 = vunpack.c.l.b16 %v2600
        %v3336 = vunpack.c.l.b16 %v2610
        %v3337 = vunpack.c.l.b16 %v2624
        %v3338 = vunpack.c.l.b16 %v2634
        %v3339 = vpack.c.b16 %v3308, %v3307
        %v3340 = vpack.c.b16 %v3310, %v3309
        %v3341 = vpack.c.b16 %v3312, %v3311
        %v3342 = vpack.c.b16 %v3314, %v3313
        %v3343 = vpack.c.b16 %v3316, %v3315
        %v3344 = vpack.c.b16 %v3318, %v3317
        %v3345 = vpack.c.b16 %v3320, %v3319
        %v3346 = vpack.c.b16 %v3322, %v3321
        %v3347 = vpack.c.b16 %v3324, %v3323
        %v3348 = vpack.c.b16 %v3326, %v3325
        %v3349 = vpack.c.b16 %v3328, %v3327
        %v3350 = vpack.c.b16 %v3330, %v3329
        %v3351 = vpack.c.b16 %v3332, %v3331
        %v3352 = vpack.c.b16 %v3334, %v3333
        %v3353 = vpack.c.b16 %v3336, %v3335
        %v3354 = vpack.c.b16 %v3338, %v3337
        %v3371 = vunpack.c.l.b16 %v2702
        %v3372 = vunpack.c.l.b16 %v2705
        %v3373 = vunpack.c.l.b16 %v2709
        %v3374 = vunpack.c.l.b16 %v2712
        %v3375 = vunpack.c.l.b16 %v2716
        %v3376 = vunpack.c.l.b16 %v2719
        %v3377 = vunpack.c.l.b16 %v2723
        %v3378 = vunpack.c.l.b16 %v2726
        %v3379 = vunpack.c.l.b16 %v2730
        %v3380 = vunpack.c.l.b16 %v2733
        %v3381 = vunpack.c.l.b16 %v2737
        %v3382 = vunpack.c.l.b16 %v2740
        %v3383 = vunpack.c.l.b16 %v2744
        %v3384 = vunpack.c.l.b16 %v2747
        %v3385 = vunpack.c.l.b16 %v2751
        %v3386 = vunpack.c.l.b16 %v2754
        %v3387 = vunpack.c.l.b16 %v2758
        %v3388 = vunpack.c.l.b16 %v2761
        %v3389 = vunpack.c.l.b16 %v2765
        %v3390 = vunpack.c.l.b16 %v2768
        %v3391 = vunpack.c.l.b16 %v2772
        %v3392 = vunpack.c.l.b16 %v2775
        %v3393 = vunpack.c.l.b16 %v2779
        %v3394 = vunpack.c.l.b16 %v2782
        %v3395 = vunpack.c.l.b16 %v2786
        %v3396 = vunpack.c.l.b16 %v2789
        %v3397 = vunpack.c.l.b16 %v2793
        %v3398 = vunpack.c.l.b16 %v2796
        %v3399 = vunpack.c.l.b16 %v2800
        %v3400 = vunpack.c.l.b16 %v2803
        %v3401 = vunpack.c.l.b16 %v2807
        %v3402 = vunpack.c.l.b16 %v2810
        %v3403 = vpack.c.b16 %v3372, %v3371
        %v3404 = vpack.c.b16 %v3374, %v3373
        %v3405 = vpack.c.b16 %v3376, %v3375
        %v3406 = vpack.c.b16 %v3378, %v3377
        %v3407 = vpack.c.b16 %v3380, %v3379
        %v3408 = vpack.c.b16 %v3382, %v3381
        %v3409 = vpack.c.b16 %v3384, %v3383
        %v3410 = vpack.c.b16 %v3386, %v3385
        %v3411 = vpack.c.b16 %v3388, %v3387
        %v3412 = vpack.c.b16 %v3390, %v3389
        %v3413 = vpack.c.b16 %v3392, %v3391
        %v3414 = vpack.c.b16 %v3394, %v3393
        %v3415 = vpack.c.b16 %v3396, %v3395
        %v3416 = vpack.c.b16 %v3398, %v3397
        %v3417 = vpack.c.b16 %v3400, %v3399
        %v3418 = vpack.c.b16 %v3402, %v3401
        %v3435 = vld [vmem:[%s1] sm:$0xf]
        %v3436 = vld [vmem:[%s1 + $0x4] sm:$0xf]
        %v3437 = vld [vmem:[%s1 + $0x8] sm:$0xf]
        %v3438 = vld [vmem:[%s1 + $0xc] sm:$0xf]
        %v3439 = vld [vmem:[%s1 + $0x10] sm:$0xf]
        %v3440 = vld [vmem:[%s1 + $0x14] sm:$0xf]
        %v3441 = vld [vmem:[%s1 + $0x18] sm:$0xf]
        %v3442 = vld [vmem:[%s1 + $0x1c] sm:$0xf]
        %v3443 = vld [vmem:[%s1 + $0x20] sm:$0xf]
        %v3444 = vld [vmem:[%s1 + $0x24] sm:$0xf]
        %v3445 = vld [vmem:[%s1 + $0x28] sm:$0xf]
        %v3446 = vld [vmem:[%s1 + $0x2c] sm:$0xf]
        %v3447 = vld [vmem:[%s1 + $0x30] sm:$0xf]
        %v3448 = vld [vmem:[%s1 + $0x34] sm:$0xf]
        %v3449 = vld [vmem:[%s1 + $0x38] sm:$0xf]
        %v3450 = vld [vmem:[%s1 + $0x3c] sm:$0xf]
        %v3451 = vld [vmem:[%s1 + $0x40] sm:$0xf]
        %v3452 = vld [vmem:[%s1 + $0x44] sm:$0xf]
        %v3453 = vld [vmem:[%s1 + $0x48] sm:$0xf]
        %v3454 = vld [vmem:[%s1 + $0x4c] sm:$0xf]
        %v3455 = vld [vmem:[%s1 + $0x50] sm:$0xf]
        %v3456 = vld [vmem:[%s1 + $0x54] sm:$0xf]
        %v3457 = vld [vmem:[%s1 + $0x58] sm:$0xf]
        %v3458 = vld [vmem:[%s1 + $0x5c] sm:$0xf]
        %v3459 = vld [vmem:[%s1 + $0x60] sm:$0xf]
        %v3460 = vld [vmem:[%s1 + $0x64] sm:$0xf]
        %v3461 = vld [vmem:[%s1 + $0x68] sm:$0xf]
        %v3462 = vld [vmem:[%s1 + $0x6c] sm:$0xf]
        %v3463 = vld [vmem:[%s1 + $0x70] sm:$0xf]
        %v3464 = vld [vmem:[%s1 + $0x74] sm:$0xf]
        %v3465 = vld [vmem:[%s1 + $0x78] sm:$0xf]
        %v3466 = vld [vmem:[%s1 + $0x7c] sm:$0xf]
        %v3467 = vld [vmem:[%s1 + $0x80] sm:$0xf]
        %v3468 = vld [vmem:[%s1 + $0x84] sm:$0xf]
        %v3469 = vld [vmem:[%s1 + $0x88] sm:$0xf]
        %v3470 = vld [vmem:[%s1 + $0x8c] sm:$0xf]
        %v3471 = vld [vmem:[%s1 + $0x90] sm:$0xf]
        %v3472 = vld [vmem:[%s1 + $0x94] sm:$0xf]
        %v3473 = vld [vmem:[%s1 + $0x98] sm:$0xf]
        %v3474 = vld [vmem:[%s1 + $0x9c] sm:$0xf]
        %v3475 = vld [vmem:[%s1 + $0xa0] sm:$0xf]
        %v3476 = vld [vmem:[%s1 + $0xa4] sm:$0xf]
        %v3477 = vld [vmem:[%s1 + $0xa8] sm:$0xf]
        %v3478 = vld [vmem:[%s1 + $0xac] sm:$0xf]
        %v3479 = vld [vmem:[%s1 + $0xb0] sm:$0xf]
        %v3480 = vld [vmem:[%s1 + $0xb4] sm:$0xf]
        %v3481 = vld [vmem:[%s1 + $0xb8] sm:$0xf]
        %v3482 = vld [vmem:[%s1 + $0xbc] sm:$0xf]
        %v3483 = vld [vmem:[%s1 + $0xc0] sm:$0xf]
        %v3484 = vld [vmem:[%s1 + $0xc4] sm:$0xf]
        %v3485 = vld [vmem:[%s1 + $0xc8] sm:$0xf]
        %v3486 = vld [vmem:[%s1 + $0xcc] sm:$0xf]
        %v3487 = vld [vmem:[%s1 + $0xd0] sm:$0xf]
        %v3488 = vld [vmem:[%s1 + $0xd4] sm:$0xf]
        %v3489 = vld [vmem:[%s1 + $0xd8] sm:$0xf]
        %v3490 = vld [vmem:[%s1 + $0xdc] sm:$0xf]
        %v3491 = vld [vmem:[%s1 + $0xe0] sm:$0xf]
        %v3492 = vld [vmem:[%s1 + $0xe4] sm:$0xf]
        %v3493 = vld [vmem:[%s1 + $0xe8] sm:$0xf]
        %v3494 = vld [vmem:[%s1 + $0xec] sm:$0xf]
        %v3495 = vld [vmem:[%s1 + $0xf0] sm:$0xf]
        %v3496 = vld [vmem:[%s1 + $0xf4] sm:$0xf]
        %v3497 = vld [vmem:[%s1 + $0xf8] sm:$0xf]
        %v3498 = vld [vmem:[%s1 + $0xfc] sm:$0xf]
        %v3499 = vld [vmem:[%s1 + $0x100] sm:$0xf]
        %v3500 = vld [vmem:[%s1 + $0x104] sm:$0xf]
        %v3501 = vld [vmem:[%s1 + $0x108] sm:$0xf]
        %v3502 = vld [vmem:[%s1 + $0x10c] sm:$0xf]
        %v3503 = vld [vmem:[%s1 + $0x110] sm:$0xf]
        %v3504 = vld [vmem:[%s1 + $0x114] sm:$0xf]
        %v3505 = vld [vmem:[%s1 + $0x118] sm:$0xf]
        %v3506 = vld [vmem:[%s1 + $0x11c] sm:$0xf]
        %v3507 = vld [vmem:[%s1 + $0x120] sm:$0xf]
        %v3508 = vld [vmem:[%s1 + $0x124] sm:$0xf]
        %v3509 = vld [vmem:[%s1 + $0x128] sm:$0xf]
        %v3510 = vld [vmem:[%s1 + $0x12c] sm:$0xf]
        %v3511 = vld [vmem:[%s1 + $0x130] sm:$0xf]
        %v3512 = vld [vmem:[%s1 + $0x134] sm:$0xf]
        %v3513 = vld [vmem:[%s1 + $0x138] sm:$0xf]
        %v3514 = vld [vmem:[%s1 + $0x13c] sm:$0xf]
        %v3515 = vld [vmem:[%s1 + $0x140] sm:$0xf]
        %v3516 = vld [vmem:[%s1 + $0x144] sm:$0xf]
        %v3517 = vld [vmem:[%s1 + $0x148] sm:$0xf]
        %v3518 = vld [vmem:[%s1 + $0x14c] sm:$0xf]
        %v3519 = vld [vmem:[%s1 + $0x150] sm:$0xf]
        %v3520 = vld [vmem:[%s1 + $0x154] sm:$0xf]
        %v3521 = vld [vmem:[%s1 + $0x158] sm:$0xf]
        %v3522 = vld [vmem:[%s1 + $0x15c] sm:$0xf]
        %v3523 = vld [vmem:[%s1 + $0x160] sm:$0xf]
        %v3524 = vld [vmem:[%s1 + $0x164] sm:$0xf]
        %v3525 = vld [vmem:[%s1 + $0x168] sm:$0xf]
        %v3526 = vld [vmem:[%s1 + $0x16c] sm:$0xf]
        %v3527 = vld [vmem:[%s1 + $0x170] sm:$0xf]
        %v3528 = vld [vmem:[%s1 + $0x174] sm:$0xf]
        %v3529 = vld [vmem:[%s1 + $0x178] sm:$0xf]
        %v3530 = vld [vmem:[%s1 + $0x17c] sm:$0xf]
        %v3531 = vld [vmem:[%s1 + $0x180] sm:$0xf]
        %v3532 = vld [vmem:[%s1 + $0x184] sm:$0xf]
        %v3533 = vld [vmem:[%s1 + $0x188] sm:$0xf]
        %v3534 = vld [vmem:[%s1 + $0x18c] sm:$0xf]
        %v3535 = vld [vmem:[%s1 + $0x190] sm:$0xf]
        %v3536 = vld [vmem:[%s1 + $0x194] sm:$0xf]
        %v3537 = vld [vmem:[%s1 + $0x198] sm:$0xf]
        %v3538 = vld [vmem:[%s1 + $0x19c] sm:$0xf]
        %v3539 = vld [vmem:[%s1 + $0x1a0] sm:$0xf]
        %v3540 = vld [vmem:[%s1 + $0x1a4] sm:$0xf]
        %v3541 = vld [vmem:[%s1 + $0x1a8] sm:$0xf]
        %v3542 = vld [vmem:[%s1 + $0x1ac] sm:$0xf]
        %v3543 = vld [vmem:[%s1 + $0x1b0] sm:$0xf]
        %v3544 = vld [vmem:[%s1 + $0x1b4] sm:$0xf]
        %v3545 = vld [vmem:[%s1 + $0x1b8] sm:$0xf]
        %v3546 = vld [vmem:[%s1 + $0x1bc] sm:$0xf]
        %v3547 = vld [vmem:[%s1 + $0x1c0] sm:$0xf]
        %v3548 = vld [vmem:[%s1 + $0x1c4] sm:$0xf]
        %v3549 = vld [vmem:[%s1 + $0x1c8] sm:$0xf]
        %v3550 = vld [vmem:[%s1 + $0x1cc] sm:$0xf]
        %v3551 = vld [vmem:[%s1 + $0x1d0] sm:$0xf]
        %v3552 = vld [vmem:[%s1 + $0x1d4] sm:$0xf]
        %v3553 = vld [vmem:[%s1 + $0x1d8] sm:$0xf]
        %v3554 = vld [vmem:[%s1 + $0x1dc] sm:$0xf]
        %v3555 = vld [vmem:[%s1 + $0x1e0] sm:$0xf]
        %v3556 = vld [vmem:[%s1 + $0x1e4] sm:$0xf]
        %v3557 = vld [vmem:[%s1 + $0x1e8] sm:$0xf]
        %v3558 = vld [vmem:[%s1 + $0x1ec] sm:$0xf]
        %v3559 = vld [vmem:[%s1 + $0x1f0] sm:$0xf]
        %v3560 = vld [vmem:[%s1 + $0x1f4] sm:$0xf]
        %v3561 = vld [vmem:[%s1 + $0x1f8] sm:$0xf]
        %v3562 = vld [vmem:[%s1 + $0x1fc] sm:$0xf]
        %v3563 = vld [vmem:[%s1 + $0x200] sm:$0xf]
        %v3564 = vld [vmem:[%s1 + $0x204] sm:$0xf]
        %v3565 = vld [vmem:[%s1 + $0x208] sm:$0xf]
        %v3566 = vld [vmem:[%s1 + $0x20c] sm:$0xf]
        %v3567 = vld [vmem:[%s1 + $0x210] sm:$0xf]
        %v3568 = vld [vmem:[%s1 + $0x214] sm:$0xf]
        %v3569 = vld [vmem:[%s1 + $0x218] sm:$0xf]
        %v3570 = vld [vmem:[%s1 + $0x21c] sm:$0xf]
        %v3571 = vld [vmem:[%s1 + $0x220] sm:$0xf]
        %v3572 = vld [vmem:[%s1 + $0x224] sm:$0xf]
        %v3573 = vld [vmem:[%s1 + $0x228] sm:$0xf]
        %v3574 = vld [vmem:[%s1 + $0x22c] sm:$0xf]
        %v3575 = vld [vmem:[%s1 + $0x230] sm:$0xf]
        %v3576 = vld [vmem:[%s1 + $0x234] sm:$0xf]
        %v3577 = vld [vmem:[%s1 + $0x238] sm:$0xf]
        %v3578 = vld [vmem:[%s1 + $0x23c] sm:$0xf]
        %v3579 = vld [vmem:[%s2] sm:$0x1]
        %v3581 = vlaneseq
        %v3582 = vshrl.u32 %v3581, 7
        %v3583 = vsub.s32 0, %v3582
        %v3584 = vrot.slane %v3579, %v3583
        %v3730 = vunpack.c.l.b16 %v3435
        %v3731 = vunpack.c.l.b16 %v3436
        %v3732 = vunpack.c.l.b16 %v3437
        %v3733 = vunpack.c.l.b16 %v3438
        %v3734 = vunpack.c.l.b16 %v3439
        %v3735 = vunpack.c.l.b16 %v3440
        %v3736 = vunpack.c.l.b16 %v3441
        %v3737 = vunpack.c.l.b16 %v3442
        %v3738 = vunpack.c.l.b16 %v3443
        %v3739 = vunpack.c.l.b16 %v3444
        %v3740 = vunpack.c.l.b16 %v3445
        %v3741 = vunpack.c.l.b16 %v3446
        %v3742 = vunpack.c.l.b16 %v3447
        %v3743 = vunpack.c.l.b16 %v3448
        %v3744 = vunpack.c.l.b16 %v3449
        %v3745 = vunpack.c.l.b16 %v3450
        %v3746 = vunpack.c.l.b16 %v3451
        %v3747 = vunpack.c.l.b16 %v3452
        %v3748 = vunpack.c.l.b16 %v3453
        %v3749 = vunpack.c.l.b16 %v3454
        %v3750 = vunpack.c.l.b16 %v3455
        %v3751 = vunpack.c.l.b16 %v3456
        %v3752 = vunpack.c.l.b16 %v3457
        %v3753 = vunpack.c.l.b16 %v3458
        %v3754 = vunpack.c.l.b16 %v3459
        %v3755 = vunpack.c.l.b16 %v3460
        %v3756 = vunpack.c.l.b16 %v3461
        %v3757 = vunpack.c.l.b16 %v3462
        %v3758 = vunpack.c.l.b16 %v3463
        %v3759 = vunpack.c.l.b16 %v3464
        %v3760 = vunpack.c.l.b16 %v3465
        %v3761 = vunpack.c.l.b16 %v3466
        %v3762 = vunpack.c.l.b16 %v3467
        %v3763 = vunpack.c.l.b16 %v3468
        %v3764 = vunpack.c.l.b16 %v3469
        %v3765 = vunpack.c.l.b16 %v3470
        %v3766 = vunpack.c.l.b16 %v3471
        %v3767 = vunpack.c.l.b16 %v3472
        %v3768 = vunpack.c.l.b16 %v3473
        %v3769 = vunpack.c.l.b16 %v3474
        %v3770 = vunpack.c.l.b16 %v3475
        %v3771 = vunpack.c.l.b16 %v3476
        %v3772 = vunpack.c.l.b16 %v3477
        %v3773 = vunpack.c.l.b16 %v3478
        %v3774 = vunpack.c.l.b16 %v3479
        %v3775 = vunpack.c.l.b16 %v3480
        %v3776 = vunpack.c.l.b16 %v3481
        %v3777 = vunpack.c.l.b16 %v3482
        %v3778 = vunpack.c.l.b16 %v3483
        %v3779 = vunpack.c.l.b16 %v3484
        %v3780 = vunpack.c.l.b16 %v3485
        %v3781 = vunpack.c.l.b16 %v3486
        %v3782 = vunpack.c.l.b16 %v3487
        %v3783 = vunpack.c.l.b16 %v3488
        %v3784 = vunpack.c.l.b16 %v3489
        %v3785 = vunpack.c.l.b16 %v3490
        %v3786 = vunpack.c.l.b16 %v3491
        %v3787 = vunpack.c.l.b16 %v3492
        %v3788 = vunpack.c.l.b16 %v3493
        %v3789 = vunpack.c.l.b16 %v3494
        %v3790 = vunpack.c.l.b16 %v3495
        %v3791 = vunpack.c.l.b16 %v3496
        %v3792 = vunpack.c.l.b16 %v3497
        %v3793 = vunpack.c.l.b16 %v3498
        %v3794 = vunpack.c.l.b16 %v3499
        %v3795 = vunpack.c.l.b16 %v3500
        %v3796 = vunpack.c.l.b16 %v3501
        %v3797 = vunpack.c.l.b16 %v3502
        %v3798 = vunpack.c.l.b16 %v3503
        %v3799 = vunpack.c.l.b16 %v3504
        %v3800 = vunpack.c.l.b16 %v3505
        %v3801 = vunpack.c.l.b16 %v3506
        %v3802 = vunpack.c.l.b16 %v3507
        %v3803 = vunpack.c.l.b16 %v3508
        %v3804 = vunpack.c.l.b16 %v3509
        %v3805 = vunpack.c.l.b16 %v3510
        %v3806 = vunpack.c.l.b16 %v3511
        %v3807 = vunpack.c.l.b16 %v3512
        %v3808 = vunpack.c.l.b16 %v3513
        %v3809 = vunpack.c.l.b16 %v3514
        %v3810 = vunpack.c.l.b16 %v3515
        %v3811 = vunpack.c.l.b16 %v3516
        %v3812 = vunpack.c.l.b16 %v3517
        %v3813 = vunpack.c.l.b16 %v3518
        %v3814 = vunpack.c.l.b16 %v3519
        %v3815 = vunpack.c.l.b16 %v3520
        %v3816 = vunpack.c.l.b16 %v3521
        %v3817 = vunpack.c.l.b16 %v3522
        %v3818 = vunpack.c.l.b16 %v3523
        %v3819 = vunpack.c.l.b16 %v3524
        %v3820 = vunpack.c.l.b16 %v3525
        %v3821 = vunpack.c.l.b16 %v3526
        %v3822 = vunpack.c.l.b16 %v3527
        %v3823 = vunpack.c.l.b16 %v3528
        %v3824 = vunpack.c.l.b16 %v3529
        %v3825 = vunpack.c.l.b16 %v3530
        %v3826 = vunpack.c.l.b16 %v3531
        %v3827 = vunpack.c.l.b16 %v3532
        %v3828 = vunpack.c.l.b16 %v3533
        %v3829 = vunpack.c.l.b16 %v3534
        %v3830 = vunpack.c.l.b16 %v3535
        %v3831 = vunpack.c.l.b16 %v3536
        %v3832 = vunpack.c.l.b16 %v3537
        %v3833 = vunpack.c.l.b16 %v3538
        %v3834 = vunpack.c.l.b16 %v3539
        %v3835 = vunpack.c.l.b16 %v3540
        %v3836 = vunpack.c.l.b16 %v3541
        %v3837 = vunpack.c.l.b16 %v3542
        %v3838 = vunpack.c.l.b16 %v3543
        %v3839 = vunpack.c.l.b16 %v3544
        %v3840 = vunpack.c.l.b16 %v3545
        %v3841 = vunpack.c.l.b16 %v3546
        %v3842 = vunpack.c.l.b16 %v3547
        %v3843 = vunpack.c.l.b16 %v3548
        %v3844 = vunpack.c.l.b16 %v3549
        %v3845 = vunpack.c.l.b16 %v3550
        %v3846 = vunpack.c.l.b16 %v3551
        %v3847 = vunpack.c.l.b16 %v3552
        %v3848 = vunpack.c.l.b16 %v3553
        %v3849 = vunpack.c.l.b16 %v3554
        %v3850 = vunpack.c.l.b16 %v3555
        %v3851 = vunpack.c.l.b16 %v3556
        %v3852 = vunpack.c.l.b16 %v3557
        %v3853 = vunpack.c.l.b16 %v3558
        %v3854 = vunpack.c.l.b16 %v3559
        %v3855 = vunpack.c.l.b16 %v3560
        %v3856 = vunpack.c.l.b16 %v3561
        %v3857 = vunpack.c.l.b16 %v3562
        %v3858 = vunpack.c.l.b16 %v3563
        %v3859 = vunpack.c.l.b16 %v3564
        %v3860 = vunpack.c.l.b16 %v3565
        %v3861 = vunpack.c.l.b16 %v3566
        %v3862 = vunpack.c.l.b16 %v3567
        %v3863 = vunpack.c.l.b16 %v3568
        %v3864 = vunpack.c.l.b16 %v3569
        %v3865 = vunpack.c.l.b16 %v3570
        %v3866 = vunpack.c.l.b16 %v3571
        %v3867 = vunpack.c.l.b16 %v3572
        %v3868 = vunpack.c.l.b16 %v3573
        %v3869 = vunpack.c.l.b16 %v3574
        %v3870 = vunpack.c.l.b16 %v3575
        %v3871 = vunpack.c.l.b16 %v3576
        %v3872 = vunpack.c.l.b16 %v3577
        %v3873 = vunpack.c.l.b16 %v3578
        %v3874 = vpack.c.b16 %v3731, %v3730
        %v3875 = vpack.c.b16 %v3733, %v3732
        %v3876 = vpack.c.b16 %v3735, %v3734
        %v3877 = vpack.c.b16 %v3737, %v3736
        %v3878 = vpack.c.b16 %v3739, %v3738
        %v3879 = vpack.c.b16 %v3741, %v3740
        %v3880 = vpack.c.b16 %v3743, %v3742
        %v3881 = vpack.c.b16 %v3745, %v3744
        %v3882 = vpack.c.b16 %v3747, %v3746
        %v3883 = vpack.c.b16 %v3749, %v3748
        %v3884 = vpack.c.b16 %v3751, %v3750
        %v3885 = vpack.c.b16 %v3753, %v3752
        %v3886 = vpack.c.b16 %v3755, %v3754
        %v3887 = vpack.c.b16 %v3757, %v3756
        %v3888 = vpack.c.b16 %v3759, %v3758
        %v3889 = vpack.c.b16 %v3761, %v3760
        %v3890 = vpack.c.b16 %v3763, %v3762
        %v3891 = vpack.c.b16 %v3765, %v3764
        %v3892 = vpack.c.b16 %v3767, %v3766
        %v3893 = vpack.c.b16 %v3769, %v3768
        %v3894 = vpack.c.b16 %v3771, %v3770
        %v3895 = vpack.c.b16 %v3773, %v3772
        %v3896 = vpack.c.b16 %v3775, %v3774
        %v3897 = vpack.c.b16 %v3777, %v3776
        %v3898 = vpack.c.b16 %v3779, %v3778
        %v3899 = vpack.c.b16 %v3781, %v3780
        %v3900 = vpack.c.b16 %v3783, %v3782
        %v3901 = vpack.c.b16 %v3785, %v3784
        %v3902 = vpack.c.b16 %v3787, %v3786
        %v3903 = vpack.c.b16 %v3789, %v3788
        %v3904 = vpack.c.b16 %v3791, %v3790
        %v3905 = vpack.c.b16 %v3793, %v3792
        %v3906 = vpack.c.b16 %v3795, %v3794
        %v3907 = vpack.c.b16 %v3797, %v3796
        %v3908 = vpack.c.b16 %v3799, %v3798
        %v3909 = vpack.c.b16 %v3801, %v3800
        %v3910 = vpack.c.b16 %v3803, %v3802
        %v3911 = vpack.c.b16 %v3805, %v3804
        %v3912 = vpack.c.b16 %v3807, %v3806
        %v3913 = vpack.c.b16 %v3809, %v3808
        %v3914 = vpack.c.b16 %v3811, %v3810
        %v3915 = vpack.c.b16 %v3813, %v3812
        %v3916 = vpack.c.b16 %v3815, %v3814
        %v3917 = vpack.c.b16 %v3817, %v3816
        %v3918 = vpack.c.b16 %v3819, %v3818
        %v3919 = vpack.c.b16 %v3821, %v3820
        %v3920 = vpack.c.b16 %v3823, %v3822
        %v3921 = vpack.c.b16 %v3825, %v3824
        %v3922 = vpack.c.b16 %v3827, %v3826
        %v3923 = vpack.c.b16 %v3829, %v3828
        %v3924 = vpack.c.b16 %v3831, %v3830
        %v3925 = vpack.c.b16 %v3833, %v3832
        %v3926 = vpack.c.b16 %v3835, %v3834
        %v3927 = vpack.c.b16 %v3837, %v3836
        %v3928 = vpack.c.b16 %v3839, %v3838
        %v3929 = vpack.c.b16 %v3841, %v3840
        %v3930 = vpack.c.b16 %v3843, %v3842
        %v3931 = vpack.c.b16 %v3845, %v3844
        %v3932 = vpack.c.b16 %v3847, %v3846
        %v3933 = vpack.c.b16 %v3849, %v3848
        %v3934 = vpack.c.b16 %v3851, %v3850
        %v3935 = vpack.c.b16 %v3853, %v3852
        %v3936 = vpack.c.b16 %v3855, %v3854
        %v3937 = vpack.c.b16 %v3857, %v3856
        %v3938 = vpack.c.b16 %v3859, %v3858
        %v3939 = vpack.c.b16 %v3861, %v3860
        %v3940 = vpack.c.b16 %v3863, %v3862
        %v3941 = vpack.c.b16 %v3865, %v3864
        %v3942 = vpack.c.b16 %v3867, %v3866
        %v3943 = vpack.c.b16 %v3869, %v3868
        %v3944 = vpack.c.b16 %v3871, %v3870
        %v3945 = vpack.c.b16 %v3873, %v3872
        %4018 = vmatprep.subr.bf16.mxu0 0
        %4019 = vmatpush1.bf16.msra.mxu0 %v3881
        %4020 = vmatprep.subr.bf16.mxu0 0
        %4021 = vmatpush1.bf16.msra.mxu0 %v3880
        %4022 = vmatprep.subr.bf16.mxu0 0
        %4023 = vmatpush1.bf16.msra.mxu0 %v3879
        %4024 = vmatprep.subr.bf16.mxu0 0
        %4025 = vmatpush1.bf16.msra.mxu0 %v3878
        %4026 = vmatprep.subr.bf16.mxu0 0
        %4027 = vmatpush1.bf16.msra.mxu0 %v3877
        %4028 = vmatprep.subr.bf16.mxu0 0
        %4029 = vmatpush1.bf16.msra.mxu0 %v3876
        %4030 = vmatprep.subr.bf16.mxu0 0
        %4031 = vmatpush1.bf16.msra.mxu0 %v3875
        %4032 = vmatprep.subr.bf16.mxu0 0
        %4033 = vmatpush1.bf16.msra.mxu0 %v3874
        %4034 = vmatprep.subr.bf16.mxu0 0
        %4035 = vmatpush2.bf16.msra.mxu0 %v3889
        %4036 = vmatprep.subr.bf16.mxu0 0
        %4037 = vmatpush2.bf16.msra.mxu0 %v3888
        %4038 = vmatprep.subr.bf16.mxu0 0
        %4039 = vmatpush2.bf16.msra.mxu0 %v3887
        %4040 = vmatprep.subr.bf16.mxu0 0
        %4041 = vmatpush2.bf16.msra.mxu0 %v3886
        %4042 = vmatprep.subr.bf16.mxu0 0
        %4043 = vmatpush2.bf16.msra.mxu0 %v3885
        %4044 = vmatprep.subr.bf16.mxu0 0
        %4045 = vmatpush2.bf16.msra.mxu0 %v3884
        %4046 = vmatprep.subr.bf16.mxu0 0
        %4047 = vmatpush2.bf16.msra.mxu0 %v3883
        %4048 = vmatprep.subr.bf16.mxu0 0
        %4049 = vmatpush2.bf16.msra.mxu0 %v3882
        %4050 = vmatprep.mubr.bf16.mxu0 %v2923
        %4051 = vmatmul.mubr.bf16.gmra.mxu0 %v2859
        %v4052 = vpop.f32.mrf.mxu0
        %v4053 = vadd.f32 %v3584, %v4052
        %v4054 = vpop.f32.mrf.mxu0
        %v4055 = vpop.f32.mrf.mxu0
        %v4056 = vadd.f32 %v3584, %v4055
        %v4057 = vpop.f32.mrf.mxu0
        %4058 = vmatprep.mubr.bf16.mxu0 %v2924
        %4059 = vmatmul.mubr.bf16.gmra.mxu0 %v2860
        %v4060 = vpop.f32.mrf.mxu0
        %v4061 = vadd.f32 %v3584, %v4060
        %v4062 = vpop.f32.mrf.mxu0
        %v4063 = vpop.f32.mrf.mxu0
        %v4064 = vadd.f32 %v3584, %v4063
        %v4065 = vpop.f32.mrf.mxu0
        %4066 = vmatprep.mubr.bf16.mxu0 %v2925
        %4067 = vmatmul.mubr.bf16.gmra.mxu0 %v2861
        %v4068 = vpop.f32.mrf.mxu0
        %v4069 = vadd.f32 %v3584, %v4068
        %v4070 = vpop.f32.mrf.mxu0
        %v4071 = vpop.f32.mrf.mxu0
        %v4072 = vadd.f32 %v3584, %v4071
        %v4073 = vpop.f32.mrf.mxu0
        %4074 = vmatprep.mubr.bf16.mxu0 %v2926
        %4075 = vmatmul.mubr.bf16.gmra.mxu0 %v2862
        %v4076 = vpop.f32.mrf.mxu0
        %v4077 = vadd.f32 %v3584, %v4076
        %v4078 = vpop.f32.mrf.mxu0
        %v4079 = vpop.f32.mrf.mxu0
        %v4080 = vadd.f32 %v3584, %v4079
        %v4081 = vpop.f32.mrf.mxu0
        %4082 = vmatprep.mubr.bf16.mxu0 %v2927
        %4083 = vmatmul.mubr.bf16.gmra.mxu0 %v2863
        %v4084 = vpop.f32.mrf.mxu0
        %v4085 = vadd.f32 %v3584, %v4084
        %v4086 = vpop.f32.mrf.mxu0
        %v4087 = vpop.f32.mrf.mxu0
        %v4088 = vadd.f32 %v3584, %v4087
        %v4089 = vpop.f32.mrf.mxu0
        %4090 = vmatprep.mubr.bf16.mxu0 %v2928
        %4091 = vmatmul.mubr.bf16.gmra.mxu0 %v2864
        %v4092 = vpop.f32.mrf.mxu0
        %v4093 = vadd.f32 %v3584, %v4092
        %v4094 = vpop.f32.mrf.mxu0
        %v4095 = vpop.f32.mrf.mxu0
        %v4096 = vadd.f32 %v3584, %v4095
        %v4097 = vpop.f32.mrf.mxu0
        %4098 = vmatprep.mubr.bf16.mxu0 %v2929
        %4099 = vmatmul.mubr.bf16.gmra.mxu0 %v2865
        %v4100 = vpop.f32.mrf.mxu0
        %v4101 = vadd.f32 %v3584, %v4100
        %v4102 = vpop.f32.mrf.mxu0
        %v4103 = vpop.f32.mrf.mxu0
        %v4104 = vadd.f32 %v3584, %v4103
        %v4105 = vpop.f32.mrf.mxu0
        %4106 = vmatprep.mubr.bf16.mxu0 %v2930
        %4107 = vmatmul.mubr.bf16.gmra.mxu0 %v2866
        %v4108 = vpop.f32.mrf.mxu0
        %v4109 = vadd.f32 %v3584, %v4108
        %v4110 = vpop.f32.mrf.mxu0
        %v4111 = vpop.f32.mrf.mxu0
        %v4112 = vadd.f32 %v3584, %v4111
        %v4113 = vpop.f32.mrf.mxu0
        %4114 = vmatprep.mubr.bf16.mxu0 %v2931
        %4115 = vmatmul.mubr.bf16.gmra.mxu0 %v2867
        %v4116 = vpop.f32.mrf.mxu0
        %v4117 = vadd.f32 %v3584, %v4116
        %v4118 = vpop.f32.mrf.mxu0
        %v4119 = vpop.f32.mrf.mxu0
        %v4120 = vadd.f32 %v3584, %v4119
        %v4121 = vpop.f32.mrf.mxu0
        %4122 = vmatprep.mubr.bf16.mxu0 %v2932
        %4123 = vmatmul.mubr.bf16.gmra.mxu0 %v2868
        %v4124 = vpop.f32.mrf.mxu0
        %v4125 = vadd.f32 %v3584, %v4124
        %v4126 = vpop.f32.mrf.mxu0
        %v4127 = vpop.f32.mrf.mxu0
        %v4128 = vadd.f32 %v3584, %v4127
        %v4129 = vpop.f32.mrf.mxu0
        %4130 = vmatprep.mubr.bf16.mxu0 %v2933
        %4131 = vmatmul.mubr.bf16.gmra.mxu0 %v2869
        %v4132 = vpop.f32.mrf.mxu0
        %v4133 = vadd.f32 %v3584, %v4132
        %v4134 = vpop.f32.mrf.mxu0
        %v4135 = vpop.f32.mrf.mxu0
        %v4136 = vadd.f32 %v3584, %v4135
        %v4137 = vpop.f32.mrf.mxu0
        %4138 = vmatprep.mubr.bf16.mxu0 %v2934
        %4139 = vmatmul.mubr.bf16.gmra.mxu0 %v2870
        %v4140 = vpop.f32.mrf.mxu0
        %v4141 = vadd.f32 %v3584, %v4140
        %v4142 = vpop.f32.mrf.mxu0
        %v4143 = vpop.f32.mrf.mxu0
        %v4144 = vadd.f32 %v3584, %v4143
        %v4145 = vpop.f32.mrf.mxu0
        %4146 = vmatprep.mubr.bf16.mxu0 %v2935
        %4147 = vmatmul.mubr.bf16.gmra.mxu0 %v2871
        %v4148 = vpop.f32.mrf.mxu0
        %v4149 = vadd.f32 %v3584, %v4148
        %v4150 = vpop.f32.mrf.mxu0
        %v4151 = vpop.f32.mrf.mxu0
        %v4152 = vadd.f32 %v3584, %v4151
        %v4153 = vpop.f32.mrf.mxu0
        %4154 = vmatprep.mubr.bf16.mxu0 %v2936
        %4155 = vmatmul.mubr.bf16.gmra.mxu0 %v2872
        %v4156 = vpop.f32.mrf.mxu0
        %v4157 = vadd.f32 %v3584, %v4156
        %v4158 = vpop.f32.mrf.mxu0
        %v4159 = vpop.f32.mrf.mxu0
        %v4160 = vadd.f32 %v3584, %v4159
        %v4161 = vpop.f32.mrf.mxu0
        %4162 = vmatprep.mubr.bf16.mxu0 %v2937
        %4163 = vmatmul.mubr.bf16.gmra.mxu0 %v2873
        %v4164 = vpop.f32.mrf.mxu0
        %v4165 = vadd.f32 %v3584, %v4164
        %v4166 = vpop.f32.mrf.mxu0
        %v4167 = vpop.f32.mrf.mxu0
        %v4168 = vadd.f32 %v3584, %v4167
        %v4169 = vpop.f32.mrf.mxu0
        %4170 = vmatprep.mubr.bf16.mxu0 %v2938
        %4171 = vmatmul.mubr.bf16.gmra.mxu0 %v2874
        %v4172 = vpop.f32.mrf.mxu0
        %v4173 = vadd.f32 %v3584, %v4172
        %v4174 = vpop.f32.mrf.mxu0
        %v4175 = vpop.f32.mrf.mxu0
        %v4176 = vadd.f32 %v3584, %v4175
        %v4177 = vpop.f32.mrf.mxu0
        %4178 = vdwg.mxu0
        %4179 = vmatprep.subr.bf16.mxu0 0
        %4180 = vmatpush1.bf16.msra.mxu0 %v3897
        %4181 = vmatprep.subr.bf16.mxu0 0
        %4182 = vmatpush1.bf16.msra.mxu0 %v3896
        %4183 = vmatprep.subr.bf16.mxu0 0
        %4184 = vmatpush1.bf16.msra.mxu0 %v3895
        %4185 = vmatprep.subr.bf16.mxu0 0
        %4186 = vmatpush1.bf16.msra.mxu0 %v3894
        %4187 = vmatprep.subr.bf16.mxu0 0
        %4188 = vmatpush1.bf16.msra.mxu0 %v3893
        %4189 = vmatprep.subr.bf16.mxu0 0
        %4190 = vmatpush1.bf16.msra.mxu0 %v3892
        %4191 = vmatprep.subr.bf16.mxu0 0
        %4192 = vmatpush1.bf16.msra.mxu0 %v3891
        %4193 = vmatprep.subr.bf16.mxu0 0
        %4194 = vmatpush1.bf16.msra.mxu0 %v3890
        %4195 = vmatprep.subr.bf16.mxu0 0
        %4196 = vmatpush2.bf16.msra.mxu0 %v3905
        %4197 = vmatprep.subr.bf16.mxu0 0
        %4198 = vmatpush2.bf16.msra.mxu0 %v3904
        %4199 = vmatprep.subr.bf16.mxu0 0
        %4200 = vmatpush2.bf16.msra.mxu0 %v3903
        %4201 = vmatprep.subr.bf16.mxu0 0
        %4202 = vmatpush2.bf16.msra.mxu0 %v3902
        %4203 = vmatprep.subr.bf16.mxu0 0
        %4204 = vmatpush2.bf16.msra.mxu0 %v3901
        %4205 = vmatprep.subr.bf16.mxu0 0
        %4206 = vmatpush2.bf16.msra.mxu0 %v3900
        %4207 = vmatprep.subr.bf16.mxu0 0
        %4208 = vmatpush2.bf16.msra.mxu0 %v3899
        %4209 = vmatprep.subr.bf16.mxu0 0
        %4210 = vmatpush2.bf16.msra.mxu0 %v3898
        %4211 = vmatprep.mubr.bf16.mxu0 %v3067
        %4212 = vmatmul.mubr.bf16.gmra.mxu0 %v2987
        %v4213 = vpop.f32.mrf.mxu0
        %v4214 = vadd.f32 %v4053, %v4213
        %v4215 = vpop.f32.mrf.mxu0
        %v4216 = vpop.f32.mrf.mxu0
        %v4217 = vadd.f32 %v4056, %v4216
        %v4218 = vpop.f32.mrf.mxu0
        %4219 = vmatprep.mubr.bf16.mxu0 %v3068
        %4220 = vmatmul.mubr.bf16.gmra.mxu0 %v2988
        %v4221 = vpop.f32.mrf.mxu0
        %v4222 = vadd.f32 %v4061, %v4221
        %v4223 = vpop.f32.mrf.mxu0
        %v4224 = vpop.f32.mrf.mxu0
        %v4225 = vadd.f32 %v4064, %v4224
        %v4226 = vpop.f32.mrf.mxu0
        %4227 = vmatprep.mubr.bf16.mxu0 %v3069
        %4228 = vmatmul.mubr.bf16.gmra.mxu0 %v2989
        %v4229 = vpop.f32.mrf.mxu0
        %v4230 = vadd.f32 %v4069, %v4229
        %v4231 = vpop.f32.mrf.mxu0
        %v4232 = vpop.f32.mrf.mxu0
        %v4233 = vadd.f32 %v4072, %v4232
        %v4234 = vpop.f32.mrf.mxu0
        %4235 = vmatprep.mubr.bf16.mxu0 %v3070
        %4236 = vmatmul.mubr.bf16.gmra.mxu0 %v2990
        %v4237 = vpop.f32.mrf.mxu0
        %v4238 = vadd.f32 %v4077, %v4237
        %v4239 = vpop.f32.mrf.mxu0
        %v4240 = vpop.f32.mrf.mxu0
        %v4241 = vadd.f32 %v4080, %v4240
        %v4242 = vpop.f32.mrf.mxu0
        %4243 = vmatprep.mubr.bf16.mxu0 %v3071
        %4244 = vmatmul.mubr.bf16.gmra.mxu0 %v2991
        %v4245 = vpop.f32.mrf.mxu0
        %v4246 = vadd.f32 %v4085, %v4245
        %v4247 = vpop.f32.mrf.mxu0
        %v4248 = vpop.f32.mrf.mxu0
        %v4249 = vadd.f32 %v4088, %v4248
        %v4250 = vpop.f32.mrf.mxu0
        %4251 = vmatprep.mubr.bf16.mxu0 %v3072
        %4252 = vmatmul.mubr.bf16.gmra.mxu0 %v2992
        %v4253 = vpop.f32.mrf.mxu0
        %v4254 = vadd.f32 %v4093, %v4253
        %v4255 = vpop.f32.mrf.mxu0
        %v4256 = vpop.f32.mrf.mxu0
        %v4257 = vadd.f32 %v4096, %v4256
        %v4258 = vpop.f32.mrf.mxu0
        %4259 = vmatprep.mubr.bf16.mxu0 %v3073
        %4260 = vmatmul.mubr.bf16.gmra.mxu0 %v2993
        %v4261 = vpop.f32.mrf.mxu0
        %v4262 = vadd.f32 %v4101, %v4261
        %v4263 = vpop.f32.mrf.mxu0
        %v4264 = vpop.f32.mrf.mxu0
        %v4265 = vadd.f32 %v4104, %v4264
        %v4266 = vpop.f32.mrf.mxu0
        %4267 = vmatprep.mubr.bf16.mxu0 %v3074
        %4268 = vmatmul.mubr.bf16.gmra.mxu0 %v2994
        %v4269 = vpop.f32.mrf.mxu0
        %v4270 = vadd.f32 %v4109, %v4269
        %v4271 = vpop.f32.mrf.mxu0
        %v4272 = vpop.f32.mrf.mxu0
        %v4273 = vadd.f32 %v4112, %v4272
        %v4274 = vpop.f32.mrf.mxu0
        %4275 = vmatprep.mubr.bf16.mxu0 %v3075
        %4276 = vmatmul.mubr.bf16.gmra.mxu0 %v2995
        %v4277 = vpop.f32.mrf.mxu0
        %v4278 = vadd.f32 %v4117, %v4277
        %v4279 = vpop.f32.mrf.mxu0
        %v4280 = vpop.f32.mrf.mxu0
        %v4281 = vadd.f32 %v4120, %v4280
        %v4282 = vpop.f32.mrf.mxu0
        %4283 = vmatprep.mubr.bf16.mxu0 %v3076
        %4284 = vmatmul.mubr.bf16.gmra.mxu0 %v2996
        %v4285 = vpop.f32.mrf.mxu0
        %v4286 = vadd.f32 %v4125, %v4285
        %v4287 = vpop.f32.mrf.mxu0
        %v4288 = vpop.f32.mrf.mxu0
        %v4289 = vadd.f32 %v4128, %v4288
        %v4290 = vpop.f32.mrf.mxu0
        %4291 = vmatprep.mubr.bf16.mxu0 %v3077
        %4292 = vmatmul.mubr.bf16.gmra.mxu0 %v2997
        %v4293 = vpop.f32.mrf.mxu0
        %v4294 = vadd.f32 %v4133, %v4293
        %v4295 = vpop.f32.mrf.mxu0
        %v4296 = vpop.f32.mrf.mxu0
        %v4297 = vadd.f32 %v4136, %v4296
        %v4298 = vpop.f32.mrf.mxu0
        %4299 = vmatprep.mubr.bf16.mxu0 %v3078
        %4300 = vmatmul.mubr.bf16.gmra.mxu0 %v2998
        %v4301 = vpop.f32.mrf.mxu0
        %v4302 = vadd.f32 %v4141, %v4301
        %v4303 = vpop.f32.mrf.mxu0
        %v4304 = vpop.f32.mrf.mxu0
        %v4305 = vadd.f32 %v4144, %v4304
        %v4306 = vpop.f32.mrf.mxu0
        %4307 = vmatprep.mubr.bf16.mxu0 %v3079
        %4308 = vmatmul.mubr.bf16.gmra.mxu0 %v2999
        %v4309 = vpop.f32.mrf.mxu0
        %v4310 = vadd.f32 %v4149, %v4309
        %v4311 = vpop.f32.mrf.mxu0
        %v4312 = vpop.f32.mrf.mxu0
        %v4313 = vadd.f32 %v4152, %v4312
        %v4314 = vpop.f32.mrf.mxu0
        %4315 = vmatprep.mubr.bf16.mxu0 %v3080
        %4316 = vmatmul.mubr.bf16.gmra.mxu0 %v3000
        %v4317 = vpop.f32.mrf.mxu0
        %v4318 = vadd.f32 %v4157, %v4317
        %v4319 = vpop.f32.mrf.mxu0
        %v4320 = vpop.f32.mrf.mxu0
        %v4321 = vadd.f32 %v4160, %v4320
        %v4322 = vpop.f32.mrf.mxu0
        %4323 = vmatprep.mubr.bf16.mxu0 %v3081
        %4324 = vmatmul.mubr.bf16.gmra.mxu0 %v3001
        %v4325 = vpop.f32.mrf.mxu0
        %v4326 = vadd.f32 %v4165, %v4325
        %v4327 = vpop.f32.mrf.mxu0
        %v4328 = vpop.f32.mrf.mxu0
        %v4329 = vadd.f32 %v4168, %v4328
        %v4330 = vpop.f32.mrf.mxu0
        %4331 = vmatprep.mubr.bf16.mxu0 %v3082
        %4332 = vmatmul.mubr.bf16.gmra.mxu0 %v3002
        %v4333 = vpop.f32.mrf.mxu0
        %v4334 = vadd.f32 %v4173, %v4333
        %v4335 = vpop.f32.mrf.mxu0
        %v4336 = vpop.f32.mrf.mxu0
        %v4337 = vadd.f32 %v4176, %v4336
        %v4338 = vpop.f32.mrf.mxu0
        %4339 = vdwg.mxu0
        %4340 = vmatprep.subr.bf16.mxu0 0
        %4341 = vmatpush1.bf16.msra.mxu0 %v3913
        %4342 = vmatprep.subr.bf16.mxu0 0
        %4343 = vmatpush1.bf16.msra.mxu0 %v3912
        %4344 = vmatprep.subr.bf16.mxu0 0
        %4345 = vmatpush1.bf16.msra.mxu0 %v3911
        %4346 = vmatprep.subr.bf16.mxu0 0
        %4347 = vmatpush1.bf16.msra.mxu0 %v3910
        %4348 = vmatprep.subr.bf16.mxu0 0
        %4349 = vmatpush1.bf16.msra.mxu0 %v3909
        %4350 = vmatprep.subr.bf16.mxu0 0
        %4351 = vmatpush1.bf16.msra.mxu0 %v3908
        %4352 = vmatprep.subr.bf16.mxu0 0
        %4353 = vmatpush1.bf16.msra.mxu0 %v3907
        %4354 = vmatprep.subr.bf16.mxu0 0
        %4355 = vmatpush1.bf16.msra.mxu0 %v3906
        %4356 = vmatprep.subr.bf16.mxu0 0
        %4357 = vmatpush2.bf16.msra.mxu0 %v3921
        %4358 = vmatprep.subr.bf16.mxu0 0
        %4359 = vmatpush2.bf16.msra.mxu0 %v3920
        %4360 = vmatprep.subr.bf16.mxu0 0
        %4361 = vmatpush2.bf16.msra.mxu0 %v3919
        %4362 = vmatprep.subr.bf16.mxu0 0
        %4363 = vmatpush2.bf16.msra.mxu0 %v3918
        %4364 = vmatprep.subr.bf16.mxu0 0
        %4365 = vmatpush2.bf16.msra.mxu0 %v3917
        %4366 = vmatprep.subr.bf16.mxu0 0
        %4367 = vmatpush2.bf16.msra.mxu0 %v3916
        %4368 = vmatprep.subr.bf16.mxu0 0
        %4369 = vmatpush2.bf16.msra.mxu0 %v3915
        %4370 = vmatprep.subr.bf16.mxu0 0
        %4371 = vmatpush2.bf16.msra.mxu0 %v3914
        %4372 = vmatprep.mubr.bf16.mxu0 %v3195
        %4373 = vmatmul.mubr.bf16.gmra.mxu0 %v3131
        %v4374 = vpop.f32.mrf.mxu0
        %v4375 = vadd.f32 %v4214, %v4374
        %v4376 = vpop.f32.mrf.mxu0
        %v4377 = vpop.f32.mrf.mxu0
        %v4378 = vadd.f32 %v4217, %v4377
        %v4379 = vpop.f32.mrf.mxu0
        %4380 = vmatprep.mubr.bf16.mxu0 %v3196
        %4381 = vmatmul.mubr.bf16.gmra.mxu0 %v3132
        %v4382 = vpop.f32.mrf.mxu0
        %v4383 = vadd.f32 %v4222, %v4382
        %v4384 = vpop.f32.mrf.mxu0
        %v4385 = vpop.f32.mrf.mxu0
        %v4386 = vadd.f32 %v4225, %v4385
        %v4387 = vpop.f32.mrf.mxu0
        %4388 = vmatprep.mubr.bf16.mxu0 %v3197
        %4389 = vmatmul.mubr.bf16.gmra.mxu0 %v3133
        %v4390 = vpop.f32.mrf.mxu0
        %v4391 = vadd.f32 %v4230, %v4390
        %v4392 = vpop.f32.mrf.mxu0
        %v4393 = vpop.f32.mrf.mxu0
        %v4394 = vadd.f32 %v4233, %v4393
        %v4395 = vpop.f32.mrf.mxu0
        %4396 = vmatprep.mubr.bf16.mxu0 %v3198
        %4397 = vmatmul.mubr.bf16.gmra.mxu0 %v3134
        %v4398 = vpop.f32.mrf.mxu0
        %v4399 = vadd.f32 %v4238, %v4398
        %v4400 = vpop.f32.mrf.mxu0
        %v4401 = vpop.f32.mrf.mxu0
        %v4402 = vadd.f32 %v4241, %v4401
        %v4403 = vpop.f32.mrf.mxu0
        %4404 = vmatprep.mubr.bf16.mxu0 %v3199
        %4405 = vmatmul.mubr.bf16.gmra.mxu0 %v3135
        %v4406 = vpop.f32.mrf.mxu0
        %v4407 = vadd.f32 %v4246, %v4406
        %v4408 = vpop.f32.mrf.mxu0
        %v4409 = vpop.f32.mrf.mxu0
        %v4410 = vadd.f32 %v4249, %v4409
        %v4411 = vpop.f32.mrf.mxu0
        %4412 = vmatprep.mubr.bf16.mxu0 %v3200
        %4413 = vmatmul.mubr.bf16.gmra.mxu0 %v3136
        %v4414 = vpop.f32.mrf.mxu0
        %v4415 = vadd.f32 %v4254, %v4414
        %v4416 = vpop.f32.mrf.mxu0
        %v4417 = vpop.f32.mrf.mxu0
        %v4418 = vadd.f32 %v4257, %v4417
        %v4419 = vpop.f32.mrf.mxu0
        %4420 = vmatprep.mubr.bf16.mxu0 %v3201
        %4421 = vmatmul.mubr.bf16.gmra.mxu0 %v3137
        %v4422 = vpop.f32.mrf.mxu0
        %v4423 = vadd.f32 %v4262, %v4422
        %v4424 = vpop.f32.mrf.mxu0
        %v4425 = vpop.f32.mrf.mxu0
        %v4426 = vadd.f32 %v4265, %v4425
        %v4427 = vpop.f32.mrf.mxu0
        %4428 = vmatprep.mubr.bf16.mxu0 %v3202
        %4429 = vmatmul.mubr.bf16.gmra.mxu0 %v3138
        %v4430 = vpop.f32.mrf.mxu0
        %v4431 = vadd.f32 %v4270, %v4430
        %v4432 = vpop.f32.mrf.mxu0
        %v4433 = vpop.f32.mrf.mxu0
        %v4434 = vadd.f32 %v4273, %v4433
        %v4435 = vpop.f32.mrf.mxu0
        %4436 = vmatprep.mubr.bf16.mxu0 %v3203
        %4437 = vmatmul.mubr.bf16.gmra.mxu0 %v3139
        %v4438 = vpop.f32.mrf.mxu0
        %v4439 = vadd.f32 %v4278, %v4438
        %v4440 = vpop.f32.mrf.mxu0
        %v4441 = vpop.f32.mrf.mxu0
        %v4442 = vadd.f32 %v4281, %v4441
        %v4443 = vpop.f32.mrf.mxu0
        %4444 = vmatprep.mubr.bf16.mxu0 %v3204
        %4445 = vmatmul.mubr.bf16.gmra.mxu0 %v3140
        %v4446 = vpop.f32.mrf.mxu0
        %v4447 = vadd.f32 %v4286, %v4446
        %v4448 = vpop.f32.mrf.mxu0
        %v4449 = vpop.f32.mrf.mxu0
        %v4450 = vadd.f32 %v4289, %v4449
        %v4451 = vpop.f32.mrf.mxu0
        %4452 = vmatprep.mubr.bf16.mxu0 %v3205
        %4453 = vmatmul.mubr.bf16.gmra.mxu0 %v3141
        %v4454 = vpop.f32.mrf.mxu0
        %v4455 = vadd.f32 %v4294, %v4454
        %v4456 = vpop.f32.mrf.mxu0
        %v4457 = vpop.f32.mrf.mxu0
        %v4458 = vadd.f32 %v4297, %v4457
        %v4459 = vpop.f32.mrf.mxu0
        %4460 = vmatprep.mubr.bf16.mxu0 %v3206
        %4461 = vmatmul.mubr.bf16.gmra.mxu0 %v3142
        %v4462 = vpop.f32.mrf.mxu0
        %v4463 = vadd.f32 %v4302, %v4462
        %v4464 = vpop.f32.mrf.mxu0
        %v4465 = vpop.f32.mrf.mxu0
        %v4466 = vadd.f32 %v4305, %v4465
        %v4467 = vpop.f32.mrf.mxu0
        %4468 = vmatprep.mubr.bf16.mxu0 %v3207
        %4469 = vmatmul.mubr.bf16.gmra.mxu0 %v3143
        %v4470 = vpop.f32.mrf.mxu0
        %v4471 = vadd.f32 %v4310, %v4470
        %v4472 = vpop.f32.mrf.mxu0
        %v4473 = vpop.f32.mrf.mxu0
        %v4474 = vadd.f32 %v4313, %v4473
        %v4475 = vpop.f32.mrf.mxu0
        %4476 = vmatprep.mubr.bf16.mxu0 %v3208
        %4477 = vmatmul.mubr.bf16.gmra.mxu0 %v3144
        %v4478 = vpop.f32.mrf.mxu0
        %v4479 = vadd.f32 %v4318, %v4478
        %v4480 = vpop.f32.mrf.mxu0
        %v4481 = vpop.f32.mrf.mxu0
        %v4482 = vadd.f32 %v4321, %v4481
        %v4483 = vpop.f32.mrf.mxu0
        %4484 = vmatprep.mubr.bf16.mxu0 %v3209
        %4485 = vmatmul.mubr.bf16.gmra.mxu0 %v3145
        %v4486 = vpop.f32.mrf.mxu0
        %v4487 = vadd.f32 %v4326, %v4486
        %v4488 = vpop.f32.mrf.mxu0
        %v4489 = vpop.f32.mrf.mxu0
        %v4490 = vadd.f32 %v4329, %v4489
        %v4491 = vpop.f32.mrf.mxu0
        %4492 = vmatprep.mubr.bf16.mxu0 %v3210
        %4493 = vmatmul.mubr.bf16.gmra.mxu0 %v3146
        %v4494 = vpop.f32.mrf.mxu0
        %v4495 = vadd.f32 %v4334, %v4494
        %v4496 = vpop.f32.mrf.mxu0
        %v4497 = vpop.f32.mrf.mxu0
        %v4498 = vadd.f32 %v4337, %v4497
        %v4499 = vpop.f32.mrf.mxu0
        %4500 = vdwg.mxu0
        %4501 = vmatprep.subr.bf16.mxu0 0
        %4502 = vmatpush1.bf16.msra.mxu0 %v3929
        %4503 = vmatprep.subr.bf16.mxu0 0
        %4504 = vmatpush1.bf16.msra.mxu0 %v3928
        %4505 = vmatprep.subr.bf16.mxu0 0
        %4506 = vmatpush1.bf16.msra.mxu0 %v3927
        %4507 = vmatprep.subr.bf16.mxu0 0
        %4508 = vmatpush1.bf16.msra.mxu0 %v3926
        %4509 = vmatprep.subr.bf16.mxu0 0
        %4510 = vmatpush1.bf16.msra.mxu0 %v3925
        %4511 = vmatprep.subr.bf16.mxu0 0
        %4512 = vmatpush1.bf16.msra.mxu0 %v3924
        %4513 = vmatprep.subr.bf16.mxu0 0
        %4514 = vmatpush1.bf16.msra.mxu0 %v3923
        %4515 = vmatprep.subr.bf16.mxu0 0
        %4516 = vmatpush1.bf16.msra.mxu0 %v3922
        %4517 = vmatprep.subr.bf16.mxu0 0
        %4518 = vmatpush2.bf16.msra.mxu0 %v3937
        %4519 = vmatprep.subr.bf16.mxu0 0
        %4520 = vmatpush2.bf16.msra.mxu0 %v3936
        %4521 = vmatprep.subr.bf16.mxu0 0
        %4522 = vmatpush2.bf16.msra.mxu0 %v3935
        %4523 = vmatprep.subr.bf16.mxu0 0
        %4524 = vmatpush2.bf16.msra.mxu0 %v3934
        %4525 = vmatprep.subr.bf16.mxu0 0
        %4526 = vmatpush2.bf16.msra.mxu0 %v3933
        %4527 = vmatprep.subr.bf16.mxu0 0
        %4528 = vmatpush2.bf16.msra.mxu0 %v3932
        %4529 = vmatprep.subr.bf16.mxu0 0
        %4530 = vmatpush2.bf16.msra.mxu0 %v3931
        %4531 = vmatprep.subr.bf16.mxu0 0
        %4532 = vmatpush2.bf16.msra.mxu0 %v3930
        %4533 = vmatprep.mubr.bf16.mxu0 %v3339
        %4534 = vmatmul.mubr.bf16.gmra.mxu0 %v3275
        %v4535 = vpop.f32.mrf.mxu0
        %v4536 = vadd.f32 %v4375, %v4535
        %v4537 = vpop.f32.mrf.mxu0
        %v4538 = vpop.f32.mrf.mxu0
        %v4539 = vadd.f32 %v4378, %v4538
        %v4540 = vpop.f32.mrf.mxu0
        %4541 = vmatprep.mubr.bf16.mxu0 %v3340
        %4542 = vmatmul.mubr.bf16.gmra.mxu0 %v3276
        %v4543 = vpop.f32.mrf.mxu0
        %v4544 = vadd.f32 %v4383, %v4543
        %v4545 = vpop.f32.mrf.mxu0
        %v4546 = vpop.f32.mrf.mxu0
        %v4547 = vadd.f32 %v4386, %v4546
        %v4548 = vpop.f32.mrf.mxu0
        %4549 = vmatprep.mubr.bf16.mxu0 %v3341
        %4550 = vmatmul.mubr.bf16.gmra.mxu0 %v3277
        %v4551 = vpop.f32.mrf.mxu0
        %v4552 = vadd.f32 %v4391, %v4551
        %v4553 = vpop.f32.mrf.mxu0
        %v4554 = vpop.f32.mrf.mxu0
        %v4555 = vadd.f32 %v4394, %v4554
        %v4556 = vpop.f32.mrf.mxu0
        %4557 = vmatprep.mubr.bf16.mxu0 %v3342
        %4558 = vmatmul.mubr.bf16.gmra.mxu0 %v3278
        %v4559 = vpop.f32.mrf.mxu0
        %v4560 = vadd.f32 %v4399, %v4559
        %v4561 = vpop.f32.mrf.mxu0
        %v4562 = vpop.f32.mrf.mxu0
        %v4563 = vadd.f32 %v4402, %v4562
        %v4564 = vpop.f32.mrf.mxu0
        %4565 = vmatprep.mubr.bf16.mxu0 %v3343
        %4566 = vmatmul.mubr.bf16.gmra.mxu0 %v3279
        %v4567 = vpop.f32.mrf.mxu0
        %v4568 = vadd.f32 %v4407, %v4567
        %v4569 = vpop.f32.mrf.mxu0
        %v4570 = vpop.f32.mrf.mxu0
        %v4571 = vadd.f32 %v4410, %v4570
        %v4572 = vpop.f32.mrf.mxu0
        %4573 = vmatprep.mubr.bf16.mxu0 %v3344
        %4574 = vmatmul.mubr.bf16.gmra.mxu0 %v3280
        %v4575 = vpop.f32.mrf.mxu0
        %v4576 = vadd.f32 %v4415, %v4575
        %v4577 = vpop.f32.mrf.mxu0
        %v4578 = vpop.f32.mrf.mxu0
        %v4579 = vadd.f32 %v4418, %v4578
        %v4580 = vpop.f32.mrf.mxu0
        %4581 = vmatprep.mubr.bf16.mxu0 %v3345
        %4582 = vmatmul.mubr.bf16.gmra.mxu0 %v3281
        %v4583 = vpop.f32.mrf.mxu0
        %v4584 = vadd.f32 %v4423, %v4583
        %v4585 = vpop.f32.mrf.mxu0
        %v4586 = vpop.f32.mrf.mxu0
        %v4587 = vadd.f32 %v4426, %v4586
        %v4588 = vpop.f32.mrf.mxu0
        %4589 = vmatprep.mubr.bf16.mxu0 %v3346
        %4590 = vmatmul.mubr.bf16.gmra.mxu0 %v3282
        %v4591 = vpop.f32.mrf.mxu0
        %v4592 = vadd.f32 %v4431, %v4591
        %v4593 = vpop.f32.mrf.mxu0
        %v4594 = vpop.f32.mrf.mxu0
        %v4595 = vadd.f32 %v4434, %v4594
        %v4596 = vpop.f32.mrf.mxu0
        %4597 = vmatprep.mubr.bf16.mxu0 %v3347
        %4598 = vmatmul.mubr.bf16.gmra.mxu0 %v3283
        %v4599 = vpop.f32.mrf.mxu0
        %v4600 = vadd.f32 %v4439, %v4599
        %v4601 = vpop.f32.mrf.mxu0
        %v4602 = vpop.f32.mrf.mxu0
        %v4603 = vadd.f32 %v4442, %v4602
        %v4604 = vpop.f32.mrf.mxu0
        %4605 = vmatprep.mubr.bf16.mxu0 %v3348
        %4606 = vmatmul.mubr.bf16.gmra.mxu0 %v3284
        %v4607 = vpop.f32.mrf.mxu0
        %v4608 = vadd.f32 %v4447, %v4607
        %v4609 = vpop.f32.mrf.mxu0
        %v4610 = vpop.f32.mrf.mxu0
        %v4611 = vadd.f32 %v4450, %v4610
        %v4612 = vpop.f32.mrf.mxu0
        %4613 = vmatprep.mubr.bf16.mxu0 %v3349
        %4614 = vmatmul.mubr.bf16.gmra.mxu0 %v3285
        %v4615 = vpop.f32.mrf.mxu0
        %v4616 = vadd.f32 %v4455, %v4615
        %v4617 = vpop.f32.mrf.mxu0
        %v4618 = vpop.f32.mrf.mxu0
        %v4619 = vadd.f32 %v4458, %v4618
        %v4620 = vpop.f32.mrf.mxu0
        %4621 = vmatprep.mubr.bf16.mxu0 %v3350
        %4622 = vmatmul.mubr.bf16.gmra.mxu0 %v3286
        %v4623 = vpop.f32.mrf.mxu0
        %v4624 = vadd.f32 %v4463, %v4623
        %v4625 = vpop.f32.mrf.mxu0
        %v4626 = vpop.f32.mrf.mxu0
        %v4627 = vadd.f32 %v4466, %v4626
        %v4628 = vpop.f32.mrf.mxu0
        %4629 = vmatprep.mubr.bf16.mxu0 %v3351
        %4630 = vmatmul.mubr.bf16.gmra.mxu0 %v3287
        %v4631 = vpop.f32.mrf.mxu0
        %v4632 = vadd.f32 %v4471, %v4631
        %v4633 = vpop.f32.mrf.mxu0
        %v4634 = vpop.f32.mrf.mxu0
        %v4635 = vadd.f32 %v4474, %v4634
        %v4636 = vpop.f32.mrf.mxu0
        %4637 = vmatprep.mubr.bf16.mxu0 %v3352
        %4638 = vmatmul.mubr.bf16.gmra.mxu0 %v3288
        %v4639 = vpop.f32.mrf.mxu0
        %v4640 = vadd.f32 %v4479, %v4639
        %v4641 = vpop.f32.mrf.mxu0
        %v4642 = vpop.f32.mrf.mxu0
        %v4643 = vadd.f32 %v4482, %v4642
        %v4644 = vpop.f32.mrf.mxu0
        %4645 = vmatprep.mubr.bf16.mxu0 %v3353
        %4646 = vmatmul.mubr.bf16.gmra.mxu0 %v3289
        %v4647 = vpop.f32.mrf.mxu0
        %v4648 = vadd.f32 %v4487, %v4647
        %v4649 = vpop.f32.mrf.mxu0
        %v4650 = vpop.f32.mrf.mxu0
        %v4651 = vadd.f32 %v4490, %v4650
        %v4652 = vpop.f32.mrf.mxu0
        %4653 = vmatprep.mubr.bf16.mxu0 %v3354
        %4654 = vmatmul.mubr.bf16.gmra.mxu0 %v3290
        %v4655 = vpop.f32.mrf.mxu0
        %v4656 = vadd.f32 %v4495, %v4655
        %v4657 = vpop.f32.mrf.mxu0
        %v4658 = vpop.f32.mrf.mxu0
        %v4659 = vadd.f32 %v4498, %v4658
        %v4660 = vpop.f32.mrf.mxu0
        %4661 = vdwg.mxu0
        %4662 = vmatprep.subr.bf16.mxu0 0
        %4663 = vmatpush1.bf16.msra.mxu0 %v3945
        %4664 = vmatprep.subr.bf16.mxu0 0
        %4665 = vmatpush1.bf16.msra.mxu0 %v3944
        %4666 = vmatprep.subr.bf16.mxu0 0
        %4667 = vmatpush1.bf16.msra.mxu0 %v3943
        %4668 = vmatprep.subr.bf16.mxu0 0
        %4669 = vmatpush1.bf16.msra.mxu0 %v3942
        %4670 = vmatprep.subr.bf16.mxu0 0
        %4671 = vmatpush1.bf16.msra.mxu0 %v3941
        %4672 = vmatprep.subr.bf16.mxu0 0
        %4673 = vmatpush1.bf16.msra.mxu0 %v3940
        %4674 = vmatprep.subr.bf16.mxu0 0
        %4675 = vmatpush1.bf16.msra.mxu0 %v3939
        %4676 = vmatprep.subr.bf16.mxu0 0
        %4677 = vmatpush1.bf16.msra.mxu0 %v3938
        %4678 = vmatprep.subr.bf16.mxu0 0
        %4679 = vmatpush2.bf16.msra.mxu0 0
        %4680 = vmatprep.subr.bf16.mxu0 0
        %4681 = vmatpush2.bf16.msra.mxu0 0
        %4682 = vmatprep.subr.bf16.mxu0 0
        %4683 = vmatpush2.bf16.msra.mxu0 0
        %4684 = vmatprep.subr.bf16.mxu0 0
        %4685 = vmatpush2.bf16.msra.mxu0 0
        %4686 = vmatprep.subr.bf16.mxu0 0
        %4687 = vmatpush2.bf16.msra.mxu0 0
        %4688 = vmatprep.subr.bf16.mxu0 0
        %4689 = vmatpush2.bf16.msra.mxu0 0
        %4690 = vmatprep.subr.bf16.mxu0 0
        %4691 = vmatpush2.bf16.msra.mxu0 0
        %4692 = vmatprep.subr.bf16.mxu0 0
        %4693 = vmatpush2.bf16.msra.mxu0 0
        %4694 = vmatprep.mubr.bf16.mxu0 0
        %4695 = vmatmul.mubr.bf16.gmra.mxu0 %v3403
        %v4696 = vpop.f32.mrf.mxu0
        %v4697 = vadd.f32 %v4536, %v4696
        %v4698 = vpop.f32.mrf.mxu0
        %v4699 = vpop.f32.mrf.mxu0
        %v4700 = vadd.f32 %v4539, %v4699
        %v4701 = vpop.f32.mrf.mxu0
        %4702 = vmatprep.mubr.bf16.mxu0 0
        %4703 = vmatmul.mubr.bf16.gmra.mxu0 %v3404
        %v4704 = vpop.f32.mrf.mxu0
        %v4705 = vadd.f32 %v4544, %v4704
        %v4706 = vpop.f32.mrf.mxu0
        %v4707 = vpop.f32.mrf.mxu0
        %v4708 = vadd.f32 %v4547, %v4707
        %v4709 = vpop.f32.mrf.mxu0
        %4710 = vmatprep.mubr.bf16.mxu0 0
        %4711 = vmatmul.mubr.bf16.gmra.mxu0 %v3405
        %v4712 = vpop.f32.mrf.mxu0
        %v4713 = vadd.f32 %v4552, %v4712
        %v4714 = vpop.f32.mrf.mxu0
        %v4715 = vpop.f32.mrf.mxu0
        %v4716 = vadd.f32 %v4555, %v4715
        %v4717 = vpop.f32.mrf.mxu0
        %4718 = vmatprep.mubr.bf16.mxu0 0
        %4719 = vmatmul.mubr.bf16.gmra.mxu0 %v3406
        %v4720 = vpop.f32.mrf.mxu0
        %v4721 = vadd.f32 %v4560, %v4720
        %v4722 = vpop.f32.mrf.mxu0
        %v4723 = vpop.f32.mrf.mxu0
        %v4724 = vadd.f32 %v4563, %v4723
        %v4725 = vpop.f32.mrf.mxu0
        %4726 = vmatprep.mubr.bf16.mxu0 0
        %4727 = vmatmul.mubr.bf16.gmra.mxu0 %v3407
        %v4728 = vpop.f32.mrf.mxu0
        %v4729 = vadd.f32 %v4568, %v4728
        %v4730 = vpop.f32.mrf.mxu0
        %v4731 = vpop.f32.mrf.mxu0
        %v4732 = vadd.f32 %v4571, %v4731
        %v4733 = vpop.f32.mrf.mxu0
        %4734 = vmatprep.mubr.bf16.mxu0 0
        %4735 = vmatmul.mubr.bf16.gmra.mxu0 %v3408
        %v4736 = vpop.f32.mrf.mxu0
        %v4737 = vadd.f32 %v4576, %v4736
        %v4738 = vpop.f32.mrf.mxu0
        %v4739 = vpop.f32.mrf.mxu0
        %v4740 = vadd.f32 %v4579, %v4739
        %v4741 = vpop.f32.mrf.mxu0
        %4742 = vmatprep.mubr.bf16.mxu0 0
        %4743 = vmatmul.mubr.bf16.gmra.mxu0 %v3409
        %v4744 = vpop.f32.mrf.mxu0
        %v4745 = vadd.f32 %v4584, %v4744
        %v4746 = vpop.f32.mrf.mxu0
        %v4747 = vpop.f32.mrf.mxu0
        %v4748 = vadd.f32 %v4587, %v4747
        %v4749 = vpop.f32.mrf.mxu0
        %4750 = vmatprep.mubr.bf16.mxu0 0
        %4751 = vmatmul.mubr.bf16.gmra.mxu0 %v3410
        %v4752 = vpop.f32.mrf.mxu0
        %v4753 = vadd.f32 %v4592, %v4752
        %v4754 = vpop.f32.mrf.mxu0
        %v4755 = vpop.f32.mrf.mxu0
        %v4756 = vadd.f32 %v4595, %v4755
        %v4757 = vpop.f32.mrf.mxu0
        %4758 = vmatprep.mubr.bf16.mxu0 0
        %4759 = vmatmul.mubr.bf16.gmra.mxu0 %v3411
        %v4760 = vpop.f32.mrf.mxu0
        %v4761 = vadd.f32 %v4600, %v4760
        %v4762 = vpop.f32.mrf.mxu0
        %v4763 = vpop.f32.mrf.mxu0
        %v4764 = vadd.f32 %v4603, %v4763
        %v4765 = vpop.f32.mrf.mxu0
        %4766 = vmatprep.mubr.bf16.mxu0 0
        %4767 = vmatmul.mubr.bf16.gmra.mxu0 %v3412
        %v4768 = vpop.f32.mrf.mxu0
        %v4769 = vadd.f32 %v4608, %v4768
        %v4770 = vpop.f32.mrf.mxu0
        %v4771 = vpop.f32.mrf.mxu0
        %v4772 = vadd.f32 %v4611, %v4771
        %v4773 = vpop.f32.mrf.mxu0
        %4774 = vmatprep.mubr.bf16.mxu0 0
        %4775 = vmatmul.mubr.bf16.gmra.mxu0 %v3413
        %v4776 = vpop.f32.mrf.mxu0
        %v4777 = vadd.f32 %v4616, %v4776
        %v4778 = vpop.f32.mrf.mxu0
        %v4779 = vpop.f32.mrf.mxu0
        %v4780 = vadd.f32 %v4619, %v4779
        %v4781 = vpop.f32.mrf.mxu0
        %4782 = vmatprep.mubr.bf16.mxu0 0
        %4783 = vmatmul.mubr.bf16.gmra.mxu0 %v3414
        %v4784 = vpop.f32.mrf.mxu0
        %v4785 = vadd.f32 %v4624, %v4784
        %v4786 = vpop.f32.mrf.mxu0
        %v4787 = vpop.f32.mrf.mxu0
        %v4788 = vadd.f32 %v4627, %v4787
        %v4789 = vpop.f32.mrf.mxu0
        %4790 = vmatprep.mubr.bf16.mxu0 0
        %4791 = vmatmul.mubr.bf16.gmra.mxu0 %v3415
        %v4792 = vpop.f32.mrf.mxu0
        %v4793 = vadd.f32 %v4632, %v4792
        %v4794 = vpop.f32.mrf.mxu0
        %v4795 = vpop.f32.mrf.mxu0
        %v4796 = vadd.f32 %v4635, %v4795
        %v4797 = vpop.f32.mrf.mxu0
        %4798 = vmatprep.mubr.bf16.mxu0 0
        %4799 = vmatmul.mubr.bf16.gmra.mxu0 %v3416
        %v4800 = vpop.f32.mrf.mxu0
        %v4801 = vadd.f32 %v4640, %v4800
        %v4802 = vpop.f32.mrf.mxu0
        %v4803 = vpop.f32.mrf.mxu0
        %v4804 = vadd.f32 %v4643, %v4803
        %v4805 = vpop.f32.mrf.mxu0
        %4806 = vmatprep.mubr.bf16.mxu0 0
        %4807 = vmatmul.mubr.bf16.gmra.mxu0 %v3417
        %v4808 = vpop.f32.mrf.mxu0
        %v4809 = vadd.f32 %v4648, %v4808
        %v4810 = vpop.f32.mrf.mxu0
        %v4811 = vpop.f32.mrf.mxu0
        %v4812 = vadd.f32 %v4651, %v4811
        %v4813 = vpop.f32.mrf.mxu0
        %4814 = vmatprep.mubr.bf16.mxu0 0
        %4815 = vmatmul.mubr.bf16.gmra.mxu0 %v3418
        %v4816 = vpop.f32.mrf.mxu0
        %v4817 = vadd.f32 %v4656, %v4816
        %v4818 = vpop.f32.mrf.mxu0
        %v4819 = vpop.f32.mrf.mxu0
        %v4820 = vadd.f32 %v4659, %v4819
        %v4821 = vpop.f32.mrf.mxu0
        %4822 = vdwg.mxu0
        %v4823 = vmax.f32 %v4697, 0.0
        %v4824 = vmax.f32 %v4700, 0.0
        %v4825 = vmax.f32 %v4705, 0.0
        %v4826 = vmax.f32 %v4708, 0.0
        %v4827 = vmax.f32 %v4713, 0.0
        %v4828 = vmax.f32 %v4716, 0.0
        %v4829 = vmax.f32 %v4721, 0.0
        %v4830 = vmax.f32 %v4724, 0.0
        %v4831 = vmax.f32 %v4729, 0.0
        %v4832 = vmax.f32 %v4732, 0.0
        %v4833 = vmax.f32 %v4737, 0.0
        %v4834 = vmax.f32 %v4740, 0.0
        %v4835 = vmax.f32 %v4745, 0.0
        %v4836 = vmax.f32 %v4748, 0.0
        %v4837 = vmax.f32 %v4753, 0.0
        %v4838 = vmax.f32 %v4756, 0.0
        %v4839 = vmax.f32 %v4761, 0.0
        %v4840 = vmax.f32 %v4764, 0.0
        %v4841 = vmax.f32 %v4769, 0.0
        %v4842 = vmax.f32 %v4772, 0.0
        %v4843 = vmax.f32 %v4777, 0.0
        %v4844 = vmax.f32 %v4780, 0.0
        %v4845 = vmax.f32 %v4785, 0.0
        %v4846 = vmax.f32 %v4788, 0.0
        %v4847 = vmax.f32 %v4793, 0.0
        %v4848 = vmax.f32 %v4796, 0.0
        %v4849 = vmax.f32 %v4801, 0.0
        %v4850 = vmax.f32 %v4804, 0.0
        %v4851 = vmax.f32 %v4809, 0.0
        %v4852 = vmax.f32 %v4812, 0.0
        %v4853 = vmax.f32 %v4817, 0.0
        %v4854 = vmax.f32 %v4820, 0.0
        %v4855 = vpack.c.bf16 %v4824, %v4823
        %v4856 = vpack.c.bf16 %v4826, %v4825
        %v4857 = vpack.c.bf16 %v4828, %v4827
        %v4858 = vpack.c.bf16 %v4830, %v4829
        %v4859 = vpack.c.bf16 %v4832, %v4831
        %v4860 = vpack.c.bf16 %v4834, %v4833
        %v4861 = vpack.c.bf16 %v4836, %v4835
        %v4862 = vpack.c.bf16 %v4838, %v4837
        %v4863 = vpack.c.bf16 %v4840, %v4839
        %v4864 = vpack.c.bf16 %v4842, %v4841
        %v4865 = vpack.c.bf16 %v4844, %v4843
        %v4866 = vpack.c.bf16 %v4846, %v4845
        %v4867 = vpack.c.bf16 %v4848, %v4847
        %v4868 = vpack.c.bf16 %v4850, %v4849
        %v4869 = vpack.c.bf16 %v4852, %v4851
        %v4870 = vpack.c.bf16 %v4854, %v4853
        %v4887 = vunpack.c.l.b16 %v4855
        %v4888 = vunpack.c.h.b16 %v4855
        %v4889 = vunpack.c.l.b16 %v4856
        %v4890 = vunpack.c.h.b16 %v4856
        %v4891 = vunpack.c.l.b16 %v4857
        %v4892 = vunpack.c.h.b16 %v4857
        %v4893 = vunpack.c.l.b16 %v4858
        %v4894 = vunpack.c.h.b16 %v4858
        %v4895 = vunpack.c.l.b16 %v4859
        %v4896 = vunpack.c.h.b16 %v4859
        %v4897 = vunpack.c.l.b16 %v4860
        %v4898 = vunpack.c.h.b16 %v4860
        %v4899 = vunpack.c.l.b16 %v4861
        %v4900 = vunpack.c.h.b16 %v4861
        %v4901 = vunpack.c.l.b16 %v4862
        %v4902 = vunpack.c.h.b16 %v4862
        %v4903 = vunpack.c.l.b16 %v4863
        %v4904 = vunpack.c.h.b16 %v4863
        %v4905 = vunpack.c.l.b16 %v4864
        %v4906 = vunpack.c.h.b16 %v4864
        %v4907 = vunpack.c.l.b16 %v4865
        %v4908 = vunpack.c.h.b16 %v4865
        %v4909 = vunpack.c.l.b16 %v4866
        %v4910 = vunpack.c.h.b16 %v4866
        %v4911 = vunpack.c.l.b16 %v4867
        %v4912 = vunpack.c.h.b16 %v4867
        %v4913 = vunpack.c.l.b16 %v4868
        %v4914 = vunpack.c.h.b16 %v4868
        %v4915 = vunpack.c.l.b16 %v4869
        %v4916 = vunpack.c.h.b16 %v4869
        %v4917 = vunpack.c.l.b16 %v4870
        %v4918 = vunpack.c.h.b16 %v4870
        %v4919 = vpack.c.b16 %v4887, %v4887
        %v4920 = vpack.c.b16 %v4888, %v4888
        %v4921 = vpack.c.b16 %v4889, %v4889
        %v4922 = vpack.c.b16 %v4890, %v4890
        %v4923 = vpack.c.b16 %v4891, %v4891
        %v4924 = vpack.c.b16 %v4892, %v4892
        %v4925 = vpack.c.b16 %v4893, %v4893
        %v4926 = vpack.c.b16 %v4894, %v4894
        %v4927 = vpack.c.b16 %v4895, %v4895
        %v4928 = vpack.c.b16 %v4896, %v4896
        %v4929 = vpack.c.b16 %v4897, %v4897
        %v4930 = vpack.c.b16 %v4898, %v4898
        %v4931 = vpack.c.b16 %v4899, %v4899
        %v4932 = vpack.c.b16 %v4900, %v4900
        %v4933 = vpack.c.b16 %v4901, %v4901
        %v4934 = vpack.c.b16 %v4902, %v4902
        %v4935 = vpack.c.b16 %v4903, %v4903
        %v4936 = vpack.c.b16 %v4904, %v4904
        %v4937 = vpack.c.b16 %v4905, %v4905
        %v4938 = vpack.c.b16 %v4906, %v4906
        %v4939 = vpack.c.b16 %v4907, %v4907
        %v4940 = vpack.c.b16 %v4908, %v4908
        %v4941 = vpack.c.b16 %v4909, %v4909
        %v4942 = vpack.c.b16 %v4910, %v4910
        %v4943 = vpack.c.b16 %v4911, %v4911
        %v4944 = vpack.c.b16 %v4912, %v4912
        %v4945 = vpack.c.b16 %v4913, %v4913
        %v4946 = vpack.c.b16 %v4914, %v4914
        %v4947 = vpack.c.b16 %v4915, %v4915
        %v4948 = vpack.c.b16 %v4916, %v4916
        %v4949 = vpack.c.b16 %v4917, %v4917
        %v4950 = vpack.c.b16 %v4918, %v4918
        %v4952 = vshrl.u32 %v4919, 16
        %v4954 = vrot.slane %v4952, 7
        %v4955 = vshll.u32 %v4919, 16
        %v4957 = vor.u32 %v4954, %v4955
        %v4958 = vrot.slane %v4954, 4
        %v4960 = vshrl.u32 %v4920, 16
        %v4962 = vrot.slane %v4960, 7
        %v4963 = vshll.u32 %v4920, 16
        %v4965 = vor.u32 %v4962, %v4963
        %v4966 = vsel %vm544, %v4958, %v4965
        %v4967 = vrot.slane %v4962, 4
        %v4969 = vshrl.u32 %v4921, 16
        %v4971 = vrot.slane %v4969, 7
        %v4972 = vshll.u32 %v4921, 16
        %v4974 = vor.u32 %v4971, %v4972
        %v4975 = vrot.slane %v4971, 4
        %v4977 = vshrl.u32 %v4922, 16
        %v4979 = vrot.slane %v4977, 7
        %v4980 = vshll.u32 %v4922, 16
        %v4982 = vor.u32 %v4979, %v4980
        %v4983 = vsel %vm544, %v4975, %v4982
        %v4984 = vrot.slane %v4979, 4
        %v4986 = vshrl.u32 %v4923, 16
        %v4988 = vrot.slane %v4986, 7
        %v4989 = vshll.u32 %v4923, 16
        %v4991 = vor.u32 %v4988, %v4989
        %v4992 = vrot.slane %v4988, 4
        %v4994 = vshrl.u32 %v4924, 16
        %v4996 = vrot.slane %v4994, 7
        %v4997 = vshll.u32 %v4924, 16
        %v4999 = vor.u32 %v4996, %v4997
        %v5000 = vsel %vm544, %v4992, %v4999
        %v5001 = vrot.slane %v4996, 4
        %v5003 = vshrl.u32 %v4925, 16
        %v5005 = vrot.slane %v5003, 7
        %v5006 = vshll.u32 %v4925, 16
        %v5008 = vor.u32 %v5005, %v5006
        %v5009 = vrot.slane %v5005, 4
        %v5011 = vshrl.u32 %v4926, 16
        %v5013 = vrot.slane %v5011, 7
        %v5014 = vshll.u32 %v4926, 16
        %v5016 = vor.u32 %v5013, %v5014
        %v5017 = vsel %vm544, %v5009, %v5016
        %v5018 = vrot.slane %v5013, 4
        %v5020 = vshrl.u32 %v4927, 16
        %v5022 = vrot.slane %v5020, 7
        %v5023 = vshll.u32 %v4927, 16
        %v5025 = vor.u32 %v5022, %v5023
        %v5026 = vrot.slane %v5022, 4
        %v5028 = vshrl.u32 %v4928, 16
        %v5030 = vrot.slane %v5028, 7
        %v5031 = vshll.u32 %v4928, 16
        %v5033 = vor.u32 %v5030, %v5031
        %v5034 = vsel %vm544, %v5026, %v5033
        %v5035 = vrot.slane %v5030, 4
        %v5037 = vshrl.u32 %v4929, 16
        %v5039 = vrot.slane %v5037, 7
        %v5040 = vshll.u32 %v4929, 16
        %v5042 = vor.u32 %v5039, %v5040
        %v5043 = vrot.slane %v5039, 4
        %v5045 = vshrl.u32 %v4930, 16
        %v5047 = vrot.slane %v5045, 7
        %v5048 = vshll.u32 %v4930, 16
        %v5050 = vor.u32 %v5047, %v5048
        %v5051 = vsel %vm544, %v5043, %v5050
        %v5052 = vrot.slane %v5047, 4
        %v5054 = vshrl.u32 %v4931, 16
        %v5056 = vrot.slane %v5054, 7
        %v5057 = vshll.u32 %v4931, 16
        %v5059 = vor.u32 %v5056, %v5057
        %v5060 = vrot.slane %v5056, 4
        %v5062 = vshrl.u32 %v4932, 16
        %v5064 = vrot.slane %v5062, 7
        %v5065 = vshll.u32 %v4932, 16
        %v5067 = vor.u32 %v5064, %v5065
        %v5068 = vsel %vm544, %v5060, %v5067
        %v5069 = vrot.slane %v5064, 4
        %v5071 = vshrl.u32 %v4933, 16
        %v5073 = vrot.slane %v5071, 7
        %v5074 = vshll.u32 %v4933, 16
        %v5076 = vor.u32 %v5073, %v5074
        %v5077 = vrot.slane %v5073, 4
        %v5079 = vshrl.u32 %v4934, 16
        %v5081 = vrot.slane %v5079, 7
        %v5082 = vshll.u32 %v4934, 16
        %v5084 = vor.u32 %v5081, %v5082
        %v5085 = vsel %vm544, %v5077, %v5084
        %v5086 = vrot.slane %v5081, 4
        %v5088 = vshrl.u32 %v4935, 16
        %v5090 = vrot.slane %v5088, 7
        %v5091 = vshll.u32 %v4935, 16
        %v5093 = vor.u32 %v5090, %v5091
        %v5094 = vrot.slane %v5090, 4
        %v5096 = vshrl.u32 %v4936, 16
        %v5098 = vrot.slane %v5096, 7
        %v5099 = vshll.u32 %v4936, 16
        %v5101 = vor.u32 %v5098, %v5099
        %v5102 = vsel %vm544, %v5094, %v5101
        %v5103 = vrot.slane %v5098, 4
        %v5105 = vshrl.u32 %v4937, 16
        %v5107 = vrot.slane %v5105, 7
        %v5108 = vshll.u32 %v4937, 16
        %v5110 = vor.u32 %v5107, %v5108
        %v5111 = vrot.slane %v5107, 4
        %v5113 = vshrl.u32 %v4938, 16
        %v5115 = vrot.slane %v5113, 7
        %v5116 = vshll.u32 %v4938, 16
        %v5118 = vor.u32 %v5115, %v5116
        %v5119 = vsel %vm544, %v5111, %v5118
        %v5120 = vrot.slane %v5115, 4
        %v5122 = vshrl.u32 %v4939, 16
        %v5124 = vrot.slane %v5122, 7
        %v5125 = vshll.u32 %v4939, 16
        %v5127 = vor.u32 %v5124, %v5125
        %v5128 = vrot.slane %v5124, 4
        %v5130 = vshrl.u32 %v4940, 16
        %v5132 = vrot.slane %v5130, 7
        %v5133 = vshll.u32 %v4940, 16
        %v5135 = vor.u32 %v5132, %v5133
        %v5136 = vsel %vm544, %v5128, %v5135
        %v5137 = vrot.slane %v5132, 4
        %v5139 = vshrl.u32 %v4941, 16
        %v5141 = vrot.slane %v5139, 7
        %v5142 = vshll.u32 %v4941, 16
        %v5144 = vor.u32 %v5141, %v5142
        %v5145 = vrot.slane %v5141, 4
        %v5147 = vshrl.u32 %v4942, 16
        %v5149 = vrot.slane %v5147, 7
        %v5150 = vshll.u32 %v4942, 16
        %v5152 = vor.u32 %v5149, %v5150
        %v5153 = vsel %vm544, %v5145, %v5152
        %v5154 = vrot.slane %v5149, 4
        %v5156 = vshrl.u32 %v4943, 16
        %v5158 = vrot.slane %v5156, 7
        %v5159 = vshll.u32 %v4943, 16
        %v5161 = vor.u32 %v5158, %v5159
        %v5162 = vrot.slane %v5158, 4
        %v5164 = vshrl.u32 %v4944, 16
        %v5166 = vrot.slane %v5164, 7
        %v5167 = vshll.u32 %v4944, 16
        %v5169 = vor.u32 %v5166, %v5167
        %v5170 = vsel %vm544, %v5162, %v5169
        %v5171 = vrot.slane %v5166, 4
        %v5173 = vshrl.u32 %v4945, 16
        %v5175 = vrot.slane %v5173, 7
        %v5176 = vshll.u32 %v4945, 16
        %v5178 = vor.u32 %v5175, %v5176
        %v5179 = vrot.slane %v5175, 4
        %v5181 = vshrl.u32 %v4946, 16
        %v5183 = vrot.slane %v5181, 7
        %v5184 = vshll.u32 %v4946, 16
        %v5186 = vor.u32 %v5183, %v5184
        %v5187 = vsel %vm544, %v5179, %v5186
        %v5188 = vrot.slane %v5183, 4
        %v5190 = vshrl.u32 %v4947, 16
        %v5192 = vrot.slane %v5190, 7
        %v5193 = vshll.u32 %v4947, 16
        %v5195 = vor.u32 %v5192, %v5193
        %v5196 = vrot.slane %v5192, 4
        %v5198 = vshrl.u32 %v4948, 16
        %v5200 = vrot.slane %v5198, 7
        %v5201 = vshll.u32 %v4948, 16
        %v5203 = vor.u32 %v5200, %v5201
        %v5204 = vsel %vm544, %v5196, %v5203
        %v5205 = vrot.slane %v5200, 4
        %v5207 = vshrl.u32 %v4949, 16
        %v5209 = vrot.slane %v5207, 7
        %v5210 = vshll.u32 %v4949, 16
        %v5212 = vor.u32 %v5209, %v5210
        %v5213 = vrot.slane %v5209, 4
        %v5215 = vshrl.u32 %v4950, 16
        %v5217 = vrot.slane %v5215, 7
        %v5218 = vshll.u32 %v4950, 16
        %v5220 = vor.u32 %v5217, %v5218
        %v5221 = vsel %vm544, %v5213, %v5220
        %v5222 = vrot.slane %v5217, 4
        %v5271 = vsel %vm867, %v4957, %v1594
        %5272 = vst [vmem:[%s865] sm:$0xf] %v5271
        %5273 = vst [vmem:[%s865 + $0x4] sm:$0xf] %v4966
        %v5274 = vld [vmem:[%s865 + $0x8] sm:$0x1]
        %v5275 = vsel %vm304, %v4967, %v5274
        %5276 = vst [vmem:[%s865 + $0x8] sm:$0x1] %v5275
        %v5277 = vld [vmem:[%s865 + $0xc] sm:$0xf]
        %v5278 = vsel %vm867, %v4974, %v5277
        %5279 = vst [vmem:[%s865 + $0xc] sm:$0xf] %v5278
        %5280 = vst [vmem:[%s865 + $0x10] sm:$0xf] %v4983
        %v5281 = vld [vmem:[%s865 + $0x14] sm:$0x1]
        %v5282 = vsel %vm304, %v4984, %v5281
        %5283 = vst [vmem:[%s865 + $0x14] sm:$0x1] %v5282
        %v5284 = vld [vmem:[%s865 + $0x18] sm:$0xf]
        %v5285 = vsel %vm867, %v4991, %v5284
        %5286 = vst [vmem:[%s865 + $0x18] sm:$0xf] %v5285
        %5287 = vst [vmem:[%s865 + $0x1c] sm:$0xf] %v5000
        %v5288 = vld [vmem:[%s865 + $0x20] sm:$0x1]
        %v5289 = vsel %vm304, %v5001, %v5288
        %5290 = vst [vmem:[%s865 + $0x20] sm:$0x1] %v5289
        %v5291 = vld [vmem:[%s865 + $0x24] sm:$0xf]
        %v5292 = vsel %vm867, %v5008, %v5291
        %5293 = vst [vmem:[%s865 + $0x24] sm:$0xf] %v5292
        %5294 = vst [vmem:[%s865 + $0x28] sm:$0xf] %v5017
        %v5295 = vld [vmem:[%s865 + $0x2c] sm:$0x1]
        %v5296 = vsel %vm304, %v5018, %v5295
        %5297 = vst [vmem:[%s865 + $0x2c] sm:$0x1] %v5296
        %v5298 = vld [vmem:[%s865 + $0x30] sm:$0xf]
        %v5299 = vsel %vm867, %v5025, %v5298
        %5300 = vst [vmem:[%s865 + $0x30] sm:$0xf] %v5299
        %5301 = vst [vmem:[%s865 + $0x34] sm:$0xf] %v5034
        %v5302 = vld [vmem:[%s865 + $0x38] sm:$0x1]
        %v5303 = vsel %vm304, %v5035, %v5302
        %5304 = vst [vmem:[%s865 + $0x38] sm:$0x1] %v5303
        %v5305 = vld [vmem:[%s865 + $0x3c] sm:$0xf]
        %v5306 = vsel %vm867, %v5042, %v5305
        %5307 = vst [vmem:[%s865 + $0x3c] sm:$0xf] %v5306
        %5308 = vst [vmem:[%s865 + $0x40] sm:$0xf] %v5051
        %v5309 = vld [vmem:[%s865 + $0x44] sm:$0x1]
        %v5310 = vsel %vm304, %v5052, %v5309
        %5311 = vst [vmem:[%s865 + $0x44] sm:$0x1] %v5310
        %v5312 = vld [vmem:[%s865 + $0x48] sm:$0xf]
        %v5313 = vsel %vm867, %v5059, %v5312
        %5314 = vst [vmem:[%s865 + $0x48] sm:$0xf] %v5313
        %5315 = vst [vmem:[%s865 + $0x4c] sm:$0xf] %v5068
        %v5316 = vld [vmem:[%s865 + $0x50] sm:$0x1]
        %v5317 = vsel %vm304, %v5069, %v5316
        %5318 = vst [vmem:[%s865 + $0x50] sm:$0x1] %v5317
        %v5319 = vld [vmem:[%s865 + $0x54] sm:$0xf]
        %v5320 = vsel %vm867, %v5076, %v5319
        %5321 = vst [vmem:[%s865 + $0x54] sm:$0xf] %v5320
        %5322 = vst [vmem:[%s865 + $0x58] sm:$0xf] %v5085
        %v5323 = vld [vmem:[%s865 + $0x5c] sm:$0x1]
        %v5324 = vsel %vm304, %v5086, %v5323
        %5325 = vst [vmem:[%s865 + $0x5c] sm:$0x1] %v5324
        %v5326 = vld [vmem:[%s865 + $0x60] sm:$0xf]
        %v5327 = vsel %vm867, %v5093, %v5326
        %5328 = vst [vmem:[%s865 + $0x60] sm:$0xf] %v5327
        %5329 = vst [vmem:[%s865 + $0x64] sm:$0xf] %v5102
        %v5330 = vld [vmem:[%s865 + $0x68] sm:$0x1]
        %v5331 = vsel %vm304, %v5103, %v5330
        %5332 = vst [vmem:[%s865 + $0x68] sm:$0x1] %v5331
        %v5333 = vld [vmem:[%s865 + $0x6c] sm:$0xf]
        %v5334 = vsel %vm867, %v5110, %v5333
        %5335 = vst [vmem:[%s865 + $0x6c] sm:$0xf] %v5334
        %5336 = vst [vmem:[%s865 + $0x70] sm:$0xf] %v5119
        %v5337 = vld [vmem:[%s865 + $0x74] sm:$0x1]
        %v5338 = vsel %vm304, %v5120, %v5337
        %5339 = vst [vmem:[%s865 + $0x74] sm:$0x1] %v5338
        %v5340 = vld [vmem:[%s865 + $0x78] sm:$0xf]
        %v5341 = vsel %vm867, %v5127, %v5340
        %5342 = vst [vmem:[%s865 + $0x78] sm:$0xf] %v5341
        %5343 = vst [vmem:[%s865 + $0x7c] sm:$0xf] %v5136
        %v5344 = vld [vmem:[%s865 + $0x80] sm:$0x1]
        %v5345 = vsel %vm304, %v5137, %v5344
        %5346 = vst [vmem:[%s865 + $0x80] sm:$0x1] %v5345
        %v5347 = vld [vmem:[%s865 + $0x84] sm:$0xf]
        %v5348 = vsel %vm867, %v5144, %v5347
        %5349 = vst [vmem:[%s865 + $0x84] sm:$0xf] %v5348
        %5350 = vst [vmem:[%s865 + $0x88] sm:$0xf] %v5153
        %v5351 = vld [vmem:[%s865 + $0x8c] sm:$0x1]
        %v5352 = vsel %vm304, %v5154, %v5351
        %5353 = vst [vmem:[%s865 + $0x8c] sm:$0x1] %v5352
        %v5354 = vld [vmem:[%s865 + $0x90] sm:$0xf]
        %v5355 = vsel %vm867, %v5161, %v5354
        %5356 = vst [vmem:[%s865 + $0x90] sm:$0xf] %v5355
        %5357 = vst [vmem:[%s865 + $0x94] sm:$0xf] %v5170
        %v5358 = vld [vmem:[%s865 + $0x98] sm:$0x1]
        %v5359 = vsel %vm304, %v5171, %v5358
        %5360 = vst [vmem:[%s865 + $0x98] sm:$0x1] %v5359
        %v5361 = vld [vmem:[%s865 + $0x9c] sm:$0xf]
        %v5362 = vsel %vm867, %v5178, %v5361
        %5363 = vst [vmem:[%s865 + $0x9c] sm:$0xf] %v5362
        %5364 = vst [vmem:[%s865 + $0xa0] sm:$0xf] %v5187
        %v5365 = vld [vmem:[%s865 + $0xa4] sm:$0x1]
        %v5366 = vsel %vm304, %v5188, %v5365
        %5367 = vst [vmem:[%s865 + $0xa4] sm:$0x1] %v5366
        %v5368 = vld [vmem:[%s865 + $0xa8] sm:$0xf]
        %v5369 = vsel %vm867, %v5195, %v5368
        %5370 = vst [vmem:[%s865 + $0xa8] sm:$0xf] %v5369
        %5371 = vst [vmem:[%s865 + $0xac] sm:$0xf] %v5204
        %v5372 = vld [vmem:[%s865 + $0xb0] sm:$0x1]
        %v5373 = vsel %vm304, %v5205, %v5372
        %5374 = vst [vmem:[%s865 + $0xb0] sm:$0x1] %v5373
        %v5375 = vld [vmem:[%s865 + $0xb4] sm:$0xf]
        %v5376 = vsel %vm867, %v5212, %v5375
        %5377 = vst [vmem:[%s865 + $0xb4] sm:$0xf] %v5376
        %5378 = vst [vmem:[%s865 + $0xb8] sm:$0xf] %v5221
        %v5379 = vld [vmem:[%s865 + $0xbc] sm:$0x1]
        %v5380 = vsel %vm304, %v5222, %v5379
        %5381 = vst [vmem:[%s865 + $0xbc] sm:$0x1] %v5380
        %v5382 = vld [vmem:[#allocation2] sm:$0xf]
        %v5383 = vld [vmem:[#allocation2 + $0x4] sm:$0xf]
        %v5384 = vld [vmem:[#allocation2 + $0xc] sm:$0xf]
        %v5385 = vld [vmem:[#allocation2 + $0x10] sm:$0xf]
        %v5386 = vld [vmem:[#allocation2 + $0x18] sm:$0xf]
        %v5387 = vld [vmem:[#allocation2 + $0x1c] sm:$0xf]
        %v5388 = vld [vmem:[#allocation2 + $0x24] sm:$0xf]
        %v5389 = vld [vmem:[#allocation2 + $0x28] sm:$0xf]
        %v5390 = vld [vmem:[#allocation2 + $0x30] sm:$0xf]
        %v5391 = vld [vmem:[#allocation2 + $0x34] sm:$0xf]
        %v5392 = vld [vmem:[#allocation2 + $0x3c] sm:$0xf]
        %v5393 = vld [vmem:[#allocation2 + $0x40] sm:$0xf]
        %v5394 = vld [vmem:[#allocation2 + $0x48] sm:$0xf]
        %v5395 = vld [vmem:[#allocation2 + $0x4c] sm:$0xf]
        %v5396 = vld [vmem:[#allocation2 + $0x54] sm:$0xf]
        %v5397 = vld [vmem:[#allocation2 + $0x58] sm:$0xf]
        %v5398 = vld [vmem:[#allocation2 + $0x60] sm:$0xf]
        %v5399 = vld [vmem:[#allocation2 + $0x64] sm:$0xf]
        %v5400 = vld [vmem:[#allocation2 + $0x6c] sm:$0xf]
        %v5401 = vld [vmem:[#allocation2 + $0x70] sm:$0xf]
        %v5402 = vld [vmem:[#allocation2 + $0x78] sm:$0xf]
        %v5403 = vld [vmem:[#allocation2 + $0x7c] sm:$0xf]
        %v5404 = vld [vmem:[#allocation2 + $0x84] sm:$0xf]
        %v5405 = vld [vmem:[#allocation2 + $0x88] sm:$0xf]
        %v5406 = vld [vmem:[#allocation2 + $0x90] sm:$0xf]
        %v5407 = vld [vmem:[#allocation2 + $0x94] sm:$0xf]
        %v5408 = vld [vmem:[#allocation2 + $0x9c] sm:$0xf]
        %v5409 = vld [vmem:[#allocation2 + $0xa0] sm:$0xf]
        %v5410 = vld [vmem:[#allocation2 + $0xa8] sm:$0xf]
        %v5411 = vld [vmem:[#allocation2 + $0xac] sm:$0xf]
        %v5412 = vld [vmem:[#allocation2 + $0xb4] sm:$0xf]
        %v5413 = vld [vmem:[#allocation2 + $0xb8] sm:$0xf]
        %v5414 = vld [vmem:[#allocation2 + $0x8] sm:$0x1]
        %v5415 = vld [vmem:[#allocation2 + $0x14] sm:$0x1]
        %v5416 = vld [vmem:[#allocation2 + $0x20] sm:$0x1]
        %v5417 = vld [vmem:[#allocation2 + $0x2c] sm:$0x1]
        %v5418 = vld [vmem:[#allocation2 + $0x38] sm:$0x1]
        %v5419 = vld [vmem:[#allocation2 + $0x44] sm:$0x1]
        %v5420 = vld [vmem:[#allocation2 + $0x50] sm:$0x1]
        %v5421 = vld [vmem:[#allocation2 + $0x5c] sm:$0x1]
        %v5422 = vld [vmem:[#allocation2 + $0x68] sm:$0x1]
        %v5423 = vld [vmem:[#allocation2 + $0x74] sm:$0x1]
        %v5424 = vld [vmem:[#allocation2 + $0x80] sm:$0x1]
        %v5425 = vld [vmem:[#allocation2 + $0x8c] sm:$0x1]
        %v5426 = vld [vmem:[#allocation2 + $0x98] sm:$0x1]
        %v5427 = vld [vmem:[#allocation2 + $0xa4] sm:$0x1]
        %v5428 = vld [vmem:[#allocation2 + $0xb0] sm:$0x1]
        %v5429 = vld [vmem:[#allocation2 + $0xbc] sm:$0x1]
        %v5431 = vshrl.u32 %v5382, 16
        %v5433 = vrot.slane %v5431, 4
        %v5434 = vshll.u32 %v5382, 16
        %v5436 = vrot.slane %v5434, 5
        %v5437 = vor.u32 %v5433, %v5436
        %v5438 = vrot.slane %v5437, 4
        %v5440 = vshll.u32 %v5383, 16
        %v5442 = vrot.slane %v5440, 5
        %v5443 = vsel %vm1030, %v5438, %v5442
        %v5444 = vshrl.u32 %v5383, 16
        %v5446 = vrot.slane %v5444, 4
        %v5447 = vor.u32 %v5446, %v5442
        %v5448 = vrot.slane %v5447, 4
        %v5450 = vshll.u32 %v5414, 16
        %v5452 = vrot.slane %v5450, 5
        %v5453 = vsel %vm1030, %v5448, %v5452
        %v5455 = vshrl.u32 %v5384, 16
        %v5457 = vrot.slane %v5455, 4
        %v5458 = vshll.u32 %v5384, 16
        %v5460 = vrot.slane %v5458, 5
        %v5461 = vor.u32 %v5457, %v5460
        %v5462 = vrot.slane %v5461, 4
        %v5464 = vshll.u32 %v5385, 16
        %v5466 = vrot.slane %v5464, 5
        %v5467 = vsel %vm1030, %v5462, %v5466
        %v5468 = vshrl.u32 %v5385, 16
        %v5470 = vrot.slane %v5468, 4
        %v5471 = vor.u32 %v5470, %v5466
        %v5472 = vrot.slane %v5471, 4
        %v5474 = vshll.u32 %v5415, 16
        %v5476 = vrot.slane %v5474, 5
        %v5477 = vsel %vm1030, %v5472, %v5476
        %v5479 = vshrl.u32 %v5386, 16
        %v5481 = vrot.slane %v5479, 4
        %v5482 = vshll.u32 %v5386, 16
        %v5484 = vrot.slane %v5482, 5
        %v5485 = vor.u32 %v5481, %v5484
        %v5486 = vrot.slane %v5485, 4
        %v5488 = vshll.u32 %v5387, 16
        %v5490 = vrot.slane %v5488, 5
        %v5491 = vsel %vm1030, %v5486, %v5490
        %v5492 = vshrl.u32 %v5387, 16
        %v5494 = vrot.slane %v5492, 4
        %v5495 = vor.u32 %v5494, %v5490
        %v5496 = vrot.slane %v5495, 4
        %v5498 = vshll.u32 %v5416, 16
        %v5500 = vrot.slane %v5498, 5
        %v5501 = vsel %vm1030, %v5496, %v5500
        %v5503 = vshrl.u32 %v5388, 16
        %v5505 = vrot.slane %v5503, 4
        %v5506 = vshll.u32 %v5388, 16
        %v5508 = vrot.slane %v5506, 5
        %v5509 = vor.u32 %v5505, %v5508
        %v5510 = vrot.slane %v5509, 4
        %v5512 = vshll.u32 %v5389, 16
        %v5514 = vrot.slane %v5512, 5
        %v5515 = vsel %vm1030, %v5510, %v5514
        %v5516 = vshrl.u32 %v5389, 16
        %v5518 = vrot.slane %v5516, 4
        %v5519 = vor.u32 %v5518, %v5514
        %v5520 = vrot.slane %v5519, 4
        %v5522 = vshll.u32 %v5417, 16
        %v5524 = vrot.slane %v5522, 5
        %v5525 = vsel %vm1030, %v5520, %v5524
        %v5527 = vshrl.u32 %v5390, 16
        %v5529 = vrot.slane %v5527, 4
        %v5530 = vshll.u32 %v5390, 16
        %v5532 = vrot.slane %v5530, 5
        %v5533 = vor.u32 %v5529, %v5532
        %v5534 = vrot.slane %v5533, 4
        %v5536 = vshll.u32 %v5391, 16
        %v5538 = vrot.slane %v5536, 5
        %v5539 = vsel %vm1030, %v5534, %v5538
        %v5540 = vshrl.u32 %v5391, 16
        %v5542 = vrot.slane %v5540, 4
        %v5543 = vor.u32 %v5542, %v5538
        %v5544 = vrot.slane %v5543, 4
        %v5546 = vshll.u32 %v5418, 16
        %v5548 = vrot.slane %v5546, 5
        %v5549 = vsel %vm1030, %v5544, %v5548
        %v5551 = vshrl.u32 %v5392, 16
        %v5553 = vrot.slane %v5551, 4
        %v5554 = vshll.u32 %v5392, 16
        %v5556 = vrot.slane %v5554, 5
        %v5557 = vor.u32 %v5553, %v5556
        %v5558 = vrot.slane %v5557, 4
        %v5560 = vshll.u32 %v5393, 16
        %v5562 = vrot.slane %v5560, 5
        %v5563 = vsel %vm1030, %v5558, %v5562
        %v5564 = vshrl.u32 %v5393, 16
        %v5566 = vrot.slane %v5564, 4
        %v5567 = vor.u32 %v5566, %v5562
        %v5568 = vrot.slane %v5567, 4
        %v5570 = vshll.u32 %v5419, 16
        %v5572 = vrot.slane %v5570, 5
        %v5573 = vsel %vm1030, %v5568, %v5572
        %v5575 = vshrl.u32 %v5394, 16
        %v5577 = vrot.slane %v5575, 4
        %v5578 = vshll.u32 %v5394, 16
        %v5580 = vrot.slane %v5578, 5
        %v5581 = vor.u32 %v5577, %v5580
        %v5582 = vrot.slane %v5581, 4
        %v5584 = vshll.u32 %v5395, 16
        %v5586 = vrot.slane %v5584, 5
        %v5587 = vsel %vm1030, %v5582, %v5586
        %v5588 = vshrl.u32 %v5395, 16
        %v5590 = vrot.slane %v5588, 4
        %v5591 = vor.u32 %v5590, %v5586
        %v5592 = vrot.slane %v5591, 4
        %v5594 = vshll.u32 %v5420, 16
        %v5596 = vrot.slane %v5594, 5
        %v5597 = vsel %vm1030, %v5592, %v5596
        %v5599 = vshrl.u32 %v5396, 16
        %v5601 = vrot.slane %v5599, 4
        %v5602 = vshll.u32 %v5396, 16
        %v5604 = vrot.slane %v5602, 5
        %v5605 = vor.u32 %v5601, %v5604
        %v5606 = vrot.slane %v5605, 4
        %v5608 = vshll.u32 %v5397, 16
        %v5610 = vrot.slane %v5608, 5
        %v5611 = vsel %vm1030, %v5606, %v5610
        %v5612 = vshrl.u32 %v5397, 16
        %v5614 = vrot.slane %v5612, 4
        %v5615 = vor.u32 %v5614, %v5610
        %v5616 = vrot.slane %v5615, 4
        %v5618 = vshll.u32 %v5421, 16
        %v5620 = vrot.slane %v5618, 5
        %v5621 = vsel %vm1030, %v5616, %v5620
        %v5623 = vshrl.u32 %v5398, 16
        %v5625 = vrot.slane %v5623, 4
        %v5626 = vshll.u32 %v5398, 16
        %v5628 = vrot.slane %v5626, 5
        %v5629 = vor.u32 %v5625, %v5628
        %v5630 = vrot.slane %v5629, 4
        %v5632 = vshll.u32 %v5399, 16
        %v5634 = vrot.slane %v5632, 5
        %v5635 = vsel %vm1030, %v5630, %v5634
        %v5636 = vshrl.u32 %v5399, 16
        %v5638 = vrot.slane %v5636, 4
        %v5639 = vor.u32 %v5638, %v5634
        %v5640 = vrot.slane %v5639, 4
        %v5642 = vshll.u32 %v5422, 16
        %v5644 = vrot.slane %v5642, 5
        %v5645 = vsel %vm1030, %v5640, %v5644
        %v5647 = vshrl.u32 %v5400, 16
        %v5649 = vrot.slane %v5647, 4
        %v5650 = vshll.u32 %v5400, 16
        %v5652 = vrot.slane %v5650, 5
        %v5653 = vor.u32 %v5649, %v5652
        %v5654 = vrot.slane %v5653, 4
        %v5656 = vshll.u32 %v5401, 16
        %v5658 = vrot.slane %v5656, 5
        %v5659 = vsel %vm1030, %v5654, %v5658
        %v5660 = vshrl.u32 %v5401, 16
        %v5662 = vrot.slane %v5660, 4
        %v5663 = vor.u32 %v5662, %v5658
        %v5664 = vrot.slane %v5663, 4
        %v5666 = vshll.u32 %v5423, 16
        %v5668 = vrot.slane %v5666, 5
        %v5669 = vsel %vm1030, %v5664, %v5668
        %v5671 = vshrl.u32 %v5402, 16
        %v5673 = vrot.slane %v5671, 4
        %v5674 = vshll.u32 %v5402, 16
        %v5676 = vrot.slane %v5674, 5
        %v5677 = vor.u32 %v5673, %v5676
        %v5678 = vrot.slane %v5677, 4
        %v5680 = vshll.u32 %v5403, 16
        %v5682 = vrot.slane %v5680, 5
        %v5683 = vsel %vm1030, %v5678, %v5682
        %v5684 = vshrl.u32 %v5403, 16
        %v5686 = vrot.slane %v5684, 4
        %v5687 = vor.u32 %v5686, %v5682
        %v5688 = vrot.slane %v5687, 4
        %v5690 = vshll.u32 %v5424, 16
        %v5692 = vrot.slane %v5690, 5
        %v5693 = vsel %vm1030, %v5688, %v5692
        %v5695 = vshrl.u32 %v5404, 16
        %v5697 = vrot.slane %v5695, 4
        %v5698 = vshll.u32 %v5404, 16
        %v5700 = vrot.slane %v5698, 5
        %v5701 = vor.u32 %v5697, %v5700
        %v5702 = vrot.slane %v5701, 4
        %v5704 = vshll.u32 %v5405, 16
        %v5706 = vrot.slane %v5704, 5
        %v5707 = vsel %vm1030, %v5702, %v5706
        %v5708 = vshrl.u32 %v5405, 16
        %v5710 = vrot.slane %v5708, 4
        %v5711 = vor.u32 %v5710, %v5706
        %v5712 = vrot.slane %v5711, 4
        %v5714 = vshll.u32 %v5425, 16
        %v5716 = vrot.slane %v5714, 5
        %v5717 = vsel %vm1030, %v5712, %v5716
        %v5719 = vshrl.u32 %v5406, 16
        %v5721 = vrot.slane %v5719, 4
        %v5722 = vshll.u32 %v5406, 16
        %v5724 = vrot.slane %v5722, 5
        %v5725 = vor.u32 %v5721, %v5724
        %v5726 = vrot.slane %v5725, 4
        %v5728 = vshll.u32 %v5407, 16
        %v5730 = vrot.slane %v5728, 5
        %v5731 = vsel %vm1030, %v5726, %v5730
        %v5732 = vshrl.u32 %v5407, 16
        %v5734 = vrot.slane %v5732, 4
        %v5735 = vor.u32 %v5734, %v5730
        %v5736 = vrot.slane %v5735, 4
        %v5738 = vshll.u32 %v5426, 16
        %v5740 = vrot.slane %v5738, 5
        %v5741 = vsel %vm1030, %v5736, %v5740
        %v5743 = vshrl.u32 %v5408, 16
        %v5745 = vrot.slane %v5743, 4
        %v5746 = vshll.u32 %v5408, 16
        %v5748 = vrot.slane %v5746, 5
        %v5749 = vor.u32 %v5745, %v5748
        %v5750 = vrot.slane %v5749, 4
        %v5752 = vshll.u32 %v5409, 16
        %v5754 = vrot.slane %v5752, 5
        %v5755 = vsel %vm1030, %v5750, %v5754
        %v5756 = vshrl.u32 %v5409, 16
        %v5758 = vrot.slane %v5756, 4
        %v5759 = vor.u32 %v5758, %v5754
        %v5760 = vrot.slane %v5759, 4
        %v5762 = vshll.u32 %v5427, 16
        %v5764 = vrot.slane %v5762, 5
        %v5765 = vsel %vm1030, %v5760, %v5764
        %v5767 = vshrl.u32 %v5410, 16
        %v5769 = vrot.slane %v5767, 4
        %v5770 = vshll.u32 %v5410, 16
        %v5772 = vrot.slane %v5770, 5
        %v5773 = vor.u32 %v5769, %v5772
        %v5774 = vrot.slane %v5773, 4
        %v5776 = vshll.u32 %v5411, 16
        %v5778 = vrot.slane %v5776, 5
        %v5779 = vsel %vm1030, %v5774, %v5778
        %v5780 = vshrl.u32 %v5411, 16
        %v5782 = vrot.slane %v5780, 4
        %v5783 = vor.u32 %v5782, %v5778
        %v5784 = vrot.slane %v5783, 4
        %v5786 = vshll.u32 %v5428, 16
        %v5788 = vrot.slane %v5786, 5
        %v5789 = vsel %vm1030, %v5784, %v5788
        %v5791 = vshrl.u32 %v5412, 16
        %v5793 = vrot.slane %v5791, 4
        %v5794 = vshll.u32 %v5412, 16
        %v5796 = vrot.slane %v5794, 5
        %v5797 = vor.u32 %v5793, %v5796
        %v5798 = vrot.slane %v5797, 4
        %v5800 = vshll.u32 %v5413, 16
        %v5802 = vrot.slane %v5800, 5
        %v5803 = vsel %vm1030, %v5798, %v5802
        %v5804 = vshrl.u32 %v5413, 16
        %v5806 = vrot.slane %v5804, 4
        %v5807 = vor.u32 %v5806, %v5802
        %v5808 = vrot.slane %v5807, 4
        %v5810 = vshll.u32 %v5429, 16
        %v5812 = vrot.slane %v5810, 5
        %v5813 = vsel %vm1030, %v5808, %v5812
        %v5814 = vld [vmem:[#allocation2] sm:$0xe]
        %v5815 = vld [vmem:[#allocation2 + $0xc] sm:$0xe]
        %v5816 = vld [vmem:[#allocation2 + $0x18] sm:$0xe]
        %v5817 = vld [vmem:[#allocation2 + $0x24] sm:$0xe]
        %v5818 = vld [vmem:[#allocation2 + $0x30] sm:$0xe]
        %v5819 = vld [vmem:[#allocation2 + $0x3c] sm:$0xe]
        %v5820 = vld [vmem:[#allocation2 + $0x48] sm:$0xe]
        %v5821 = vld [vmem:[#allocation2 + $0x54] sm:$0xe]
        %v5822 = vld [vmem:[#allocation2 + $0x60] sm:$0xe]
        %v5823 = vld [vmem:[#allocation2 + $0x6c] sm:$0xe]
        %v5824 = vld [vmem:[#allocation2 + $0x78] sm:$0xe]
        %v5825 = vld [vmem:[#allocation2 + $0x84] sm:$0xe]
        %v5826 = vld [vmem:[#allocation2 + $0x90] sm:$0xe]
        %v5827 = vld [vmem:[#allocation2 + $0x9c] sm:$0xe]
        %v5828 = vld [vmem:[#allocation2 + $0xa8] sm:$0xe]
        %v5829 = vld [vmem:[#allocation2 + $0xb4] sm:$0xe]
        %v5878 = vrot.slane %v5814, 5
        %v5879 = vrot.slane %v5878, 4
        %v5880 = vrot.slane %v5383, 5
        %v5881 = vsel %vm1481, %v5879, %v5880
        %v5882 = vrot.slane %v5880, 4
        %v5883 = vrot.slane %v5414, 5
        %v5884 = vsel %vm1481, %v5882, %v5883
        %v5885 = vrot.slane %v5815, 5
        %v5886 = vrot.slane %v5885, 4
        %v5887 = vrot.slane %v5385, 5
        %v5888 = vsel %vm1481, %v5886, %v5887
        %v5889 = vrot.slane %v5887, 4
        %v5890 = vrot.slane %v5415, 5
        %v5891 = vsel %vm1481, %v5889, %v5890
        %v5892 = vrot.slane %v5816, 5
        %v5893 = vrot.slane %v5892, 4
        %v5894 = vrot.slane %v5387, 5
        %v5895 = vsel %vm1481, %v5893, %v5894
        %v5896 = vrot.slane %v5894, 4
        %v5897 = vrot.slane %v5416, 5
        %v5898 = vsel %vm1481, %v5896, %v5897
        %v5899 = vrot.slane %v5817, 5
        %v5900 = vrot.slane %v5899, 4
        %v5901 = vrot.slane %v5389, 5
        %v5902 = vsel %vm1481, %v5900, %v5901
        %v5903 = vrot.slane %v5901, 4
        %v5904 = vrot.slane %v5417, 5
        %v5905 = vsel %vm1481, %v5903, %v5904
        %v5906 = vrot.slane %v5818, 5
        %v5907 = vrot.slane %v5906, 4
        %v5908 = vrot.slane %v5391, 5
        %v5909 = vsel %vm1481, %v5907, %v5908
        %v5910 = vrot.slane %v5908, 4
        %v5911 = vrot.slane %v5418, 5
        %v5912 = vsel %vm1481, %v5910, %v5911
        %v5913 = vrot.slane %v5819, 5
        %v5914 = vrot.slane %v5913, 4
        %v5915 = vrot.slane %v5393, 5
        %v5916 = vsel %vm1481, %v5914, %v5915
        %v5917 = vrot.slane %v5915, 4
        %v5918 = vrot.slane %v5419, 5
        %v5919 = vsel %vm1481, %v5917, %v5918
        %v5920 = vrot.slane %v5820, 5
        %v5921 = vrot.slane %v5920, 4
        %v5922 = vrot.slane %v5395, 5
        %v5923 = vsel %vm1481, %v5921, %v5922
        %v5924 = vrot.slane %v5922, 4
        %v5925 = vrot.slane %v5420, 5
        %v5926 = vsel %vm1481, %v5924, %v5925
        %v5927 = vrot.slane %v5821, 5
        %v5928 = vrot.slane %v5927, 4
        %v5929 = vrot.slane %v5397, 5
        %v5930 = vsel %vm1481, %v5928, %v5929
        %v5931 = vrot.slane %v5929, 4
        %v5932 = vrot.slane %v5421, 5
        %v5933 = vsel %vm1481, %v5931, %v5932
        %v5934 = vrot.slane %v5822, 5
        %v5935 = vrot.slane %v5934, 4
        %v5936 = vrot.slane %v5399, 5
        %v5937 = vsel %vm1481, %v5935, %v5936
        %v5938 = vrot.slane %v5936, 4
        %v5939 = vrot.slane %v5422, 5
        %v5940 = vsel %vm1481, %v5938, %v5939
        %v5941 = vrot.slane %v5823, 5
        %v5942 = vrot.slane %v5941, 4
        %v5943 = vrot.slane %v5401, 5
        %v5944 = vsel %vm1481, %v5942, %v5943
        %v5945 = vrot.slane %v5943, 4
        %v5946 = vrot.slane %v5423, 5
        %v5947 = vsel %vm1481, %v5945, %v5946
        %v5948 = vrot.slane %v5824, 5
        %v5949 = vrot.slane %v5948, 4
        %v5950 = vrot.slane %v5403, 5
        %v5951 = vsel %vm1481, %v5949, %v5950
        %v5952 = vrot.slane %v5950, 4
        %v5953 = vrot.slane %v5424, 5
        %v5954 = vsel %vm1481, %v5952, %v5953
        %v5955 = vrot.slane %v5825, 5
        %v5956 = vrot.slane %v5955, 4
        %v5957 = vrot.slane %v5405, 5
        %v5958 = vsel %vm1481, %v5956, %v5957
        %v5959 = vrot.slane %v5957, 4
        %v5960 = vrot.slane %v5425, 5
        %v5961 = vsel %vm1481, %v5959, %v5960
        %v5962 = vrot.slane %v5826, 5
        %v5963 = vrot.slane %v5962, 4
        %v5964 = vrot.slane %v5407, 5
        %v5965 = vsel %vm1481, %v5963, %v5964
        %v5966 = vrot.slane %v5964, 4
        %v5967 = vrot.slane %v5426, 5
        %v5968 = vsel %vm1481, %v5966, %v5967
        %v5969 = vrot.slane %v5827, 5
        %v5970 = vrot.slane %v5969, 4
        %v5971 = vrot.slane %v5409, 5
        %v5972 = vsel %vm1481, %v5970, %v5971
        %v5973 = vrot.slane %v5971, 4
        %v5974 = vrot.slane %v5427, 5
        %v5975 = vsel %vm1481, %v5973, %v5974
        %v5976 = vrot.slane %v5828, 5
        %v5977 = vrot.slane %v5976, 4
        %v5978 = vrot.slane %v5411, 5
        %v5979 = vsel %vm1481, %v5977, %v5978
        %v5980 = vrot.slane %v5978, 4
        %v5981 = vrot.slane %v5428, 5
        %v5982 = vsel %vm1481, %v5980, %v5981
        %v5983 = vrot.slane %v5829, 5
        %v5984 = vrot.slane %v5983, 4
        %v5985 = vrot.slane %v5413, 5
        %v5986 = vsel %vm1481, %v5984, %v5985
        %v5987 = vrot.slane %v5985, 4
        %v5988 = vrot.slane %v5429, 5
        %v5989 = vsel %vm1481, %v5987, %v5988
        %v5990 = vld [vmem:[%s865] sm:$0xf]
        %v5991 = vld [vmem:[%s865 + $0x4] sm:$0xf]
        %v5992 = vld [vmem:[%s865 + $0xc] sm:$0xf]
        %v5993 = vld [vmem:[%s865 + $0x10] sm:$0xf]
        %v5994 = vld [vmem:[%s865 + $0x18] sm:$0xf]
        %v5995 = vld [vmem:[%s865 + $0x1c] sm:$0xf]
        %v5996 = vld [vmem:[%s865 + $0x24] sm:$0xf]
        %v5997 = vld [vmem:[%s865 + $0x28] sm:$0xf]
        %v5998 = vld [vmem:[%s865 + $0x30] sm:$0xf]
        %v5999 = vld [vmem:[%s865 + $0x34] sm:$0xf]
        %v6000 = vld [vmem:[%s865 + $0x3c] sm:$0xf]
        %v6001 = vld [vmem:[%s865 + $0x40] sm:$0xf]
        %v6002 = vld [vmem:[%s865 + $0x48] sm:$0xf]
        %v6003 = vld [vmem:[%s865 + $0x4c] sm:$0xf]
        %v6004 = vld [vmem:[%s865 + $0x54] sm:$0xf]
        %v6005 = vld [vmem:[%s865 + $0x58] sm:$0xf]
        %v6006 = vld [vmem:[%s865 + $0x60] sm:$0xf]
        %v6007 = vld [vmem:[%s865 + $0x64] sm:$0xf]
        %v6008 = vld [vmem:[%s865 + $0x6c] sm:$0xf]
        %v6009 = vld [vmem:[%s865 + $0x70] sm:$0xf]
        %v6010 = vld [vmem:[%s865 + $0x78] sm:$0xf]
        %v6011 = vld [vmem:[%s865 + $0x7c] sm:$0xf]
        %v6012 = vld [vmem:[%s865 + $0x84] sm:$0xf]
        %v6013 = vld [vmem:[%s865 + $0x88] sm:$0xf]
        %v6014 = vld [vmem:[%s865 + $0x90] sm:$0xf]
        %v6015 = vld [vmem:[%s865 + $0x94] sm:$0xf]
        %v6016 = vld [vmem:[%s865 + $0x9c] sm:$0xf]
        %v6017 = vld [vmem:[%s865 + $0xa0] sm:$0xf]
        %v6018 = vld [vmem:[%s865 + $0xa8] sm:$0xf]
        %v6019 = vld [vmem:[%s865 + $0xac] sm:$0xf]
        %v6020 = vld [vmem:[%s865 + $0xb4] sm:$0xf]
        %v6021 = vld [vmem:[%s865 + $0xb8] sm:$0xf]
        %v6022 = vld [vmem:[%s865 + $0x8] sm:$0x1]
        %v6023 = vld [vmem:[%s865 + $0x14] sm:$0x1]
        %v6024 = vld [vmem:[%s865 + $0x20] sm:$0x1]
        %v6025 = vld [vmem:[%s865 + $0x2c] sm:$0x1]
        %v6026 = vld [vmem:[%s865 + $0x38] sm:$0x1]
        %v6027 = vld [vmem:[%s865 + $0x44] sm:$0x1]
        %v6028 = vld [vmem:[%s865 + $0x50] sm:$0x1]
        %v6029 = vld [vmem:[%s865 + $0x5c] sm:$0x1]
        %v6030 = vld [vmem:[%s865 + $0x68] sm:$0x1]
        %v6031 = vld [vmem:[%s865 + $0x74] sm:$0x1]
        %v6032 = vld [vmem:[%s865 + $0x80] sm:$0x1]
        %v6033 = vld [vmem:[%s865 + $0x8c] sm:$0x1]
        %v6034 = vld [vmem:[%s865 + $0x98] sm:$0x1]
        %v6035 = vld [vmem:[%s865 + $0xa4] sm:$0x1]
        %v6036 = vld [vmem:[%s865 + $0xb0] sm:$0x1]
        %v6037 = vld [vmem:[%s865 + $0xbc] sm:$0x1]
        %v6039 = vshrl.u32 %v5990, 16
        %v6041 = vrot.slane %v6039, 4
        %v6042 = vshll.u32 %v5990, 16
        %v6044 = vrot.slane %v6042, 5
        %v6045 = vor.u32 %v6041, %v6044
        %v6046 = vrot.slane %v6045, 4
        %v6048 = vshll.u32 %v5991, 16
        %v6050 = vrot.slane %v6048, 5
        %v6051 = vsel %vm1030, %v6046, %v6050
        %v6052 = vshrl.u32 %v5991, 16
        %v6054 = vrot.slane %v6052, 4
        %v6055 = vor.u32 %v6054, %v6050
        %v6056 = vrot.slane %v6055, 4
        %v6058 = vshll.u32 %v6022, 16
        %v6060 = vrot.slane %v6058, 5
        %v6061 = vsel %vm1030, %v6056, %v6060
        %v6063 = vshrl.u32 %v5992, 16
        %v6065 = vrot.slane %v6063, 4
        %v6066 = vshll.u32 %v5992, 16
        %v6068 = vrot.slane %v6066, 5
        %v6069 = vor.u32 %v6065, %v6068
        %v6070 = vrot.slane %v6069, 4
        %v6072 = vshll.u32 %v5993, 16
        %v6074 = vrot.slane %v6072, 5
        %v6075 = vsel %vm1030, %v6070, %v6074
        %v6076 = vshrl.u32 %v5993, 16
        %v6078 = vrot.slane %v6076, 4
        %v6079 = vor.u32 %v6078, %v6074
        %v6080 = vrot.slane %v6079, 4
        %v6082 = vshll.u32 %v6023, 16
        %v6084 = vrot.slane %v6082, 5
        %v6085 = vsel %vm1030, %v6080, %v6084
        %v6087 = vshrl.u32 %v5994, 16
        %v6089 = vrot.slane %v6087, 4
        %v6090 = vshll.u32 %v5994, 16
        %v6092 = vrot.slane %v6090, 5
        %v6093 = vor.u32 %v6089, %v6092
        %v6094 = vrot.slane %v6093, 4
        %v6096 = vshll.u32 %v5995, 16
        %v6098 = vrot.slane %v6096, 5
        %v6099 = vsel %vm1030, %v6094, %v6098
        %v6100 = vshrl.u32 %v5995, 16
        %v6102 = vrot.slane %v6100, 4
        %v6103 = vor.u32 %v6102, %v6098
        %v6104 = vrot.slane %v6103, 4
        %v6106 = vshll.u32 %v6024, 16
        %v6108 = vrot.slane %v6106, 5
        %v6109 = vsel %vm1030, %v6104, %v6108
        %v6111 = vshrl.u32 %v5996, 16
        %v6113 = vrot.slane %v6111, 4
        %v6114 = vshll.u32 %v5996, 16
        %v6116 = vrot.slane %v6114, 5
        %v6117 = vor.u32 %v6113, %v6116
        %v6118 = vrot.slane %v6117, 4
        %v6120 = vshll.u32 %v5997, 16
        %v6122 = vrot.slane %v6120, 5
        %v6123 = vsel %vm1030, %v6118, %v6122
        %v6124 = vshrl.u32 %v5997, 16
        %v6126 = vrot.slane %v6124, 4
        %v6127 = vor.u32 %v6126, %v6122
        %v6128 = vrot.slane %v6127, 4
        %v6130 = vshll.u32 %v6025, 16
        %v6132 = vrot.slane %v6130, 5
        %v6133 = vsel %vm1030, %v6128, %v6132
        %v6135 = vshrl.u32 %v5998, 16
        %v6137 = vrot.slane %v6135, 4
        %v6138 = vshll.u32 %v5998, 16
        %v6140 = vrot.slane %v6138, 5
        %v6141 = vor.u32 %v6137, %v6140
        %v6142 = vrot.slane %v6141, 4
        %v6144 = vshll.u32 %v5999, 16
        %v6146 = vrot.slane %v6144, 5
        %v6147 = vsel %vm1030, %v6142, %v6146
        %v6148 = vshrl.u32 %v5999, 16
        %v6150 = vrot.slane %v6148, 4
        %v6151 = vor.u32 %v6150, %v6146
        %v6152 = vrot.slane %v6151, 4
        %v6154 = vshll.u32 %v6026, 16
        %v6156 = vrot.slane %v6154, 5
        %v6157 = vsel %vm1030, %v6152, %v6156
        %v6159 = vshrl.u32 %v6000, 16
        %v6161 = vrot.slane %v6159, 4
        %v6162 = vshll.u32 %v6000, 16
        %v6164 = vrot.slane %v6162, 5
        %v6165 = vor.u32 %v6161, %v6164
        %v6166 = vrot.slane %v6165, 4
        %v6168 = vshll.u32 %v6001, 16
        %v6170 = vrot.slane %v6168, 5
        %v6171 = vsel %vm1030, %v6166, %v6170
        %v6172 = vshrl.u32 %v6001, 16
        %v6174 = vrot.slane %v6172, 4
        %v6175 = vor.u32 %v6174, %v6170
        %v6176 = vrot.slane %v6175, 4
        %v6178 = vshll.u32 %v6027, 16
        %v6180 = vrot.slane %v6178, 5
        %v6181 = vsel %vm1030, %v6176, %v6180
        %v6183 = vshrl.u32 %v6002, 16
        %v6185 = vrot.slane %v6183, 4
        %v6186 = vshll.u32 %v6002, 16
        %v6188 = vrot.slane %v6186, 5
        %v6189 = vor.u32 %v6185, %v6188
        %v6190 = vrot.slane %v6189, 4
        %v6192 = vshll.u32 %v6003, 16
        %v6194 = vrot.slane %v6192, 5
        %v6195 = vsel %vm1030, %v6190, %v6194
        %v6196 = vshrl.u32 %v6003, 16
        %v6198 = vrot.slane %v6196, 4
        %v6199 = vor.u32 %v6198, %v6194
        %v6200 = vrot.slane %v6199, 4
        %v6202 = vshll.u32 %v6028, 16
        %v6204 = vrot.slane %v6202, 5
        %v6205 = vsel %vm1030, %v6200, %v6204
        %v6207 = vshrl.u32 %v6004, 16
        %v6209 = vrot.slane %v6207, 4
        %v6210 = vshll.u32 %v6004, 16
        %v6212 = vrot.slane %v6210, 5
        %v6213 = vor.u32 %v6209, %v6212
        %v6214 = vrot.slane %v6213, 4
        %v6216 = vshll.u32 %v6005, 16
        %v6218 = vrot.slane %v6216, 5
        %v6219 = vsel %vm1030, %v6214, %v6218
        %v6220 = vshrl.u32 %v6005, 16
        %v6222 = vrot.slane %v6220, 4
        %v6223 = vor.u32 %v6222, %v6218
        %v6224 = vrot.slane %v6223, 4
        %v6226 = vshll.u32 %v6029, 16
        %v6228 = vrot.slane %v6226, 5
        %v6229 = vsel %vm1030, %v6224, %v6228
        %v6231 = vshrl.u32 %v6006, 16
        %v6233 = vrot.slane %v6231, 4
        %v6234 = vshll.u32 %v6006, 16
        %v6236 = vrot.slane %v6234, 5
        %v6237 = vor.u32 %v6233, %v6236
        %v6238 = vrot.slane %v6237, 4
        %v6240 = vshll.u32 %v6007, 16
        %v6242 = vrot.slane %v6240, 5
        %v6243 = vsel %vm1030, %v6238, %v6242
        %v6244 = vshrl.u32 %v6007, 16
        %v6246 = vrot.slane %v6244, 4
        %v6247 = vor.u32 %v6246, %v6242
        %v6248 = vrot.slane %v6247, 4
        %v6250 = vshll.u32 %v6030, 16
        %v6252 = vrot.slane %v6250, 5
        %v6253 = vsel %vm1030, %v6248, %v6252
        %v6255 = vshrl.u32 %v6008, 16
        %v6257 = vrot.slane %v6255, 4
        %v6258 = vshll.u32 %v6008, 16
        %v6260 = vrot.slane %v6258, 5
        %v6261 = vor.u32 %v6257, %v6260
        %v6262 = vrot.slane %v6261, 4
        %v6264 = vshll.u32 %v6009, 16
        %v6266 = vrot.slane %v6264, 5
        %v6267 = vsel %vm1030, %v6262, %v6266
        %v6268 = vshrl.u32 %v6009, 16
        %v6270 = vrot.slane %v6268, 4
        %v6271 = vor.u32 %v6270, %v6266
        %v6272 = vrot.slane %v6271, 4
        %v6274 = vshll.u32 %v6031, 16
        %v6276 = vrot.slane %v6274, 5
        %v6277 = vsel %vm1030, %v6272, %v6276
        %v6279 = vshrl.u32 %v6010, 16
        %v6281 = vrot.slane %v6279, 4
        %v6282 = vshll.u32 %v6010, 16
        %v6284 = vrot.slane %v6282, 5
        %v6285 = vor.u32 %v6281, %v6284
        %v6286 = vrot.slane %v6285, 4
        %v6288 = vshll.u32 %v6011, 16
        %v6290 = vrot.slane %v6288, 5
        %v6291 = vsel %vm1030, %v6286, %v6290
        %v6292 = vshrl.u32 %v6011, 16
        %v6294 = vrot.slane %v6292, 4
        %v6295 = vor.u32 %v6294, %v6290
        %v6296 = vrot.slane %v6295, 4
        %v6298 = vshll.u32 %v6032, 16
        %v6300 = vrot.slane %v6298, 5
        %v6301 = vsel %vm1030, %v6296, %v6300
        %v6303 = vshrl.u32 %v6012, 16
        %v6305 = vrot.slane %v6303, 4
        %v6306 = vshll.u32 %v6012, 16
        %v6308 = vrot.slane %v6306, 5
        %v6309 = vor.u32 %v6305, %v6308
        %v6310 = vrot.slane %v6309, 4
        %v6312 = vshll.u32 %v6013, 16
        %v6314 = vrot.slane %v6312, 5
        %v6315 = vsel %vm1030, %v6310, %v6314
        %v6316 = vshrl.u32 %v6013, 16
        %v6318 = vrot.slane %v6316, 4
        %v6319 = vor.u32 %v6318, %v6314
        %v6320 = vrot.slane %v6319, 4
        %v6322 = vshll.u32 %v6033, 16
        %v6324 = vrot.slane %v6322, 5
        %v6325 = vsel %vm1030, %v6320, %v6324
        %v6327 = vshrl.u32 %v6014, 16
        %v6329 = vrot.slane %v6327, 4
        %v6330 = vshll.u32 %v6014, 16
        %v6332 = vrot.slane %v6330, 5
        %v6333 = vor.u32 %v6329, %v6332
        %v6334 = vrot.slane %v6333, 4
        %v6336 = vshll.u32 %v6015, 16
        %v6338 = vrot.slane %v6336, 5
        %v6339 = vsel %vm1030, %v6334, %v6338
        %v6340 = vshrl.u32 %v6015, 16
        %v6342 = vrot.slane %v6340, 4
        %v6343 = vor.u32 %v6342, %v6338
        %v6344 = vrot.slane %v6343, 4
        %v6346 = vshll.u32 %v6034, 16
        %v6348 = vrot.slane %v6346, 5
        %v6349 = vsel %vm1030, %v6344, %v6348
        %v6351 = vshrl.u32 %v6016, 16
        %v6353 = vrot.slane %v6351, 4
        %v6354 = vshll.u32 %v6016, 16
        %v6356 = vrot.slane %v6354, 5
        %v6357 = vor.u32 %v6353, %v6356
        %v6358 = vrot.slane %v6357, 4
        %v6360 = vshll.u32 %v6017, 16
        %v6362 = vrot.slane %v6360, 5
        %v6363 = vsel %vm1030, %v6358, %v6362
        %v6364 = vshrl.u32 %v6017, 16
        %v6366 = vrot.slane %v6364, 4
        %v6367 = vor.u32 %v6366, %v6362
        %v6368 = vrot.slane %v6367, 4
        %v6370 = vshll.u32 %v6035, 16
        %v6372 = vrot.slane %v6370, 5
        %v6373 = vsel %vm1030, %v6368, %v6372
        %v6375 = vshrl.u32 %v6018, 16
        %v6377 = vrot.slane %v6375, 4
        %v6378 = vshll.u32 %v6018, 16
        %v6380 = vrot.slane %v6378, 5
        %v6381 = vor.u32 %v6377, %v6380
        %v6382 = vrot.slane %v6381, 4
        %v6384 = vshll.u32 %v6019, 16
        %v6386 = vrot.slane %v6384, 5
        %v6387 = vsel %vm1030, %v6382, %v6386
        %v6388 = vshrl.u32 %v6019, 16
        %v6390 = vrot.slane %v6388, 4
        %v6391 = vor.u32 %v6390, %v6386
        %v6392 = vrot.slane %v6391, 4
        %v6394 = vshll.u32 %v6036, 16
        %v6396 = vrot.slane %v6394, 5
        %v6397 = vsel %vm1030, %v6392, %v6396
        %v6399 = vshrl.u32 %v6020, 16
        %v6401 = vrot.slane %v6399, 4
        %v6402 = vshll.u32 %v6020, 16
        %v6404 = vrot.slane %v6402, 5
        %v6405 = vor.u32 %v6401, %v6404
        %v6406 = vrot.slane %v6405, 4
        %v6408 = vshll.u32 %v6021, 16
        %v6410 = vrot.slane %v6408, 5
        %v6411 = vsel %vm1030, %v6406, %v6410
        %v6412 = vshrl.u32 %v6021, 16
        %v6414 = vrot.slane %v6412, 4
        %v6415 = vor.u32 %v6414, %v6410
        %v6416 = vrot.slane %v6415, 4
        %v6418 = vshll.u32 %v6037, 16
        %v6420 = vrot.slane %v6418, 5
        %v6421 = vsel %vm1030, %v6416, %v6420
        %v6422 = vld [vmem:[%s865] sm:$0xe]
        %v6423 = vld [vmem:[%s865 + $0xc] sm:$0xe]
        %v6424 = vld [vmem:[%s865 + $0x18] sm:$0xe]
        %v6425 = vld [vmem:[%s865 + $0x24] sm:$0xe]
        %v6426 = vld [vmem:[%s865 + $0x30] sm:$0xe]
        %v6427 = vld [vmem:[%s865 + $0x3c] sm:$0xe]
        %v6428 = vld [vmem:[%s865 + $0x48] sm:$0xe]
        %v6429 = vld [vmem:[%s865 + $0x54] sm:$0xe]
        %v6430 = vld [vmem:[%s865 + $0x60] sm:$0xe]
        %v6431 = vld [vmem:[%s865 + $0x6c] sm:$0xe]
        %v6432 = vld [vmem:[%s865 + $0x78] sm:$0xe]
        %v6433 = vld [vmem:[%s865 + $0x84] sm:$0xe]
        %v6434 = vld [vmem:[%s865 + $0x90] sm:$0xe]
        %v6435 = vld [vmem:[%s865 + $0x9c] sm:$0xe]
        %v6436 = vld [vmem:[%s865 + $0xa8] sm:$0xe]
        %v6437 = vld [vmem:[%s865 + $0xb4] sm:$0xe]
        %v6486 = vrot.slane %v6422, 5
        %v6487 = vrot.slane %v6486, 4
        %v6488 = vrot.slane %v5991, 5
        %v6489 = vsel %vm1481, %v6487, %v6488
        %v6490 = vrot.slane %v6488, 4
        %v6491 = vrot.slane %v6022, 5
        %v6492 = vsel %vm1481, %v6490, %v6491
        %v6493 = vrot.slane %v6423, 5
        %v6494 = vrot.slane %v6493, 4
        %v6495 = vrot.slane %v5993, 5
        %v6496 = vsel %vm1481, %v6494, %v6495
        %v6497 = vrot.slane %v6495, 4
        %v6498 = vrot.slane %v6023, 5
        %v6499 = vsel %vm1481, %v6497, %v6498
        %v6500 = vrot.slane %v6424, 5
        %v6501 = vrot.slane %v6500, 4
        %v6502 = vrot.slane %v5995, 5
        %v6503 = vsel %vm1481, %v6501, %v6502
        %v6504 = vrot.slane %v6502, 4
        %v6505 = vrot.slane %v6024, 5
        %v6506 = vsel %vm1481, %v6504, %v6505
        %v6507 = vrot.slane %v6425, 5
        %v6508 = vrot.slane %v6507, 4
        %v6509 = vrot.slane %v5997, 5
        %v6510 = vsel %vm1481, %v6508, %v6509
        %v6511 = vrot.slane %v6509, 4
        %v6512 = vrot.slane %v6025, 5
        %v6513 = vsel %vm1481, %v6511, %v6512
        %v6514 = vrot.slane %v6426, 5
        %v6515 = vrot.slane %v6514, 4
        %v6516 = vrot.slane %v5999, 5
        %v6517 = vsel %vm1481, %v6515, %v6516
        %v6518 = vrot.slane %v6516, 4
        %v6519 = vrot.slane %v6026, 5
        %v6520 = vsel %vm1481, %v6518, %v6519
        %v6521 = vrot.slane %v6427, 5
        %v6522 = vrot.slane %v6521, 4
        %v6523 = vrot.slane %v6001, 5
        %v6524 = vsel %vm1481, %v6522, %v6523
        %v6525 = vrot.slane %v6523, 4
        %v6526 = vrot.slane %v6027, 5
        %v6527 = vsel %vm1481, %v6525, %v6526
        %v6528 = vrot.slane %v6428, 5
        %v6529 = vrot.slane %v6528, 4
        %v6530 = vrot.slane %v6003, 5
        %v6531 = vsel %vm1481, %v6529, %v6530
        %v6532 = vrot.slane %v6530, 4
        %v6533 = vrot.slane %v6028, 5
        %v6534 = vsel %vm1481, %v6532, %v6533
        %v6535 = vrot.slane %v6429, 5
        %v6536 = vrot.slane %v6535, 4
        %v6537 = vrot.slane %v6005, 5
        %v6538 = vsel %vm1481, %v6536, %v6537
        %v6539 = vrot.slane %v6537, 4
        %v6540 = vrot.slane %v6029, 5
        %v6541 = vsel %vm1481, %v6539, %v6540
        %v6542 = vrot.slane %v6430, 5
        %v6543 = vrot.slane %v6542, 4
        %v6544 = vrot.slane %v6007, 5
        %v6545 = vsel %vm1481, %v6543, %v6544
        %v6546 = vrot.slane %v6544, 4
        %v6547 = vrot.slane %v6030, 5
        %v6548 = vsel %vm1481, %v6546, %v6547
        %v6549 = vrot.slane %v6431, 5
        %v6550 = vrot.slane %v6549, 4
        %v6551 = vrot.slane %v6009, 5
        %v6552 = vsel %vm1481, %v6550, %v6551
        %v6553 = vrot.slane %v6551, 4
        %v6554 = vrot.slane %v6031, 5
        %v6555 = vsel %vm1481, %v6553, %v6554
        %v6556 = vrot.slane %v6432, 5
        %v6557 = vrot.slane %v6556, 4
        %v6558 = vrot.slane %v6011, 5
        %v6559 = vsel %vm1481, %v6557, %v6558
        %v6560 = vrot.slane %v6558, 4
        %v6561 = vrot.slane %v6032, 5
        %v6562 = vsel %vm1481, %v6560, %v6561
        %v6563 = vrot.slane %v6433, 5
        %v6564 = vrot.slane %v6563, 4
        %v6565 = vrot.slane %v6013, 5
        %v6566 = vsel %vm1481, %v6564, %v6565
        %v6567 = vrot.slane %v6565, 4
        %v6568 = vrot.slane %v6033, 5
        %v6569 = vsel %vm1481, %v6567, %v6568
        %v6570 = vrot.slane %v6434, 5
        %v6571 = vrot.slane %v6570, 4
        %v6572 = vrot.slane %v6015, 5
        %v6573 = vsel %vm1481, %v6571, %v6572
        %v6574 = vrot.slane %v6572, 4
        %v6575 = vrot.slane %v6034, 5
        %v6576 = vsel %vm1481, %v6574, %v6575
        %v6577 = vrot.slane %v6435, 5
        %v6578 = vrot.slane %v6577, 4
        %v6579 = vrot.slane %v6017, 5
        %v6580 = vsel %vm1481, %v6578, %v6579
        %v6581 = vrot.slane %v6579, 4
        %v6582 = vrot.slane %v6035, 5
        %v6583 = vsel %vm1481, %v6581, %v6582
        %v6584 = vrot.slane %v6436, 5
        %v6585 = vrot.slane %v6584, 4
        %v6586 = vrot.slane %v6019, 5
        %v6587 = vsel %vm1481, %v6585, %v6586
        %v6588 = vrot.slane %v6586, 4
        %v6589 = vrot.slane %v6036, 5
        %v6590 = vsel %vm1481, %v6588, %v6589
        %v6591 = vrot.slane %v6437, 5
        %v6592 = vrot.slane %v6591, 4
        %v6593 = vrot.slane %v6021, 5
        %v6594 = vsel %vm1481, %v6592, %v6593
        %v6595 = vrot.slane %v6593, 4
        %v6596 = vrot.slane %v6037, 5
        %v6597 = vsel %vm1481, %v6595, %v6596
        %v6598 = vld [vmem:[%s2202] sm:$0xf]
        %v6599 = vld [vmem:[%s2202 + $0x4] sm:$0xf]
        %v6600 = vld [vmem:[%s2202 + $0xc] sm:$0xf]
        %v6601 = vld [vmem:[%s2202 + $0x10] sm:$0xf]
        %v6602 = vld [vmem:[%s2202 + $0x18] sm:$0xf]
        %v6603 = vld [vmem:[%s2202 + $0x1c] sm:$0xf]
        %v6604 = vld [vmem:[%s2202 + $0x24] sm:$0xf]
        %v6605 = vld [vmem:[%s2202 + $0x28] sm:$0xf]
        %v6606 = vld [vmem:[%s2202 + $0x30] sm:$0xf]
        %v6607 = vld [vmem:[%s2202 + $0x34] sm:$0xf]
        %v6608 = vld [vmem:[%s2202 + $0x3c] sm:$0xf]
        %v6609 = vld [vmem:[%s2202 + $0x40] sm:$0xf]
        %v6610 = vld [vmem:[%s2202 + $0x48] sm:$0xf]
        %v6611 = vld [vmem:[%s2202 + $0x4c] sm:$0xf]
        %v6612 = vld [vmem:[%s2202 + $0x54] sm:$0xf]
        %v6613 = vld [vmem:[%s2202 + $0x58] sm:$0xf]
        %v6614 = vld [vmem:[%s2202 + $0x60] sm:$0xf]
        %v6615 = vld [vmem:[%s2202 + $0x64] sm:$0xf]
        %v6616 = vld [vmem:[%s2202 + $0x6c] sm:$0xf]
        %v6617 = vld [vmem:[%s2202 + $0x70] sm:$0xf]
        %v6618 = vld [vmem:[%s2202 + $0x78] sm:$0xf]
        %v6619 = vld [vmem:[%s2202 + $0x7c] sm:$0xf]
        %v6620 = vld [vmem:[%s2202 + $0x84] sm:$0xf]
        %v6621 = vld [vmem:[%s2202 + $0x88] sm:$0xf]
        %v6622 = vld [vmem:[%s2202 + $0x90] sm:$0xf]
        %v6623 = vld [vmem:[%s2202 + $0x94] sm:$0xf]
        %v6624 = vld [vmem:[%s2202 + $0x9c] sm:$0xf]
        %v6625 = vld [vmem:[%s2202 + $0xa0] sm:$0xf]
        %v6626 = vld [vmem:[%s2202 + $0xa8] sm:$0xf]
        %v6627 = vld [vmem:[%s2202 + $0xac] sm:$0xf]
        %v6628 = vld [vmem:[%s2202 + $0xb4] sm:$0xf]
        %v6629 = vld [vmem:[%s2202 + $0xb8] sm:$0xf]
        %v6630 = vld [vmem:[%s2202 + $0x8] sm:$0x1]
        %v6631 = vld [vmem:[%s2202 + $0x14] sm:$0x1]
        %v6632 = vld [vmem:[%s2202 + $0x20] sm:$0x1]
        %v6633 = vld [vmem:[%s2202 + $0x2c] sm:$0x1]
        %v6634 = vld [vmem:[%s2202 + $0x38] sm:$0x1]
        %v6635 = vld [vmem:[%s2202 + $0x44] sm:$0x1]
        %v6636 = vld [vmem:[%s2202 + $0x50] sm:$0x1]
        %v6637 = vld [vmem:[%s2202 + $0x5c] sm:$0x1]
        %v6638 = vld [vmem:[%s2202 + $0x68] sm:$0x1]
        %v6639 = vld [vmem:[%s2202 + $0x74] sm:$0x1]
        %v6640 = vld [vmem:[%s2202 + $0x80] sm:$0x1]
        %v6641 = vld [vmem:[%s2202 + $0x8c] sm:$0x1]
        %v6642 = vld [vmem:[%s2202 + $0x98] sm:$0x1]
        %v6643 = vld [vmem:[%s2202 + $0xa4] sm:$0x1]
        %v6644 = vld [vmem:[%s2202 + $0xb0] sm:$0x1]
        %v6645 = vld [vmem:[%s2202 + $0xbc] sm:$0x1]
        %v6647 = vshrl.u32 %v6598, 16
        %v6649 = vrot.slane %v6647, 4
        %v6650 = vshll.u32 %v6598, 16
        %v6652 = vrot.slane %v6650, 5
        %v6653 = vor.u32 %v6649, %v6652
        %v6654 = vrot.slane %v6653, 4
        %v6656 = vshll.u32 %v6599, 16
        %v6658 = vrot.slane %v6656, 5
        %v6659 = vsel %vm1030, %v6654, %v6658
        %v6660 = vshrl.u32 %v6599, 16
        %v6662 = vrot.slane %v6660, 4
        %v6663 = vor.u32 %v6662, %v6658
        %v6664 = vrot.slane %v6663, 4
        %v6666 = vshll.u32 %v6630, 16
        %v6668 = vrot.slane %v6666, 5
        %v6669 = vsel %vm1030, %v6664, %v6668
        %v6671 = vshrl.u32 %v6600, 16
        %v6673 = vrot.slane %v6671, 4
        %v6674 = vshll.u32 %v6600, 16
        %v6676 = vrot.slane %v6674, 5
        %v6677 = vor.u32 %v6673, %v6676
        %v6678 = vrot.slane %v6677, 4
        %v6680 = vshll.u32 %v6601, 16
        %v6682 = vrot.slane %v6680, 5
        %v6683 = vsel %vm1030, %v6678, %v6682
        %v6684 = vshrl.u32 %v6601, 16
        %v6686 = vrot.slane %v6684, 4
        %v6687 = vor.u32 %v6686, %v6682
        %v6688 = vrot.slane %v6687, 4
        %v6690 = vshll.u32 %v6631, 16
        %v6692 = vrot.slane %v6690, 5
        %v6693 = vsel %vm1030, %v6688, %v6692
        %v6695 = vshrl.u32 %v6602, 16
        %v6697 = vrot.slane %v6695, 4
        %v6698 = vshll.u32 %v6602, 16
        %v6700 = vrot.slane %v6698, 5
        %v6701 = vor.u32 %v6697, %v6700
        %v6702 = vrot.slane %v6701, 4
        %v6704 = vshll.u32 %v6603, 16
        %v6706 = vrot.slane %v6704, 5
        %v6707 = vsel %vm1030, %v6702, %v6706
        %v6708 = vshrl.u32 %v6603, 16
        %v6710 = vrot.slane %v6708, 4
        %v6711 = vor.u32 %v6710, %v6706
        %v6712 = vrot.slane %v6711, 4
        %v6714 = vshll.u32 %v6632, 16
        %v6716 = vrot.slane %v6714, 5
        %v6717 = vsel %vm1030, %v6712, %v6716
        %v6719 = vshrl.u32 %v6604, 16
        %v6721 = vrot.slane %v6719, 4
        %v6722 = vshll.u32 %v6604, 16
        %v6724 = vrot.slane %v6722, 5
        %v6725 = vor.u32 %v6721, %v6724
        %v6726 = vrot.slane %v6725, 4
        %v6728 = vshll.u32 %v6605, 16
        %v6730 = vrot.slane %v6728, 5
        %v6731 = vsel %vm1030, %v6726, %v6730
        %v6732 = vshrl.u32 %v6605, 16
        %v6734 = vrot.slane %v6732, 4
        %v6735 = vor.u32 %v6734, %v6730
        %v6736 = vrot.slane %v6735, 4
        %v6738 = vshll.u32 %v6633, 16
        %v6740 = vrot.slane %v6738, 5
        %v6741 = vsel %vm1030, %v6736, %v6740
        %v6743 = vshrl.u32 %v6606, 16
        %v6745 = vrot.slane %v6743, 4
        %v6746 = vshll.u32 %v6606, 16
        %v6748 = vrot.slane %v6746, 5
        %v6749 = vor.u32 %v6745, %v6748
        %v6750 = vrot.slane %v6749, 4
        %v6752 = vshll.u32 %v6607, 16
        %v6754 = vrot.slane %v6752, 5
        %v6755 = vsel %vm1030, %v6750, %v6754
        %v6756 = vshrl.u32 %v6607, 16
        %v6758 = vrot.slane %v6756, 4
        %v6759 = vor.u32 %v6758, %v6754
        %v6760 = vrot.slane %v6759, 4
        %v6762 = vshll.u32 %v6634, 16
        %v6764 = vrot.slane %v6762, 5
        %v6765 = vsel %vm1030, %v6760, %v6764
        %v6767 = vshrl.u32 %v6608, 16
        %v6769 = vrot.slane %v6767, 4
        %v6770 = vshll.u32 %v6608, 16
        %v6772 = vrot.slane %v6770, 5
        %v6773 = vor.u32 %v6769, %v6772
        %v6774 = vrot.slane %v6773, 4
        %v6776 = vshll.u32 %v6609, 16
        %v6778 = vrot.slane %v6776, 5
        %v6779 = vsel %vm1030, %v6774, %v6778
        %v6780 = vshrl.u32 %v6609, 16
        %v6782 = vrot.slane %v6780, 4
        %v6783 = vor.u32 %v6782, %v6778
        %v6784 = vrot.slane %v6783, 4
        %v6786 = vshll.u32 %v6635, 16
        %v6788 = vrot.slane %v6786, 5
        %v6789 = vsel %vm1030, %v6784, %v6788
        %v6791 = vshrl.u32 %v6610, 16
        %v6793 = vrot.slane %v6791, 4
        %v6794 = vshll.u32 %v6610, 16
        %v6796 = vrot.slane %v6794, 5
        %v6797 = vor.u32 %v6793, %v6796
        %v6798 = vrot.slane %v6797, 4
        %v6800 = vshll.u32 %v6611, 16
        %v6802 = vrot.slane %v6800, 5
        %v6803 = vsel %vm1030, %v6798, %v6802
        %v6804 = vshrl.u32 %v6611, 16
        %v6806 = vrot.slane %v6804, 4
        %v6807 = vor.u32 %v6806, %v6802
        %v6808 = vrot.slane %v6807, 4
        %v6810 = vshll.u32 %v6636, 16
        %v6812 = vrot.slane %v6810, 5
        %v6813 = vsel %vm1030, %v6808, %v6812
        %v6815 = vshrl.u32 %v6612, 16
        %v6817 = vrot.slane %v6815, 4
        %v6818 = vshll.u32 %v6612, 16
        %v6820 = vrot.slane %v6818, 5
        %v6821 = vor.u32 %v6817, %v6820
        %v6822 = vrot.slane %v6821, 4
        %v6824 = vshll.u32 %v6613, 16
        %v6826 = vrot.slane %v6824, 5
        %v6827 = vsel %vm1030, %v6822, %v6826
        %v6828 = vshrl.u32 %v6613, 16
        %v6830 = vrot.slane %v6828, 4
        %v6831 = vor.u32 %v6830, %v6826
        %v6832 = vrot.slane %v6831, 4
        %v6834 = vshll.u32 %v6637, 16
        %v6836 = vrot.slane %v6834, 5
        %v6837 = vsel %vm1030, %v6832, %v6836
        %v6839 = vshrl.u32 %v6614, 16
        %v6841 = vrot.slane %v6839, 4
        %v6842 = vshll.u32 %v6614, 16
        %v6844 = vrot.slane %v6842, 5
        %v6845 = vor.u32 %v6841, %v6844
        %v6846 = vrot.slane %v6845, 4
        %v6848 = vshll.u32 %v6615, 16
        %v6850 = vrot.slane %v6848, 5
        %v6851 = vsel %vm1030, %v6846, %v6850
        %v6852 = vshrl.u32 %v6615, 16
        %v6854 = vrot.slane %v6852, 4
        %v6855 = vor.u32 %v6854, %v6850
        %v6856 = vrot.slane %v6855, 4
        %v6858 = vshll.u32 %v6638, 16
        %v6860 = vrot.slane %v6858, 5
        %v6861 = vsel %vm1030, %v6856, %v6860
        %v6863 = vshrl.u32 %v6616, 16
        %v6865 = vrot.slane %v6863, 4
        %v6866 = vshll.u32 %v6616, 16
        %v6868 = vrot.slane %v6866, 5
        %v6869 = vor.u32 %v6865, %v6868
        %v6870 = vrot.slane %v6869, 4
        %v6872 = vshll.u32 %v6617, 16
        %v6874 = vrot.slane %v6872, 5
        %v6875 = vsel %vm1030, %v6870, %v6874
        %v6876 = vshrl.u32 %v6617, 16
        %v6878 = vrot.slane %v6876, 4
        %v6879 = vor.u32 %v6878, %v6874
        %v6880 = vrot.slane %v6879, 4
        %v6882 = vshll.u32 %v6639, 16
        %v6884 = vrot.slane %v6882, 5
        %v6885 = vsel %vm1030, %v6880, %v6884
        %v6887 = vshrl.u32 %v6618, 16
        %v6889 = vrot.slane %v6887, 4
        %v6890 = vshll.u32 %v6618, 16
        %v6892 = vrot.slane %v6890, 5
        %v6893 = vor.u32 %v6889, %v6892
        %v6894 = vrot.slane %v6893, 4
        %v6896 = vshll.u32 %v6619, 16
        %v6898 = vrot.slane %v6896, 5
        %v6899 = vsel %vm1030, %v6894, %v6898
        %v6900 = vshrl.u32 %v6619, 16
        %v6902 = vrot.slane %v6900, 4
        %v6903 = vor.u32 %v6902, %v6898
        %v6904 = vrot.slane %v6903, 4
        %v6906 = vshll.u32 %v6640, 16
        %v6908 = vrot.slane %v6906, 5
        %v6909 = vsel %vm1030, %v6904, %v6908
        %v6911 = vshrl.u32 %v6620, 16
        %v6913 = vrot.slane %v6911, 4
        %v6914 = vshll.u32 %v6620, 16
        %v6916 = vrot.slane %v6914, 5
        %v6917 = vor.u32 %v6913, %v6916
        %v6918 = vrot.slane %v6917, 4
        %v6920 = vshll.u32 %v6621, 16
        %v6922 = vrot.slane %v6920, 5
        %v6923 = vsel %vm1030, %v6918, %v6922
        %v6924 = vshrl.u32 %v6621, 16
        %v6926 = vrot.slane %v6924, 4
        %v6927 = vor.u32 %v6926, %v6922
        %v6928 = vrot.slane %v6927, 4
        %v6930 = vshll.u32 %v6641, 16
        %v6932 = vrot.slane %v6930, 5
        %v6933 = vsel %vm1030, %v6928, %v6932
        %v6935 = vshrl.u32 %v6622, 16
        %v6937 = vrot.slane %v6935, 4
        %v6938 = vshll.u32 %v6622, 16
        %v6940 = vrot.slane %v6938, 5
        %v6941 = vor.u32 %v6937, %v6940
        %v6942 = vrot.slane %v6941, 4
        %v6944 = vshll.u32 %v6623, 16
        %v6946 = vrot.slane %v6944, 5
        %v6947 = vsel %vm1030, %v6942, %v6946
        %v6948 = vshrl.u32 %v6623, 16
        %v6950 = vrot.slane %v6948, 4
        %v6951 = vor.u32 %v6950, %v6946
        %v6952 = vrot.slane %v6951, 4
        %v6954 = vshll.u32 %v6642, 16
        %v6956 = vrot.slane %v6954, 5
        %v6957 = vsel %vm1030, %v6952, %v6956
        %v6959 = vshrl.u32 %v6624, 16
        %v6961 = vrot.slane %v6959, 4
        %v6962 = vshll.u32 %v6624, 16
        %v6964 = vrot.slane %v6962, 5
        %v6965 = vor.u32 %v6961, %v6964
        %v6966 = vrot.slane %v6965, 4
        %v6968 = vshll.u32 %v6625, 16
        %v6970 = vrot.slane %v6968, 5
        %v6971 = vsel %vm1030, %v6966, %v6970
        %v6972 = vshrl.u32 %v6625, 16
        %v6974 = vrot.slane %v6972, 4
        %v6975 = vor.u32 %v6974, %v6970
        %v6976 = vrot.slane %v6975, 4
        %v6978 = vshll.u32 %v6643, 16
        %v6980 = vrot.slane %v6978, 5
        %v6981 = vsel %vm1030, %v6976, %v6980
        %v6983 = vshrl.u32 %v6626, 16
        %v6985 = vrot.slane %v6983, 4
        %v6986 = vshll.u32 %v6626, 16
        %v6988 = vrot.slane %v6986, 5
        %v6989 = vor.u32 %v6985, %v6988
        %v6990 = vrot.slane %v6989, 4
        %v6992 = vshll.u32 %v6627, 16
        %v6994 = vrot.slane %v6992, 5
        %v6995 = vsel %vm1030, %v6990, %v6994
        %v6996 = vshrl.u32 %v6627, 16
        %v6998 = vrot.slane %v6996, 4
        %v6999 = vor.u32 %v6998, %v6994
        %v7000 = vrot.slane %v6999, 4
        %v7002 = vshll.u32 %v6644, 16
        %v7004 = vrot.slane %v7002, 5
        %v7005 = vsel %vm1030, %v7000, %v7004
        %v7007 = vshrl.u32 %v6628, 16
        %v7009 = vrot.slane %v7007, 4
        %v7010 = vshll.u32 %v6628, 16
        %v7012 = vrot.slane %v7010, 5
        %v7013 = vor.u32 %v7009, %v7012
        %v7014 = vrot.slane %v7013, 4
        %v7016 = vshll.u32 %v6629, 16
        %v7018 = vrot.slane %v7016, 5
        %v7019 = vsel %vm1030, %v7014, %v7018
        %v7020 = vshrl.u32 %v6629, 16
        %v7022 = vrot.slane %v7020, 4
        %v7023 = vor.u32 %v7022, %v7018
        %v7024 = vrot.slane %v7023, 4
        %v7026 = vshll.u32 %v6645, 16
        %v7028 = vrot.slane %v7026, 5
        %v7029 = vsel %vm1030, %v7024, %v7028
        %v7030 = vld [vmem:[%s2202] sm:$0xe]
        %v7031 = vld [vmem:[%s2202 + $0xc] sm:$0xe]
        %v7032 = vld [vmem:[%s2202 + $0x18] sm:$0xe]
        %v7033 = vld [vmem:[%s2202 + $0x24] sm:$0xe]
        %v7034 = vld [vmem:[%s2202 + $0x30] sm:$0xe]
        %v7035 = vld [vmem:[%s2202 + $0x3c] sm:$0xe]
        %v7036 = vld [vmem:[%s2202 + $0x48] sm:$0xe]
        %v7037 = vld [vmem:[%s2202 + $0x54] sm:$0xe]
        %v7038 = vld [vmem:[%s2202 + $0x60] sm:$0xe]
        %v7039 = vld [vmem:[%s2202 + $0x6c] sm:$0xe]
        %v7040 = vld [vmem:[%s2202 + $0x78] sm:$0xe]
        %v7041 = vld [vmem:[%s2202 + $0x84] sm:$0xe]
        %v7042 = vld [vmem:[%s2202 + $0x90] sm:$0xe]
        %v7043 = vld [vmem:[%s2202 + $0x9c] sm:$0xe]
        %v7044 = vld [vmem:[%s2202 + $0xa8] sm:$0xe]
        %v7045 = vld [vmem:[%s2202 + $0xb4] sm:$0xe]
        %v7094 = vrot.slane %v7030, 5
        %v7095 = vrot.slane %v7094, 4
        %v7096 = vrot.slane %v6599, 5
        %v7097 = vsel %vm1481, %v7095, %v7096
        %v7098 = vrot.slane %v7096, 4
        %v7099 = vrot.slane %v6630, 5
        %v7100 = vsel %vm1481, %v7098, %v7099
        %v7101 = vrot.slane %v7031, 5
        %v7102 = vrot.slane %v7101, 4
        %v7103 = vrot.slane %v6601, 5
        %v7104 = vsel %vm1481, %v7102, %v7103
        %v7105 = vrot.slane %v7103, 4
        %v7106 = vrot.slane %v6631, 5
        %v7107 = vsel %vm1481, %v7105, %v7106
        %v7108 = vrot.slane %v7032, 5
        %v7109 = vrot.slane %v7108, 4
        %v7110 = vrot.slane %v6603, 5
        %v7111 = vsel %vm1481, %v7109, %v7110
        %v7112 = vrot.slane %v7110, 4
        %v7113 = vrot.slane %v6632, 5
        %v7114 = vsel %vm1481, %v7112, %v7113
        %v7115 = vrot.slane %v7033, 5
        %v7116 = vrot.slane %v7115, 4
        %v7117 = vrot.slane %v6605, 5
        %v7118 = vsel %vm1481, %v7116, %v7117
        %v7119 = vrot.slane %v7117, 4
        %v7120 = vrot.slane %v6633, 5
        %v7121 = vsel %vm1481, %v7119, %v7120
        %v7122 = vrot.slane %v7034, 5
        %v7123 = vrot.slane %v7122, 4
        %v7124 = vrot.slane %v6607, 5
        %v7125 = vsel %vm1481, %v7123, %v7124
        %v7126 = vrot.slane %v7124, 4
        %v7127 = vrot.slane %v6634, 5
        %v7128 = vsel %vm1481, %v7126, %v7127
        %v7129 = vrot.slane %v7035, 5
        %v7130 = vrot.slane %v7129, 4
        %v7131 = vrot.slane %v6609, 5
        %v7132 = vsel %vm1481, %v7130, %v7131
        %v7133 = vrot.slane %v7131, 4
        %v7134 = vrot.slane %v6635, 5
        %v7135 = vsel %vm1481, %v7133, %v7134
        %v7136 = vrot.slane %v7036, 5
        %v7137 = vrot.slane %v7136, 4
        %v7138 = vrot.slane %v6611, 5
        %v7139 = vsel %vm1481, %v7137, %v7138
        %v7140 = vrot.slane %v7138, 4
        %v7141 = vrot.slane %v6636, 5
        %v7142 = vsel %vm1481, %v7140, %v7141
        %v7143 = vrot.slane %v7037, 5
        %v7144 = vrot.slane %v7143, 4
        %v7145 = vrot.slane %v6613, 5
        %v7146 = vsel %vm1481, %v7144, %v7145
        %v7147 = vrot.slane %v7145, 4
        %v7148 = vrot.slane %v6637, 5
        %v7149 = vsel %vm1481, %v7147, %v7148
        %v7150 = vrot.slane %v7038, 5
        %v7151 = vrot.slane %v7150, 4
        %v7152 = vrot.slane %v6615, 5
        %v7153 = vsel %vm1481, %v7151, %v7152
        %v7154 = vrot.slane %v7152, 4
        %v7155 = vrot.slane %v6638, 5
        %v7156 = vsel %vm1481, %v7154, %v7155
        %v7157 = vrot.slane %v7039, 5
        %v7158 = vrot.slane %v7157, 4
        %v7159 = vrot.slane %v6617, 5
        %v7160 = vsel %vm1481, %v7158, %v7159
        %v7161 = vrot.slane %v7159, 4
        %v7162 = vrot.slane %v6639, 5
        %v7163 = vsel %vm1481, %v7161, %v7162
        %v7164 = vrot.slane %v7040, 5
        %v7165 = vrot.slane %v7164, 4
        %v7166 = vrot.slane %v6619, 5
        %v7167 = vsel %vm1481, %v7165, %v7166
        %v7168 = vrot.slane %v7166, 4
        %v7169 = vrot.slane %v6640, 5
        %v7170 = vsel %vm1481, %v7168, %v7169
        %v7171 = vrot.slane %v7041, 5
        %v7172 = vrot.slane %v7171, 4
        %v7173 = vrot.slane %v6621, 5
        %v7174 = vsel %vm1481, %v7172, %v7173
        %v7175 = vrot.slane %v7173, 4
        %v7176 = vrot.slane %v6641, 5
        %v7177 = vsel %vm1481, %v7175, %v7176
        %v7178 = vrot.slane %v7042, 5
        %v7179 = vrot.slane %v7178, 4
        %v7180 = vrot.slane %v6623, 5
        %v7181 = vsel %vm1481, %v7179, %v7180
        %v7182 = vrot.slane %v7180, 4
        %v7183 = vrot.slane %v6642, 5
        %v7184 = vsel %vm1481, %v7182, %v7183
        %v7185 = vrot.slane %v7043, 5
        %v7186 = vrot.slane %v7185, 4
        %v7187 = vrot.slane %v6625, 5
        %v7188 = vsel %vm1481, %v7186, %v7187
        %v7189 = vrot.slane %v7187, 4
        %v7190 = vrot.slane %v6643, 5
        %v7191 = vsel %vm1481, %v7189, %v7190
        %v7192 = vrot.slane %v7044, 5
        %v7193 = vrot.slane %v7192, 4
        %v7194 = vrot.slane %v6627, 5
        %v7195 = vsel %vm1481, %v7193, %v7194
        %v7196 = vrot.slane %v7194, 4
        %v7197 = vrot.slane %v6644, 5
        %v7198 = vsel %vm1481, %v7196, %v7197
        %v7199 = vrot.slane %v7045, 5
        %v7200 = vrot.slane %v7199, 4
        %v7201 = vrot.slane %v6629, 5
        %v7202 = vsel %vm1481, %v7200, %v7201
        %v7203 = vrot.slane %v7201, 4
        %v7204 = vrot.slane %v6645, 5
        %v7205 = vsel %vm1481, %v7203, %v7204
        %v7222 = vunpack.c.l.b16 %v5382
        %v7223 = vunpack.c.l.b16 %v5383
        %v7224 = vunpack.c.l.b16 %v5384
        %v7225 = vunpack.c.l.b16 %v5385
        %v7226 = vunpack.c.l.b16 %v5386
        %v7227 = vunpack.c.l.b16 %v5387
        %v7228 = vunpack.c.l.b16 %v5388
        %v7229 = vunpack.c.l.b16 %v5389
        %v7230 = vunpack.c.l.b16 %v5390
        %v7231 = vunpack.c.l.b16 %v5391
        %v7232 = vunpack.c.l.b16 %v5392
        %v7233 = vunpack.c.l.b16 %v5393
        %v7234 = vunpack.c.l.b16 %v5394
        %v7235 = vunpack.c.l.b16 %v5395
        %v7236 = vunpack.c.l.b16 %v5396
        %v7237 = vunpack.c.l.b16 %v5397
        %v7238 = vunpack.c.l.b16 %v5398
        %v7239 = vunpack.c.l.b16 %v5399
        %v7240 = vunpack.c.l.b16 %v5400
        %v7241 = vunpack.c.l.b16 %v5401
        %v7242 = vunpack.c.l.b16 %v5402
        %v7243 = vunpack.c.l.b16 %v5403
        %v7244 = vunpack.c.l.b16 %v5404
        %v7245 = vunpack.c.l.b16 %v5405
        %v7246 = vunpack.c.l.b16 %v5406
        %v7247 = vunpack.c.l.b16 %v5407
        %v7248 = vunpack.c.l.b16 %v5408
        %v7249 = vunpack.c.l.b16 %v5409
        %v7250 = vunpack.c.l.b16 %v5410
        %v7251 = vunpack.c.l.b16 %v5411
        %v7252 = vunpack.c.l.b16 %v5412
        %v7253 = vunpack.c.l.b16 %v5413
        %v7254 = vpack.c.b16 %v7223, %v7222
        %v7255 = vpack.c.b16 %v7225, %v7224
        %v7256 = vpack.c.b16 %v7227, %v7226
        %v7257 = vpack.c.b16 %v7229, %v7228
        %v7258 = vpack.c.b16 %v7231, %v7230
        %v7259 = vpack.c.b16 %v7233, %v7232
        %v7260 = vpack.c.b16 %v7235, %v7234
        %v7261 = vpack.c.b16 %v7237, %v7236
        %v7262 = vpack.c.b16 %v7239, %v7238
        %v7263 = vpack.c.b16 %v7241, %v7240
        %v7264 = vpack.c.b16 %v7243, %v7242
        %v7265 = vpack.c.b16 %v7245, %v7244
        %v7266 = vpack.c.b16 %v7247, %v7246
        %v7267 = vpack.c.b16 %v7249, %v7248
        %v7268 = vpack.c.b16 %v7251, %v7250
        %v7269 = vpack.c.b16 %v7253, %v7252
        %v7286 = vunpack.c.l.b16 %v5443
        %v7287 = vunpack.c.l.b16 %v5453
        %v7288 = vunpack.c.l.b16 %v5467
        %v7289 = vunpack.c.l.b16 %v5477
        %v7290 = vunpack.c.l.b16 %v5491
        %v7291 = vunpack.c.l.b16 %v5501
        %v7292 = vunpack.c.l.b16 %v5515
        %v7293 = vunpack.c.l.b16 %v5525
        %v7294 = vunpack.c.l.b16 %v5539
        %v7295 = vunpack.c.l.b16 %v5549
        %v7296 = vunpack.c.l.b16 %v5563
        %v7297 = vunpack.c.l.b16 %v5573
        %v7298 = vunpack.c.l.b16 %v5587
        %v7299 = vunpack.c.l.b16 %v5597
        %v7300 = vunpack.c.l.b16 %v5611
        %v7301 = vunpack.c.l.b16 %v5621
        %v7302 = vunpack.c.l.b16 %v5635
        %v7303 = vunpack.c.l.b16 %v5645
        %v7304 = vunpack.c.l.b16 %v5659
        %v7305 = vunpack.c.l.b16 %v5669
        %v7306 = vunpack.c.l.b16 %v5683
        %v7307 = vunpack.c.l.b16 %v5693
        %v7308 = vunpack.c.l.b16 %v5707
        %v7309 = vunpack.c.l.b16 %v5717
        %v7310 = vunpack.c.l.b16 %v5731
        %v7311 = vunpack.c.l.b16 %v5741
        %v7312 = vunpack.c.l.b16 %v5755
        %v7313 = vunpack.c.l.b16 %v5765
        %v7314 = vunpack.c.l.b16 %v5779
        %v7315 = vunpack.c.l.b16 %v5789
        %v7316 = vunpack.c.l.b16 %v5803
        %v7317 = vunpack.c.l.b16 %v5813
        %v7318 = vpack.c.b16 %v7287, %v7286
        %v7319 = vpack.c.b16 %v7289, %v7288
        %v7320 = vpack.c.b16 %v7291, %v7290
        %v7321 = vpack.c.b16 %v7293, %v7292
        %v7322 = vpack.c.b16 %v7295, %v7294
        %v7323 = vpack.c.b16 %v7297, %v7296
        %v7324 = vpack.c.b16 %v7299, %v7298
        %v7325 = vpack.c.b16 %v7301, %v7300
        %v7326 = vpack.c.b16 %v7303, %v7302
        %v7327 = vpack.c.b16 %v7305, %v7304
        %v7328 = vpack.c.b16 %v7307, %v7306
        %v7329 = vpack.c.b16 %v7309, %v7308
        %v7330 = vpack.c.b16 %v7311, %v7310
        %v7331 = vpack.c.b16 %v7313, %v7312
        %v7332 = vpack.c.b16 %v7315, %v7314
        %v7333 = vpack.c.b16 %v7317, %v7316
        %v7350 = vunpack.c.l.b16 %v5881
        %v7351 = vunpack.c.l.b16 %v5884
        %v7352 = vunpack.c.l.b16 %v5888
        %v7353 = vunpack.c.l.b16 %v5891
        %v7354 = vunpack.c.l.b16 %v5895
        %v7355 = vunpack.c.l.b16 %v5898
        %v7356 = vunpack.c.l.b16 %v5902
        %v7357 = vunpack.c.l.b16 %v5905
        %v7358 = vunpack.c.l.b16 %v5909
        %v7359 = vunpack.c.l.b16 %v5912
        %v7360 = vunpack.c.l.b16 %v5916
        %v7361 = vunpack.c.l.b16 %v5919
        %v7362 = vunpack.c.l.b16 %v5923
        %v7363 = vunpack.c.l.b16 %v5926
        %v7364 = vunpack.c.l.b16 %v5930
        %v7365 = vunpack.c.l.b16 %v5933
        %v7366 = vunpack.c.l.b16 %v5937
        %v7367 = vunpack.c.l.b16 %v5940
        %v7368 = vunpack.c.l.b16 %v5944
        %v7369 = vunpack.c.l.b16 %v5947
        %v7370 = vunpack.c.l.b16 %v5951
        %v7371 = vunpack.c.l.b16 %v5954
        %v7372 = vunpack.c.l.b16 %v5958
        %v7373 = vunpack.c.l.b16 %v5961
        %v7374 = vunpack.c.l.b16 %v5965
        %v7375 = vunpack.c.l.b16 %v5968
        %v7376 = vunpack.c.l.b16 %v5972
        %v7377 = vunpack.c.l.b16 %v5975
        %v7378 = vunpack.c.l.b16 %v5979
        %v7379 = vunpack.c.l.b16 %v5982
        %v7380 = vunpack.c.l.b16 %v5986
        %v7381 = vunpack.c.l.b16 %v5989
        %v7382 = vpack.c.b16 %v7351, %v7350
        %v7383 = vpack.c.b16 %v7353, %v7352
        %v7384 = vpack.c.b16 %v7355, %v7354
        %v7385 = vpack.c.b16 %v7357, %v7356
        %v7386 = vpack.c.b16 %v7359, %v7358
        %v7387 = vpack.c.b16 %v7361, %v7360
        %v7388 = vpack.c.b16 %v7363, %v7362
        %v7389 = vpack.c.b16 %v7365, %v7364
        %v7390 = vpack.c.b16 %v7367, %v7366
        %v7391 = vpack.c.b16 %v7369, %v7368
        %v7392 = vpack.c.b16 %v7371, %v7370
        %v7393 = vpack.c.b16 %v7373, %v7372
        %v7394 = vpack.c.b16 %v7375, %v7374
        %v7395 = vpack.c.b16 %v7377, %v7376
        %v7396 = vpack.c.b16 %v7379, %v7378
        %v7397 = vpack.c.b16 %v7381, %v7380
        %v7430 = vunpack.c.l.b16 %v5990
        %v7431 = vunpack.c.l.b16 %v5991
        %v7432 = vunpack.c.l.b16 %v5992
        %v7433 = vunpack.c.l.b16 %v5993
        %v7434 = vunpack.c.l.b16 %v5994
        %v7435 = vunpack.c.l.b16 %v5995
        %v7436 = vunpack.c.l.b16 %v5996
        %v7437 = vunpack.c.l.b16 %v5997
        %v7438 = vunpack.c.l.b16 %v5998
        %v7439 = vunpack.c.l.b16 %v5999
        %v7440 = vunpack.c.l.b16 %v6000
        %v7441 = vunpack.c.l.b16 %v6001
        %v7442 = vunpack.c.l.b16 %v6002
        %v7443 = vunpack.c.l.b16 %v6003
        %v7444 = vunpack.c.l.b16 %v6004
        %v7445 = vunpack.c.l.b16 %v6005
        %v7446 = vunpack.c.l.b16 %v6006
        %v7447 = vunpack.c.l.b16 %v6007
        %v7448 = vunpack.c.l.b16 %v6008
        %v7449 = vunpack.c.l.b16 %v6009
        %v7450 = vunpack.c.l.b16 %v6010
        %v7451 = vunpack.c.l.b16 %v6011
        %v7452 = vunpack.c.l.b16 %v6012
        %v7453 = vunpack.c.l.b16 %v6013
        %v7454 = vunpack.c.l.b16 %v6014
        %v7455 = vunpack.c.l.b16 %v6015
        %v7456 = vunpack.c.l.b16 %v6016
        %v7457 = vunpack.c.l.b16 %v6017
        %v7458 = vunpack.c.l.b16 %v6018
        %v7459 = vunpack.c.l.b16 %v6019
        %v7460 = vunpack.c.l.b16 %v6020
        %v7461 = vunpack.c.l.b16 %v6021
        %v7462 = vpack.c.b16 %v7431, %v7430
        %v7463 = vpack.c.b16 %v7433, %v7432
        %v7464 = vpack.c.b16 %v7435, %v7434
        %v7465 = vpack.c.b16 %v7437, %v7436
        %v7466 = vpack.c.b16 %v7439, %v7438
        %v7467 = vpack.c.b16 %v7441, %v7440
        %v7468 = vpack.c.b16 %v7443, %v7442
        %v7469 = vpack.c.b16 %v7445, %v7444
        %v7470 = vpack.c.b16 %v7447, %v7446
        %v7471 = vpack.c.b16 %v7449, %v7448
        %v7472 = vpack.c.b16 %v7451, %v7450
        %v7473 = vpack.c.b16 %v7453, %v7452
        %v7474 = vpack.c.b16 %v7455, %v7454
        %v7475 = vpack.c.b16 %v7457, %v7456
        %v7476 = vpack.c.b16 %v7459, %v7458
        %v7477 = vpack.c.b16 %v7461, %v7460
        %v7494 = vunpack.c.l.b16 %v6051
        %v7495 = vunpack.c.l.b16 %v6061
        %v7496 = vunpack.c.l.b16 %v6075
        %v7497 = vunpack.c.l.b16 %v6085
        %v7498 = vunpack.c.l.b16 %v6099
        %v7499 = vunpack.c.l.b16 %v6109
        %v7500 = vunpack.c.l.b16 %v6123
        %v7501 = vunpack.c.l.b16 %v6133
        %v7502 = vunpack.c.l.b16 %v6147
        %v7503 = vunpack.c.l.b16 %v6157
        %v7504 = vunpack.c.l.b16 %v6171
        %v7505 = vunpack.c.l.b16 %v6181
        %v7506 = vunpack.c.l.b16 %v6195
        %v7507 = vunpack.c.l.b16 %v6205
        %v7508 = vunpack.c.l.b16 %v6219
        %v7509 = vunpack.c.l.b16 %v6229
        %v7510 = vunpack.c.l.b16 %v6243
        %v7511 = vunpack.c.l.b16 %v6253
        %v7512 = vunpack.c.l.b16 %v6267
        %v7513 = vunpack.c.l.b16 %v6277
        %v7514 = vunpack.c.l.b16 %v6291
        %v7515 = vunpack.c.l.b16 %v6301
        %v7516 = vunpack.c.l.b16 %v6315
        %v7517 = vunpack.c.l.b16 %v6325
        %v7518 = vunpack.c.l.b16 %v6339
        %v7519 = vunpack.c.l.b16 %v6349
        %v7520 = vunpack.c.l.b16 %v6363
        %v7521 = vunpack.c.l.b16 %v6373
        %v7522 = vunpack.c.l.b16 %v6387
        %v7523 = vunpack.c.l.b16 %v6397
        %v7524 = vunpack.c.l.b16 %v6411
        %v7525 = vunpack.c.l.b16 %v6421
        %v7526 = vpack.c.b16 %v7495, %v7494
        %v7527 = vpack.c.b16 %v7497, %v7496
        %v7528 = vpack.c.b16 %v7499, %v7498
        %v7529 = vpack.c.b16 %v7501, %v7500
        %v7530 = vpack.c.b16 %v7503, %v7502
        %v7531 = vpack.c.b16 %v7505, %v7504
        %v7532 = vpack.c.b16 %v7507, %v7506
        %v7533 = vpack.c.b16 %v7509, %v7508
        %v7534 = vpack.c.b16 %v7511, %v7510
        %v7535 = vpack.c.b16 %v7513, %v7512
        %v7536 = vpack.c.b16 %v7515, %v7514
        %v7537 = vpack.c.b16 %v7517, %v7516
        %v7538 = vpack.c.b16 %v7519, %v7518
        %v7539 = vpack.c.b16 %v7521, %v7520
        %v7540 = vpack.c.b16 %v7523, %v7522
        %v7541 = vpack.c.b16 %v7525, %v7524
        %v7558 = vunpack.c.l.b16 %v6489
        %v7559 = vunpack.c.l.b16 %v6492
        %v7560 = vunpack.c.l.b16 %v6496
        %v7561 = vunpack.c.l.b16 %v6499
        %v7562 = vunpack.c.l.b16 %v6503
        %v7563 = vunpack.c.l.b16 %v6506
        %v7564 = vunpack.c.l.b16 %v6510
        %v7565 = vunpack.c.l.b16 %v6513
        %v7566 = vunpack.c.l.b16 %v6517
        %v7567 = vunpack.c.l.b16 %v6520
        %v7568 = vunpack.c.l.b16 %v6524
        %v7569 = vunpack.c.l.b16 %v6527
        %v7570 = vunpack.c.l.b16 %v6531
        %v7571 = vunpack.c.l.b16 %v6534
        %v7572 = vunpack.c.l.b16 %v6538
        %v7573 = vunpack.c.l.b16 %v6541
        %v7574 = vunpack.c.l.b16 %v6545
        %v7575 = vunpack.c.l.b16 %v6548
        %v7576 = vunpack.c.l.b16 %v6552
        %v7577 = vunpack.c.l.b16 %v6555
        %v7578 = vunpack.c.l.b16 %v6559
        %v7579 = vunpack.c.l.b16 %v6562
        %v7580 = vunpack.c.l.b16 %v6566
        %v7581 = vunpack.c.l.b16 %v6569
        %v7582 = vunpack.c.l.b16 %v6573
        %v7583 = vunpack.c.l.b16 %v6576
        %v7584 = vunpack.c.l.b16 %v6580
        %v7585 = vunpack.c.l.b16 %v6583
        %v7586 = vunpack.c.l.b16 %v6587
        %v7587 = vunpack.c.l.b16 %v6590
        %v7588 = vunpack.c.l.b16 %v6594
        %v7589 = vunpack.c.l.b16 %v6597
        %v7590 = vpack.c.b16 %v7559, %v7558
        %v7591 = vpack.c.b16 %v7561, %v7560
        %v7592 = vpack.c.b16 %v7563, %v7562
        %v7593 = vpack.c.b16 %v7565, %v7564
        %v7594 = vpack.c.b16 %v7567, %v7566
        %v7595 = vpack.c.b16 %v7569, %v7568
        %v7596 = vpack.c.b16 %v7571, %v7570
        %v7597 = vpack.c.b16 %v7573, %v7572
        %v7598 = vpack.c.b16 %v7575, %v7574
        %v7599 = vpack.c.b16 %v7577, %v7576
        %v7600 = vpack.c.b16 %v7579, %v7578
        %v7601 = vpack.c.b16 %v7581, %v7580
        %v7602 = vpack.c.b16 %v7583, %v7582
        %v7603 = vpack.c.b16 %v7585, %v7584
        %v7604 = vpack.c.b16 %v7587, %v7586
        %v7605 = vpack.c.b16 %v7589, %v7588
        %v7638 = vunpack.c.l.b16 %v6598
        %v7639 = vunpack.c.l.b16 %v6599
        %v7640 = vunpack.c.l.b16 %v6600
        %v7641 = vunpack.c.l.b16 %v6601
        %v7642 = vunpack.c.l.b16 %v6602
        %v7643 = vunpack.c.l.b16 %v6603
        %v7644 = vunpack.c.l.b16 %v6604
        %v7645 = vunpack.c.l.b16 %v6605
        %v7646 = vunpack.c.l.b16 %v6606
        %v7647 = vunpack.c.l.b16 %v6607
        %v7648 = vunpack.c.l.b16 %v6608
        %v7649 = vunpack.c.l.b16 %v6609
        %v7650 = vunpack.c.l.b16 %v6610
        %v7651 = vunpack.c.l.b16 %v6611
        %v7652 = vunpack.c.l.b16 %v6612
        %v7653 = vunpack.c.l.b16 %v6613
        %v7654 = vunpack.c.l.b16 %v6614
        %v7655 = vunpack.c.l.b16 %v6615
        %v7656 = vunpack.c.l.b16 %v6616
        %v7657 = vunpack.c.l.b16 %v6617
        %v7658 = vunpack.c.l.b16 %v6618
        %v7659 = vunpack.c.l.b16 %v6619
        %v7660 = vunpack.c.l.b16 %v6620
        %v7661 = vunpack.c.l.b16 %v6621
        %v7662 = vunpack.c.l.b16 %v6622
        %v7663 = vunpack.c.l.b16 %v6623
        %v7664 = vunpack.c.l.b16 %v6624
        %v7665 = vunpack.c.l.b16 %v6625
        %v7666 = vunpack.c.l.b16 %v6626
        %v7667 = vunpack.c.l.b16 %v6627
        %v7668 = vunpack.c.l.b16 %v6628
        %v7669 = vunpack.c.l.b16 %v6629
        %v7670 = vpack.c.b16 %v7639, %v7638
        %v7671 = vpack.c.b16 %v7641, %v7640
        %v7672 = vpack.c.b16 %v7643, %v7642
        %v7673 = vpack.c.b16 %v7645, %v7644
        %v7674 = vpack.c.b16 %v7647, %v7646
        %v7675 = vpack.c.b16 %v7649, %v7648
        %v7676 = vpack.c.b16 %v7651, %v7650
        %v7677 = vpack.c.b16 %v7653, %v7652
        %v7678 = vpack.c.b16 %v7655, %v7654
        %v7679 = vpack.c.b16 %v7657, %v7656
        %v7680 = vpack.c.b16 %v7659, %v7658
        %v7681 = vpack.c.b16 %v7661, %v7660
        %v7682 = vpack.c.b16 %v7663, %v7662
        %v7683 = vpack.c.b16 %v7665, %v7664
        %v7684 = vpack.c.b16 %v7667, %v7666
        %v7685 = vpack.c.b16 %v7669, %v7668
        %v7702 = vunpack.c.l.b16 %v6659
        %v7703 = vunpack.c.l.b16 %v6669
        %v7704 = vunpack.c.l.b16 %v6683
        %v7705 = vunpack.c.l.b16 %v6693
        %v7706 = vunpack.c.l.b16 %v6707
        %v7707 = vunpack.c.l.b16 %v6717
        %v7708 = vunpack.c.l.b16 %v6731
        %v7709 = vunpack.c.l.b16 %v6741
        %v7710 = vunpack.c.l.b16 %v6755
        %v7711 = vunpack.c.l.b16 %v6765
        %v7712 = vunpack.c.l.b16 %v6779
        %v7713 = vunpack.c.l.b16 %v6789
        %v7714 = vunpack.c.l.b16 %v6803
        %v7715 = vunpack.c.l.b16 %v6813
        %v7716 = vunpack.c.l.b16 %v6827
        %v7717 = vunpack.c.l.b16 %v6837
        %v7718 = vunpack.c.l.b16 %v6851
        %v7719 = vunpack.c.l.b16 %v6861
        %v7720 = vunpack.c.l.b16 %v6875
        %v7721 = vunpack.c.l.b16 %v6885
        %v7722 = vunpack.c.l.b16 %v6899
        %v7723 = vunpack.c.l.b16 %v6909
        %v7724 = vunpack.c.l.b16 %v6923
        %v7725 = vunpack.c.l.b16 %v6933
        %v7726 = vunpack.c.l.b16 %v6947
        %v7727 = vunpack.c.l.b16 %v6957
        %v7728 = vunpack.c.l.b16 %v6971
        %v7729 = vunpack.c.l.b16 %v6981
        %v7730 = vunpack.c.l.b16 %v6995
        %v7731 = vunpack.c.l.b16 %v7005
        %v7732 = vunpack.c.l.b16 %v7019
        %v7733 = vunpack.c.l.b16 %v7029
        %v7734 = vpack.c.b16 %v7703, %v7702
        %v7735 = vpack.c.b16 %v7705, %v7704
        %v7736 = vpack.c.b16 %v7707, %v7706
        %v7737 = vpack.c.b16 %v7709, %v7708
        %v7738 = vpack.c.b16 %v7711, %v7710
        %v7739 = vpack.c.b16 %v7713, %v7712
        %v7740 = vpack.c.b16 %v7715, %v7714
        %v7741 = vpack.c.b16 %v7717, %v7716
        %v7742 = vpack.c.b16 %v7719, %v7718
        %v7743 = vpack.c.b16 %v7721, %v7720
        %v7744 = vpack.c.b16 %v7723, %v7722
        %v7745 = vpack.c.b16 %v7725, %v7724
        %v7746 = vpack.c.b16 %v7727, %v7726
        %v7747 = vpack.c.b16 %v7729, %v7728
        %v7748 = vpack.c.b16 %v7731, %v7730
        %v7749 = vpack.c.b16 %v7733, %v7732
        %v7766 = vunpack.c.l.b16 %v7097
        %v7767 = vunpack.c.l.b16 %v7100
        %v7768 = vunpack.c.l.b16 %v7104
        %v7769 = vunpack.c.l.b16 %v7107
        %v7770 = vunpack.c.l.b16 %v7111
        %v7771 = vunpack.c.l.b16 %v7114
        %v7772 = vunpack.c.l.b16 %v7118
        %v7773 = vunpack.c.l.b16 %v7121
        %v7774 = vunpack.c.l.b16 %v7125
        %v7775 = vunpack.c.l.b16 %v7128
        %v7776 = vunpack.c.l.b16 %v7132
        %v7777 = vunpack.c.l.b16 %v7135
        %v7778 = vunpack.c.l.b16 %v7139
        %v7779 = vunpack.c.l.b16 %v7142
        %v7780 = vunpack.c.l.b16 %v7146
        %v7781 = vunpack.c.l.b16 %v7149
        %v7782 = vunpack.c.l.b16 %v7153
        %v7783 = vunpack.c.l.b16 %v7156
        %v7784 = vunpack.c.l.b16 %v7160
        %v7785 = vunpack.c.l.b16 %v7163
        %v7786 = vunpack.c.l.b16 %v7167
        %v7787 = vunpack.c.l.b16 %v7170
        %v7788 = vunpack.c.l.b16 %v7174
        %v7789 = vunpack.c.l.b16 %v7177
        %v7790 = vunpack.c.l.b16 %v7181
        %v7791 = vunpack.c.l.b16 %v7184
        %v7792 = vunpack.c.l.b16 %v7188
        %v7793 = vunpack.c.l.b16 %v7191
        %v7794 = vunpack.c.l.b16 %v7195
        %v7795 = vunpack.c.l.b16 %v7198
        %v7796 = vunpack.c.l.b16 %v7202
        %v7797 = vunpack.c.l.b16 %v7205
        %v7798 = vpack.c.b16 %v7767, %v7766
        %v7799 = vpack.c.b16 %v7769, %v7768
        %v7800 = vpack.c.b16 %v7771, %v7770
        %v7801 = vpack.c.b16 %v7773, %v7772
        %v7802 = vpack.c.b16 %v7775, %v7774
        %v7803 = vpack.c.b16 %v7777, %v7776
        %v7804 = vpack.c.b16 %v7779, %v7778
        %v7805 = vpack.c.b16 %v7781, %v7780
        %v7806 = vpack.c.b16 %v7783, %v7782
        %v7807 = vpack.c.b16 %v7785, %v7784
        %v7808 = vpack.c.b16 %v7787, %v7786
        %v7809 = vpack.c.b16 %v7789, %v7788
        %v7810 = vpack.c.b16 %v7791, %v7790
        %v7811 = vpack.c.b16 %v7793, %v7792
        %v7812 = vpack.c.b16 %v7795, %v7794
        %v7813 = vpack.c.b16 %v7797, %v7796
        %v7830 = vld [vmem:[#allocation3] sm:$0xf]
        %v7831 = vld [vmem:[#allocation3 + $0x4] sm:$0xf]
        %v7832 = vld [vmem:[#allocation3 + $0x8] sm:$0xf]
        %v7833 = vld [vmem:[#allocation3 + $0xc] sm:$0xf]
        %v7834 = vld [vmem:[#allocation3 + $0x10] sm:$0xf]
        %v7835 = vld [vmem:[#allocation3 + $0x14] sm:$0xf]
        %v7836 = vld [vmem:[#allocation3 + $0x18] sm:$0xf]
        %v7837 = vld [vmem:[#allocation3 + $0x1c] sm:$0xf]
        %v7838 = vld [vmem:[#allocation3 + $0x20] sm:$0xf]
        %v7839 = vld [vmem:[#allocation3 + $0x24] sm:$0xf]
        %v7840 = vld [vmem:[#allocation3 + $0x28] sm:$0xf]
        %v7841 = vld [vmem:[#allocation3 + $0x2c] sm:$0xf]
        %v7842 = vld [vmem:[#allocation3 + $0x30] sm:$0xf]
        %v7843 = vld [vmem:[#allocation3 + $0x34] sm:$0xf]
        %v7844 = vld [vmem:[#allocation3 + $0x38] sm:$0xf]
        %v7845 = vld [vmem:[#allocation3 + $0x3c] sm:$0xf]
        %v7846 = vld [vmem:[#allocation3 + $0x40] sm:$0xf]
        %v7847 = vld [vmem:[#allocation3 + $0x44] sm:$0xf]
        %v7848 = vld [vmem:[#allocation3 + $0x48] sm:$0xf]
        %v7849 = vld [vmem:[#allocation3 + $0x4c] sm:$0xf]
        %v7850 = vld [vmem:[#allocation3 + $0x50] sm:$0xf]
        %v7851 = vld [vmem:[#allocation3 + $0x54] sm:$0xf]
        %v7852 = vld [vmem:[#allocation3 + $0x58] sm:$0xf]
        %v7853 = vld [vmem:[#allocation3 + $0x5c] sm:$0xf]
        %v7854 = vld [vmem:[#allocation3 + $0x60] sm:$0xf]
        %v7855 = vld [vmem:[#allocation3 + $0x64] sm:$0xf]
        %v7856 = vld [vmem:[#allocation3 + $0x68] sm:$0xf]
        %v7857 = vld [vmem:[#allocation3 + $0x6c] sm:$0xf]
        %v7858 = vld [vmem:[#allocation3 + $0x70] sm:$0xf]
        %v7859 = vld [vmem:[#allocation3 + $0x74] sm:$0xf]
        %v7860 = vld [vmem:[#allocation3 + $0x78] sm:$0xf]
        %v7861 = vld [vmem:[#allocation3 + $0x7c] sm:$0xf]
        %v7862 = vld [vmem:[#allocation3 + $0x80] sm:$0xf]
        %v7863 = vld [vmem:[#allocation3 + $0x84] sm:$0xf]
        %v7864 = vld [vmem:[#allocation3 + $0x88] sm:$0xf]
        %v7865 = vld [vmem:[#allocation3 + $0x8c] sm:$0xf]
        %v7866 = vld [vmem:[#allocation3 + $0x90] sm:$0xf]
        %v7867 = vld [vmem:[#allocation3 + $0x94] sm:$0xf]
        %v7868 = vld [vmem:[#allocation3 + $0x98] sm:$0xf]
        %v7869 = vld [vmem:[#allocation3 + $0x9c] sm:$0xf]
        %v7870 = vld [vmem:[#allocation3 + $0xa0] sm:$0xf]
        %v7871 = vld [vmem:[#allocation3 + $0xa4] sm:$0xf]
        %v7872 = vld [vmem:[#allocation3 + $0xa8] sm:$0xf]
        %v7873 = vld [vmem:[#allocation3 + $0xac] sm:$0xf]
        %v7874 = vld [vmem:[#allocation3 + $0xb0] sm:$0xf]
        %v7875 = vld [vmem:[#allocation3 + $0xb4] sm:$0xf]
        %v7876 = vld [vmem:[#allocation3 + $0xb8] sm:$0xf]
        %v7877 = vld [vmem:[#allocation3 + $0xbc] sm:$0xf]
        %v7878 = vld [vmem:[#allocation3 + $0xc0] sm:$0xf]
        %v7879 = vld [vmem:[#allocation3 + $0xc4] sm:$0xf]
        %v7880 = vld [vmem:[#allocation3 + $0xc8] sm:$0xf]
        %v7881 = vld [vmem:[#allocation3 + $0xcc] sm:$0xf]
        %v7882 = vld [vmem:[#allocation3 + $0xd0] sm:$0xf]
        %v7883 = vld [vmem:[#allocation3 + $0xd4] sm:$0xf]
        %v7884 = vld [vmem:[#allocation3 + $0xd8] sm:$0xf]
        %v7885 = vld [vmem:[#allocation3 + $0xdc] sm:$0xf]
        %v7886 = vld [vmem:[#allocation3 + $0xe0] sm:$0xf]
        %v7887 = vld [vmem:[#allocation3 + $0xe4] sm:$0xf]
        %v7888 = vld [vmem:[#allocation3 + $0xe8] sm:$0xf]
        %v7889 = vld [vmem:[#allocation3 + $0xec] sm:$0xf]
        %v7890 = vld [vmem:[#allocation3 + $0xf0] sm:$0xf]
        %v7891 = vld [vmem:[#allocation3 + $0xf4] sm:$0xf]
        %v7892 = vld [vmem:[#allocation3 + $0xf8] sm:$0xf]
        %v7893 = vld [vmem:[#allocation3 + $0xfc] sm:$0xf]
        %v7894 = vld [vmem:[#allocation3 + $0x100] sm:$0xf]
        %v7895 = vld [vmem:[#allocation3 + $0x104] sm:$0xf]
        %v7896 = vld [vmem:[#allocation3 + $0x108] sm:$0xf]
        %v7897 = vld [vmem:[#allocation3 + $0x10c] sm:$0xf]
        %v7898 = vld [vmem:[#allocation3 + $0x110] sm:$0xf]
        %v7899 = vld [vmem:[#allocation3 + $0x114] sm:$0xf]
        %v7900 = vld [vmem:[#allocation3 + $0x118] sm:$0xf]
        %v7901 = vld [vmem:[#allocation3 + $0x11c] sm:$0xf]
        %v7902 = vld [vmem:[#allocation3 + $0x120] sm:$0xf]
        %v7903 = vld [vmem:[#allocation3 + $0x124] sm:$0xf]
        %v7904 = vld [vmem:[#allocation3 + $0x128] sm:$0xf]
        %v7905 = vld [vmem:[#allocation3 + $0x12c] sm:$0xf]
        %v7906 = vld [vmem:[#allocation3 + $0x130] sm:$0xf]
        %v7907 = vld [vmem:[#allocation3 + $0x134] sm:$0xf]
        %v7908 = vld [vmem:[#allocation3 + $0x138] sm:$0xf]
        %v7909 = vld [vmem:[#allocation3 + $0x13c] sm:$0xf]
        %v7910 = vld [vmem:[#allocation3 + $0x140] sm:$0xf]
        %v7911 = vld [vmem:[#allocation3 + $0x144] sm:$0xf]
        %v7912 = vld [vmem:[#allocation3 + $0x148] sm:$0xf]
        %v7913 = vld [vmem:[#allocation3 + $0x14c] sm:$0xf]
        %v7914 = vld [vmem:[#allocation3 + $0x150] sm:$0xf]
        %v7915 = vld [vmem:[#allocation3 + $0x154] sm:$0xf]
        %v7916 = vld [vmem:[#allocation3 + $0x158] sm:$0xf]
        %v7917 = vld [vmem:[#allocation3 + $0x15c] sm:$0xf]
        %v7918 = vld [vmem:[#allocation3 + $0x160] sm:$0xf]
        %v7919 = vld [vmem:[#allocation3 + $0x164] sm:$0xf]
        %v7920 = vld [vmem:[#allocation3 + $0x168] sm:$0xf]
        %v7921 = vld [vmem:[#allocation3 + $0x16c] sm:$0xf]
        %v7922 = vld [vmem:[#allocation3 + $0x170] sm:$0xf]
        %v7923 = vld [vmem:[#allocation3 + $0x174] sm:$0xf]
        %v7924 = vld [vmem:[#allocation3 + $0x178] sm:$0xf]
        %v7925 = vld [vmem:[#allocation3 + $0x17c] sm:$0xf]
        %v7926 = vld [vmem:[#allocation3 + $0x180] sm:$0xf]
        %v7927 = vld [vmem:[#allocation3 + $0x184] sm:$0xf]
        %v7928 = vld [vmem:[#allocation3 + $0x188] sm:$0xf]
        %v7929 = vld [vmem:[#allocation3 + $0x18c] sm:$0xf]
        %v7930 = vld [vmem:[#allocation3 + $0x190] sm:$0xf]
        %v7931 = vld [vmem:[#allocation3 + $0x194] sm:$0xf]
        %v7932 = vld [vmem:[#allocation3 + $0x198] sm:$0xf]
        %v7933 = vld [vmem:[#allocation3 + $0x19c] sm:$0xf]
        %v7934 = vld [vmem:[#allocation3 + $0x1a0] sm:$0xf]
        %v7935 = vld [vmem:[#allocation3 + $0x1a4] sm:$0xf]
        %v7936 = vld [vmem:[#allocation3 + $0x1a8] sm:$0xf]
        %v7937 = vld [vmem:[#allocation3 + $0x1ac] sm:$0xf]
        %v7938 = vld [vmem:[#allocation3 + $0x1b0] sm:$0xf]
        %v7939 = vld [vmem:[#allocation3 + $0x1b4] sm:$0xf]
        %v7940 = vld [vmem:[#allocation3 + $0x1b8] sm:$0xf]
        %v7941 = vld [vmem:[#allocation3 + $0x1bc] sm:$0xf]
        %v7942 = vld [vmem:[#allocation3 + $0x1c0] sm:$0xf]
        %v7943 = vld [vmem:[#allocation3 + $0x1c4] sm:$0xf]
        %v7944 = vld [vmem:[#allocation3 + $0x1c8] sm:$0xf]
        %v7945 = vld [vmem:[#allocation3 + $0x1cc] sm:$0xf]
        %v7946 = vld [vmem:[#allocation3 + $0x1d0] sm:$0xf]
        %v7947 = vld [vmem:[#allocation3 + $0x1d4] sm:$0xf]
        %v7948 = vld [vmem:[#allocation3 + $0x1d8] sm:$0xf]
        %v7949 = vld [vmem:[#allocation3 + $0x1dc] sm:$0xf]
        %v7950 = vld [vmem:[#allocation3 + $0x1e0] sm:$0xf]
        %v7951 = vld [vmem:[#allocation3 + $0x1e4] sm:$0xf]
        %v7952 = vld [vmem:[#allocation3 + $0x1e8] sm:$0xf]
        %v7953 = vld [vmem:[#allocation3 + $0x1ec] sm:$0xf]
        %v7954 = vld [vmem:[#allocation3 + $0x1f0] sm:$0xf]
        %v7955 = vld [vmem:[#allocation3 + $0x1f4] sm:$0xf]
        %v7956 = vld [vmem:[#allocation3 + $0x1f8] sm:$0xf]
        %v7957 = vld [vmem:[#allocation3 + $0x1fc] sm:$0xf]
        %v7958 = vld [vmem:[#allocation3 + $0x200] sm:$0xf]
        %v7959 = vld [vmem:[#allocation3 + $0x204] sm:$0xf]
        %v7960 = vld [vmem:[#allocation3 + $0x208] sm:$0xf]
        %v7961 = vld [vmem:[#allocation3 + $0x20c] sm:$0xf]
        %v7962 = vld [vmem:[#allocation3 + $0x210] sm:$0xf]
        %v7963 = vld [vmem:[#allocation3 + $0x214] sm:$0xf]
        %v7964 = vld [vmem:[#allocation3 + $0x218] sm:$0xf]
        %v7965 = vld [vmem:[#allocation3 + $0x21c] sm:$0xf]
        %v7966 = vld [vmem:[#allocation3 + $0x220] sm:$0xf]
        %v7967 = vld [vmem:[#allocation3 + $0x224] sm:$0xf]
        %v7968 = vld [vmem:[#allocation3 + $0x228] sm:$0xf]
        %v7969 = vld [vmem:[#allocation3 + $0x22c] sm:$0xf]
        %v7970 = vld [vmem:[#allocation3 + $0x230] sm:$0xf]
        %v7971 = vld [vmem:[#allocation3 + $0x234] sm:$0xf]
        %v7972 = vld [vmem:[#allocation3 + $0x238] sm:$0xf]
        %v7973 = vld [vmem:[#allocation3 + $0x23c] sm:$0xf]
        %v7974 = vld [vmem:[%s4] sm:$0x1]
        %v7976 = vlaneseq
        %v7977 = vshrl.u32 %v7976, 7
        %v7978 = vsub.s32 0, %v7977
        %v7979 = vrot.slane %v7974, %v7978
        %v8125 = vunpack.c.l.b16 %v7830
        %v8126 = vunpack.c.l.b16 %v7831
        %v8127 = vunpack.c.l.b16 %v7832
        %v8128 = vunpack.c.l.b16 %v7833
        %v8129 = vunpack.c.l.b16 %v7834
        %v8130 = vunpack.c.l.b16 %v7835
        %v8131 = vunpack.c.l.b16 %v7836
        %v8132 = vunpack.c.l.b16 %v7837
        %v8133 = vunpack.c.l.b16 %v7838
        %v8134 = vunpack.c.l.b16 %v7839
        %v8135 = vunpack.c.l.b16 %v7840
        %v8136 = vunpack.c.l.b16 %v7841
        %v8137 = vunpack.c.l.b16 %v7842
        %v8138 = vunpack.c.l.b16 %v7843
        %v8139 = vunpack.c.l.b16 %v7844
        %v8140 = vunpack.c.l.b16 %v7845
        %v8141 = vunpack.c.l.b16 %v7846
        %v8142 = vunpack.c.l.b16 %v7847
        %v8143 = vunpack.c.l.b16 %v7848
        %v8144 = vunpack.c.l.b16 %v7849
        %v8145 = vunpack.c.l.b16 %v7850
        %v8146 = vunpack.c.l.b16 %v7851
        %v8147 = vunpack.c.l.b16 %v7852
        %v8148 = vunpack.c.l.b16 %v7853
        %v8149 = vunpack.c.l.b16 %v7854
        %v8150 = vunpack.c.l.b16 %v7855
        %v8151 = vunpack.c.l.b16 %v7856
        %v8152 = vunpack.c.l.b16 %v7857
        %v8153 = vunpack.c.l.b16 %v7858
        %v8154 = vunpack.c.l.b16 %v7859
        %v8155 = vunpack.c.l.b16 %v7860
        %v8156 = vunpack.c.l.b16 %v7861
        %v8157 = vunpack.c.l.b16 %v7862
        %v8158 = vunpack.c.l.b16 %v7863
        %v8159 = vunpack.c.l.b16 %v7864
        %v8160 = vunpack.c.l.b16 %v7865
        %v8161 = vunpack.c.l.b16 %v7866
        %v8162 = vunpack.c.l.b16 %v7867
        %v8163 = vunpack.c.l.b16 %v7868
        %v8164 = vunpack.c.l.b16 %v7869
        %v8165 = vunpack.c.l.b16 %v7870
        %v8166 = vunpack.c.l.b16 %v7871
        %v8167 = vunpack.c.l.b16 %v7872
        %v8168 = vunpack.c.l.b16 %v7873
        %v8169 = vunpack.c.l.b16 %v7874
        %v8170 = vunpack.c.l.b16 %v7875
        %v8171 = vunpack.c.l.b16 %v7876
        %v8172 = vunpack.c.l.b16 %v7877
        %v8173 = vunpack.c.l.b16 %v7878
        %v8174 = vunpack.c.l.b16 %v7879
        %v8175 = vunpack.c.l.b16 %v7880
        %v8176 = vunpack.c.l.b16 %v7881
        %v8177 = vunpack.c.l.b16 %v7882
        %v8178 = vunpack.c.l.b16 %v7883
        %v8179 = vunpack.c.l.b16 %v7884
        %v8180 = vunpack.c.l.b16 %v7885
        %v8181 = vunpack.c.l.b16 %v7886
        %v8182 = vunpack.c.l.b16 %v7887
        %v8183 = vunpack.c.l.b16 %v7888
        %v8184 = vunpack.c.l.b16 %v7889
        %v8185 = vunpack.c.l.b16 %v7890
        %v8186 = vunpack.c.l.b16 %v7891
        %v8187 = vunpack.c.l.b16 %v7892
        %v8188 = vunpack.c.l.b16 %v7893
        %v8189 = vunpack.c.l.b16 %v7894
        %v8190 = vunpack.c.l.b16 %v7895
        %v8191 = vunpack.c.l.b16 %v7896
        %v8192 = vunpack.c.l.b16 %v7897
        %v8193 = vunpack.c.l.b16 %v7898
        %v8194 = vunpack.c.l.b16 %v7899
        %v8195 = vunpack.c.l.b16 %v7900
        %v8196 = vunpack.c.l.b16 %v7901
        %v8197 = vunpack.c.l.b16 %v7902
        %v8198 = vunpack.c.l.b16 %v7903
        %v8199 = vunpack.c.l.b16 %v7904
        %v8200 = vunpack.c.l.b16 %v7905
        %v8201 = vunpack.c.l.b16 %v7906
        %v8202 = vunpack.c.l.b16 %v7907
        %v8203 = vunpack.c.l.b16 %v7908
        %v8204 = vunpack.c.l.b16 %v7909
        %v8205 = vunpack.c.l.b16 %v7910
        %v8206 = vunpack.c.l.b16 %v7911
        %v8207 = vunpack.c.l.b16 %v7912
        %v8208 = vunpack.c.l.b16 %v7913
        %v8209 = vunpack.c.l.b16 %v7914
        %v8210 = vunpack.c.l.b16 %v7915
        %v8211 = vunpack.c.l.b16 %v7916
        %v8212 = vunpack.c.l.b16 %v7917
        %v8213 = vunpack.c.l.b16 %v7918
        %v8214 = vunpack.c.l.b16 %v7919
        %v8215 = vunpack.c.l.b16 %v7920
        %v8216 = vunpack.c.l.b16 %v7921
        %v8217 = vunpack.c.l.b16 %v7922
        %v8218 = vunpack.c.l.b16 %v7923
        %v8219 = vunpack.c.l.b16 %v7924
        %v8220 = vunpack.c.l.b16 %v7925
        %v8221 = vunpack.c.l.b16 %v7926
        %v8222 = vunpack.c.l.b16 %v7927
        %v8223 = vunpack.c.l.b16 %v7928
        %v8224 = vunpack.c.l.b16 %v7929
        %v8225 = vunpack.c.l.b16 %v7930
        %v8226 = vunpack.c.l.b16 %v7931
        %v8227 = vunpack.c.l.b16 %v7932
        %v8228 = vunpack.c.l.b16 %v7933
        %v8229 = vunpack.c.l.b16 %v7934
        %v8230 = vunpack.c.l.b16 %v7935
        %v8231 = vunpack.c.l.b16 %v7936
        %v8232 = vunpack.c.l.b16 %v7937
        %v8233 = vunpack.c.l.b16 %v7938
        %v8234 = vunpack.c.l.b16 %v7939
        %v8235 = vunpack.c.l.b16 %v7940
        %v8236 = vunpack.c.l.b16 %v7941
        %v8237 = vunpack.c.l.b16 %v7942
        %v8238 = vunpack.c.l.b16 %v7943
        %v8239 = vunpack.c.l.b16 %v7944
        %v8240 = vunpack.c.l.b16 %v7945
        %v8241 = vunpack.c.l.b16 %v7946
        %v8242 = vunpack.c.l.b16 %v7947
        %v8243 = vunpack.c.l.b16 %v7948
        %v8244 = vunpack.c.l.b16 %v7949
        %v8245 = vunpack.c.l.b16 %v7950
        %v8246 = vunpack.c.l.b16 %v7951
        %v8247 = vunpack.c.l.b16 %v7952
        %v8248 = vunpack.c.l.b16 %v7953
        %v8249 = vunpack.c.l.b16 %v7954
        %v8250 = vunpack.c.l.b16 %v7955
        %v8251 = vunpack.c.l.b16 %v7956
        %v8252 = vunpack.c.l.b16 %v7957
        %v8253 = vunpack.c.l.b16 %v7958
        %v8254 = vunpack.c.l.b16 %v7959
        %v8255 = vunpack.c.l.b16 %v7960
        %v8256 = vunpack.c.l.b16 %v7961
        %v8257 = vunpack.c.l.b16 %v7962
        %v8258 = vunpack.c.l.b16 %v7963
        %v8259 = vunpack.c.l.b16 %v7964
        %v8260 = vunpack.c.l.b16 %v7965
        %v8261 = vunpack.c.l.b16 %v7966
        %v8262 = vunpack.c.l.b16 %v7967
        %v8263 = vunpack.c.l.b16 %v7968
        %v8264 = vunpack.c.l.b16 %v7969
        %v8265 = vunpack.c.l.b16 %v7970
        %v8266 = vunpack.c.l.b16 %v7971
        %v8267 = vunpack.c.l.b16 %v7972
        %v8268 = vunpack.c.l.b16 %v7973
        %v8269 = vpack.c.b16 %v8126, %v8125
        %v8270 = vpack.c.b16 %v8128, %v8127
        %v8271 = vpack.c.b16 %v8130, %v8129
        %v8272 = vpack.c.b16 %v8132, %v8131
        %v8273 = vpack.c.b16 %v8134, %v8133
        %v8274 = vpack.c.b16 %v8136, %v8135
        %v8275 = vpack.c.b16 %v8138, %v8137
        %v8276 = vpack.c.b16 %v8140, %v8139
        %v8277 = vpack.c.b16 %v8142, %v8141
        %v8278 = vpack.c.b16 %v8144, %v8143
        %v8279 = vpack.c.b16 %v8146, %v8145
        %v8280 = vpack.c.b16 %v8148, %v8147
        %v8281 = vpack.c.b16 %v8150, %v8149
        %v8282 = vpack.c.b16 %v8152, %v8151
        %v8283 = vpack.c.b16 %v8154, %v8153
        %v8284 = vpack.c.b16 %v8156, %v8155
        %v8285 = vpack.c.b16 %v8158, %v8157
        %v8286 = vpack.c.b16 %v8160, %v8159
        %v8287 = vpack.c.b16 %v8162, %v8161
        %v8288 = vpack.c.b16 %v8164, %v8163
        %v8289 = vpack.c.b16 %v8166, %v8165
        %v8290 = vpack.c.b16 %v8168, %v8167
        %v8291 = vpack.c.b16 %v8170, %v8169
        %v8292 = vpack.c.b16 %v8172, %v8171
        %v8293 = vpack.c.b16 %v8174, %v8173
        %v8294 = vpack.c.b16 %v8176, %v8175
        %v8295 = vpack.c.b16 %v8178, %v8177
        %v8296 = vpack.c.b16 %v8180, %v8179
        %v8297 = vpack.c.b16 %v8182, %v8181
        %v8298 = vpack.c.b16 %v8184, %v8183
        %v8299 = vpack.c.b16 %v8186, %v8185
        %v8300 = vpack.c.b16 %v8188, %v8187
        %v8301 = vpack.c.b16 %v8190, %v8189
        %v8302 = vpack.c.b16 %v8192, %v8191
        %v8303 = vpack.c.b16 %v8194, %v8193
        %v8304 = vpack.c.b16 %v8196, %v8195
        %v8305 = vpack.c.b16 %v8198, %v8197
        %v8306 = vpack.c.b16 %v8200, %v8199
        %v8307 = vpack.c.b16 %v8202, %v8201
        %v8308 = vpack.c.b16 %v8204, %v8203
        %v8309 = vpack.c.b16 %v8206, %v8205
        %v8310 = vpack.c.b16 %v8208, %v8207
        %v8311 = vpack.c.b16 %v8210, %v8209
        %v8312 = vpack.c.b16 %v8212, %v8211
        %v8313 = vpack.c.b16 %v8214, %v8213
        %v8314 = vpack.c.b16 %v8216, %v8215
        %v8315 = vpack.c.b16 %v8218, %v8217
        %v8316 = vpack.c.b16 %v8220, %v8219
        %v8317 = vpack.c.b16 %v8222, %v8221
        %v8318 = vpack.c.b16 %v8224, %v8223
        %v8319 = vpack.c.b16 %v8226, %v8225
        %v8320 = vpack.c.b16 %v8228, %v8227
        %v8321 = vpack.c.b16 %v8230, %v8229
        %v8322 = vpack.c.b16 %v8232, %v8231
        %v8323 = vpack.c.b16 %v8234, %v8233
        %v8324 = vpack.c.b16 %v8236, %v8235
        %v8325 = vpack.c.b16 %v8238, %v8237
        %v8326 = vpack.c.b16 %v8240, %v8239
        %v8327 = vpack.c.b16 %v8242, %v8241
        %v8328 = vpack.c.b16 %v8244, %v8243
        %v8329 = vpack.c.b16 %v8246, %v8245
        %v8330 = vpack.c.b16 %v8248, %v8247
        %v8331 = vpack.c.b16 %v8250, %v8249
        %v8332 = vpack.c.b16 %v8252, %v8251
        %v8333 = vpack.c.b16 %v8254, %v8253
        %v8334 = vpack.c.b16 %v8256, %v8255
        %v8335 = vpack.c.b16 %v8258, %v8257
        %v8336 = vpack.c.b16 %v8260, %v8259
        %v8337 = vpack.c.b16 %v8262, %v8261
        %v8338 = vpack.c.b16 %v8264, %v8263
        %v8339 = vpack.c.b16 %v8266, %v8265
        %v8340 = vpack.c.b16 %v8268, %v8267
        %8413 = vmatprep.subr.bf16.mxu0 0
        %8414 = vmatpush1.bf16.msra.mxu0 %v8276
        %8415 = vmatprep.subr.bf16.mxu0 0
        %8416 = vmatpush1.bf16.msra.mxu0 %v8275
        %8417 = vmatprep.subr.bf16.mxu0 0
        %8418 = vmatpush1.bf16.msra.mxu0 %v8274
        %8419 = vmatprep.subr.bf16.mxu0 0
        %8420 = vmatpush1.bf16.msra.mxu0 %v8273
        %8421 = vmatprep.subr.bf16.mxu0 0
        %8422 = vmatpush1.bf16.msra.mxu0 %v8272
        %8423 = vmatprep.subr.bf16.mxu0 0
        %8424 = vmatpush1.bf16.msra.mxu0 %v8271
        %8425 = vmatprep.subr.bf16.mxu0 0
        %8426 = vmatpush1.bf16.msra.mxu0 %v8270
        %8427 = vmatprep.subr.bf16.mxu0 0
        %8428 = vmatpush1.bf16.msra.mxu0 %v8269
        %8429 = vmatprep.subr.bf16.mxu0 0
        %8430 = vmatpush2.bf16.msra.mxu0 %v8284
        %8431 = vmatprep.subr.bf16.mxu0 0
        %8432 = vmatpush2.bf16.msra.mxu0 %v8283
        %8433 = vmatprep.subr.bf16.mxu0 0
        %8434 = vmatpush2.bf16.msra.mxu0 %v8282
        %8435 = vmatprep.subr.bf16.mxu0 0
        %8436 = vmatpush2.bf16.msra.mxu0 %v8281
        %8437 = vmatprep.subr.bf16.mxu0 0
        %8438 = vmatpush2.bf16.msra.mxu0 %v8280
        %8439 = vmatprep.subr.bf16.mxu0 0
        %8440 = vmatpush2.bf16.msra.mxu0 %v8279
        %8441 = vmatprep.subr.bf16.mxu0 0
        %8442 = vmatpush2.bf16.msra.mxu0 %v8278
        %8443 = vmatprep.subr.bf16.mxu0 0
        %8444 = vmatpush2.bf16.msra.mxu0 %v8277
        %8445 = vmatprep.mubr.bf16.mxu0 %v7318
        %8446 = vmatmul.mubr.bf16.gmra.mxu0 %v7254
        %v8447 = vpop.f32.mrf.mxu0
        %v8448 = vadd.f32 %v7979, %v8447
        %v8449 = vpop.f32.mrf.mxu0
        %v8450 = vpop.f32.mrf.mxu0
        %v8451 = vadd.f32 %v7979, %v8450
        %v8452 = vpop.f32.mrf.mxu0
        %8453 = vmatprep.mubr.bf16.mxu0 %v7319
        %8454 = vmatmul.mubr.bf16.gmra.mxu0 %v7255
        %v8455 = vpop.f32.mrf.mxu0
        %v8456 = vadd.f32 %v7979, %v8455
        %v8457 = vpop.f32.mrf.mxu0
        %v8458 = vpop.f32.mrf.mxu0
        %v8459 = vadd.f32 %v7979, %v8458
        %v8460 = vpop.f32.mrf.mxu0
        %8461 = vmatprep.mubr.bf16.mxu0 %v7320
        %8462 = vmatmul.mubr.bf16.gmra.mxu0 %v7256
        %v8463 = vpop.f32.mrf.mxu0
        %v8464 = vadd.f32 %v7979, %v8463
        %v8465 = vpop.f32.mrf.mxu0
        %v8466 = vpop.f32.mrf.mxu0
        %v8467 = vadd.f32 %v7979, %v8466
        %v8468 = vpop.f32.mrf.mxu0
        %8469 = vmatprep.mubr.bf16.mxu0 %v7321
        %8470 = vmatmul.mubr.bf16.gmra.mxu0 %v7257
        %v8471 = vpop.f32.mrf.mxu0
        %v8472 = vadd.f32 %v7979, %v8471
        %v8473 = vpop.f32.mrf.mxu0
        %v8474 = vpop.f32.mrf.mxu0
        %v8475 = vadd.f32 %v7979, %v8474
        %v8476 = vpop.f32.mrf.mxu0
        %8477 = vmatprep.mubr.bf16.mxu0 %v7322
        %8478 = vmatmul.mubr.bf16.gmra.mxu0 %v7258
        %v8479 = vpop.f32.mrf.mxu0
        %v8480 = vadd.f32 %v7979, %v8479
        %v8481 = vpop.f32.mrf.mxu0
        %v8482 = vpop.f32.mrf.mxu0
        %v8483 = vadd.f32 %v7979, %v8482
        %v8484 = vpop.f32.mrf.mxu0
        %8485 = vmatprep.mubr.bf16.mxu0 %v7323
        %8486 = vmatmul.mubr.bf16.gmra.mxu0 %v7259
        %v8487 = vpop.f32.mrf.mxu0
        %v8488 = vadd.f32 %v7979, %v8487
        %v8489 = vpop.f32.mrf.mxu0
        %v8490 = vpop.f32.mrf.mxu0
        %v8491 = vadd.f32 %v7979, %v8490
        %v8492 = vpop.f32.mrf.mxu0
        %8493 = vmatprep.mubr.bf16.mxu0 %v7324
        %8494 = vmatmul.mubr.bf16.gmra.mxu0 %v7260
        %v8495 = vpop.f32.mrf.mxu0
        %v8496 = vadd.f32 %v7979, %v8495
        %v8497 = vpop.f32.mrf.mxu0
        %v8498 = vpop.f32.mrf.mxu0
        %v8499 = vadd.f32 %v7979, %v8498
        %v8500 = vpop.f32.mrf.mxu0
        %8501 = vmatprep.mubr.bf16.mxu0 %v7325
        %8502 = vmatmul.mubr.bf16.gmra.mxu0 %v7261
        %v8503 = vpop.f32.mrf.mxu0
        %v8504 = vadd.f32 %v7979, %v8503
        %v8505 = vpop.f32.mrf.mxu0
        %v8506 = vpop.f32.mrf.mxu0
        %v8507 = vadd.f32 %v7979, %v8506
        %v8508 = vpop.f32.mrf.mxu0
        %8509 = vmatprep.mubr.bf16.mxu0 %v7326
        %8510 = vmatmul.mubr.bf16.gmra.mxu0 %v7262
        %v8511 = vpop.f32.mrf.mxu0
        %v8512 = vadd.f32 %v7979, %v8511
        %v8513 = vpop.f32.mrf.mxu0
        %v8514 = vpop.f32.mrf.mxu0
        %v8515 = vadd.f32 %v7979, %v8514
        %v8516 = vpop.f32.mrf.mxu0
        %8517 = vmatprep.mubr.bf16.mxu0 %v7327
        %8518 = vmatmul.mubr.bf16.gmra.mxu0 %v7263
        %v8519 = vpop.f32.mrf.mxu0
        %v8520 = vadd.f32 %v7979, %v8519
        %v8521 = vpop.f32.mrf.mxu0
        %v8522 = vpop.f32.mrf.mxu0
        %v8523 = vadd.f32 %v7979, %v8522
        %v8524 = vpop.f32.mrf.mxu0
        %8525 = vmatprep.mubr.bf16.mxu0 %v7328
        %8526 = vmatmul.mubr.bf16.gmra.mxu0 %v7264
        %v8527 = vpop.f32.mrf.mxu0
        %v8528 = vadd.f32 %v7979, %v8527
        %v8529 = vpop.f32.mrf.mxu0
        %v8530 = vpop.f32.mrf.mxu0
        %v8531 = vadd.f32 %v7979, %v8530
        %v8532 = vpop.f32.mrf.mxu0
        %8533 = vmatprep.mubr.bf16.mxu0 %v7329
        %8534 = vmatmul.mubr.bf16.gmra.mxu0 %v7265
        %v8535 = vpop.f32.mrf.mxu0
        %v8536 = vadd.f32 %v7979, %v8535
        %v8537 = vpop.f32.mrf.mxu0
        %v8538 = vpop.f32.mrf.mxu0
        %v8539 = vadd.f32 %v7979, %v8538
        %v8540 = vpop.f32.mrf.mxu0
        %8541 = vmatprep.mubr.bf16.mxu0 %v7330
        %8542 = vmatmul.mubr.bf16.gmra.mxu0 %v7266
        %v8543 = vpop.f32.mrf.mxu0
        %v8544 = vadd.f32 %v7979, %v8543
        %v8545 = vpop.f32.mrf.mxu0
        %v8546 = vpop.f32.mrf.mxu0
        %v8547 = vadd.f32 %v7979, %v8546
        %v8548 = vpop.f32.mrf.mxu0
        %8549 = vmatprep.mubr.bf16.mxu0 %v7331
        %8550 = vmatmul.mubr.bf16.gmra.mxu0 %v7267
        %v8551 = vpop.f32.mrf.mxu0
        %v8552 = vadd.f32 %v7979, %v8551
        %v8553 = vpop.f32.mrf.mxu0
        %v8554 = vpop.f32.mrf.mxu0
        %v8555 = vadd.f32 %v7979, %v8554
        %v8556 = vpop.f32.mrf.mxu0
        %8557 = vmatprep.mubr.bf16.mxu0 %v7332
        %8558 = vmatmul.mubr.bf16.gmra.mxu0 %v7268
        %v8559 = vpop.f32.mrf.mxu0
        %v8560 = vadd.f32 %v7979, %v8559
        %v8561 = vpop.f32.mrf.mxu0
        %v8562 = vpop.f32.mrf.mxu0
        %v8563 = vadd.f32 %v7979, %v8562
        %v8564 = vpop.f32.mrf.mxu0
        %8565 = vmatprep.mubr.bf16.mxu0 %v7333
        %8566 = vmatmul.mubr.bf16.gmra.mxu0 %v7269
        %v8567 = vpop.f32.mrf.mxu0
        %v8568 = vadd.f32 %v7979, %v8567
        %v8569 = vpop.f32.mrf.mxu0
        %v8570 = vpop.f32.mrf.mxu0
        %v8571 = vadd.f32 %v7979, %v8570
        %v8572 = vpop.f32.mrf.mxu0
        %8573 = vdwg.mxu0
        %8574 = vmatprep.subr.bf16.mxu0 0
        %8575 = vmatpush1.bf16.msra.mxu0 %v8292
        %8576 = vmatprep.subr.bf16.mxu0 0
        %8577 = vmatpush1.bf16.msra.mxu0 %v8291
        %8578 = vmatprep.subr.bf16.mxu0 0
        %8579 = vmatpush1.bf16.msra.mxu0 %v8290
        %8580 = vmatprep.subr.bf16.mxu0 0
        %8581 = vmatpush1.bf16.msra.mxu0 %v8289
        %8582 = vmatprep.subr.bf16.mxu0 0
        %8583 = vmatpush1.bf16.msra.mxu0 %v8288
        %8584 = vmatprep.subr.bf16.mxu0 0
        %8585 = vmatpush1.bf16.msra.mxu0 %v8287
        %8586 = vmatprep.subr.bf16.mxu0 0
        %8587 = vmatpush1.bf16.msra.mxu0 %v8286
        %8588 = vmatprep.subr.bf16.mxu0 0
        %8589 = vmatpush1.bf16.msra.mxu0 %v8285
        %8590 = vmatprep.subr.bf16.mxu0 0
        %8591 = vmatpush2.bf16.msra.mxu0 %v8300
        %8592 = vmatprep.subr.bf16.mxu0 0
        %8593 = vmatpush2.bf16.msra.mxu0 %v8299
        %8594 = vmatprep.subr.bf16.mxu0 0
        %8595 = vmatpush2.bf16.msra.mxu0 %v8298
        %8596 = vmatprep.subr.bf16.mxu0 0
        %8597 = vmatpush2.bf16.msra.mxu0 %v8297
        %8598 = vmatprep.subr.bf16.mxu0 0
        %8599 = vmatpush2.bf16.msra.mxu0 %v8296
        %8600 = vmatprep.subr.bf16.mxu0 0
        %8601 = vmatpush2.bf16.msra.mxu0 %v8295
        %8602 = vmatprep.subr.bf16.mxu0 0
        %8603 = vmatpush2.bf16.msra.mxu0 %v8294
        %8604 = vmatprep.subr.bf16.mxu0 0
        %8605 = vmatpush2.bf16.msra.mxu0 %v8293
        %8606 = vmatprep.mubr.bf16.mxu0 %v7462
        %8607 = vmatmul.mubr.bf16.gmra.mxu0 %v7382
        %v8608 = vpop.f32.mrf.mxu0
        %v8609 = vadd.f32 %v8448, %v8608
        %v8610 = vpop.f32.mrf.mxu0
        %v8611 = vpop.f32.mrf.mxu0
        %v8612 = vadd.f32 %v8451, %v8611
        %v8613 = vpop.f32.mrf.mxu0
        %8614 = vmatprep.mubr.bf16.mxu0 %v7463
        %8615 = vmatmul.mubr.bf16.gmra.mxu0 %v7383
        %v8616 = vpop.f32.mrf.mxu0
        %v8617 = vadd.f32 %v8456, %v8616
        %v8618 = vpop.f32.mrf.mxu0
        %v8619 = vpop.f32.mrf.mxu0
        %v8620 = vadd.f32 %v8459, %v8619
        %v8621 = vpop.f32.mrf.mxu0
        %8622 = vmatprep.mubr.bf16.mxu0 %v7464
        %8623 = vmatmul.mubr.bf16.gmra.mxu0 %v7384
        %v8624 = vpop.f32.mrf.mxu0
        %v8625 = vadd.f32 %v8464, %v8624
        %v8626 = vpop.f32.mrf.mxu0
        %v8627 = vpop.f32.mrf.mxu0
        %v8628 = vadd.f32 %v8467, %v8627
        %v8629 = vpop.f32.mrf.mxu0
        %8630 = vmatprep.mubr.bf16.mxu0 %v7465
        %8631 = vmatmul.mubr.bf16.gmra.mxu0 %v7385
        %v8632 = vpop.f32.mrf.mxu0
        %v8633 = vadd.f32 %v8472, %v8632
        %v8634 = vpop.f32.mrf.mxu0
        %v8635 = vpop.f32.mrf.mxu0
        %v8636 = vadd.f32 %v8475, %v8635
        %v8637 = vpop.f32.mrf.mxu0
        %8638 = vmatprep.mubr.bf16.mxu0 %v7466
        %8639 = vmatmul.mubr.bf16.gmra.mxu0 %v7386
        %v8640 = vpop.f32.mrf.mxu0
        %v8641 = vadd.f32 %v8480, %v8640
        %v8642 = vpop.f32.mrf.mxu0
        %v8643 = vpop.f32.mrf.mxu0
        %v8644 = vadd.f32 %v8483, %v8643
        %v8645 = vpop.f32.mrf.mxu0
        %8646 = vmatprep.mubr.bf16.mxu0 %v7467
        %8647 = vmatmul.mubr.bf16.gmra.mxu0 %v7387
        %v8648 = vpop.f32.mrf.mxu0
        %v8649 = vadd.f32 %v8488, %v8648
        %v8650 = vpop.f32.mrf.mxu0
        %v8651 = vpop.f32.mrf.mxu0
        %v8652 = vadd.f32 %v8491, %v8651
        %v8653 = vpop.f32.mrf.mxu0
        %8654 = vmatprep.mubr.bf16.mxu0 %v7468
        %8655 = vmatmul.mubr.bf16.gmra.mxu0 %v7388
        %v8656 = vpop.f32.mrf.mxu0
        %v8657 = vadd.f32 %v8496, %v8656
        %v8658 = vpop.f32.mrf.mxu0
        %v8659 = vpop.f32.mrf.mxu0
        %v8660 = vadd.f32 %v8499, %v8659
        %v8661 = vpop.f32.mrf.mxu0
        %8662 = vmatprep.mubr.bf16.mxu0 %v7469
        %8663 = vmatmul.mubr.bf16.gmra.mxu0 %v7389
        %v8664 = vpop.f32.mrf.mxu0
        %v8665 = vadd.f32 %v8504, %v8664
        %v8666 = vpop.f32.mrf.mxu0
        %v8667 = vpop.f32.mrf.mxu0
        %v8668 = vadd.f32 %v8507, %v8667
        %v8669 = vpop.f32.mrf.mxu0
        %8670 = vmatprep.mubr.bf16.mxu0 %v7470
        %8671 = vmatmul.mubr.bf16.gmra.mxu0 %v7390
        %v8672 = vpop.f32.mrf.mxu0
        %v8673 = vadd.f32 %v8512, %v8672
        %v8674 = vpop.f32.mrf.mxu0
        %v8675 = vpop.f32.mrf.mxu0
        %v8676 = vadd.f32 %v8515, %v8675
        %v8677 = vpop.f32.mrf.mxu0
        %8678 = vmatprep.mubr.bf16.mxu0 %v7471
        %8679 = vmatmul.mubr.bf16.gmra.mxu0 %v7391
        %v8680 = vpop.f32.mrf.mxu0
        %v8681 = vadd.f32 %v8520, %v8680
        %v8682 = vpop.f32.mrf.mxu0
        %v8683 = vpop.f32.mrf.mxu0
        %v8684 = vadd.f32 %v8523, %v8683
        %v8685 = vpop.f32.mrf.mxu0
        %8686 = vmatprep.mubr.bf16.mxu0 %v7472
        %8687 = vmatmul.mubr.bf16.gmra.mxu0 %v7392
        %v8688 = vpop.f32.mrf.mxu0
        %v8689 = vadd.f32 %v8528, %v8688
        %v8690 = vpop.f32.mrf.mxu0
        %v8691 = vpop.f32.mrf.mxu0
        %v8692 = vadd.f32 %v8531, %v8691
        %v8693 = vpop.f32.mrf.mxu0
        %8694 = vmatprep.mubr.bf16.mxu0 %v7473
        %8695 = vmatmul.mubr.bf16.gmra.mxu0 %v7393
        %v8696 = vpop.f32.mrf.mxu0
        %v8697 = vadd.f32 %v8536, %v8696
        %v8698 = vpop.f32.mrf.mxu0
        %v8699 = vpop.f32.mrf.mxu0
        %v8700 = vadd.f32 %v8539, %v8699
        %v8701 = vpop.f32.mrf.mxu0
        %8702 = vmatprep.mubr.bf16.mxu0 %v7474
        %8703 = vmatmul.mubr.bf16.gmra.mxu0 %v7394
        %v8704 = vpop.f32.mrf.mxu0
        %v8705 = vadd.f32 %v8544, %v8704
        %v8706 = vpop.f32.mrf.mxu0
        %v8707 = vpop.f32.mrf.mxu0
        %v8708 = vadd.f32 %v8547, %v8707
        %v8709 = vpop.f32.mrf.mxu0
        %8710 = vmatprep.mubr.bf16.mxu0 %v7475
        %8711 = vmatmul.mubr.bf16.gmra.mxu0 %v7395
        %v8712 = vpop.f32.mrf.mxu0
        %v8713 = vadd.f32 %v8552, %v8712
        %v8714 = vpop.f32.mrf.mxu0
        %v8715 = vpop.f32.mrf.mxu0
        %v8716 = vadd.f32 %v8555, %v8715
        %v8717 = vpop.f32.mrf.mxu0
        %8718 = vmatprep.mubr.bf16.mxu0 %v7476
        %8719 = vmatmul.mubr.bf16.gmra.mxu0 %v7396
        %v8720 = vpop.f32.mrf.mxu0
        %v8721 = vadd.f32 %v8560, %v8720
        %v8722 = vpop.f32.mrf.mxu0
        %v8723 = vpop.f32.mrf.mxu0
        %v8724 = vadd.f32 %v8563, %v8723
        %v8725 = vpop.f32.mrf.mxu0
        %8726 = vmatprep.mubr.bf16.mxu0 %v7477
        %8727 = vmatmul.mubr.bf16.gmra.mxu0 %v7397
        %v8728 = vpop.f32.mrf.mxu0
        %v8729 = vadd.f32 %v8568, %v8728
        %v8730 = vpop.f32.mrf.mxu0
        %v8731 = vpop.f32.mrf.mxu0
        %v8732 = vadd.f32 %v8571, %v8731
        %v8733 = vpop.f32.mrf.mxu0
        %8734 = vdwg.mxu0
        %8735 = vmatprep.subr.bf16.mxu0 0
        %8736 = vmatpush1.bf16.msra.mxu0 %v8308
        %8737 = vmatprep.subr.bf16.mxu0 0
        %8738 = vmatpush1.bf16.msra.mxu0 %v8307
        %8739 = vmatprep.subr.bf16.mxu0 0
        %8740 = vmatpush1.bf16.msra.mxu0 %v8306
        %8741 = vmatprep.subr.bf16.mxu0 0
        %8742 = vmatpush1.bf16.msra.mxu0 %v8305
        %8743 = vmatprep.subr.bf16.mxu0 0
        %8744 = vmatpush1.bf16.msra.mxu0 %v8304
        %8745 = vmatprep.subr.bf16.mxu0 0
        %8746 = vmatpush1.bf16.msra.mxu0 %v8303
        %8747 = vmatprep.subr.bf16.mxu0 0
        %8748 = vmatpush1.bf16.msra.mxu0 %v8302
        %8749 = vmatprep.subr.bf16.mxu0 0
        %8750 = vmatpush1.bf16.msra.mxu0 %v8301
        %8751 = vmatprep.subr.bf16.mxu0 0
        %8752 = vmatpush2.bf16.msra.mxu0 %v8316
        %8753 = vmatprep.subr.bf16.mxu0 0
        %8754 = vmatpush2.bf16.msra.mxu0 %v8315
        %8755 = vmatprep.subr.bf16.mxu0 0
        %8756 = vmatpush2.bf16.msra.mxu0 %v8314
        %8757 = vmatprep.subr.bf16.mxu0 0
        %8758 = vmatpush2.bf16.msra.mxu0 %v8313
        %8759 = vmatprep.subr.bf16.mxu0 0
        %8760 = vmatpush2.bf16.msra.mxu0 %v8312
        %8761 = vmatprep.subr.bf16.mxu0 0
        %8762 = vmatpush2.bf16.msra.mxu0 %v8311
        %8763 = vmatprep.subr.bf16.mxu0 0
        %8764 = vmatpush2.bf16.msra.mxu0 %v8310
        %8765 = vmatprep.subr.bf16.mxu0 0
        %8766 = vmatpush2.bf16.msra.mxu0 %v8309
        %8767 = vmatprep.mubr.bf16.mxu0 %v7590
        %8768 = vmatmul.mubr.bf16.gmra.mxu0 %v7526
        %v8769 = vpop.f32.mrf.mxu0
        %v8770 = vadd.f32 %v8609, %v8769
        %v8771 = vpop.f32.mrf.mxu0
        %v8772 = vpop.f32.mrf.mxu0
        %v8773 = vadd.f32 %v8612, %v8772
        %v8774 = vpop.f32.mrf.mxu0
        %8775 = vmatprep.mubr.bf16.mxu0 %v7591
        %8776 = vmatmul.mubr.bf16.gmra.mxu0 %v7527
        %v8777 = vpop.f32.mrf.mxu0
        %v8778 = vadd.f32 %v8617, %v8777
        %v8779 = vpop.f32.mrf.mxu0
        %v8780 = vpop.f32.mrf.mxu0
        %v8781 = vadd.f32 %v8620, %v8780
        %v8782 = vpop.f32.mrf.mxu0
        %8783 = vmatprep.mubr.bf16.mxu0 %v7592
        %8784 = vmatmul.mubr.bf16.gmra.mxu0 %v7528
        %v8785 = vpop.f32.mrf.mxu0
        %v8786 = vadd.f32 %v8625, %v8785
        %v8787 = vpop.f32.mrf.mxu0
        %v8788 = vpop.f32.mrf.mxu0
        %v8789 = vadd.f32 %v8628, %v8788
        %v8790 = vpop.f32.mrf.mxu0
        %8791 = vmatprep.mubr.bf16.mxu0 %v7593
        %8792 = vmatmul.mubr.bf16.gmra.mxu0 %v7529
        %v8793 = vpop.f32.mrf.mxu0
        %v8794 = vadd.f32 %v8633, %v8793
        %v8795 = vpop.f32.mrf.mxu0
        %v8796 = vpop.f32.mrf.mxu0
        %v8797 = vadd.f32 %v8636, %v8796
        %v8798 = vpop.f32.mrf.mxu0
        %8799 = vmatprep.mubr.bf16.mxu0 %v7594
        %8800 = vmatmul.mubr.bf16.gmra.mxu0 %v7530
        %v8801 = vpop.f32.mrf.mxu0
        %v8802 = vadd.f32 %v8641, %v8801
        %v8803 = vpop.f32.mrf.mxu0
        %v8804 = vpop.f32.mrf.mxu0
        %v8805 = vadd.f32 %v8644, %v8804
        %v8806 = vpop.f32.mrf.mxu0
        %8807 = vmatprep.mubr.bf16.mxu0 %v7595
        %8808 = vmatmul.mubr.bf16.gmra.mxu0 %v7531
        %v8809 = vpop.f32.mrf.mxu0
        %v8810 = vadd.f32 %v8649, %v8809
        %v8811 = vpop.f32.mrf.mxu0
        %v8812 = vpop.f32.mrf.mxu0
        %v8813 = vadd.f32 %v8652, %v8812
        %v8814 = vpop.f32.mrf.mxu0
        %8815 = vmatprep.mubr.bf16.mxu0 %v7596
        %8816 = vmatmul.mubr.bf16.gmra.mxu0 %v7532
        %v8817 = vpop.f32.mrf.mxu0
        %v8818 = vadd.f32 %v8657, %v8817
        %v8819 = vpop.f32.mrf.mxu0
        %v8820 = vpop.f32.mrf.mxu0
        %v8821 = vadd.f32 %v8660, %v8820
        %v8822 = vpop.f32.mrf.mxu0
        %8823 = vmatprep.mubr.bf16.mxu0 %v7597
        %8824 = vmatmul.mubr.bf16.gmra.mxu0 %v7533
        %v8825 = vpop.f32.mrf.mxu0
        %v8826 = vadd.f32 %v8665, %v8825
        %v8827 = vpop.f32.mrf.mxu0
        %v8828 = vpop.f32.mrf.mxu0
        %v8829 = vadd.f32 %v8668, %v8828
        %v8830 = vpop.f32.mrf.mxu0
        %8831 = vmatprep.mubr.bf16.mxu0 %v7598
        %8832 = vmatmul.mubr.bf16.gmra.mxu0 %v7534
        %v8833 = vpop.f32.mrf.mxu0
        %v8834 = vadd.f32 %v8673, %v8833
        %v8835 = vpop.f32.mrf.mxu0
        %v8836 = vpop.f32.mrf.mxu0
        %v8837 = vadd.f32 %v8676, %v8836
        %v8838 = vpop.f32.mrf.mxu0
        %8839 = vmatprep.mubr.bf16.mxu0 %v7599
        %8840 = vmatmul.mubr.bf16.gmra.mxu0 %v7535
        %v8841 = vpop.f32.mrf.mxu0
        %v8842 = vadd.f32 %v8681, %v8841
        %v8843 = vpop.f32.mrf.mxu0
        %v8844 = vpop.f32.mrf.mxu0
        %v8845 = vadd.f32 %v8684, %v8844
        %v8846 = vpop.f32.mrf.mxu0
        %8847 = vmatprep.mubr.bf16.mxu0 %v7600
        %8848 = vmatmul.mubr.bf16.gmra.mxu0 %v7536
        %v8849 = vpop.f32.mrf.mxu0
        %v8850 = vadd.f32 %v8689, %v8849
        %v8851 = vpop.f32.mrf.mxu0
        %v8852 = vpop.f32.mrf.mxu0
        %v8853 = vadd.f32 %v8692, %v8852
        %v8854 = vpop.f32.mrf.mxu0
        %8855 = vmatprep.mubr.bf16.mxu0 %v7601
        %8856 = vmatmul.mubr.bf16.gmra.mxu0 %v7537
        %v8857 = vpop.f32.mrf.mxu0
        %v8858 = vadd.f32 %v8697, %v8857
        %v8859 = vpop.f32.mrf.mxu0
        %v8860 = vpop.f32.mrf.mxu0
        %v8861 = vadd.f32 %v8700, %v8860
        %v8862 = vpop.f32.mrf.mxu0
        %8863 = vmatprep.mubr.bf16.mxu0 %v7602
        %8864 = vmatmul.mubr.bf16.gmra.mxu0 %v7538
        %v8865 = vpop.f32.mrf.mxu0
        %v8866 = vadd.f32 %v8705, %v8865
        %v8867 = vpop.f32.mrf.mxu0
        %v8868 = vpop.f32.mrf.mxu0
        %v8869 = vadd.f32 %v8708, %v8868
        %v8870 = vpop.f32.mrf.mxu0
        %8871 = vmatprep.mubr.bf16.mxu0 %v7603
        %8872 = vmatmul.mubr.bf16.gmra.mxu0 %v7539
        %v8873 = vpop.f32.mrf.mxu0
        %v8874 = vadd.f32 %v8713, %v8873
        %v8875 = vpop.f32.mrf.mxu0
        %v8876 = vpop.f32.mrf.mxu0
        %v8877 = vadd.f32 %v8716, %v8876
        %v8878 = vpop.f32.mrf.mxu0
        %8879 = vmatprep.mubr.bf16.mxu0 %v7604
        %8880 = vmatmul.mubr.bf16.gmra.mxu0 %v7540
        %v8881 = vpop.f32.mrf.mxu0
        %v8882 = vadd.f32 %v8721, %v8881
        %v8883 = vpop.f32.mrf.mxu0
        %v8884 = vpop.f32.mrf.mxu0
        %v8885 = vadd.f32 %v8724, %v8884
        %v8886 = vpop.f32.mrf.mxu0
        %8887 = vmatprep.mubr.bf16.mxu0 %v7605
        %8888 = vmatmul.mubr.bf16.gmra.mxu0 %v7541
        %v8889 = vpop.f32.mrf.mxu0
        %v8890 = vadd.f32 %v8729, %v8889
        %v8891 = vpop.f32.mrf.mxu0
        %v8892 = vpop.f32.mrf.mxu0
        %v8893 = vadd.f32 %v8732, %v8892
        %v8894 = vpop.f32.mrf.mxu0
        %8895 = vdwg.mxu0
        %8896 = vmatprep.subr.bf16.mxu0 0
        %8897 = vmatpush1.bf16.msra.mxu0 %v8324
        %8898 = vmatprep.subr.bf16.mxu0 0
        %8899 = vmatpush1.bf16.msra.mxu0 %v8323
        %8900 = vmatprep.subr.bf16.mxu0 0
        %8901 = vmatpush1.bf16.msra.mxu0 %v8322
        %8902 = vmatprep.subr.bf16.mxu0 0
        %8903 = vmatpush1.bf16.msra.mxu0 %v8321
        %8904 = vmatprep.subr.bf16.mxu0 0
        %8905 = vmatpush1.bf16.msra.mxu0 %v8320
        %8906 = vmatprep.subr.bf16.mxu0 0
        %8907 = vmatpush1.bf16.msra.mxu0 %v8319
        %8908 = vmatprep.subr.bf16.mxu0 0
        %8909 = vmatpush1.bf16.msra.mxu0 %v8318
        %8910 = vmatprep.subr.bf16.mxu0 0
        %8911 = vmatpush1.bf16.msra.mxu0 %v8317
        %8912 = vmatprep.subr.bf16.mxu0 0
        %8913 = vmatpush2.bf16.msra.mxu0 %v8332
        %8914 = vmatprep.subr.bf16.mxu0 0
        %8915 = vmatpush2.bf16.msra.mxu0 %v8331
        %8916 = vmatprep.subr.bf16.mxu0 0
        %8917 = vmatpush2.bf16.msra.mxu0 %v8330
        %8918 = vmatprep.subr.bf16.mxu0 0
        %8919 = vmatpush2.bf16.msra.mxu0 %v8329
        %8920 = vmatprep.subr.bf16.mxu0 0
        %8921 = vmatpush2.bf16.msra.mxu0 %v8328
        %8922 = vmatprep.subr.bf16.mxu0 0
        %8923 = vmatpush2.bf16.msra.mxu0 %v8327
        %8924 = vmatprep.subr.bf16.mxu0 0
        %8925 = vmatpush2.bf16.msra.mxu0 %v8326
        %8926 = vmatprep.subr.bf16.mxu0 0
        %8927 = vmatpush2.bf16.msra.mxu0 %v8325
        %8928 = vmatprep.mubr.bf16.mxu0 %v7734
        %8929 = vmatmul.mubr.bf16.gmra.mxu0 %v7670
        %v8930 = vpop.f32.mrf.mxu0
        %v8931 = vadd.f32 %v8770, %v8930
        %v8932 = vpop.f32.mrf.mxu0
        %v8933 = vpop.f32.mrf.mxu0
        %v8934 = vadd.f32 %v8773, %v8933
        %v8935 = vpop.f32.mrf.mxu0
        %8936 = vmatprep.mubr.bf16.mxu0 %v7735
        %8937 = vmatmul.mubr.bf16.gmra.mxu0 %v7671
        %v8938 = vpop.f32.mrf.mxu0
        %v8939 = vadd.f32 %v8778, %v8938
        %v8940 = vpop.f32.mrf.mxu0
        %v8941 = vpop.f32.mrf.mxu0
        %v8942 = vadd.f32 %v8781, %v8941
        %v8943 = vpop.f32.mrf.mxu0
        %8944 = vmatprep.mubr.bf16.mxu0 %v7736
        %8945 = vmatmul.mubr.bf16.gmra.mxu0 %v7672
        %v8946 = vpop.f32.mrf.mxu0
        %v8947 = vadd.f32 %v8786, %v8946
        %v8948 = vpop.f32.mrf.mxu0
        %v8949 = vpop.f32.mrf.mxu0
        %v8950 = vadd.f32 %v8789, %v8949
        %v8951 = vpop.f32.mrf.mxu0
        %8952 = vmatprep.mubr.bf16.mxu0 %v7737
        %8953 = vmatmul.mubr.bf16.gmra.mxu0 %v7673
        %v8954 = vpop.f32.mrf.mxu0
        %v8955 = vadd.f32 %v8794, %v8954
        %v8956 = vpop.f32.mrf.mxu0
        %v8957 = vpop.f32.mrf.mxu0
        %v8958 = vadd.f32 %v8797, %v8957
        %v8959 = vpop.f32.mrf.mxu0
        %8960 = vmatprep.mubr.bf16.mxu0 %v7738
        %8961 = vmatmul.mubr.bf16.gmra.mxu0 %v7674
        %v8962 = vpop.f32.mrf.mxu0
        %v8963 = vadd.f32 %v8802, %v8962
        %v8964 = vpop.f32.mrf.mxu0
        %v8965 = vpop.f32.mrf.mxu0
        %v8966 = vadd.f32 %v8805, %v8965
        %v8967 = vpop.f32.mrf.mxu0
        %8968 = vmatprep.mubr.bf16.mxu0 %v7739
        %8969 = vmatmul.mubr.bf16.gmra.mxu0 %v7675
        %v8970 = vpop.f32.mrf.mxu0
        %v8971 = vadd.f32 %v8810, %v8970
        %v8972 = vpop.f32.mrf.mxu0
        %v8973 = vpop.f32.mrf.mxu0
        %v8974 = vadd.f32 %v8813, %v8973
        %v8975 = vpop.f32.mrf.mxu0
        %8976 = vmatprep.mubr.bf16.mxu0 %v7740
        %8977 = vmatmul.mubr.bf16.gmra.mxu0 %v7676
        %v8978 = vpop.f32.mrf.mxu0
        %v8979 = vadd.f32 %v8818, %v8978
        %v8980 = vpop.f32.mrf.mxu0
        %v8981 = vpop.f32.mrf.mxu0
        %v8982 = vadd.f32 %v8821, %v8981
        %v8983 = vpop.f32.mrf.mxu0
        %8984 = vmatprep.mubr.bf16.mxu0 %v7741
        %8985 = vmatmul.mubr.bf16.gmra.mxu0 %v7677
        %v8986 = vpop.f32.mrf.mxu0
        %v8987 = vadd.f32 %v8826, %v8986
        %v8988 = vpop.f32.mrf.mxu0
        %v8989 = vpop.f32.mrf.mxu0
        %v8990 = vadd.f32 %v8829, %v8989
        %v8991 = vpop.f32.mrf.mxu0
        %8992 = vmatprep.mubr.bf16.mxu0 %v7742
        %8993 = vmatmul.mubr.bf16.gmra.mxu0 %v7678
        %v8994 = vpop.f32.mrf.mxu0
        %v8995 = vadd.f32 %v8834, %v8994
        %v8996 = vpop.f32.mrf.mxu0
        %v8997 = vpop.f32.mrf.mxu0
        %v8998 = vadd.f32 %v8837, %v8997
        %v8999 = vpop.f32.mrf.mxu0
        %9000 = vmatprep.mubr.bf16.mxu0 %v7743
        %9001 = vmatmul.mubr.bf16.gmra.mxu0 %v7679
        %v9002 = vpop.f32.mrf.mxu0
        %v9003 = vadd.f32 %v8842, %v9002
        %v9004 = vpop.f32.mrf.mxu0
        %v9005 = vpop.f32.mrf.mxu0
        %v9006 = vadd.f32 %v8845, %v9005
        %v9007 = vpop.f32.mrf.mxu0
        %9008 = vmatprep.mubr.bf16.mxu0 %v7744
        %9009 = vmatmul.mubr.bf16.gmra.mxu0 %v7680
        %v9010 = vpop.f32.mrf.mxu0
        %v9011 = vadd.f32 %v8850, %v9010
        %v9012 = vpop.f32.mrf.mxu0
        %v9013 = vpop.f32.mrf.mxu0
        %v9014 = vadd.f32 %v8853, %v9013
        %v9015 = vpop.f32.mrf.mxu0
        %9016 = vmatprep.mubr.bf16.mxu0 %v7745
        %9017 = vmatmul.mubr.bf16.gmra.mxu0 %v7681
        %v9018 = vpop.f32.mrf.mxu0
        %v9019 = vadd.f32 %v8858, %v9018
        %v9020 = vpop.f32.mrf.mxu0
        %v9021 = vpop.f32.mrf.mxu0
        %v9022 = vadd.f32 %v8861, %v9021
        %v9023 = vpop.f32.mrf.mxu0
        %9024 = vmatprep.mubr.bf16.mxu0 %v7746
        %9025 = vmatmul.mubr.bf16.gmra.mxu0 %v7682
        %v9026 = vpop.f32.mrf.mxu0
        %v9027 = vadd.f32 %v8866, %v9026
        %v9028 = vpop.f32.mrf.mxu0
        %v9029 = vpop.f32.mrf.mxu0
        %v9030 = vadd.f32 %v8869, %v9029
        %v9031 = vpop.f32.mrf.mxu0
        %9032 = vmatprep.mubr.bf16.mxu0 %v7747
        %9033 = vmatmul.mubr.bf16.gmra.mxu0 %v7683
        %v9034 = vpop.f32.mrf.mxu0
        %v9035 = vadd.f32 %v8874, %v9034
        %v9036 = vpop.f32.mrf.mxu0
        %v9037 = vpop.f32.mrf.mxu0
        %v9038 = vadd.f32 %v8877, %v9037
        %v9039 = vpop.f32.mrf.mxu0
        %9040 = vmatprep.mubr.bf16.mxu0 %v7748
        %9041 = vmatmul.mubr.bf16.gmra.mxu0 %v7684
        %v9042 = vpop.f32.mrf.mxu0
        %v9043 = vadd.f32 %v8882, %v9042
        %v9044 = vpop.f32.mrf.mxu0
        %v9045 = vpop.f32.mrf.mxu0
        %v9046 = vadd.f32 %v8885, %v9045
        %v9047 = vpop.f32.mrf.mxu0
        %9048 = vmatprep.mubr.bf16.mxu0 %v7749
        %9049 = vmatmul.mubr.bf16.gmra.mxu0 %v7685
        %v9050 = vpop.f32.mrf.mxu0
        %v9051 = vadd.f32 %v8890, %v9050
        %v9052 = vpop.f32.mrf.mxu0
        %v9053 = vpop.f32.mrf.mxu0
        %v9054 = vadd.f32 %v8893, %v9053
        %v9055 = vpop.f32.mrf.mxu0
        %9056 = vdwg.mxu0
        %9057 = vmatprep.subr.bf16.mxu0 0
        %9058 = vmatpush1.bf16.msra.mxu0 %v8340
        %9059 = vmatprep.subr.bf16.mxu0 0
        %9060 = vmatpush1.bf16.msra.mxu0 %v8339
        %9061 = vmatprep.subr.bf16.mxu0 0
        %9062 = vmatpush1.bf16.msra.mxu0 %v8338
        %9063 = vmatprep.subr.bf16.mxu0 0
        %9064 = vmatpush1.bf16.msra.mxu0 %v8337
        %9065 = vmatprep.subr.bf16.mxu0 0
        %9066 = vmatpush1.bf16.msra.mxu0 %v8336
        %9067 = vmatprep.subr.bf16.mxu0 0
        %9068 = vmatpush1.bf16.msra.mxu0 %v8335
        %9069 = vmatprep.subr.bf16.mxu0 0
        %9070 = vmatpush1.bf16.msra.mxu0 %v8334
        %9071 = vmatprep.subr.bf16.mxu0 0
        %9072 = vmatpush1.bf16.msra.mxu0 %v8333
        %9073 = vmatprep.subr.bf16.mxu0 0
        %9074 = vmatpush2.bf16.msra.mxu0 0
        %9075 = vmatprep.subr.bf16.mxu0 0
        %9076 = vmatpush2.bf16.msra.mxu0 0
        %9077 = vmatprep.subr.bf16.mxu0 0
        %9078 = vmatpush2.bf16.msra.mxu0 0
        %9079 = vmatprep.subr.bf16.mxu0 0
        %9080 = vmatpush2.bf16.msra.mxu0 0
        %9081 = vmatprep.subr.bf16.mxu0 0
        %9082 = vmatpush2.bf16.msra.mxu0 0
        %9083 = vmatprep.subr.bf16.mxu0 0
        %9084 = vmatpush2.bf16.msra.mxu0 0
        %9085 = vmatprep.subr.bf16.mxu0 0
        %9086 = vmatpush2.bf16.msra.mxu0 0
        %9087 = vmatprep.subr.bf16.mxu0 0
        %9088 = vmatpush2.bf16.msra.mxu0 0
        %9089 = vmatprep.mubr.bf16.mxu0 0
        %9090 = vmatmul.mubr.bf16.gmra.mxu0 %v7798
        %v9091 = vpop.f32.mrf.mxu0
        %v9092 = vadd.f32 %v8931, %v9091
        %v9093 = vpop.f32.mrf.mxu0
        %v9094 = vpop.f32.mrf.mxu0
        %v9095 = vadd.f32 %v8934, %v9094
        %v9096 = vpop.f32.mrf.mxu0
        %9097 = vmatprep.mubr.bf16.mxu0 0
        %9098 = vmatmul.mubr.bf16.gmra.mxu0 %v7799
        %v9099 = vpop.f32.mrf.mxu0
        %v9100 = vadd.f32 %v8939, %v9099
        %v9101 = vpop.f32.mrf.mxu0
        %v9102 = vpop.f32.mrf.mxu0
        %v9103 = vadd.f32 %v8942, %v9102
        %v9104 = vpop.f32.mrf.mxu0
        %9105 = vmatprep.mubr.bf16.mxu0 0
        %9106 = vmatmul.mubr.bf16.gmra.mxu0 %v7800
        %v9107 = vpop.f32.mrf.mxu0
        %v9108 = vadd.f32 %v8947, %v9107
        %v9109 = vpop.f32.mrf.mxu0
        %v9110 = vpop.f32.mrf.mxu0
        %v9111 = vadd.f32 %v8950, %v9110
        %v9112 = vpop.f32.mrf.mxu0
        %9113 = vmatprep.mubr.bf16.mxu0 0
        %9114 = vmatmul.mubr.bf16.gmra.mxu0 %v7801
        %v9115 = vpop.f32.mrf.mxu0
        %v9116 = vadd.f32 %v8955, %v9115
        %v9117 = vpop.f32.mrf.mxu0
        %v9118 = vpop.f32.mrf.mxu0
        %v9119 = vadd.f32 %v8958, %v9118
        %v9120 = vpop.f32.mrf.mxu0
        %9121 = vmatprep.mubr.bf16.mxu0 0
        %9122 = vmatmul.mubr.bf16.gmra.mxu0 %v7802
        %v9123 = vpop.f32.mrf.mxu0
        %v9124 = vadd.f32 %v8963, %v9123
        %v9125 = vpop.f32.mrf.mxu0
        %v9126 = vpop.f32.mrf.mxu0
        %v9127 = vadd.f32 %v8966, %v9126
        %v9128 = vpop.f32.mrf.mxu0
        %9129 = vmatprep.mubr.bf16.mxu0 0
        %9130 = vmatmul.mubr.bf16.gmra.mxu0 %v7803
        %v9131 = vpop.f32.mrf.mxu0
        %v9132 = vadd.f32 %v8971, %v9131
        %v9133 = vpop.f32.mrf.mxu0
        %v9134 = vpop.f32.mrf.mxu0
        %v9135 = vadd.f32 %v8974, %v9134
        %v9136 = vpop.f32.mrf.mxu0
        %9137 = vmatprep.mubr.bf16.mxu0 0
        %9138 = vmatmul.mubr.bf16.gmra.mxu0 %v7804
        %v9139 = vpop.f32.mrf.mxu0
        %v9140 = vadd.f32 %v8979, %v9139
        %v9141 = vpop.f32.mrf.mxu0
        %v9142 = vpop.f32.mrf.mxu0
        %v9143 = vadd.f32 %v8982, %v9142
        %v9144 = vpop.f32.mrf.mxu0
        %9145 = vmatprep.mubr.bf16.mxu0 0
        %9146 = vmatmul.mubr.bf16.gmra.mxu0 %v7805
        %v9147 = vpop.f32.mrf.mxu0
        %v9148 = vadd.f32 %v8987, %v9147
        %v9149 = vpop.f32.mrf.mxu0
        %v9150 = vpop.f32.mrf.mxu0
        %v9151 = vadd.f32 %v8990, %v9150
        %v9152 = vpop.f32.mrf.mxu0
        %9153 = vmatprep.mubr.bf16.mxu0 0
        %9154 = vmatmul.mubr.bf16.gmra.mxu0 %v7806
        %v9155 = vpop.f32.mrf.mxu0
        %v9156 = vadd.f32 %v8995, %v9155
        %v9157 = vpop.f32.mrf.mxu0
        %v9158 = vpop.f32.mrf.mxu0
        %v9159 = vadd.f32 %v8998, %v9158
        %v9160 = vpop.f32.mrf.mxu0
        %9161 = vmatprep.mubr.bf16.mxu0 0
        %9162 = vmatmul.mubr.bf16.gmra.mxu0 %v7807
        %v9163 = vpop.f32.mrf.mxu0
        %v9164 = vadd.f32 %v9003, %v9163
        %v9165 = vpop.f32.mrf.mxu0
        %v9166 = vpop.f32.mrf.mxu0
        %v9167 = vadd.f32 %v9006, %v9166
        %v9168 = vpop.f32.mrf.mxu0
        %9169 = vmatprep.mubr.bf16.mxu0 0
        %9170 = vmatmul.mubr.bf16.gmra.mxu0 %v7808
        %v9171 = vpop.f32.mrf.mxu0
        %v9172 = vadd.f32 %v9011, %v9171
        %v9173 = vpop.f32.mrf.mxu0
        %v9174 = vpop.f32.mrf.mxu0
        %v9175 = vadd.f32 %v9014, %v9174
        %v9176 = vpop.f32.mrf.mxu0
        %9177 = vmatprep.mubr.bf16.mxu0 0
        %9178 = vmatmul.mubr.bf16.gmra.mxu0 %v7809
        %v9179 = vpop.f32.mrf.mxu0
        %v9180 = vadd.f32 %v9019, %v9179
        %v9181 = vpop.f32.mrf.mxu0
        %v9182 = vpop.f32.mrf.mxu0
        %v9183 = vadd.f32 %v9022, %v9182
        %v9184 = vpop.f32.mrf.mxu0
        %9185 = vmatprep.mubr.bf16.mxu0 0
        %9186 = vmatmul.mubr.bf16.gmra.mxu0 %v7810
        %v9187 = vpop.f32.mrf.mxu0
        %v9188 = vadd.f32 %v9027, %v9187
        %v9189 = vpop.f32.mrf.mxu0
        %v9190 = vpop.f32.mrf.mxu0
        %v9191 = vadd.f32 %v9030, %v9190
        %v9192 = vpop.f32.mrf.mxu0
        %9193 = vmatprep.mubr.bf16.mxu0 0
        %9194 = vmatmul.mubr.bf16.gmra.mxu0 %v7811
        %v9195 = vpop.f32.mrf.mxu0
        %v9196 = vadd.f32 %v9035, %v9195
        %v9197 = vpop.f32.mrf.mxu0
        %v9198 = vpop.f32.mrf.mxu0
        %v9199 = vadd.f32 %v9038, %v9198
        %v9200 = vpop.f32.mrf.mxu0
        %9201 = vmatprep.mubr.bf16.mxu0 0
        %9202 = vmatmul.mubr.bf16.gmra.mxu0 %v7812
        %v9203 = vpop.f32.mrf.mxu0
        %v9204 = vadd.f32 %v9043, %v9203
        %v9205 = vpop.f32.mrf.mxu0
        %v9206 = vpop.f32.mrf.mxu0
        %v9207 = vadd.f32 %v9046, %v9206
        %v9208 = vpop.f32.mrf.mxu0
        %9209 = vmatprep.mubr.bf16.mxu0 0
        %9210 = vmatmul.mubr.bf16.gmra.mxu0 %v7813
        %v9211 = vpop.f32.mrf.mxu0
        %v9212 = vadd.f32 %v9051, %v9211
        %v9213 = vpop.f32.mrf.mxu0
        %v9214 = vpop.f32.mrf.mxu0
        %v9215 = vadd.f32 %v9054, %v9214
        %v9216 = vpop.f32.mrf.mxu0
        %9217 = vdwg.mxu0
        %v9218 = vmax.f32 %v9092, 0.0
        %v9219 = vmax.f32 %v9095, 0.0
        %v9220 = vmax.f32 %v9100, 0.0
        %v9221 = vmax.f32 %v9103, 0.0
        %v9222 = vmax.f32 %v9108, 0.0
        %v9223 = vmax.f32 %v9111, 0.0
        %v9224 = vmax.f32 %v9116, 0.0
        %v9225 = vmax.f32 %v9119, 0.0
        %v9226 = vmax.f32 %v9124, 0.0
        %v9227 = vmax.f32 %v9127, 0.0
        %v9228 = vmax.f32 %v9132, 0.0
        %v9229 = vmax.f32 %v9135, 0.0
        %v9230 = vmax.f32 %v9140, 0.0
        %v9231 = vmax.f32 %v9143, 0.0
        %v9232 = vmax.f32 %v9148, 0.0
        %v9233 = vmax.f32 %v9151, 0.0
        %v9234 = vmax.f32 %v9156, 0.0
        %v9235 = vmax.f32 %v9159, 0.0
        %v9236 = vmax.f32 %v9164, 0.0
        %v9237 = vmax.f32 %v9167, 0.0
        %v9238 = vmax.f32 %v9172, 0.0
        %v9239 = vmax.f32 %v9175, 0.0
        %v9240 = vmax.f32 %v9180, 0.0
        %v9241 = vmax.f32 %v9183, 0.0
        %v9242 = vmax.f32 %v9188, 0.0
        %v9243 = vmax.f32 %v9191, 0.0
        %v9244 = vmax.f32 %v9196, 0.0
        %v9245 = vmax.f32 %v9199, 0.0
        %v9246 = vmax.f32 %v9204, 0.0
        %v9247 = vmax.f32 %v9207, 0.0
        %v9248 = vmax.f32 %v9212, 0.0
        %v9249 = vmax.f32 %v9215, 0.0
        %v9250 = vpack.c.bf16 %v9219, %v9218
        %v9251 = vpack.c.bf16 %v9221, %v9220
        %v9252 = vpack.c.bf16 %v9223, %v9222
        %v9253 = vpack.c.bf16 %v9225, %v9224
        %v9254 = vpack.c.bf16 %v9227, %v9226
        %v9255 = vpack.c.bf16 %v9229, %v9228
        %v9256 = vpack.c.bf16 %v9231, %v9230
        %v9257 = vpack.c.bf16 %v9233, %v9232
        %v9258 = vpack.c.bf16 %v9235, %v9234
        %v9259 = vpack.c.bf16 %v9237, %v9236
        %v9260 = vpack.c.bf16 %v9239, %v9238
        %v9261 = vpack.c.bf16 %v9241, %v9240
        %v9262 = vpack.c.bf16 %v9243, %v9242
        %v9263 = vpack.c.bf16 %v9245, %v9244
        %v9264 = vpack.c.bf16 %v9247, %v9246
        %v9265 = vpack.c.bf16 %v9249, %v9248
        %v9266 = vld [vmem:[%s5] sm:$0xf]
        %v9267 = vld [vmem:[%s5 + $0x4] sm:$0xf]
        %v9268 = vld [vmem:[%s5 + $0x8] sm:$0xf]
        %v9269 = vld [vmem:[%s5 + $0xc] sm:$0xf]
        %v9270 = vld [vmem:[%s5 + $0x10] sm:$0xf]
        %v9271 = vld [vmem:[%s5 + $0x14] sm:$0xf]
        %v9272 = vld [vmem:[%s5 + $0x18] sm:$0xf]
        %v9273 = vld [vmem:[%s5 + $0x1c] sm:$0xf]
        %v9274 = vld [vmem:[%s5 + $0x20] sm:$0xf]
        %v9275 = vld [vmem:[%s5 + $0x24] sm:$0xf]
        %v9276 = vld [vmem:[%s5 + $0x28] sm:$0xf]
        %v9277 = vld [vmem:[%s5 + $0x2c] sm:$0xf]
        %v9278 = vld [vmem:[%s5 + $0x30] sm:$0xf]
        %v9279 = vld [vmem:[%s5 + $0x34] sm:$0xf]
        %v9280 = vld [vmem:[%s5 + $0x38] sm:$0xf]
        %v9281 = vld [vmem:[%s5 + $0x3c] sm:$0xf]
        %v9282 = vld [vmem:[%s6] sm:$0x1]
        %v9284 = vlaneseq
        %v9285 = vshrl.u32 %v9284, 7
        %v9286 = vsub.s32 0, %v9285
        %v9287 = vrot.slane %v9282, %v9286
        %v9305 = vunpack.c.l.b16 %v9266
        %v9306 = vunpack.c.l.b16 %v9267
        %v9307 = vunpack.c.l.b16 %v9268
        %v9308 = vunpack.c.l.b16 %v9269
        %v9309 = vunpack.c.l.b16 %v9270
        %v9310 = vunpack.c.l.b16 %v9271
        %v9311 = vunpack.c.l.b16 %v9272
        %v9312 = vunpack.c.l.b16 %v9273
        %v9313 = vunpack.c.l.b16 %v9274
        %v9314 = vunpack.c.l.b16 %v9275
        %v9315 = vunpack.c.l.b16 %v9276
        %v9316 = vunpack.c.l.b16 %v9277
        %v9317 = vunpack.c.l.b16 %v9278
        %v9318 = vunpack.c.l.b16 %v9279
        %v9319 = vunpack.c.l.b16 %v9280
        %v9320 = vunpack.c.l.b16 %v9281
        %v9321 = vpack.c.b16 %v9306, %v9305
        %v9322 = vpack.c.b16 %v9308, %v9307
        %v9323 = vpack.c.b16 %v9310, %v9309
        %v9324 = vpack.c.b16 %v9312, %v9311
        %v9325 = vpack.c.b16 %v9314, %v9313
        %v9326 = vpack.c.b16 %v9316, %v9315
        %v9327 = vpack.c.b16 %v9318, %v9317
        %v9328 = vpack.c.b16 %v9320, %v9319
        %9337 = vmatprep.subr.bf16.mxu0 0
        %9338 = vmatpush1.bf16.msra.mxu0 %v9328
        %9339 = vmatprep.subr.bf16.mxu0 0
        %9340 = vmatpush1.bf16.msra.mxu0 %v9327
        %9341 = vmatprep.subr.bf16.mxu0 0
        %9342 = vmatpush1.bf16.msra.mxu0 %v9326
        %9343 = vmatprep.subr.bf16.mxu0 0
        %9344 = vmatpush1.bf16.msra.mxu0 %v9325
        %9345 = vmatprep.subr.bf16.mxu0 0
        %9346 = vmatpush1.bf16.msra.mxu0 %v9324
        %9347 = vmatprep.subr.bf16.mxu0 0
        %9348 = vmatpush1.bf16.msra.mxu0 %v9323
        %9349 = vmatprep.subr.bf16.mxu0 0
        %9350 = vmatpush1.bf16.msra.mxu0 %v9322
        %9351 = vmatprep.subr.bf16.mxu0 0
        %9352 = vmatpush1.bf16.msra.mxu0 %v9321
        %9353 = vmatprep.subr.bf16.mxu0 0
        %9354 = vmatpush2.bf16.msra.mxu0 0
        %9355 = vmatprep.subr.bf16.mxu0 0
        %9356 = vmatpush2.bf16.msra.mxu0 0
        %9357 = vmatprep.subr.bf16.mxu0 0
        %9358 = vmatpush2.bf16.msra.mxu0 0
        %9359 = vmatprep.subr.bf16.mxu0 0
        %9360 = vmatpush2.bf16.msra.mxu0 0
        %9361 = vmatprep.subr.bf16.mxu0 0
        %9362 = vmatpush2.bf16.msra.mxu0 0
        %9363 = vmatprep.subr.bf16.mxu0 0
        %9364 = vmatpush2.bf16.msra.mxu0 0
        %9365 = vmatprep.subr.bf16.mxu0 0
        %9366 = vmatpush2.bf16.msra.mxu0 0
        %9367 = vmatprep.subr.bf16.mxu0 0
        %9368 = vmatpush2.bf16.msra.mxu0 0
        %9369 = vmatprep.mubr.bf16.mxu0 0
        %9370 = vmatmul.mubr.bf16.gmra.mxu0 %v9250
        %v9371 = vpop.f32.mrf.mxu0
        %v9372 = vadd.f32 %v9287, %v9371
        %v9373 = vpop.f32.mrf.mxu0
        %v9374 = vpop.f32.mrf.mxu0
        %v9375 = vadd.f32 %v9287, %v9374
        %v9376 = vpop.f32.mrf.mxu0
        %9377 = vmatprep.mubr.bf16.mxu0 0
        %9378 = vmatmul.mubr.bf16.gmra.mxu0 %v9251
        %v9379 = vpop.f32.mrf.mxu0
        %v9380 = vadd.f32 %v9287, %v9379
        %v9381 = vpop.f32.mrf.mxu0
        %v9382 = vpop.f32.mrf.mxu0
        %v9383 = vadd.f32 %v9287, %v9382
        %v9384 = vpop.f32.mrf.mxu0
        %9385 = vmatprep.mubr.bf16.mxu0 0
        %9386 = vmatmul.mubr.bf16.gmra.mxu0 %v9252
        %v9387 = vpop.f32.mrf.mxu0
        %v9388 = vadd.f32 %v9287, %v9387
        %v9389 = vpop.f32.mrf.mxu0
        %v9390 = vpop.f32.mrf.mxu0
        %v9391 = vadd.f32 %v9287, %v9390
        %v9392 = vpop.f32.mrf.mxu0
        %9393 = vmatprep.mubr.bf16.mxu0 0
        %9394 = vmatmul.mubr.bf16.gmra.mxu0 %v9253
        %v9395 = vpop.f32.mrf.mxu0
        %v9396 = vadd.f32 %v9287, %v9395
        %v9397 = vpop.f32.mrf.mxu0
        %v9398 = vpop.f32.mrf.mxu0
        %v9399 = vadd.f32 %v9287, %v9398
        %v9400 = vpop.f32.mrf.mxu0
        %9401 = vmatprep.mubr.bf16.mxu0 0
        %9402 = vmatmul.mubr.bf16.gmra.mxu0 %v9254
        %v9403 = vpop.f32.mrf.mxu0
        %v9404 = vadd.f32 %v9287, %v9403
        %v9405 = vpop.f32.mrf.mxu0
        %v9406 = vpop.f32.mrf.mxu0
        %v9407 = vadd.f32 %v9287, %v9406
        %v9408 = vpop.f32.mrf.mxu0
        %9409 = vmatprep.mubr.bf16.mxu0 0
        %9410 = vmatmul.mubr.bf16.gmra.mxu0 %v9255
        %v9411 = vpop.f32.mrf.mxu0
        %v9412 = vadd.f32 %v9287, %v9411
        %v9413 = vpop.f32.mrf.mxu0
        %v9414 = vpop.f32.mrf.mxu0
        %v9415 = vadd.f32 %v9287, %v9414
        %v9416 = vpop.f32.mrf.mxu0
        %9417 = vmatprep.mubr.bf16.mxu0 0
        %9418 = vmatmul.mubr.bf16.gmra.mxu0 %v9256
        %v9419 = vpop.f32.mrf.mxu0
        %v9420 = vadd.f32 %v9287, %v9419
        %v9421 = vpop.f32.mrf.mxu0
        %v9422 = vpop.f32.mrf.mxu0
        %v9423 = vadd.f32 %v9287, %v9422
        %v9424 = vpop.f32.mrf.mxu0
        %9425 = vmatprep.mubr.bf16.mxu0 0
        %9426 = vmatmul.mubr.bf16.gmra.mxu0 %v9257
        %v9427 = vpop.f32.mrf.mxu0
        %v9428 = vadd.f32 %v9287, %v9427
        %v9429 = vpop.f32.mrf.mxu0
        %v9430 = vpop.f32.mrf.mxu0
        %v9431 = vadd.f32 %v9287, %v9430
        %v9432 = vpop.f32.mrf.mxu0
        %9433 = vmatprep.mubr.bf16.mxu0 0
        %9434 = vmatmul.mubr.bf16.gmra.mxu0 %v9258
        %v9435 = vpop.f32.mrf.mxu0
        %v9436 = vadd.f32 %v9287, %v9435
        %v9437 = vpop.f32.mrf.mxu0
        %v9438 = vpop.f32.mrf.mxu0
        %v9439 = vadd.f32 %v9287, %v9438
        %v9440 = vpop.f32.mrf.mxu0
        %9441 = vmatprep.mubr.bf16.mxu0 0
        %9442 = vmatmul.mubr.bf16.gmra.mxu0 %v9259
        %v9443 = vpop.f32.mrf.mxu0
        %v9444 = vadd.f32 %v9287, %v9443
        %v9445 = vpop.f32.mrf.mxu0
        %v9446 = vpop.f32.mrf.mxu0
        %v9447 = vadd.f32 %v9287, %v9446
        %v9448 = vpop.f32.mrf.mxu0
        %9449 = vmatprep.mubr.bf16.mxu0 0
        %9450 = vmatmul.mubr.bf16.gmra.mxu0 %v9260
        %v9451 = vpop.f32.mrf.mxu0
        %v9452 = vadd.f32 %v9287, %v9451
        %v9453 = vpop.f32.mrf.mxu0
        %v9454 = vpop.f32.mrf.mxu0
        %v9455 = vadd.f32 %v9287, %v9454
        %v9456 = vpop.f32.mrf.mxu0
        %9457 = vmatprep.mubr.bf16.mxu0 0
        %9458 = vmatmul.mubr.bf16.gmra.mxu0 %v9261
        %v9459 = vpop.f32.mrf.mxu0
        %v9460 = vadd.f32 %v9287, %v9459
        %v9461 = vpop.f32.mrf.mxu0
        %v9462 = vpop.f32.mrf.mxu0
        %v9463 = vadd.f32 %v9287, %v9462
        %v9464 = vpop.f32.mrf.mxu0
        %9465 = vmatprep.mubr.bf16.mxu0 0
        %9466 = vmatmul.mubr.bf16.gmra.mxu0 %v9262
        %v9467 = vpop.f32.mrf.mxu0
        %v9468 = vadd.f32 %v9287, %v9467
        %v9469 = vpop.f32.mrf.mxu0
        %v9470 = vpop.f32.mrf.mxu0
        %v9471 = vadd.f32 %v9287, %v9470
        %v9472 = vpop.f32.mrf.mxu0
        %9473 = vmatprep.mubr.bf16.mxu0 0
        %9474 = vmatmul.mubr.bf16.gmra.mxu0 %v9263
        %v9475 = vpop.f32.mrf.mxu0
        %v9476 = vadd.f32 %v9287, %v9475
        %v9477 = vpop.f32.mrf.mxu0
        %v9478 = vpop.f32.mrf.mxu0
        %v9479 = vadd.f32 %v9287, %v9478
        %v9480 = vpop.f32.mrf.mxu0
        %9481 = vmatprep.mubr.bf16.mxu0 0
        %9482 = vmatmul.mubr.bf16.gmra.mxu0 %v9264
        %v9483 = vpop.f32.mrf.mxu0
        %v9484 = vadd.f32 %v9287, %v9483
        %v9485 = vpop.f32.mrf.mxu0
        %v9486 = vpop.f32.mrf.mxu0
        %v9487 = vadd.f32 %v9287, %v9486
        %v9488 = vpop.f32.mrf.mxu0
        %9489 = vmatprep.mubr.bf16.mxu0 0
        %9490 = vmatmul.mubr.bf16.gmra.mxu0 %v9265
        %v9491 = vpop.f32.mrf.mxu0
        %v9492 = vadd.f32 %v9287, %v9491
        %v9493 = vpop.f32.mrf.mxu0
        %v9494 = vpop.f32.mrf.mxu0
        %v9495 = vadd.f32 %v9287, %v9494
        %v9496 = vpop.f32.mrf.mxu0
        %9497 = vdwg.mxu0
        %v9498 = vadd.f32 %v9372, %v415
        %v9499 = vadd.f32 %v9375, %v416
        %v9500 = vadd.f32 %v9380, %v417
        %v9501 = vadd.f32 %v9383, %v418
        %v9502 = vadd.f32 %v9388, %v419
        %v9503 = vadd.f32 %v9391, %v420
        %v9504 = vadd.f32 %v9396, %v421
        %v9505 = vadd.f32 %v9399, %v422
        %v9506 = vadd.f32 %v9404, %v423
        %v9507 = vadd.f32 %v9407, %v424
        %v9508 = vadd.f32 %v9412, %v425
        %v9509 = vadd.f32 %v9415, %v426
        %v9510 = vadd.f32 %v9420, %v427
        %v9511 = vadd.f32 %v9423, %v428
        %v9512 = vadd.f32 %v9428, %v429
        %v9513 = vadd.f32 %v9431, %v430
        %v9514 = vadd.f32 %v9436, %v431
        %v9515 = vadd.f32 %v9439, %v432
        %v9516 = vadd.f32 %v9444, %v433
        %v9517 = vadd.f32 %v9447, %v434
        %v9518 = vadd.f32 %v9452, %v435
        %v9519 = vadd.f32 %v9455, %v436
        %v9520 = vadd.f32 %v9460, %v437
        %v9521 = vadd.f32 %v9463, %v438
        %v9522 = vadd.f32 %v9468, %v439
        %v9523 = vadd.f32 %v9471, %v440
        %v9524 = vadd.f32 %v9476, %v441
        %v9525 = vadd.f32 %v9479, %v442
        %v9526 = vadd.f32 %v9484, %v443
        %v9527 = vadd.f32 %v9487, %v444
        %v9528 = vadd.f32 %v9492, %v445
        %v9529 = vadd.f32 %v9495, %v446
        %9530 = vst [vmem:[%s293] sm:$0xff] %v9498
        %9531 = vst [vmem:[%s293 + $0x8] sm:$0xff] %v9499
        %9532 = vst [vmem:[%s293 + $0x10] sm:$0xff] %v9500
        %9533 = vst [vmem:[%s293 + $0x18] sm:$0xff] %v9501
        %9534 = vst [vmem:[%s293 + $0x20] sm:$0xff] %v9502
        %9535 = vst [vmem:[%s293 + $0x28] sm:$0xff] %v9503
        %9536 = vst [vmem:[%s293 + $0x30] sm:$0xff] %v9504
        %9537 = vst [vmem:[%s293 + $0x38] sm:$0xff] %v9505
        %9538 = vst [vmem:[%s293 + $0x40] sm:$0xff] %v9506
        %9539 = vst [vmem:[%s293 + $0x48] sm:$0xff] %v9507
        %9540 = vst [vmem:[%s293 + $0x50] sm:$0xff] %v9508
        %9541 = vst [vmem:[%s293 + $0x58] sm:$0xff] %v9509
        %9542 = vst [vmem:[%s293 + $0x60] sm:$0xff] %v9510
        %9543 = vst [vmem:[%s293 + $0x68] sm:$0xff] %v9511
        %9544 = vst [vmem:[%s293 + $0x70] sm:$0xff] %v9512
        %9545 = vst [vmem:[%s293 + $0x78] sm:$0xff] %v9513
        %9546 = vst [vmem:[%s293 + $0x80] sm:$0xff] %v9514
        %9547 = vst [vmem:[%s293 + $0x88] sm:$0xff] %v9515
        %9548 = vst [vmem:[%s293 + $0x90] sm:$0xff] %v9516
        %9549 = vst [vmem:[%s293 + $0x98] sm:$0xff] %v9517
        %9550 = vst [vmem:[%s293 + $0xa0] sm:$0xff] %v9518
        %9551 = vst [vmem:[%s293 + $0xa8] sm:$0xff] %v9519
        %9552 = vst [vmem:[%s293 + $0xb0] sm:$0xff] %v9520
        %9553 = vst [vmem:[%s293 + $0xb8] sm:$0xff] %v9521
        %9554 = vst [vmem:[%s293 + $0xc0] sm:$0xff] %v9522
        %9555 = vst [vmem:[%s293 + $0xc8] sm:$0xff] %v9523
        %9556 = vst [vmem:[%s293 + $0xd0] sm:$0xff] %v9524
        %9557 = vst [vmem:[%s293 + $0xd8] sm:$0xff] %v9525
        %9558 = vst [vmem:[%s293 + $0xe0] sm:$0xff] %v9526
        %9559 = vst [vmem:[%s293 + $0xe8] sm:$0xff] %v9527
        %9560 = vst [vmem:[%s293 + $0xf0] sm:$0xff] %v9528
        %9561 = vst [vmem:[%s293 + $0xf8] sm:$0xff] %v9529
        %p9562 = scmp.lt.s32.totalorder %s19, 1
        %s9563 = scalar_select %p9562, %s19, 1
        %s9564 = smul.addr %s9563, 32
        %s9565 = smul.addr %s9564, 8
        %s9566 = scalar_lea.vmem %s7, %s9565
        // Predicated region
        $region53: #{resblock_forward.1} parent=47 // pred_check
          %p9567 = pneg %p189
        $region54: #{resblock_forward.1} parent=47 // pred_check_branch
          %9569 = sbr.rel (%p9567) target = $region56
        $region55: #{resblock_forward.1} parent=47 // pred_region
          _
        $region56: #{resblock_forward.1} parent=47 // pred_fallthru
          _
      $region48: #{resblock_forward.1} parent=5 // pred_fallthru
        _
      %p9570 = scmp.le.s32.totalorder 2, %s14
      // Predicated region
      $region57: #{resblock_forward.1} parent=5 // pred_check
        %p9571 = pneg %p9570
      $region58: #{resblock_forward.1} parent=5 // pred_check_branch
        %9573 = sbr.rel (%p9571) target = $region60
      $region59: #{resblock_forward.1} parent=5 // pred_region
        %s9574 = ssub.s32 %s14, 2
        // Predicated region
        $region61: #{resblock_forward.1} parent=59 // pred_check
          %p9575 = pneg %p195
        $region62: #{resblock_forward.1} parent=59 // pred_check_branch
          %9577 = sbr.rel (%p9575) target = $region64
        $region63: #{resblock_forward.1} parent=59 // pred_region
          %p9578 = scmp.lt.s32.totalorder %s20, 1
          %s9579 = scalar_select %p9578, %s20, 1
          %s9580 = smul.addr %s9579, 32
          %s9581 = smul.addr %s9580, 8
          %s9582 = scalar_lea.vmem %s7, %s9581
        $region64: #{resblock_forward.1} parent=59 // pred_fallthru
          _
      $region60: #{resblock_forward.1} parent=5 // pred_fallthru
        _
    $region6: #{resblock_forward.1} parent=1 // loop_footer
      %s18 = sadd.s32 1, %s14
    $region7: #{resblock_forward.1} parent=1 // loop_footer_branch
      %13 = sbr.rel target = $region3
    $region8: #{resblock_forward.1} parent=1 // loop_exit
      _
    %9583 = vsyncpa [#allocation4], 1
    %s9584 = scalar_lea.sflag [#allocation4], 1
    %9585 = vsyncpa %s9584, 1

</llo_original>
